<compile_context>
chip_gen: v7x
topology: tpu7x:2x2x1
jax: 0.10.0
libtpu: 0.0.40
codegen_flags: <defaults>
</compile_context>

<pallas_src>
import math

import jax
import jax.numpy as jnp
from jax import lax
from jax.experimental import pallas as pl
from jax.experimental.pallas import tpu as pltpu


EMBED_DIM = 256
NUM_HEADS = 8
HEAD_DIM = EMBED_DIM // NUM_HEADS
OUTPUT_DIM = 128
BN_EPS = 1e-5

_VMEM = pl.BlockSpec(memory_space=pltpu.MemorySpace.VMEM)


# ---------------------------------------------------------------------------
# Fused kernel
# ---------------------------------------------------------------------------
def _make_fused_kernel(batch, seq_len):
    B, L = batch, seq_len
    R = B * L                      # rows of the (B*L, C) token matrix
    H, DH, E = NUM_HEADS, HEAD_DIM, EMBED_DIM
    scale = 1.0 / math.sqrt(DH)

    def kernel(*refs):
        (x_ref, mfirst_ref, mlast_ref, pool_ref, gr_ref, gc_ref,
         c1w1, c1b1, c1w2, c1b2, c1wd, c1bd, c1s, c1t,
         c2w1, c2b1, c2w2, c2b2, c2wd, c2bd, c2s, c2t,
         c3w1, c3b1, c3w2, c3b2, c3wd, c3bd, c3s, c3t,
         a1wqkv, a1bqkv, a1wo, a1bo,
         a2wqkv, a2bqkv, a2wo, a2bo,
         fcw, fcb, out_ref) = refs

        mfirst = mfirst_ref[...]     # (R, 1) f32: 0.0 where pos == 0,   else 1.0
        mlast = mlast_ref[...]       # (R, 1) f32: 0.0 where pos == L-1, else 1.0

        # ---- k=3 conv helpers: shifted copies of the (R, C) token matrix ----
        def shift_prev(h):           # row r <- h[r-1]; zero at batch start
            z = jnp.zeros((1, h.shape[1]), jnp.float32)
            return jnp.concatenate([z, h[:-1, :]], axis=0) * mfirst

        def shift_next(h):           # row r <- h[r+1]; zero at batch end
            z = jnp.zeros((1, h.shape[1]), jnp.float32)
            return jnp.concatenate([h[1:, :], z], axis=0) * mlast

        def conv3(h, wcat, b):
            # im2col: single (R, 3*Cin) @ (3*Cin, Cout) matmul (taps stacked in K).
            cols = jnp.concatenate([shift_prev(h), h, shift_next(h)], axis=1)
            return jnp.dot(cols, wcat, preferred_element_type=jnp.float32) + b

        def residual_block(h, w1, b1, w2, b2, wd, bd, bns, bnt):
            cin = h.shape[1]
            if cin == 1:
                # Cin == 1: K=1 "matmuls" done as VPU broadcast multiply-adds.
                w1v = w1[...]                                       # (3, Cout)
                a = (shift_prev(h) * w1v[0:1, :] + h * w1v[1:2, :]
                     + shift_next(h) * w1v[2:3, :] + b1[...])
                res = h * wd[...] + bd[...]                         # 1x1 downsample
            else:
                a = conv3(h, w1[...], b1[...])
                res = jnp.dot(h, wd[...],
                              preferred_element_type=jnp.float32) + bd[...]
            a = jnp.maximum(a, 0.0)                                 # relu(conv1)
            c2 = conv3(a, w2[...], b2[...])                         # conv2
            y = (c2 + res) * bns[...] + bnt[...]                    # BatchNorm (eval)
            return jnp.maximum(y, 0.0)

        # ---- multi-head self-attention, heads packed into rows ----
        block_mask = gr_ref[...] == gc_ref[...]      # (H*R, H*R) block-diagonal

        def attention(x, wqkv, bqkv, wo, bo):
            # Fused Q/K/V projection: one (R, E) @ (E, 3E) MXU matmul.
            qkv = (jnp.dot(x, wqkv[...], preferred_element_type=jnp.float32)
                   + bqkv[...])
            q = qkv[:, 0:E] * scale              # 128-aligned lane slices
            k = qkv[:, E:2 * E]
            v = qkv[:, 2 * E:3 * E]
            # pack heads along rows: (H*R, DH); each L-row chunk is one (head, batch)
            qp = jnp.concatenate([q[:, i * DH:(i + 1) * DH] for i in range(H)], axis=0)
            kp = jnp.concatenate([k[:, i * DH:(i + 1) * DH] for i in range(H)], axis=0)
            vp = jnp.concatenate([v[:, i * DH:(i + 1) * DH] for i in range(H)], axis=0)
            s = lax.dot_general(qp, kp, (((1,), (1,)), ((), ())),
                                preferred_element_type=jnp.float32)   # (H*R, H*R)
            s = jnp.where(block_mask, s, -1e30)
            s = s - jnp.max(s, axis=-1, keepdims=True)
            p = jnp.exp(s)
            p = p * pl.reciprocal(jnp.sum(p, axis=-1, keepdims=True), approx=True)
            o = jnp.dot(p, vp, preferred_element_type=jnp.float32)     # (H*R, DH)
            # unpack heads back to lanes: (R, E), heads concatenated in order
            o = jnp.concatenate([o[i * R:(i + 1) * R, :] for i in range(H)], axis=1)
            o = jnp.dot(o, wo[...], preferred_element_type=jnp.float32) + bo[...]
            return jnp.maximum(o + x, 0.0)            # residual add + relu

        h = x_ref[...]                                                      # (R, 1)
        h = residual_block(h, c1w1, c1b1, c1w2, c1b2, c1wd, c1bd, c1s, c1t)  # (R, 64)
        h = residual_block(h, c2w1, c2b1, c2w2, c2b2, c2wd, c2bd, c2s, c2t)  # (R, 128)
        h = residual_block(h, c3w1, c3b1, c3w2, c3b2, c3wd, c3bd, c3s, c3t)  # (R, 256)
        h = attention(h, a1wqkv, a1bqkv, a1wo, a1bo)
        h = attention(h, a2wqkv, a2bqkv, a2wo, a2bo)

        # adaptive_avg_pool1d(., 1): per-batch mean over L positions as one
        # lane-dense MXU matmul with the precomputed (B, R) pooling matrix.
        pooled = jnp.dot(pool_ref[...], h, preferred_element_type=jnp.float32)  # (B, E)
        out_ref[...] = (jnp.dot(pooled, fcw[...],
                                preferred_element_type=jnp.float32) + fcb[...])

    return kernel


# ---------------------------------------------------------------------------
# Forward wrapper: one fused pallas_call, everything in VMEM
# ---------------------------------------------------------------------------
@jax.jit
def cnn_attention_forward(x, params):
    """x: (B, L) float32  ->  (B, OUTPUT_DIM) float32."""
    B, L = x.shape
    R = B * L
    HR = NUM_HEADS * R

    # Token layout: (B, L) -> (B*L, 1) rows (channels-last, batch folded into M).
    x_rows = x.reshape(R, 1).astype(jnp.float32)

    # Tiny precomputed helpers (avoid int div/mod & selects inside the kernel).
    pos = jnp.arange(R, dtype=jnp.int32) % L
    mfirst = (pos != 0).astype(jnp.float32).reshape(R, 1)        # conv left-pad mask
    mlast = (pos != L - 1).astype(jnp.float32).reshape(R, 1)     # conv right-pad mask
    pool = jnp.repeat(jnp.eye(B, dtype=jnp.float32), L, axis=1) / float(L)  # (B, R)
    gid = jnp.arange(HR, dtype=jnp.int32) // L    # (head, batch) group per packed row
    gr = gid.reshape(HR, 1)
    gc = gid.reshape(1, HR)

    flat = [x_rows, mfirst, mlast, pool, gr, gc]
    for blk in params["blocks"]:
        flat += [blk["w1"], blk["b1"], blk["w2"], blk["b2"],
                 blk["wd"], blk["bd"], blk["bn_scale"], blk["bn_shift"]]
    for att in params["attn"]:
        # Fuse Q/K/V projection weights once, outside the kernel.
        wqkv = jnp.concatenate([att["wq"], att["wk"], att["wv"]], axis=1)  # (E, 3E)
        bqkv = jnp.concatenate([att["bq"], att["bk"], att["bv"]], axis=1)  # (1, 3E)
        flat += [wqkv, bqkv, att["wo"], att["bo"]]
    flat += [params["fc_w"], params["fc_b"]]

    out_dim = params["fc_w"].shape[1]
    # Entire working set (~4 MB weights + <1 MB activations) fits comfortably in
    # VMEM on v5e/v6e (128 MiB) and v7x (64 MiB), so no grid is needed here.
    # TODO(synk): for large B or L, add a grid over batch tiles with
    # dimension_semantics=("parallel",) so v7x's two TensorCores split the work.
    return pl.pallas_call(
        _make_fused_kernel(B, L),
        out_shape=jax.ShapeDtypeStruct((B, out_dim), jnp.float32),
        in_specs=[_VMEM] * len(flat),
        out_specs=_VMEM,
    )(*flat)


# ---------------------------------------------------------------------------
# Deterministic parameter initialization (kernel-ready layouts)
# ---------------------------------------------------------------------------
def _init_resblock(key, cin, cout, s=0.05):
    k1, k2, k3, k4, k5, k6 = jax.random.split(key, 6)
    # Conv1d weights pre-transposed for im2col matmuls:
    #   PyTorch (Cout, Cin, K) -> here (K*Cin, Cout), tap-major rows
    #   (row k*Cin + i == tap k / input channel i), i.e. W_pt.transpose(2,1,0).reshape(...)
    w1 = jax.random.normal(k1, (3 * cin, cout), jnp.float32) * s
    w2 = jax.random.normal(k3, (3 * cout, cout), jnp.float32) * s
    wd = jax.random.normal(k5, (cin, cout), jnp.float32) * s        # 1x1 downsample
    # BatchNorm1d eval-mode (running mean=0, var=1) folded to per-channel scale/shift.
    # TODO(synk): training-mode batch statistics are not implemented (inference only).
    gamma = jnp.ones((1, cout), jnp.float32)
    beta = jnp.zeros((1, cout), jnp.float32)
    mean = jnp.zeros((1, cout), jnp.float32)
    var = jnp.ones((1, cout), jnp.float32)
    bn_scale = gamma * lax.rsqrt(var + BN_EPS)
    bn_shift = beta - mean * bn_scale
    return dict(
        w1=w1, b1=jax.random.normal(k2, (1, cout), jnp.float32) * s,
        w2=w2, b2=jax.random.normal(k4, (1, cout), jnp.float32) * s,
        wd=wd, bd=jax.random.normal(k6, (1, cout), jnp.float32) * s,
        bn_scale=bn_scale, bn_shift=bn_shift)


def _init_mha(key, e=EMBED_DIM, s=0.05):
    ks = jax.random.split(key, 8)
    # (E, E) projection weights stored input-major ("x @ W"); head h owns output
    # channels [h*HEAD_DIM, (h+1)*HEAD_DIM), matching nn.MultiheadAttention's
    # in_proj_weight.T slices; wo == out_proj.weight.T.
    return dict(
        wq=jax.random.normal(ks[0], (e, e), jnp.float32) * s,
        bq=jax.random.normal(ks[1], (1, e), jnp.float32) * s,
        wk=jax.random.normal(ks[2], (e, e), jnp.float32) * s,
        bk=jax.random.normal(ks[3], (1, e), jnp.float32) * s,
        wv=jax.random.normal(ks[4], (e, e), jnp.float32) * s,
        bv=jax.random.normal(ks[5], (1, e), jnp.float32) * s,
        wo=jax.random.normal(ks[6], (e, e), jnp.float32) * s,
        bo=jax.random.normal(ks[7], (1, e), jnp.float32) * s)


def init_params(key, output_dim=OUTPUT_DIM):
    k1, k2, k3, ka1, ka2, kf1, kf2 = jax.random.split(key, 7)
    return dict(
        blocks=[_init_resblock(k1, 1, 64),
                _init_resblock(k2, 64, 128),
                _init_resblock(k3, 128, 256)],
        attn=[_init_mha(ka1), _init_mha(ka2)],
        fc_w=jax.random.normal(kf1, (EMBED_DIM, output_dim), jnp.float32) * 0.05,
        fc_b=jax.random.normal(kf2, (1, output_dim), jnp.float32) * 0.05)


if __name__ == "__main__":
    key = jax.random.PRNGKey(0)
    kx, kp = jax.random.split(key)

    B, L = 2, 16
    x = jax.random.normal(kx, (B, L), jnp.float32)
    params = init_params(kp)

    out = cnn_attention_forward(x, params)
    out = jax.block_until_ready(out)
    assert out.shape == (B, OUTPUT_DIM) and out.dtype == jnp.float32
    assert bool(jnp.all(jnp.isfinite(out)))
    print("KERNEL_OK")
</pallas_src>

<mosaic_0001>
module attributes {stable_mosaic.version = 11 : i64} {
  func.func @kernel(%arg0: memref<32x1xf32, #tpu.memory_space<vmem>>, %arg1: memref<32x1xf32, #tpu.memory_space<vmem>>, %arg2: memref<32x1xf32, #tpu.memory_space<vmem>>, %arg3: memref<2x32xf32, #tpu.memory_space<vmem>>, %arg4: memref<256x1xi32, #tpu.memory_space<vmem>>, %arg5: memref<1x256xi32, #tpu.memory_space<vmem>>, %arg6: memref<3x64xf32, #tpu.memory_space<vmem>>, %arg7: memref<1x64xf32, #tpu.memory_space<vmem>>, %arg8: memref<192x64xf32, #tpu.memory_space<vmem>>, %arg9: memref<1x64xf32, #tpu.memory_space<vmem>>, %arg10: memref<1x64xf32, #tpu.memory_space<vmem>>, %arg11: memref<1x64xf32, #tpu.memory_space<vmem>>, %arg12: memref<1x64xf32, #tpu.memory_space<vmem>>, %arg13: memref<1x64xf32, #tpu.memory_space<vmem>>, %arg14: memref<192x128xf32, #tpu.memory_space<vmem>>, %arg15: memref<1x128xf32, #tpu.memory_space<vmem>>, %arg16: memref<384x128xf32, #tpu.memory_space<vmem>>, %arg17: memref<1x128xf32, #tpu.memory_space<vmem>>, %arg18: memref<64x128xf32, #tpu.memory_space<vmem>>, %arg19: memref<1x128xf32, #tpu.memory_space<vmem>>, %arg20: memref<1x128xf32, #tpu.memory_space<vmem>>, %arg21: memref<1x128xf32, #tpu.memory_space<vmem>>, %arg22: memref<384x256xf32, #tpu.memory_space<vmem>>, %arg23: memref<1x256xf32, #tpu.memory_space<vmem>>, %arg24: memref<768x256xf32, #tpu.memory_space<vmem>>, %arg25: memref<1x256xf32, #tpu.memory_space<vmem>>, %arg26: memref<128x256xf32, #tpu.memory_space<vmem>>, %arg27: memref<1x256xf32, #tpu.memory_space<vmem>>, %arg28: memref<1x256xf32, #tpu.memory_space<vmem>>, %arg29: memref<1x256xf32, #tpu.memory_space<vmem>>, %arg30: memref<256x768xf32, #tpu.memory_space<vmem>>, %arg31: memref<1x768xf32, #tpu.memory_space<vmem>>, %arg32: memref<256x256xf32, #tpu.memory_space<vmem>>, %arg33: memref<1x256xf32, #tpu.memory_space<vmem>>, %arg34: memref<256x768xf32, #tpu.memory_space<vmem>>, %arg35: memref<1x768xf32, #tpu.memory_space<vmem>>, %arg36: memref<256x256xf32, #tpu.memory_space<vmem>>, %arg37: memref<1x256xf32, #tpu.memory_space<vmem>>, %arg38: memref<256x128xf32, #tpu.memory_space<vmem>>, %arg39: memref<1x128xf32, #tpu.memory_space<vmem>>, %arg40: memref<2x128xf32, #tpu.memory_space<vmem>>) attributes {dimension_semantics = [], scalar_prefetch = 0 : i64, scratch_operands = 0 : i64, tpu.core_type = #tpu.core_type<tc>} {
    %c0 = arith.constant 0 : index
    %c0_0 = arith.constant 0 : index
    %0 = vector.load %arg1[%c0, %c0_0] : memref<32x1xf32, #tpu.memory_space<vmem>>, vector<32x1xf32>
    %c0_1 = arith.constant 0 : index
    %c0_2 = arith.constant 0 : index
    %1 = vector.load %arg2[%c0_1, %c0_2] : memref<32x1xf32, #tpu.memory_space<vmem>>, vector<32x1xf32>
    %c0_3 = arith.constant 0 : index
    %c0_4 = arith.constant 0 : index
    %2 = vector.load %arg4[%c0_3, %c0_4] : memref<256x1xi32, #tpu.memory_space<vmem>>, vector<256x1xi32>
    %c0_5 = arith.constant 0 : index
    %c0_6 = arith.constant 0 : index
    %3 = vector.load %arg5[%c0_5, %c0_6] : memref<1x256xi32, #tpu.memory_space<vmem>>, vector<1x256xi32>
    %4 = vector.broadcast %2 : vector<256x1xi32> to vector<256x256xi32>
    %5 = vector.broadcast %3 : vector<1x256xi32> to vector<256x256xi32>
    %6 = arith.cmpi eq, %4, %5 : vector<256x256xi32>
    %c0_7 = arith.constant 0 : index
    %c0_8 = arith.constant 0 : index
    %7 = vector.load %arg0[%c0_7, %c0_8] : memref<32x1xf32, #tpu.memory_space<vmem>>, vector<32x1xf32>
    %c0_9 = arith.constant 0 : index
    %c0_10 = arith.constant 0 : index
    %8 = vector.load %arg6[%c0_9, %c0_10] : memref<3x64xf32, #tpu.memory_space<vmem>>, vector<3x64xf32>
    %cst = arith.constant 0.000000e+00 : f32
    %9 = vector.broadcast %cst : f32 to vector<1x1xf32>
    %10 = vector.extract_strided_slice %7 {offsets = [0, 0], sizes = [31, 1], strides = [1, 1]} : vector<32x1xf32> to vector<31x1xf32>
    %11 = tpu.concatenate %9, %10 in 0 : vector<1x1xf32>, vector<31x1xf32> -> vector<32x1xf32>
    %12 = arith.mulf %11, %0 : vector<32x1xf32>
    %13 = vector.extract_strided_slice %8 {offsets = [0, 0], sizes = [1, 64], strides = [1, 1]} : vector<3x64xf32> to vector<1x64xf32>
    %14 = vector.broadcast %12 : vector<32x1xf32> to vector<32x64xf32>
    %15 = vector.broadcast %13 : vector<1x64xf32> to vector<32x64xf32>
    %16 = arith.mulf %14, %15 : vector<32x64xf32>
    %17 = vector.extract_strided_slice %8 {offsets = [1, 0], sizes = [1, 64], strides = [1, 1]} : vector<3x64xf32> to vector<1x64xf32>
    %18 = vector.broadcast %7 : vector<32x1xf32> to vector<32x64xf32>
    %19 = vector.broadcast %17 : vector<1x64xf32> to vector<32x64xf32>
    %20 = arith.mulf %18, %19 : vector<32x64xf32>
    %21 = arith.addf %16, %20 : vector<32x64xf32>
    %cst_11 = arith.constant 0.000000e+00 : f32
    %22 = vector.broadcast %cst_11 : f32 to vector<1x1xf32>
    %23 = vector.extract_strided_slice %7 {offsets = [1, 0], sizes = [31, 1], strides = [1, 1]} : vector<32x1xf32> to vector<31x1xf32>
    %24 = tpu.concatenate %23, %22 in 0 : vector<31x1xf32>, vector<1x1xf32> -> vector<32x1xf32>
    %25 = arith.mulf %24, %1 : vector<32x1xf32>
    %26 = vector.extract_strided_slice %8 {offsets = [2, 0], sizes = [1, 64], strides = [1, 1]} : vector<3x64xf32> to vector<1x64xf32>
    %27 = vector.broadcast %25 : vector<32x1xf32> to vector<32x64xf32>
    %28 = vector.broadcast %26 : vector<1x64xf32> to vector<32x64xf32>
    %29 = arith.mulf %27, %28 : vector<32x64xf32>
    %30 = arith.addf %21, %29 : vector<32x64xf32>
    %c0_12 = arith.constant 0 : index
    %c0_13 = arith.constant 0 : index
    %31 = vector.load %arg7[%c0_12, %c0_13] : memref<1x64xf32, #tpu.memory_space<vmem>>, vector<1x64xf32>
    %32 = vector.broadcast %31 : vector<1x64xf32> to vector<32x64xf32>
    %33 = arith.addf %30, %32 : vector<32x64xf32>
    %c0_14 = arith.constant 0 : index
    %c0_15 = arith.constant 0 : index
    %34 = vector.load %arg10[%c0_14, %c0_15] : memref<1x64xf32, #tpu.memory_space<vmem>>, vector<1x64xf32>
    %35 = vector.broadcast %7 : vector<32x1xf32> to vector<32x64xf32>
    %36 = vector.broadcast %34 : vector<1x64xf32> to vector<32x64xf32>
    %37 = arith.mulf %35, %36 : vector<32x64xf32>
    %c0_16 = arith.constant 0 : index
    %c0_17 = arith.constant 0 : index
    %38 = vector.load %arg11[%c0_16, %c0_17] : memref<1x64xf32, #tpu.memory_space<vmem>>, vector<1x64xf32>
    %39 = vector.broadcast %38 : vector<1x64xf32> to vector<32x64xf32>
    %40 = arith.addf %37, %39 : vector<32x64xf32>
    %cst_18 = arith.constant 0.000000e+00 : f32
    %41 = vector.broadcast %cst_18 : f32 to vector<32x64xf32>
    %42 = arith.maximumf %33, %41 : vector<32x64xf32>
    %c0_19 = arith.constant 0 : index
    %c0_20 = arith.constant 0 : index
    %43 = vector.load %arg8[%c0_19, %c0_20] : memref<192x64xf32, #tpu.memory_space<vmem>>, vector<192x64xf32>
    %c0_21 = arith.constant 0 : index
    %c0_22 = arith.constant 0 : index
    %44 = vector.load %arg9[%c0_21, %c0_22] : memref<1x64xf32, #tpu.memory_space<vmem>>, vector<1x64xf32>
    %cst_23 = arith.constant 0.000000e+00 : f32
    %45 = vector.broadcast %cst_23 : f32 to vector<1x64xf32>
    %46 = vector.extract_strided_slice %42 {offsets = [0, 0], sizes = [31, 64], strides = [1, 1]} : vector<32x64xf32> to vector<31x64xf32>
    %47 = tpu.concatenate %45, %46 in 0 : vector<1x64xf32>, vector<31x64xf32> -> vector<32x64xf32>
    %48 = vector.broadcast %0 : vector<32x1xf32> to vector<32x64xf32>
    %49 = arith.mulf %47, %48 : vector<32x64xf32>
    %cst_24 = arith.constant 0.000000e+00 : f32
    %50 = vector.broadcast %cst_24 : f32 to vector<1x64xf32>
    %51 = vector.extract_strided_slice %42 {offsets = [1, 0], sizes = [31, 64], strides = [1, 1]} : vector<32x64xf32> to vector<31x64xf32>
    %52 = tpu.concatenate %51, %50 in 0 : vector<31x64xf32>, vector<1x64xf32> -> vector<32x64xf32>
    %53 = vector.broadcast %1 : vector<32x1xf32> to vector<32x64xf32>
    %54 = arith.mulf %52, %53 : vector<32x64xf32>
    %55 = tpu.concatenate %49, %42, %54 in 1 : vector<32x64xf32>, vector<32x64xf32>, vector<32x64xf32> -> vector<32x192xf32>
    %cst_25 = arith.constant dense<0.000000e+00> : vector<32x64xf32>
    %56 = tpu.matmul %55, %43, %cst_25 {dimension_numbers = #tpu.dot_dimension_numbers<[1], [0], [0], [1], [0, 0, 1, 1], [], []>} : vector<32x192xf32>, vector<192x64xf32>, vector<32x64xf32> -> vector<32x64xf32>
    %57 = vector.broadcast %44 : vector<1x64xf32> to vector<32x64xf32>
    %58 = arith.addf %56, %57 : vector<32x64xf32>
    %59 = arith.addf %58, %40 : vector<32x64xf32>
    %c0_26 = arith.constant 0 : index
    %c0_27 = arith.constant 0 : index
    %60 = vector.load %arg12[%c0_26, %c0_27] : memref<1x64xf32, #tpu.memory_space<vmem>>, vector<1x64xf32>
    %61 = vector.broadcast %60 : vector<1x64xf32> to vector<32x64xf32>
    %62 = arith.mulf %59, %61 : vector<32x64xf32>
    %c0_28 = arith.constant 0 : index
    %c0_29 = arith.constant 0 : index
    %63 = vector.load %arg13[%c0_28, %c0_29] : memref<1x64xf32, #tpu.memory_space<vmem>>, vector<1x64xf32>
    %64 = vector.broadcast %63 : vector<1x64xf32> to vector<32x64xf32>
    %65 = arith.addf %62, %64 : vector<32x64xf32>
    %cst_30 = arith.constant 0.000000e+00 : f32
    %66 = vector.broadcast %cst_30 : f32 to vector<32x64xf32>
    %67 = arith.maximumf %65, %66 : vector<32x64xf32>
    %c0_31 = arith.constant 0 : index
    %c0_32 = arith.constant 0 : index
    %68 = vector.load %arg14[%c0_31, %c0_32] : memref<192x128xf32, #tpu.memory_space<vmem>>, vector<192x128xf32>
    %c0_33 = arith.constant 0 : index
    %c0_34 = arith.constant 0 : index
    %69 = vector.load %arg15[%c0_33, %c0_34] : memref<1x128xf32, #tpu.memory_space<vmem>>, vector<1x128xf32>
    %cst_35 = arith.constant 0.000000e+00 : f32
    %70 = vector.broadcast %cst_35 : f32 to vector<1x64xf32>
    %71 = vector.extract_strided_slice %67 {offsets = [0, 0], sizes = [31, 64], strides = [1, 1]} : vector<32x64xf32> to vector<31x64xf32>
    %72 = tpu.concatenate %70, %71 in 0 : vector<1x64xf32>, vector<31x64xf32> -> vector<32x64xf32>
    %73 = vector.broadcast %0 : vector<32x1xf32> to vector<32x64xf32>
    %74 = arith.mulf %72, %73 : vector<32x64xf32>
    %cst_36 = arith.constant 0.000000e+00 : f32
    %75 = vector.broadcast %cst_36 : f32 to vector<1x64xf32>
    %76 = vector.extract_strided_slice %67 {offsets = [1, 0], sizes = [31, 64], strides = [1, 1]} : vector<32x64xf32> to vector<31x64xf32>
    %77 = tpu.concatenate %76, %75 in 0 : vector<31x64xf32>, vector<1x64xf32> -> vector<32x64xf32>
    %78 = vector.broadcast %1 : vector<32x1xf32> to vector<32x64xf32>
    %79 = arith.mulf %77, %78 : vector<32x64xf32>
    %80 = tpu.concatenate %74, %67, %79 in 1 : vector<32x64xf32>, vector<32x64xf32>, vector<32x64xf32> -> vector<32x192xf32>
    %cst_37 = arith.constant dense<0.000000e+00> : vector<32x128xf32>
    %81 = tpu.matmul %80, %68, %cst_37 {dimension_numbers = #tpu.dot_dimension_numbers<[1], [0], [0], [1], [0, 0, 1, 1], [], []>} : vector<32x192xf32>, vector<192x128xf32>, vector<32x128xf32> -> vector<32x128xf32>
    %82 = vector.broadcast %69 : vector<1x128xf32> to vector<32x128xf32>
    %83 = arith.addf %81, %82 : vector<32x128xf32>
    %c0_38 = arith.constant 0 : index
    %c0_39 = arith.constant 0 : index
    %84 = vector.load %arg18[%c0_38, %c0_39] : memref<64x128xf32, #tpu.memory_space<vmem>>, vector<64x128xf32>
    %cst_40 = arith.constant dense<0.000000e+00> : vector<32x128xf32>
    %85 = tpu.matmul %67, %84, %cst_40 {dimension_numbers = #tpu.dot_dimension_numbers<[1], [0], [0], [1], [0, 0, 1, 1], [], []>} : vector<32x64xf32>, vector<64x128xf32>, vector<32x128xf32> -> vector<32x128xf32>
    %c0_41 = arith.constant 0 : index
    %c0_42 = arith.constant 0 : index
    %86 = vector.load %arg19[%c0_41, %c0_42] : memref<1x128xf32, #tpu.memory_space<vmem>>, vector<1x128xf32>
    %87 = vector.broadcast %86 : vector<1x128xf32> to vector<32x128xf32>
    %88 = arith.addf %85, %87 : vector<32x128xf32>
    %cst_43 = arith.constant 0.000000e+00 : f32
    %89 = vector.broadcast %cst_43 : f32 to vector<32x128xf32>
    %90 = arith.maximumf %83, %89 : vector<32x128xf32>
    %c0_44 = arith.constant 0 : index
    %c0_45 = arith.constant 0 : index
    %91 = vector.load %arg16[%c0_44, %c0_45] : memref<384x128xf32, #tpu.memory_space<vmem>>, vector<384x128xf32>
    %c0_46 = arith.constant 0 : index
    %c0_47 = arith.constant 0 : index
    %92 = vector.load %arg17[%c0_46, %c0_47] : memref<1x128xf32, #tpu.memory_space<vmem>>, vector<1x128xf32>
    %cst_48 = arith.constant 0.000000e+00 : f32
    %93 = vector.broadcast %cst_48 : f32 to vector<1x128xf32>
    %94 = vector.extract_strided_slice %90 {offsets = [0, 0], sizes = [31, 128], strides = [1, 1]} : vector<32x128xf32> to vector<31x128xf32>
    %95 = tpu.concatenate %93, %94 in 0 : vector<1x128xf32>, vector<31x128xf32> -> vector<32x128xf32>
    %96 = vector.broadcast %0 : vector<32x1xf32> to vector<32x128xf32>
    %97 = arith.mulf %95, %96 : vector<32x128xf32>
    %cst_49 = arith.constant 0.000000e+00 : f32
    %98 = vector.broadcast %cst_49 : f32 to vector<1x128xf32>
    %99 = vector.extract_strided_slice %90 {offsets = [1, 0], sizes = [31, 128], strides = [1, 1]} : vector<32x128xf32> to vector<31x128xf32>
    %100 = tpu.concatenate %99, %98 in 0 : vector<31x128xf32>, vector<1x128xf32> -> vector<32x128xf32>
    %101 = vector.broadcast %1 : vector<32x1xf32> to vector<32x128xf32>
    %102 = arith.mulf %100, %101 : vector<32x128xf32>
    %103 = tpu.concatenate %97, %90, %102 in 1 : vector<32x128xf32>, vector<32x128xf32>, vector<32x128xf32> -> vector<32x384xf32>
    %cst_50 = arith.constant dense<0.000000e+00> : vector<32x128xf32>
    %104 = tpu.matmul %103, %91, %cst_50 {dimension_numbers = #tpu.dot_dimension_numbers<[1], [0], [0], [1], [0, 0, 1, 1], [], []>} : vector<32x384xf32>, vector<384x128xf32>, vector<32x128xf32> -> vector<32x128xf32>
    %105 = vector.broadcast %92 : vector<1x128xf32> to vector<32x128xf32>
    %106 = arith.addf %104, %105 : vector<32x128xf32>
    %107 = arith.addf %106, %88 : vector<32x128xf32>
    %c0_51 = arith.constant 0 : index
    %c0_52 = arith.constant 0 : index
    %108 = vector.load %arg20[%c0_51, %c0_52] : memref<1x128xf32, #tpu.memory_space<vmem>>, vector<1x128xf32>
    %109 = vector.broadcast %108 : vector<1x128xf32> to vector<32x128xf32>
    %110 = arith.mulf %107, %109 : vector<32x128xf32>
    %c0_53 = arith.constant 0 : index
    %c0_54 = arith.constant 0 : index
    %111 = vector.load %arg21[%c0_53, %c0_54] : memref<1x128xf32, #tpu.memory_space<vmem>>, vector<1x128xf32>
    %112 = vector.broadcast %111 : vector<1x128xf32> to vector<32x128xf32>
    %113 = arith.addf %110, %112 : vector<32x128xf32>
    %cst_55 = arith.constant 0.000000e+00 : f32
    %114 = vector.broadcast %cst_55 : f32 to vector<32x128xf32>
    %115 = arith.maximumf %113, %114 : vector<32x128xf32>
    %c0_56 = arith.constant 0 : index
    %c0_57 = arith.constant 0 : index
    %116 = vector.load %arg22[%c0_56, %c0_57] : memref<384x256xf32, #tpu.memory_space<vmem>>, vector<384x256xf32>
    %c0_58 = arith.constant 0 : index
    %c0_59 = arith.constant 0 : index
    %117 = vector.load %arg23[%c0_58, %c0_59] : memref<1x256xf32, #tpu.memory_space<vmem>>, vector<1x256xf32>
    %cst_60 = arith.constant 0.000000e+00 : f32
    %118 = vector.broadcast %cst_60 : f32 to vector<1x128xf32>
    %119 = vector.extract_strided_slice %115 {offsets = [0, 0], sizes = [31, 128], strides = [1, 1]} : vector<32x128xf32> to vector<31x128xf32>
    %120 = tpu.concatenate %118, %119 in 0 : vector<1x128xf32>, vector<31x128xf32> -> vector<32x128xf32>
    %121 = vector.broadcast %0 : vector<32x1xf32> to vector<32x128xf32>
    %122 = arith.mulf %120, %121 : vector<32x128xf32>
    %cst_61 = arith.constant 0.000000e+00 : f32
    %123 = vector.broadcast %cst_61 : f32 to vector<1x128xf32>
    %124 = vector.extract_strided_slice %115 {offsets = [1, 0], sizes = [31, 128], strides = [1, 1]} : vector<32x128xf32> to vector<31x128xf32>
    %125 = tpu.concatenate %124, %123 in 0 : vector<31x128xf32>, vector<1x128xf32> -> vector<32x128xf32>
    %126 = vector.broadcast %1 : vector<32x1xf32> to vector<32x128xf32>
    %127 = arith.mulf %125, %126 : vector<32x128xf32>
    %128 = tpu.concatenate %122, %115, %127 in 1 : vector<32x128xf32>, vector<32x128xf32>, vector<32x128xf32> -> vector<32x384xf32>
    %cst_62 = arith.constant dense<0.000000e+00> : vector<32x256xf32>
    %129 = tpu.matmul %128, %116, %cst_62 {dimension_numbers = #tpu.dot_dimension_numbers<[1], [0], [0], [1], [0, 0, 1, 1], [], []>} : vector<32x384xf32>, vector<384x256xf32>, vector<32x256xf32> -> vector<32x256xf32>
    %130 = vector.broadcast %117 : vector<1x256xf32> to vector<32x256xf32>
    %131 = arith.addf %129, %130 : vector<32x256xf32>
    %c0_63 = arith.constant 0 : index
    %c0_64 = arith.constant 0 : index
    %132 = vector.load %arg26[%c0_63, %c0_64] : memref<128x256xf32, #tpu.memory_space<vmem>>, vector<128x256xf32>
    %cst_65 = arith.constant dense<0.000000e+00> : vector<32x256xf32>
    %133 = tpu.matmul %115, %132, %cst_65 {dimension_numbers = #tpu.dot_dimension_numbers<[1], [0], [0], [1], [0, 0, 1, 1], [], []>} : vector<32x128xf32>, vector<128x256xf32>, vector<32x256xf32> -> vector<32x256xf32>
    %c0_66 = arith.constant 0 : index
    %c0_67 = arith.constant 0 : index
    %134 = vector.load %arg27[%c0_66, %c0_67] : memref<1x256xf32, #tpu.memory_space<vmem>>, vector<1x256xf32>
    %135 = vector.broadcast %134 : vector<1x256xf32> to vector<32x256xf32>
    %136 = arith.addf %133, %135 : vector<32x256xf32>
    %cst_68 = arith.constant 0.000000e+00 : f32
    %137 = vector.broadcast %cst_68 : f32 to vector<32x256xf32>
    %138 = arith.maximumf %131, %137 : vector<32x256xf32>
    %c0_69 = arith.constant 0 : index
    %c0_70 = arith.constant 0 : index
    %139 = vector.load %arg24[%c0_69, %c0_70] : memref<768x256xf32, #tpu.memory_space<vmem>>, vector<768x256xf32>
    %c0_71 = arith.constant 0 : index
    %c0_72 = arith.constant 0 : index
    %140 = vector.load %arg25[%c0_71, %c0_72] : memref<1x256xf32, #tpu.memory_space<vmem>>, vector<1x256xf32>
    %cst_73 = arith.constant 0.000000e+00 : f32
    %141 = vector.broadcast %cst_73 : f32 to vector<1x256xf32>
    %142 = vector.extract_strided_slice %138 {offsets = [0, 0], sizes = [31, 256], strides = [1, 1]} : vector<32x256xf32> to vector<31x256xf32>
    %143 = tpu.concatenate %141, %142 in 0 : vector<1x256xf32>, vector<31x256xf32> -> vector<32x256xf32>
    %144 = vector.broadcast %0 : vector<32x1xf32> to vector<32x256xf32>
    %145 = arith.mulf %143, %144 : vector<32x256xf32>
    %cst_74 = arith.constant 0.000000e+00 : f32
    %146 = vector.broadcast %cst_74 : f32 to vector<1x256xf32>
    %147 = vector.extract_strided_slice %138 {offsets = [1, 0], sizes = [31, 256], strides = [1, 1]} : vector<32x256xf32> to vector<31x256xf32>
    %148 = tpu.concatenate %147, %146 in 0 : vector<31x256xf32>, vector<1x256xf32> -> vector<32x256xf32>
    %149 = vector.broadcast %1 : vector<32x1xf32> to vector<32x256xf32>
    %150 = arith.mulf %148, %149 : vector<32x256xf32>
    %151 = tpu.concatenate %145, %138, %150 in 1 : vector<32x256xf32>, vector<32x256xf32>, vector<32x256xf32> -> vector<32x768xf32>
    %cst_75 = arith.constant dense<0.000000e+00> : vector<32x256xf32>
    %152 = tpu.matmul %151, %139, %cst_75 {dimension_numbers = #tpu.dot_dimension_numbers<[1], [0], [0], [1], [0, 0, 1, 1], [], []>} : vector<32x768xf32>, vector<768x256xf32>, vector<32x256xf32> -> vector<32x256xf32>
    %153 = vector.broadcast %140 : vector<1x256xf32> to vector<32x256xf32>
    %154 = arith.addf %152, %153 : vector<32x256xf32>
    %155 = arith.addf %154, %136 : vector<32x256xf32>
    %c0_76 = arith.constant 0 : index
    %c0_77 = arith.constant 0 : index
    %156 = vector.load %arg28[%c0_76, %c0_77] : memref<1x256xf32, #tpu.memory_space<vmem>>, vector<1x256xf32>
    %157 = vector.broadcast %156 : vector<1x256xf32> to vector<32x256xf32>
    %158 = arith.mulf %155, %157 : vector<32x256xf32>
    %c0_78 = arith.constant 0 : index
    %c0_79 = arith.constant 0 : index
    %159 = vector.load %arg29[%c0_78, %c0_79] : memref<1x256xf32, #tpu.memory_space<vmem>>, vector<1x256xf32>
    %160 = vector.broadcast %159 : vector<1x256xf32> to vector<32x256xf32>
    %161 = arith.addf %158, %160 : vector<32x256xf32>
    %cst_80 = arith.constant 0.000000e+00 : f32
    %162 = vector.broadcast %cst_80 : f32 to vector<32x256xf32>
    %163 = arith.maximumf %161, %162 : vector<32x256xf32>
    %c0_81 = arith.constant 0 : index
    %c0_82 = arith.constant 0 : index
    %164 = vector.load %arg30[%c0_81, %c0_82] : memref<256x768xf32, #tpu.memory_space<vmem>>, vector<256x768xf32>
    %cst_83 = arith.constant dense<0.000000e+00> : vector<32x768xf32>
    %165 = tpu.matmul %163, %164, %cst_83 {dimension_numbers = #tpu.dot_dimension_numbers<[1], [0], [0], [1], [0, 0, 1, 1], [], []>} : vector<32x256xf32>, vector<256x768xf32>, vector<32x768xf32> -> vector<32x768xf32>
    %c0_84 = arith.constant 0 : index
    %c0_85 = arith.constant 0 : index
    %166 = vector.load %arg31[%c0_84, %c0_85] : memref<1x768xf32, #tpu.memory_space<vmem>>, vector<1x768xf32>
    %167 = vector.broadcast %166 : vector<1x768xf32> to vector<32x768xf32>
    %168 = arith.addf %165, %167 : vector<32x768xf32>
    %169 = vector.extract_strided_slice %168 {offsets = [0, 0], sizes = [32, 256], strides = [1, 1]} : vector<32x768xf32> to vector<32x256xf32>
    %cst_86 = arith.constant 0.176776692 : f32
    %170 = vector.broadcast %cst_86 : f32 to vector<32x256xf32>
    %171 = arith.mulf %169, %170 : vector<32x256xf32>
    %172 = vector.extract_strided_slice %168 {offsets = [0, 256], sizes = [32, 256], strides = [1, 1]} : vector<32x768xf32> to vector<32x256xf32>
    %173 = vector.extract_strided_slice %168 {offsets = [0, 512], sizes = [32, 256], strides = [1, 1]} : vector<32x768xf32> to vector<32x256xf32>
    %174 = vector.extract_strided_slice %171 {offsets = [0, 0], sizes = [32, 32], strides = [1, 1]} : vector<32x256xf32> to vector<32x32xf32>
    %175 = vector.extract_strided_slice %171 {offsets = [0, 32], sizes = [32, 32], strides = [1, 1]} : vector<32x256xf32> to vector<32x32xf32>
    %176 = vector.extract_strided_slice %171 {offsets = [0, 64], sizes = [32, 32], strides = [1, 1]} : vector<32x256xf32> to vector<32x32xf32>
    %177 = vector.extract_strided_slice %171 {offsets = [0, 96], sizes = [32, 32], strides = [1, 1]} : vector<32x256xf32> to vector<32x32xf32>
    %178 = vector.extract_strided_slice %171 {offsets = [0, 128], sizes = [32, 32], strides = [1, 1]} : vector<32x256xf32> to vector<32x32xf32>
    %179 = vector.extract_strided_slice %171 {offsets = [0, 160], sizes = [32, 32], strides = [1, 1]} : vector<32x256xf32> to vector<32x32xf32>
    %180 = vector.extract_strided_slice %171 {offsets = [0, 192], sizes = [32, 32], strides = [1, 1]} : vector<32x256xf32> to vector<32x32xf32>
    %181 = vector.extract_strided_slice %171 {offsets = [0, 224], sizes = [32, 32], strides = [1, 1]} : vector<32x256xf32> to vector<32x32xf32>
    %182 = tpu.concatenate %174, %175, %176, %177, %178, %179, %180, %181 in 0 : vector<32x32xf32>, vector<32x32xf32>, vector<32x32xf32>, vector<32x32xf32>, vector<32x32xf32>, vector<32x32xf32>, vector<32x32xf32>, vector<32x32xf32> -> vector<256x32xf32>
    %183 = vector.extract_strided_slice %172 {offsets = [0, 0], sizes = [32, 32], strides = [1, 1]} : vector<32x256xf32> to vector<32x32xf32>
    %184 = vector.extract_strided_slice %172 {offsets = [0, 32], sizes = [32, 32], strides = [1, 1]} : vector<32x256xf32> to vector<32x32xf32>
    %185 = vector.extract_strided_slice %172 {offsets = [0, 64], sizes = [32, 32], strides = [1, 1]} : vector<32x256xf32> to vector<32x32xf32>
    %186 = vector.extract_strided_slice %172 {offsets = [0, 96], sizes = [32, 32], strides = [1, 1]} : vector<32x256xf32> to vector<32x32xf32>
    %187 = vector.extract_strided_slice %172 {offsets = [0, 128], sizes = [32, 32], strides = [1, 1]} : vector<32x256xf32> to vector<32x32xf32>
    %188 = vector.extract_strided_slice %172 {offsets = [0, 160], sizes = [32, 32], strides = [1, 1]} : vector<32x256xf32> to vector<32x32xf32>
    %189 = vector.extract_strided_slice %172 {offsets = [0, 192], sizes = [32, 32], strides = [1, 1]} : vector<32x256xf32> to vector<32x32xf32>
    %190 = vector.extract_strided_slice %172 {offsets = [0, 224], sizes = [32, 32], strides = [1, 1]} : vector<32x256xf32> to vector<32x32xf32>
    %191 = tpu.concatenate %183, %184, %185, %186, %187, %188, %189, %190 in 0 : vector<32x32xf32>, vector<32x32xf32>, vector<32x32xf32>, vector<32x32xf32>, vector<32x32xf32>, vector<32x32xf32>, vector<32x32xf32>, vector<32x32xf32> -> vector<256x32xf32>
    %192 = vector.extract_strided_slice %173 {offsets = [0, 0], sizes = [32, 32], strides = [1, 1]} : vector<32x256xf32> to vector<32x32xf32>
    %193 = vector.extract_strided_slice %173 {offsets = [0, 32], sizes = [32, 32], strides = [1, 1]} : vector<32x256xf32> to vector<32x32xf32>
    %194 = vector.extract_strided_slice %173 {offsets = [0, 64], sizes = [32, 32], strides = [1, 1]} : vector<32x256xf32> to vector<32x32xf32>
    %195 = vector.extract_strided_slice %173 {offsets = [0, 96], sizes = [32, 32], strides = [1, 1]} : vector<32x256xf32> to vector<32x32xf32>
    %196 = vector.extract_strided_slice %173 {offsets = [0, 128], sizes = [32, 32], strides = [1, 1]} : vector<32x256xf32> to vector<32x32xf32>
    %197 = vector.extract_strided_slice %173 {offsets = [0, 160], sizes = [32, 32], strides = [1, 1]} : vector<32x256xf32> to vector<32x32xf32>
    %198 = vector.extract_strided_slice %173 {offsets = [0, 192], sizes = [32, 32], strides = [1, 1]} : vector<32x256xf32> to vector<32x32xf32>
    %199 = vector.extract_strided_slice %173 {offsets = [0, 224], sizes = [32, 32], strides = [1, 1]} : vector<32x256xf32> to vector<32x32xf32>
    %200 = tpu.concatenate %192, %193, %194, %195, %196, %197, %198, %199 in 0 : vector<32x32xf32>, vector<32x32xf32>, vector<32x32xf32>, vector<32x32xf32>, vector<32x32xf32>, vector<32x32xf32>, vector<32x32xf32>, vector<32x32xf32> -> vector<256x32xf32>
    %cst_87 = arith.constant dense<0.000000e+00> : vector<256x256xf32>
    %201 = tpu.matmul %182, %191, %cst_87 {dimension_numbers = #tpu.dot_dimension_numbers<[1], [1], [0], [0], [0, 0, 1, 0], [], []>} : vector<256x32xf32>, vector<256x32xf32>, vector<256x256xf32> -> vector<256x256xf32>
    %cst_88 = arith.constant -1.000000e+30 : f32
    %202 = vector.broadcast %cst_88 : f32 to vector<256x256xf32>
    %203 = arith.select %6, %201, %202 : vector<256x256xi1>, vector<256x256xf32>
    %cst_89 = arith.constant dense<0xFF800000> : vector<256xf32>
    %204 = vector.multi_reduction <maximumf>, %203, %cst_89 [1] : vector<256x256xf32> to vector<256xf32>
    %205 = vector.shape_cast %204 : vector<256xf32> to vector<256x1xf32>
    %206 = vector.broadcast %205 : vector<256x1xf32> to vector<256x256xf32>
    %207 = arith.subf %203, %206 : vector<256x256xf32>
    %208 = math.exp %207 : vector<256x256xf32>
    %cst_90 = arith.constant dense<0.000000e+00> : vector<256xf32>
    %209 = vector.multi_reduction <add>, %208, %cst_90 [1] : vector<256x256xf32> to vector<256xf32>
    %210 = vector.shape_cast %209 : vector<256xf32> to vector<256x1xf32>
    %211 = tpu.reciprocal %210 {approx = true} : vector<256x1xf32> -> vector<256x1xf32>
    %212 = vector.broadcast %211 : vector<256x1xf32> to vector<256x256xf32>
    %213 = arith.mulf %208, %212 : vector<256x256xf32>
    %cst_91 = arith.constant dense<0.000000e+00> : vector<256x32xf32>
    %214 = tpu.matmul %213, %200, %cst_91 {dimension_numbers = #tpu.dot_dimension_numbers<[1], [0], [0], [1], [0, 0, 1, 1], [], []>} : vector<256x256xf32>, vector<256x32xf32>, vector<256x32xf32> -> vector<256x32xf32>
    %215 = vector.extract_strided_slice %214 {offsets = [0, 0], sizes = [32, 32], strides = [1, 1]} : vector<256x32xf32> to vector<32x32xf32>
    %216 = vector.extract_strided_slice %214 {offsets = [32, 0], sizes = [32, 32], strides = [1, 1]} : vector<256x32xf32> to vector<32x32xf32>
    %217 = vector.extract_strided_slice %214 {offsets = [64, 0], sizes = [32, 32], strides = [1, 1]} : vector<256x32xf32> to vector<32x32xf32>
    %218 = vector.extract_strided_slice %214 {offsets = [96, 0], sizes = [32, 32], strides = [1, 1]} : vector<256x32xf32> to vector<32x32xf32>
    %219 = vector.extract_strided_slice %214 {offsets = [128, 0], sizes = [32, 32], strides = [1, 1]} : vector<256x32xf32> to vector<32x32xf32>
    %220 = vector.extract_strided_slice %214 {offsets = [160, 0], sizes = [32, 32], strides = [1, 1]} : vector<256x32xf32> to vector<32x32xf32>
    %221 = vector.extract_strided_slice %214 {offsets = [192, 0], sizes = [32, 32], strides = [1, 1]} : vector<256x32xf32> to vector<32x32xf32>
    %222 = vector.extract_strided_slice %214 {offsets = [224, 0], sizes = [32, 32], strides = [1, 1]} : vector<256x32xf32> to vector<32x32xf32>
    %223 = tpu.concatenate %215, %216, %217, %218, %219, %220, %221, %222 in 1 : vector<32x32xf32>, vector<32x32xf32>, vector<32x32xf32>, vector<32x32xf32>, vector<32x32xf32>, vector<32x32xf32>, vector<32x32xf32>, vector<32x32xf32> -> vector<32x256xf32>
    %c0_92 = arith.constant 0 : index
    %c0_93 = arith.constant 0 : index
    %224 = vector.load %arg32[%c0_92, %c0_93] : memref<256x256xf32, #tpu.memory_space<vmem>>, vector<256x256xf32>
    %cst_94 = arith.constant dense<0.000000e+00> : vector<32x256xf32>
    %225 = tpu.matmul %223, %224, %cst_94 {dimension_numbers = #tpu.dot_dimension_numbers<[1], [0], [0], [1], [0, 0, 1, 1], [], []>} : vector<32x256xf32>, vector<256x256xf32>, vector<32x256xf32> -> vector<32x256xf32>
    %c0_95 = arith.constant 0 : index
    %c0_96 = arith.constant 0 : index
    %226 = vector.load %arg33[%c0_95, %c0_96] : memref<1x256xf32, #tpu.memory_space<vmem>>, vector<1x256xf32>
    %227 = vector.broadcast %226 : vector<1x256xf32> to vector<32x256xf32>
    %228 = arith.addf %225, %227 : vector<32x256xf32>
    %229 = arith.addf %228, %163 : vector<32x256xf32>
    %cst_97 = arith.constant 0.000000e+00 : f32
    %230 = vector.broadcast %cst_97 : f32 to vector<32x256xf32>
    %231 = arith.maximumf %229, %230 : vector<32x256xf32>
    %c0_98 = arith.constant 0 : index
    %c0_99 = arith.constant 0 : index
    %232 = vector.load %arg34[%c0_98, %c0_99] : memref<256x768xf32, #tpu.memory_space<vmem>>, vector<256x768xf32>
    %cst_100 = arith.constant dense<0.000000e+00> : vector<32x768xf32>
    %233 = tpu.matmul %231, %232, %cst_100 {dimension_numbers = #tpu.dot_dimension_numbers<[1], [0], [0], [1], [0, 0, 1, 1], [], []>} : vector<32x256xf32>, vector<256x768xf32>, vector<32x768xf32> -> vector<32x768xf32>
    %c0_101 = arith.constant 0 : index
    %c0_102 = arith.constant 0 : index
    %234 = vector.load %arg35[%c0_101, %c0_102] : memref<1x768xf32, #tpu.memory_space<vmem>>, vector<1x768xf32>
    %235 = vector.broadcast %234 : vector<1x768xf32> to vector<32x768xf32>
    %236 = arith.addf %233, %235 : vector<32x768xf32>
    %237 = vector.extract_strided_slice %236 {offsets = [0, 0], sizes = [32, 256], strides = [1, 1]} : vector<32x768xf32> to vector<32x256xf32>
    %cst_103 = arith.constant 0.176776692 : f32
    %238 = vector.broadcast %cst_103 : f32 to vector<32x256xf32>
    %239 = arith.mulf %237, %238 : vector<32x256xf32>
    %240 = vector.extract_strided_slice %236 {offsets = [0, 256], sizes = [32, 256], strides = [1, 1]} : vector<32x768xf32> to vector<32x256xf32>
    %241 = vector.extract_strided_slice %236 {offsets = [0, 512], sizes = [32, 256], strides = [1, 1]} : vector<32x768xf32> to vector<32x256xf32>
    %242 = vector.extract_strided_slice %239 {offsets = [0, 0], sizes = [32, 32], strides = [1, 1]} : vector<32x256xf32> to vector<32x32xf32>
    %243 = vector.extract_strided_slice %239 {offsets = [0, 32], sizes = [32, 32], strides = [1, 1]} : vector<32x256xf32> to vector<32x32xf32>
    %244 = vector.extract_strided_slice %239 {offsets = [0, 64], sizes = [32, 32], strides = [1, 1]} : vector<32x256xf32> to vector<32x32xf32>
    %245 = vector.extract_strided_slice %239 {offsets = [0, 96], sizes = [32, 32], strides = [1, 1]} : vector<32x256xf32> to vector<32x32xf32>
    %246 = vector.extract_strided_slice %239 {offsets = [0, 128], sizes = [32, 32], strides = [1, 1]} : vector<32x256xf32> to vector<32x32xf32>
    %247 = vector.extract_strided_slice %239 {offsets = [0, 160], sizes = [32, 32], strides = [1, 1]} : vector<32x256xf32> to vector<32x32xf32>
    %248 = vector.extract_strided_slice %239 {offsets = [0, 192], sizes = [32, 32], strides = [1, 1]} : vector<32x256xf32> to vector<32x32xf32>
    %249 = vector.extract_strided_slice %239 {offsets = [0, 224], sizes = [32, 32], strides = [1, 1]} : vector<32x256xf32> to vector<32x32xf32>
    %250 = tpu.concatenate %242, %243, %244, %245, %246, %247, %248, %249 in 0 : vector<32x32xf32>, vector<32x32xf32>, vector<32x32xf32>, vector<32x32xf32>, vector<32x32xf32>, vector<32x32xf32>, vector<32x32xf32>, vector<32x32xf32> -> vector<256x32xf32>
    %251 = vector.extract_strided_slice %240 {offsets = [0, 0], sizes = [32, 32], strides = [1, 1]} : vector<32x256xf32> to vector<32x32xf32>
    %252 = vector.extract_strided_slice %240 {offsets = [0, 32], sizes = [32, 32], strides = [1, 1]} : vector<32x256xf32> to vector<32x32xf32>
    %253 = vector.extract_strided_slice %240 {offsets = [0, 64], sizes = [32, 32], strides = [1, 1]} : vector<32x256xf32> to vector<32x32xf32>
    %254 = vector.extract_strided_slice %240 {offsets = [0, 96], sizes = [32, 32], strides = [1, 1]} : vector<32x256xf32> to vector<32x32xf32>
    %255 = vector.extract_strided_slice %240 {offsets = [0, 128], sizes = [32, 32], strides = [1, 1]} : vector<32x256xf32> to vector<32x32xf32>
    %256 = vector.extract_strided_slice %240 {offsets = [0, 160], sizes = [32, 32], strides = [1, 1]} : vector<32x256xf32> to vector<32x32xf32>
    %257 = vector.extract_strided_slice %240 {offsets = [0, 192], sizes = [32, 32], strides = [1, 1]} : vector<32x256xf32> to vector<32x32xf32>
    %258 = vector.extract_strided_slice %240 {offsets = [0, 224], sizes = [32, 32], strides = [1, 1]} : vector<32x256xf32> to vector<32x32xf32>
    %259 = tpu.concatenate %251, %252, %253, %254, %255, %256, %257, %258 in 0 : vector<32x32xf32>, vector<32x32xf32>, vector<32x32xf32>, vector<32x32xf32>, vector<32x32xf32>, vector<32x32xf32>, vector<32x32xf32>, vector<32x32xf32> -> vector<256x32xf32>
    %260 = vector.extract_strided_slice %241 {offsets = [0, 0], sizes = [32, 32], strides = [1, 1]} : vector<32x256xf32> to vector<32x32xf32>
    %261 = vector.extract_strided_slice %241 {offsets = [0, 32], sizes = [32, 32], strides = [1, 1]} : vector<32x256xf32> to vector<32x32xf32>
    %262 = vector.extract_strided_slice %241 {offsets = [0, 64], sizes = [32, 32], strides = [1, 1]} : vector<32x256xf32> to vector<32x32xf32>
    %263 = vector.extract_strided_slice %241 {offsets = [0, 96], sizes = [32, 32], strides = [1, 1]} : vector<32x256xf32> to vector<32x32xf32>
    %264 = vector.extract_strided_slice %241 {offsets = [0, 128], sizes = [32, 32], strides = [1, 1]} : vector<32x256xf32> to vector<32x32xf32>
    %265 = vector.extract_strided_slice %241 {offsets = [0, 160], sizes = [32, 32], strides = [1, 1]} : vector<32x256xf32> to vector<32x32xf32>
    %266 = vector.extract_strided_slice %241 {offsets = [0, 192], sizes = [32, 32], strides = [1, 1]} : vector<32x256xf32> to vector<32x32xf32>
    %267 = vector.extract_strided_slice %241 {offsets = [0, 224], sizes = [32, 32], strides = [1, 1]} : vector<32x256xf32> to vector<32x32xf32>
    %268 = tpu.concatenate %260, %261, %262, %263, %264, %265, %266, %267 in 0 : vector<32x32xf32>, vector<32x32xf32>, vector<32x32xf32>, vector<32x32xf32>, vector<32x32xf32>, vector<32x32xf32>, vector<32x32xf32>, vector<32x32xf32> -> vector<256x32xf32>
    %cst_104 = arith.constant dense<0.000000e+00> : vector<256x256xf32>
    %269 = tpu.matmul %250, %259, %cst_104 {dimension_numbers = #tpu.dot_dimension_numbers<[1], [1], [0], [0], [0, 0, 1, 0], [], []>} : vector<256x32xf32>, vector<256x32xf32>, vector<256x256xf32> -> vector<256x256xf32>
    %cst_105 = arith.constant -1.000000e+30 : f32
    %270 = vector.broadcast %cst_105 : f32 to vector<256x256xf32>
    %271 = arith.select %6, %269, %270 : vector<256x256xi1>, vector<256x256xf32>
    %cst_106 = arith.constant dense<0xFF800000> : vector<256xf32>
    %272 = vector.multi_reduction <maximumf>, %271, %cst_106 [1] : vector<256x256xf32> to vector<256xf32>
    %273 = vector.shape_cast %272 : vector<256xf32> to vector<256x1xf32>
    %274 = vector.broadcast %273 : vector<256x1xf32> to vector<256x256xf32>
    %275 = arith.subf %271, %274 : vector<256x256xf32>
    %276 = math.exp %275 : vector<256x256xf32>
    %cst_107 = arith.constant dense<0.000000e+00> : vector<256xf32>
    %277 = vector.multi_reduction <add>, %276, %cst_107 [1] : vector<256x256xf32> to vector<256xf32>
    %278 = vector.shape_cast %277 : vector<256xf32> to vector<256x1xf32>
    %279 = tpu.reciprocal %278 {approx = true} : vector<256x1xf32> -> vector<256x1xf32>
    %280 = vector.broadcast %279 : vector<256x1xf32> to vector<256x256xf32>
    %281 = arith.mulf %276, %280 : vector<256x256xf32>
    %cst_108 = arith.constant dense<0.000000e+00> : vector<256x32xf32>
    %282 = tpu.matmul %281, %268, %cst_108 {dimension_numbers = #tpu.dot_dimension_numbers<[1], [0], [0], [1], [0, 0, 1, 1], [], []>} : vector<256x256xf32>, vector<256x32xf32>, vector<256x32xf32> -> vector<256x32xf32>
    %283 = vector.extract_strided_slice %282 {offsets = [0, 0], sizes = [32, 32], strides = [1, 1]} : vector<256x32xf32> to vector<32x32xf32>
    %284 = vector.extract_strided_slice %282 {offsets = [32, 0], sizes = [32, 32], strides = [1, 1]} : vector<256x32xf32> to vector<32x32xf32>
    %285 = vector.extract_strided_slice %282 {offsets = [64, 0], sizes = [32, 32], strides = [1, 1]} : vector<256x32xf32> to vector<32x32xf32>
    %286 = vector.extract_strided_slice %282 {offsets = [96, 0], sizes = [32, 32], strides = [1, 1]} : vector<256x32xf32> to vector<32x32xf32>
    %287 = vector.extract_strided_slice %282 {offsets = [128, 0], sizes = [32, 32], strides = [1, 1]} : vector<256x32xf32> to vector<32x32xf32>
    %288 = vector.extract_strided_slice %282 {offsets = [160, 0], sizes = [32, 32], strides = [1, 1]} : vector<256x32xf32> to vector<32x32xf32>
    %289 = vector.extract_strided_slice %282 {offsets = [192, 0], sizes = [32, 32], strides = [1, 1]} : vector<256x32xf32> to vector<32x32xf32>
    %290 = vector.extract_strided_slice %282 {offsets = [224, 0], sizes = [32, 32], strides = [1, 1]} : vector<256x32xf32> to vector<32x32xf32>
    %291 = tpu.concatenate %283, %284, %285, %286, %287, %288, %289, %290 in 1 : vector<32x32xf32>, vector<32x32xf32>, vector<32x32xf32>, vector<32x32xf32>, vector<32x32xf32>, vector<32x32xf32>, vector<32x32xf32>, vector<32x32xf32> -> vector<32x256xf32>
    %c0_109 = arith.constant 0 : index
    %c0_110 = arith.constant 0 : index
    %292 = vector.load %arg36[%c0_109, %c0_110] : memref<256x256xf32, #tpu.memory_space<vmem>>, vector<256x256xf32>
    %cst_111 = arith.constant dense<0.000000e+00> : vector<32x256xf32>
    %293 = tpu.matmul %291, %292, %cst_111 {dimension_numbers = #tpu.dot_dimension_numbers<[1], [0], [0], [1], [0, 0, 1, 1], [], []>} : vector<32x256xf32>, vector<256x256xf32>, vector<32x256xf32> -> vector<32x256xf32>
    %c0_112 = arith.constant 0 : index
    %c0_113 = arith.constant 0 : index
    %294 = vector.load %arg37[%c0_112, %c0_113] : memref<1x256xf32, #tpu.memory_space<vmem>>, vector<1x256xf32>
    %295 = vector.broadcast %294 : vector<1x256xf32> to vector<32x256xf32>
    %296 = arith.addf %293, %295 : vector<32x256xf32>
    %297 = arith.addf %296, %231 : vector<32x256xf32>
    %cst_114 = arith.constant 0.000000e+00 : f32
    %298 = vector.broadcast %cst_114 : f32 to vector<32x256xf32>
    %299 = arith.maximumf %297, %298 : vector<32x256xf32>
    %c0_115 = arith.constant 0 : index
    %c0_116 = arith.constant 0 : index
    %300 = vector.load %arg3[%c0_115, %c0_116] : memref<2x32xf32, #tpu.memory_space<vmem>>, vector<2x32xf32>
    %cst_117 = arith.constant dense<0.000000e+00> : vector<2x256xf32>
    %301 = tpu.matmul %300, %299, %cst_117 {dimension_numbers = #tpu.dot_dimension_numbers<[1], [0], [0], [1], [0, 0, 1, 1], [], []>} : vector<2x32xf32>, vector<32x256xf32>, vector<2x256xf32> -> vector<2x256xf32>
    %c0_118 = arith.constant 0 : index
    %c0_119 = arith.constant 0 : index
    %302 = vector.load %arg38[%c0_118, %c0_119] : memref<256x128xf32, #tpu.memory_space<vmem>>, vector<256x128xf32>
    %cst_120 = arith.constant dense<0.000000e+00> : vector<2x128xf32>
    %303 = tpu.matmul %301, %302, %cst_120 {dimension_numbers = #tpu.dot_dimension_numbers<[1], [0], [0], [1], [0, 0, 1, 1], [], []>} : vector<2x256xf32>, vector<256x128xf32>, vector<2x128xf32> -> vector<2x128xf32>
    %c0_121 = arith.constant 0 : index
    %c0_122 = arith.constant 0 : index
    %304 = vector.load %arg39[%c0_121, %c0_122] : memref<1x128xf32, #tpu.memory_space<vmem>>, vector<1x128xf32>
    %305 = vector.broadcast %304 : vector<1x128xf32> to vector<2x128xf32>
    %306 = arith.addf %303, %305 : vector<2x128xf32>
    %c0_123 = arith.constant 0 : index
    %c0_124 = arith.constant 0 : index
    %307 = vector.load %arg40[%c0_123, %c0_124] : memref<2x128xf32, #tpu.memory_space<vmem>>, vector<2x128xf32>
    tpu.vector_store %arg40[%c0_123, %c0_124], %306 {strides = array<i32>} : memref<2x128xf32, #tpu.memory_space<vmem>>, vector<2x128xf32>,
    return
  }
}

</mosaic_0001>

<llo_original>
// kernel: cnn_attention_forward.1
$region0: #{cnn_attention_forward.1}
  #allocation0 [shape = 'u32[]', space=smem, size = 0x4, offset = 0x4, fixed_abs, tag = 'smem constant byte address 0x4 - core index']
  #allocation1 [shape = 'u32[144,128]{1,0:T(1,128)}', space=vmem, size = 0x12000, scoped, tag = 'internal scratch']
  %s0 = inlined_call_operand.smem [shape: u32[41], index: -1, kind: input, shape index: {}]
  %s1 = sld [smem:[%s0]]
  %s2 = scalar_lea.smem %s0, 1
  %s3 = sld [smem:[%s2]]
  %s4 = scalar_lea.smem %s0, 2
  %s5 = sld [smem:[%s4]]
  %s6 = scalar_lea.smem %s0, 3
  %s7 = sld [smem:[%s6]]
  %s8 = scalar_lea.smem %s0, 4
  %s9 = sld [smem:[%s8]]
  %s10 = scalar_lea.smem %s0, 5
  %s11 = sld [smem:[%s10]]
  %s12 = scalar_lea.smem %s0, 6
  %s13 = sld [smem:[%s12]]
  %s14 = scalar_lea.smem %s0, 7
  %s15 = sld [smem:[%s14]]
  %s16 = scalar_lea.smem %s0, 8
  %s17 = sld [smem:[%s16]]
  %s18 = scalar_lea.smem %s0, 9
  %s19 = sld [smem:[%s18]]
  %s20 = scalar_lea.smem %s0, 10
  %s21 = sld [smem:[%s20]]
  %s22 = scalar_lea.smem %s0, 11
  %s23 = sld [smem:[%s22]]
  %s24 = scalar_lea.smem %s0, 12
  %s25 = sld [smem:[%s24]]
  %s26 = scalar_lea.smem %s0, 13
  %s27 = sld [smem:[%s26]]
  %s28 = scalar_lea.smem %s0, 14
  %s29 = sld [smem:[%s28]]
  %s30 = scalar_lea.smem %s0, 15
  %s31 = sld [smem:[%s30]]
  %s32 = scalar_lea.smem %s0, 16
  %s33 = sld [smem:[%s32]]
  %s34 = scalar_lea.smem %s0, 17
  %s35 = sld [smem:[%s34]]
  %s36 = scalar_lea.smem %s0, 18
  %s37 = sld [smem:[%s36]]
  %s38 = scalar_lea.smem %s0, 19
  %s39 = sld [smem:[%s38]]
  %s40 = scalar_lea.smem %s0, 20
  %s41 = sld [smem:[%s40]]
  %s42 = scalar_lea.smem %s0, 21
  %s43 = sld [smem:[%s42]]
  %s44 = scalar_lea.smem %s0, 22
  %s45 = sld [smem:[%s44]]
  %s46 = scalar_lea.smem %s0, 23
  %s47 = sld [smem:[%s46]]
  %s48 = scalar_lea.smem %s0, 24
  %s49 = sld [smem:[%s48]]
  %s50 = scalar_lea.smem %s0, 25
  %s51 = sld [smem:[%s50]]
  %s52 = scalar_lea.smem %s0, 26
  %s53 = sld [smem:[%s52]]
  %s54 = scalar_lea.smem %s0, 27
  %s55 = sld [smem:[%s54]]
  %s56 = scalar_lea.smem %s0, 28
  %s57 = sld [smem:[%s56]]
  %s58 = scalar_lea.smem %s0, 29
  %s59 = sld [smem:[%s58]]
  %s60 = scalar_lea.smem %s0, 30
  %s61 = sld [smem:[%s60]]
  %s62 = scalar_lea.smem %s0, 31
  %s63 = sld [smem:[%s62]]
  %s64 = scalar_lea.smem %s0, 32
  %s65 = sld [smem:[%s64]]
  %s66 = scalar_lea.smem %s0, 33
  %s67 = sld [smem:[%s66]]
  %s68 = scalar_lea.smem %s0, 34
  %s69 = sld [smem:[%s68]]
  %s70 = scalar_lea.smem %s0, 35
  %s71 = sld [smem:[%s70]]
  %s72 = scalar_lea.smem %s0, 36
  %s73 = sld [smem:[%s72]]
  %s74 = scalar_lea.smem %s0, 37
  %s75 = sld [smem:[%s74]]
  %s76 = scalar_lea.smem %s0, 38
  %s77 = sld [smem:[%s76]]
  %s78 = scalar_lea.smem %s0, 39
  %s79 = sld [smem:[%s78]]
  %s80 = scalar_lea.smem %s0, 40
  %s81 = sld [smem:[%s80]]
  %s82 = sld [smem:[#allocation0]]
  $region170: #{cnn_attention_forward.1} parent=0
    _
  %s84 = ssub.s32 1, %s82
  %s85 = scalar_select 0, %s84, %s82
  $region1: #{cnn_attention_forward.1} parent=0
    #allocation2 [shape = 'u8[1024]{0}', space=vmem, size = 0x400, scoped, tag = 'output window, operand 0, single buffered']
    #allocation3 [shape = 's32[1]{0}', space=sflag, size = 0x4, scoped, tag = 'scoped memory for cnn_attention_forward.1']
    %86 = vsyncpa [#allocation3], 0
    // Predicated region
    $region2: #{cnn_attention_forward.1} parent=1 // pred_check
      _
    $region3: #{cnn_attention_forward.1} parent=1 // pred_check_branch
      %88 = sbr.rel (0) target = $region5
    $region4: #{cnn_attention_forward.1} parent=1 // pred_region
      _
    $region5: #{cnn_attention_forward.1} parent=1 // pred_fallthru
      _
    // Predicated region
    $region6: #{cnn_attention_forward.1} parent=1 // pred_check
      _
    $region7: #{cnn_attention_forward.1} parent=1 // pred_check_branch
      %90 = sbr.rel (0) target = $region9
    $region8: #{cnn_attention_forward.1} parent=1 // pred_region
      _
    $region9: #{cnn_attention_forward.1} parent=1 // pred_fallthru
      _
    // Predicated region
    $region10: #{cnn_attention_forward.1} parent=1 // pred_check
      _
    $region11: #{cnn_attention_forward.1} parent=1 // pred_check_branch
      %92 = sbr.rel (0) target = $region13
    $region12: #{cnn_attention_forward.1} parent=1 // pred_region
      _
    $region13: #{cnn_attention_forward.1} parent=1 // pred_fallthru
      _
    // Predicated region
    $region14: #{cnn_attention_forward.1} parent=1 // pred_check
      _
    $region15: #{cnn_attention_forward.1} parent=1 // pred_check_branch
      %94 = sbr.rel (0) target = $region17
    $region16: #{cnn_attention_forward.1} parent=1 // pred_region
      _
    $region17: #{cnn_attention_forward.1} parent=1 // pred_fallthru
      _
    // Predicated region
    $region18: #{cnn_attention_forward.1} parent=1 // pred_check
      _
    $region19: #{cnn_attention_forward.1} parent=1 // pred_check_branch
      %96 = sbr.rel (0) target = $region21
    $region20: #{cnn_attention_forward.1} parent=1 // pred_region
      _
    $region21: #{cnn_attention_forward.1} parent=1 // pred_fallthru
      _
    // Predicated region
    $region22: #{cnn_attention_forward.1} parent=1 // pred_check
      _
    $region23: #{cnn_attention_forward.1} parent=1 // pred_check_branch
      %98 = sbr.rel (0) target = $region25
    $region24: #{cnn_attention_forward.1} parent=1 // pred_region
      _
    $region25: #{cnn_attention_forward.1} parent=1 // pred_fallthru
      _
    // Predicated region
    $region26: #{cnn_attention_forward.1} parent=1 // pred_check
      _
    $region27: #{cnn_attention_forward.1} parent=1 // pred_check_branch
      %100 = sbr.rel (0) target = $region29
    $region28: #{cnn_attention_forward.1} parent=1 // pred_region
      _
    $region29: #{cnn_attention_forward.1} parent=1 // pred_fallthru
      _
    // Predicated region
    $region30: #{cnn_attention_forward.1} parent=1 // pred_check
      _
    $region31: #{cnn_attention_forward.1} parent=1 // pred_check_branch
      %102 = sbr.rel (0) target = $region33
    $region32: #{cnn_attention_forward.1} parent=1 // pred_region
      _
    $region33: #{cnn_attention_forward.1} parent=1 // pred_fallthru
      _
    // Predicated region
    $region34: #{cnn_attention_forward.1} parent=1 // pred_check
      _
    $region35: #{cnn_attention_forward.1} parent=1 // pred_check_branch
      %104 = sbr.rel (0) target = $region37
    $region36: #{cnn_attention_forward.1} parent=1 // pred_region
      _
    $region37: #{cnn_attention_forward.1} parent=1 // pred_fallthru
      _
    // Predicated region
    $region38: #{cnn_attention_forward.1} parent=1 // pred_check
      _
    $region39: #{cnn_attention_forward.1} parent=1 // pred_check_branch
      %106 = sbr.rel (0) target = $region41
    $region40: #{cnn_attention_forward.1} parent=1 // pred_region
      _
    $region41: #{cnn_attention_forward.1} parent=1 // pred_fallthru
      _
    // Predicated region
    $region42: #{cnn_attention_forward.1} parent=1 // pred_check
      _
    $region43: #{cnn_attention_forward.1} parent=1 // pred_check_branch
      %108 = sbr.rel (0) target = $region45
    $region44: #{cnn_attention_forward.1} parent=1 // pred_region
      _
    $region45: #{cnn_attention_forward.1} parent=1 // pred_fallthru
      _
    // Predicated region
    $region46: #{cnn_attention_forward.1} parent=1 // pred_check
      _
    $region47: #{cnn_attention_forward.1} parent=1 // pred_check_branch
      %110 = sbr.rel (0) target = $region49
    $region48: #{cnn_attention_forward.1} parent=1 // pred_region
      _
    $region49: #{cnn_attention_forward.1} parent=1 // pred_fallthru
      _
    // Predicated region
    $region50: #{cnn_attention_forward.1} parent=1 // pred_check
      _
    $region51: #{cnn_attention_forward.1} parent=1 // pred_check_branch
      %112 = sbr.rel (0) target = $region53
    $region52: #{cnn_attention_forward.1} parent=1 // pred_region
      _
    $region53: #{cnn_attention_forward.1} parent=1 // pred_fallthru
      _
    // Predicated region
    $region54: #{cnn_attention_forward.1} parent=1 // pred_check
      _
    $region55: #{cnn_attention_forward.1} parent=1 // pred_check_branch
      %114 = sbr.rel (0) target = $region57
    $region56: #{cnn_attention_forward.1} parent=1 // pred_region
      _
    $region57: #{cnn_attention_forward.1} parent=1 // pred_fallthru
      _
    // Predicated region
    $region58: #{cnn_attention_forward.1} parent=1 // pred_check
      _
    $region59: #{cnn_attention_forward.1} parent=1 // pred_check_branch
      %116 = sbr.rel (0) target = $region61
    $region60: #{cnn_attention_forward.1} parent=1 // pred_region
      _
    $region61: #{cnn_attention_forward.1} parent=1 // pred_fallthru
      _
    // Predicated region
    $region62: #{cnn_attention_forward.1} parent=1 // pred_check
      _
    $region63: #{cnn_attention_forward.1} parent=1 // pred_check_branch
      %118 = sbr.rel (0) target = $region65
    $region64: #{cnn_attention_forward.1} parent=1 // pred_region
      _
    $region65: #{cnn_attention_forward.1} parent=1 // pred_fallthru
      _
    // Predicated region
    $region66: #{cnn_attention_forward.1} parent=1 // pred_check
      _
    $region67: #{cnn_attention_forward.1} parent=1 // pred_check_branch
      %120 = sbr.rel (0) target = $region69
    $region68: #{cnn_attention_forward.1} parent=1 // pred_region
      _
    $region69: #{cnn_attention_forward.1} parent=1 // pred_fallthru
      _
    // Predicated region
    $region70: #{cnn_attention_forward.1} parent=1 // pred_check
      _
    $region71: #{cnn_attention_forward.1} parent=1 // pred_check_branch
      %122 = sbr.rel (0) target = $region73
    $region72: #{cnn_attention_forward.1} parent=1 // pred_region
      _
    $region73: #{cnn_attention_forward.1} parent=1 // pred_fallthru
      _
    // Predicated region
    $region74: #{cnn_attention_forward.1} parent=1 // pred_check
      _
    $region75: #{cnn_attention_forward.1} parent=1 // pred_check_branch
      %124 = sbr.rel (0) target = $region77
    $region76: #{cnn_attention_forward.1} parent=1 // pred_region
      _
    $region77: #{cnn_attention_forward.1} parent=1 // pred_fallthru
      _
    // Predicated region
    $region78: #{cnn_attention_forward.1} parent=1 // pred_check
      _
    $region79: #{cnn_attention_forward.1} parent=1 // pred_check_branch
      %126 = sbr.rel (0) target = $region81
    $region80: #{cnn_attention_forward.1} parent=1 // pred_region
      _
    $region81: #{cnn_attention_forward.1} parent=1 // pred_fallthru
      _
    // Predicated region
    $region82: #{cnn_attention_forward.1} parent=1 // pred_check
      _
    $region83: #{cnn_attention_forward.1} parent=1 // pred_check_branch
      %128 = sbr.rel (0) target = $region85
    $region84: #{cnn_attention_forward.1} parent=1 // pred_region
      _
    $region85: #{cnn_attention_forward.1} parent=1 // pred_fallthru
      _
    // Predicated region
    $region86: #{cnn_attention_forward.1} parent=1 // pred_check
      _
    $region87: #{cnn_attention_forward.1} parent=1 // pred_check_branch
      %130 = sbr.rel (0) target = $region89
    $region88: #{cnn_attention_forward.1} parent=1 // pred_region
      _
    $region89: #{cnn_attention_forward.1} parent=1 // pred_fallthru
      _
    // Predicated region
    $region90: #{cnn_attention_forward.1} parent=1 // pred_check
      _
    $region91: #{cnn_attention_forward.1} parent=1 // pred_check_branch
      %132 = sbr.rel (0) target = $region93
    $region92: #{cnn_attention_forward.1} parent=1 // pred_region
      _
    $region93: #{cnn_attention_forward.1} parent=1 // pred_fallthru
      _
    // Predicated region
    $region94: #{cnn_attention_forward.1} parent=1 // pred_check
      _
    $region95: #{cnn_attention_forward.1} parent=1 // pred_check_branch
      %134 = sbr.rel (0) target = $region97
    $region96: #{cnn_attention_forward.1} parent=1 // pred_region
      _
    $region97: #{cnn_attention_forward.1} parent=1 // pred_fallthru
      _
    // Predicated region
    $region98: #{cnn_attention_forward.1} parent=1 // pred_check
      _
    $region99: #{cnn_attention_forward.1} parent=1 // pred_check_branch
      %136 = sbr.rel (0) target = $region101
    $region100: #{cnn_attention_forward.1} parent=1 // pred_region
      _
    $region101: #{cnn_attention_forward.1} parent=1 // pred_fallthru
      _
    // Predicated region
    $region102: #{cnn_attention_forward.1} parent=1 // pred_check
      _
    $region103: #{cnn_attention_forward.1} parent=1 // pred_check_branch
      %138 = sbr.rel (0) target = $region105
    $region104: #{cnn_attention_forward.1} parent=1 // pred_region
      _
    $region105: #{cnn_attention_forward.1} parent=1 // pred_fallthru
      _
    // Predicated region
    $region106: #{cnn_attention_forward.1} parent=1 // pred_check
      _
    $region107: #{cnn_attention_forward.1} parent=1 // pred_check_branch
      %140 = sbr.rel (0) target = $region109
    $region108: #{cnn_attention_forward.1} parent=1 // pred_region
      _
    $region109: #{cnn_attention_forward.1} parent=1 // pred_fallthru
      _
    // Predicated region
    $region110: #{cnn_attention_forward.1} parent=1 // pred_check
      _
    $region111: #{cnn_attention_forward.1} parent=1 // pred_check_branch
      %142 = sbr.rel (0) target = $region113
    $region112: #{cnn_attention_forward.1} parent=1 // pred_region
      _
    $region113: #{cnn_attention_forward.1} parent=1 // pred_fallthru
      _
    // Predicated region
    $region114: #{cnn_attention_forward.1} parent=1 // pred_check
      _
    $region115: #{cnn_attention_forward.1} parent=1 // pred_check_branch
      %144 = sbr.rel (0) target = $region117
    $region116: #{cnn_attention_forward.1} parent=1 // pred_region
      _
    $region117: #{cnn_attention_forward.1} parent=1 // pred_fallthru
      _
    // Predicated region
    $region118: #{cnn_attention_forward.1} parent=1 // pred_check
      _
    $region119: #{cnn_attention_forward.1} parent=1 // pred_check_branch
      %146 = sbr.rel (0) target = $region121
    $region120: #{cnn_attention_forward.1} parent=1 // pred_region
      _
    $region121: #{cnn_attention_forward.1} parent=1 // pred_fallthru
      _
    // Predicated region
    $region122: #{cnn_attention_forward.1} parent=1 // pred_check
      _
    $region123: #{cnn_attention_forward.1} parent=1 // pred_check_branch
      %148 = sbr.rel (0) target = $region125
    $region124: #{cnn_attention_forward.1} parent=1 // pred_region
      _
    $region125: #{cnn_attention_forward.1} parent=1 // pred_fallthru
      _
    // Predicated region
    $region126: #{cnn_attention_forward.1} parent=1 // pred_check
      _
    $region127: #{cnn_attention_forward.1} parent=1 // pred_check_branch
      %150 = sbr.rel (0) target = $region129
    $region128: #{cnn_attention_forward.1} parent=1 // pred_region
      _
    $region129: #{cnn_attention_forward.1} parent=1 // pred_fallthru
      _
    // Predicated region
    $region130: #{cnn_attention_forward.1} parent=1 // pred_check
      _
    $region131: #{cnn_attention_forward.1} parent=1 // pred_check_branch
      %152 = sbr.rel (0) target = $region133
    $region132: #{cnn_attention_forward.1} parent=1 // pred_region
      _
    $region133: #{cnn_attention_forward.1} parent=1 // pred_fallthru
      _
    // Predicated region
    $region134: #{cnn_attention_forward.1} parent=1 // pred_check
      _
    $region135: #{cnn_attention_forward.1} parent=1 // pred_check_branch
      %154 = sbr.rel (0) target = $region137
    $region136: #{cnn_attention_forward.1} parent=1 // pred_region
      _
    $region137: #{cnn_attention_forward.1} parent=1 // pred_fallthru
      _
    // Predicated region
    $region138: #{cnn_attention_forward.1} parent=1 // pred_check
      _
    $region139: #{cnn_attention_forward.1} parent=1 // pred_check_branch
      %156 = sbr.rel (0) target = $region141
    $region140: #{cnn_attention_forward.1} parent=1 // pred_region
      _
    $region141: #{cnn_attention_forward.1} parent=1 // pred_fallthru
      _
    // Predicated region
    $region142: #{cnn_attention_forward.1} parent=1 // pred_check
      _
    $region143: #{cnn_attention_forward.1} parent=1 // pred_check_branch
      %158 = sbr.rel (0) target = $region145
    $region144: #{cnn_attention_forward.1} parent=1 // pred_region
      _
    $region145: #{cnn_attention_forward.1} parent=1 // pred_fallthru
      _
    // Predicated region
    $region146: #{cnn_attention_forward.1} parent=1 // pred_check
      _
    $region147: #{cnn_attention_forward.1} parent=1 // pred_check_branch
      %160 = sbr.rel (0) target = $region149
    $region148: #{cnn_attention_forward.1} parent=1 // pred_region
      _
    $region149: #{cnn_attention_forward.1} parent=1 // pred_fallthru
      _
    // Predicated region
    $region150: #{cnn_attention_forward.1} parent=1 // pred_check
      _
    $region151: #{cnn_attention_forward.1} parent=1 // pred_check_branch
      %162 = sbr.rel (0) target = $region153
    $region152: #{cnn_attention_forward.1} parent=1 // pred_region
      _
    $region153: #{cnn_attention_forward.1} parent=1 // pred_fallthru
      _
    // Predicated region
    $region154: #{cnn_attention_forward.1} parent=1 // pred_check
      _
    $region155: #{cnn_attention_forward.1} parent=1 // pred_check_branch
      %164 = sbr.rel (0) target = $region157
    $region156: #{cnn_attention_forward.1} parent=1 // pred_region
      _
    $region157: #{cnn_attention_forward.1} parent=1 // pred_fallthru
      _
    // Predicated region
    $region158: #{cnn_attention_forward.1} parent=1 // pred_check
      _
    $region159: #{cnn_attention_forward.1} parent=1 // pred_check_branch
      %166 = sbr.rel (0) target = $region161
    $region160: #{cnn_attention_forward.1} parent=1 // pred_region
      _
    $region161: #{cnn_attention_forward.1} parent=1 // pred_fallthru
      _
    %v167 = vld [vmem:[%s3] sm:$0xff]
    %v168 = vld [vmem:[%s3 + $0x8] sm:$0xff]
    %v169 = vld [vmem:[%s3 + $0x10] sm:$0xff]
    %v170 = vld [vmem:[%s3 + $0x18] sm:$0xff]
    %v171 = vld [vmem:[%s5] sm:$0xff]
    %v172 = vld [vmem:[%s5 + $0x8] sm:$0xff]
    %v173 = vld [vmem:[%s5 + $0x10] sm:$0xff]
    %v174 = vld [vmem:[%s5 + $0x18] sm:$0xff]
    %v175 = vld [vmem:[%s9] sm:$0xff]
    %v176 = vld [vmem:[%s9 + $0x8] sm:$0xff]
    %v177 = vld [vmem:[%s9 + $0x10] sm:$0xff]
    %v178 = vld [vmem:[%s9 + $0x18] sm:$0xff]
    %v179 = vld [vmem:[%s9 + $0x20] sm:$0xff]
    %v180 = vld [vmem:[%s9 + $0x28] sm:$0xff]
    %v181 = vld [vmem:[%s9 + $0x30] sm:$0xff]
    %v182 = vld [vmem:[%s9 + $0x38] sm:$0xff]
    %v183 = vld [vmem:[%s9 + $0x40] sm:$0xff]
    %v184 = vld [vmem:[%s9 + $0x48] sm:$0xff]
    %v185 = vld [vmem:[%s9 + $0x50] sm:$0xff]
    %v186 = vld [vmem:[%s9 + $0x58] sm:$0xff]
    %v187 = vld [vmem:[%s9 + $0x60] sm:$0xff]
    %v188 = vld [vmem:[%s9 + $0x68] sm:$0xff]
    %v189 = vld [vmem:[%s9 + $0x70] sm:$0xff]
    %v190 = vld [vmem:[%s9 + $0x78] sm:$0xff]
    %v191 = vld [vmem:[%s9 + $0x80] sm:$0xff]
    %v192 = vld [vmem:[%s9 + $0x88] sm:$0xff]
    %v193 = vld [vmem:[%s9 + $0x90] sm:$0xff]
    %v194 = vld [vmem:[%s9 + $0x98] sm:$0xff]
    %v195 = vld [vmem:[%s9 + $0xa0] sm:$0xff]
    %v196 = vld [vmem:[%s9 + $0xa8] sm:$0xff]
    %v197 = vld [vmem:[%s9 + $0xb0] sm:$0xff]
    %v198 = vld [vmem:[%s9 + $0xb8] sm:$0xff]
    %v199 = vld [vmem:[%s9 + $0xc0] sm:$0xff]
    %v200 = vld [vmem:[%s9 + $0xc8] sm:$0xff]
    %v201 = vld [vmem:[%s9 + $0xd0] sm:$0xff]
    %v202 = vld [vmem:[%s9 + $0xd8] sm:$0xff]
    %v203 = vld [vmem:[%s9 + $0xe0] sm:$0xff]
    %v204 = vld [vmem:[%s9 + $0xe8] sm:$0xff]
    %v205 = vld [vmem:[%s9 + $0xf0] sm:$0xff]
    %v206 = vld [vmem:[%s9 + $0xf8] sm:$0xff]
    %v207 = vld [vmem:[%s11] sm:$0x3]
    %208 = vset.pattern.permute.xlu0 0
    %209 = vperm.xlu0 %208, %v175
    %v210 = vpop.permute.xlu0 %209
    %211 = vset.pattern.permute.xlu0 0
    %212 = vperm.xlu0 %211, %v176
    %v213 = vpop.permute.xlu0 %212
    %214 = vset.pattern.permute.xlu0 0
    %215 = vperm.xlu0 %214, %v177
    %v216 = vpop.permute.xlu0 %215
    %217 = vset.pattern.permute.xlu0 0
    %218 = vperm.xlu0 %217, %v178
    %v219 = vpop.permute.xlu0 %218
    %220 = vset.pattern.permute.xlu0 0
    %221 = vperm.xlu0 %220, %v179
    %v222 = vpop.permute.xlu0 %221
    %223 = vset.pattern.permute.xlu0 0
    %224 = vperm.xlu0 %223, %v180
    %v225 = vpop.permute.xlu0 %224
    %226 = vset.pattern.permute.xlu0 0
    %227 = vperm.xlu0 %226, %v181
    %v228 = vpop.permute.xlu0 %227
    %229 = vset.pattern.permute.xlu0 0
    %230 = vperm.xlu0 %229, %v182
    %v231 = vpop.permute.xlu0 %230
    %232 = vset.pattern.permute.xlu0 0
    %233 = vperm.xlu0 %232, %v183
    %v234 = vpop.permute.xlu0 %233
    %235 = vset.pattern.permute.xlu0 0
    %236 = vperm.xlu0 %235, %v184
    %v237 = vpop.permute.xlu0 %236
    %238 = vset.pattern.permute.xlu0 0
    %239 = vperm.xlu0 %238, %v185
    %v240 = vpop.permute.xlu0 %239
    %241 = vset.pattern.permute.xlu0 0
    %242 = vperm.xlu0 %241, %v186
    %v243 = vpop.permute.xlu0 %242
    %244 = vset.pattern.permute.xlu0 0
    %245 = vperm.xlu0 %244, %v187
    %v246 = vpop.permute.xlu0 %245
    %247 = vset.pattern.permute.xlu0 0
    %248 = vperm.xlu0 %247, %v188
    %v249 = vpop.permute.xlu0 %248
    %250 = vset.pattern.permute.xlu0 0
    %251 = vperm.xlu0 %250, %v189
    %v252 = vpop.permute.xlu0 %251
    %253 = vset.pattern.permute.xlu0 0
    %254 = vperm.xlu0 %253, %v190
    %v255 = vpop.permute.xlu0 %254
    %256 = vset.pattern.permute.xlu0 0
    %257 = vperm.xlu0 %256, %v191
    %v258 = vpop.permute.xlu0 %257
    %259 = vset.pattern.permute.xlu0 0
    %260 = vperm.xlu0 %259, %v192
    %v261 = vpop.permute.xlu0 %260
    %262 = vset.pattern.permute.xlu0 0
    %263 = vperm.xlu0 %262, %v193
    %v264 = vpop.permute.xlu0 %263
    %265 = vset.pattern.permute.xlu0 0
    %266 = vperm.xlu0 %265, %v194
    %v267 = vpop.permute.xlu0 %266
    %268 = vset.pattern.permute.xlu0 0
    %269 = vperm.xlu0 %268, %v195
    %v270 = vpop.permute.xlu0 %269
    %271 = vset.pattern.permute.xlu0 0
    %272 = vperm.xlu0 %271, %v196
    %v273 = vpop.permute.xlu0 %272
    %274 = vset.pattern.permute.xlu0 0
    %275 = vperm.xlu0 %274, %v197
    %v276 = vpop.permute.xlu0 %275
    %277 = vset.pattern.permute.xlu0 0
    %278 = vperm.xlu0 %277, %v198
    %v279 = vpop.permute.xlu0 %278
    %280 = vset.pattern.permute.xlu0 0
    %281 = vperm.xlu0 %280, %v199
    %v282 = vpop.permute.xlu0 %281
    %283 = vset.pattern.permute.xlu0 0
    %284 = vperm.xlu0 %283, %v200
    %v285 = vpop.permute.xlu0 %284
    %286 = vset.pattern.permute.xlu0 0
    %287 = vperm.xlu0 %286, %v201
    %v288 = vpop.permute.xlu0 %287
    %289 = vset.pattern.permute.xlu0 0
    %290 = vperm.xlu0 %289, %v202
    %v291 = vpop.permute.xlu0 %290
    %292 = vset.pattern.permute.xlu0 0
    %293 = vperm.xlu0 %292, %v203
    %v294 = vpop.permute.xlu0 %293
    %295 = vset.pattern.permute.xlu0 0
    %296 = vperm.xlu0 %295, %v204
    %v297 = vpop.permute.xlu0 %296
    %298 = vset.pattern.permute.xlu0 0
    %299 = vperm.xlu0 %298, %v205
    %v300 = vpop.permute.xlu0 %299
    %301 = vset.pattern.permute.xlu0 0
    %302 = vperm.xlu0 %301, %v206
    %v303 = vpop.permute.xlu0 %302
    %v304 = vlaneseq
    %v305 = vshrl.u32 %v304, 7
    %v306 = vsub.s32 0, %v305
    %v307 = vrot.slane %v207, %v306
    %v308 = vlaneseq
    %v309 = vshrl.u32 %v308, 7
    %v310 = vsub.s32 1, %v309
    %v311 = vrot.slane %v207, %v310
    %vm312 = vcmp.eq.s32.totalorder %v210, %v307
    %vm313 = vcmp.eq.s32.totalorder %v210, %v311
    %vm314 = vcmp.eq.s32.totalorder %v213, %v307
    %vm315 = vcmp.eq.s32.totalorder %v213, %v311
    %vm316 = vcmp.eq.s32.totalorder %v216, %v307
    %vm317 = vcmp.eq.s32.totalorder %v216, %v311
    %vm318 = vcmp.eq.s32.totalorder %v219, %v307
    %vm319 = vcmp.eq.s32.totalorder %v219, %v311
    %vm320 = vcmp.eq.s32.totalorder %v222, %v307
    %vm321 = vcmp.eq.s32.totalorder %v222, %v311
    %vm322 = vcmp.eq.s32.totalorder %v225, %v307
    %vm323 = vcmp.eq.s32.totalorder %v225, %v311
    %vm324 = vcmp.eq.s32.totalorder %v228, %v307
    %vm325 = vcmp.eq.s32.totalorder %v228, %v311
    %vm326 = vcmp.eq.s32.totalorder %v231, %v307
    %vm327 = vcmp.eq.s32.totalorder %v231, %v311
    %vm328 = vcmp.eq.s32.totalorder %v234, %v307
    %vm329 = vcmp.eq.s32.totalorder %v234, %v311
    %vm330 = vcmp.eq.s32.totalorder %v237, %v307
    %vm331 = vcmp.eq.s32.totalorder %v237, %v311
    %vm332 = vcmp.eq.s32.totalorder %v240, %v307
    %vm333 = vcmp.eq.s32.totalorder %v240, %v311
    %vm334 = vcmp.eq.s32.totalorder %v243, %v307
    %vm335 = vcmp.eq.s32.totalorder %v243, %v311
    %vm336 = vcmp.eq.s32.totalorder %v246, %v307
    %vm337 = vcmp.eq.s32.totalorder %v246, %v311
    %vm338 = vcmp.eq.s32.totalorder %v249, %v307
    %vm339 = vcmp.eq.s32.totalorder %v249, %v311
    %vm340 = vcmp.eq.s32.totalorder %v252, %v307
    %vm341 = vcmp.eq.s32.totalorder %v252, %v311
    %vm342 = vcmp.eq.s32.totalorder %v255, %v307
    %vm343 = vcmp.eq.s32.totalorder %v255, %v311
    %vm344 = vcmp.eq.s32.totalorder %v258, %v307
    %vm345 = vcmp.eq.s32.totalorder %v258, %v311
    %vm346 = vcmp.eq.s32.totalorder %v261, %v307
    %vm347 = vcmp.eq.s32.totalorder %v261, %v311
    %vm348 = vcmp.eq.s32.totalorder %v264, %v307
    %vm349 = vcmp.eq.s32.totalorder %v264, %v311
    %vm350 = vcmp.eq.s32.totalorder %v267, %v307
    %vm351 = vcmp.eq.s32.totalorder %v267, %v311
    %vm352 = vcmp.eq.s32.totalorder %v270, %v307
    %vm353 = vcmp.eq.s32.totalorder %v270, %v311
    %vm354 = vcmp.eq.s32.totalorder %v273, %v307
    %vm355 = vcmp.eq.s32.totalorder %v273, %v311
    %vm356 = vcmp.eq.s32.totalorder %v276, %v307
    %vm357 = vcmp.eq.s32.totalorder %v276, %v311
    %vm358 = vcmp.eq.s32.totalorder %v279, %v307
    %vm359 = vcmp.eq.s32.totalorder %v279, %v311
    %vm360 = vcmp.eq.s32.totalorder %v282, %v307
    %vm361 = vcmp.eq.s32.totalorder %v282, %v311
    %vm362 = vcmp.eq.s32.totalorder %v285, %v307
    %vm363 = vcmp.eq.s32.totalorder %v285, %v311
    %vm364 = vcmp.eq.s32.totalorder %v288, %v307
    %vm365 = vcmp.eq.s32.totalorder %v288, %v311
    %vm366 = vcmp.eq.s32.totalorder %v291, %v307
    %vm367 = vcmp.eq.s32.totalorder %v291, %v311
    %vm368 = vcmp.eq.s32.totalorder %v294, %v307
    %vm369 = vcmp.eq.s32.totalorder %v294, %v311
    %vm370 = vcmp.eq.s32.totalorder %v297, %v307
    %vm371 = vcmp.eq.s32.totalorder %v297, %v311
    %vm372 = vcmp.eq.s32.totalorder %v300, %v307
    %vm373 = vcmp.eq.s32.totalorder %v300, %v311
    %vm374 = vcmp.eq.s32.totalorder %v303, %v307
    %vm375 = vcmp.eq.s32.totalorder %v303, %v311
    %v376 = vld [vmem:[%s1] sm:$0xff]
    %v377 = vld [vmem:[%s1 + $0x8] sm:$0xff]
    %v378 = vld [vmem:[%s1 + $0x10] sm:$0xff]
    %v379 = vld [vmem:[%s1 + $0x18] sm:$0xff]
    %v380 = vld [vmem:[%s13] sm:$0x7]
    %vm385 = vcmask 1040384
    %v386 = vrot.slane %v376, 7
    %v387 = vrot.slane %v377, 7
    %v388 = vsel %vm385, %v386, %v387
    %v389 = vrot.slane %v378, 7
    %v390 = vsel %vm385, %v387, %v389
    %v391 = vrot.slane %v379, 7
    %v392 = vsel %vm385, %v389, %v391
    %v397 = vsel %vm385, 0.0, %v386
    %v398 = vmul.f32 %v397, %v167
    %v399 = vmul.f32 %v388, %v168
    %v400 = vmul.f32 %v390, %v169
    %v401 = vmul.f32 %v392, %v170
    %403 = vset.pattern.permute.xlu0 0
    %404 = vperm.xlu0 %403, %v398
    %v405 = vpop.permute.xlu0 %404
    %408 = vset.pattern.permute.xlu0 0
    %409 = vperm.xlu0 %408, %v399
    %v410 = vpop.permute.xlu0 %409
    %413 = vset.pattern.permute.xlu0 0
    %414 = vperm.xlu0 %413, %v400
    %v415 = vpop.permute.xlu0 %414
    %418 = vset.pattern.permute.xlu0 0
    %419 = vperm.xlu0 %418, %v401
    %v420 = vpop.permute.xlu0 %419
    %v422 = vlaneseq
    %v423 = vshrl.u32 %v422, 7
    %v424 = vsub.s32 0, %v423
    %v425 = vrot.slane %v380, %v424
    %v426 = vmul.f32 %v405, %v425
    %v427 = vmul.f32 %v410, %v425
    %v428 = vmul.f32 %v415, %v425
    %v429 = vmul.f32 %v420, %v425
    %430 = vset.pattern.permute.xlu0 0
    %431 = vperm.xlu0 %430, %v376
    %v432 = vpop.permute.xlu0 %431
    %434 = vset.pattern.permute.xlu0 0
    %435 = vperm.xlu0 %434, %v377
    %v436 = vpop.permute.xlu0 %435
    %438 = vset.pattern.permute.xlu0 0
    %439 = vperm.xlu0 %438, %v378
    %v440 = vpop.permute.xlu0 %439
    %442 = vset.pattern.permute.xlu0 0
    %443 = vperm.xlu0 %442, %v379
    %v444 = vpop.permute.xlu0 %443
    %v446 = vlaneseq
    %v447 = vshrl.u32 %v446, 7
    %v448 = vsub.s32 1, %v447
    %v449 = vrot.slane %v380, %v448
    %v450 = vmul.f32 %v432, %v449
    %v451 = vmul.f32 %v436, %v449
    %v452 = vmul.f32 %v440, %v449
    %v453 = vmul.f32 %v444, %v449
    %v454 = vadd.f32 %v426, %v450
    %v455 = vadd.f32 %v427, %v451
    %v456 = vadd.f32 %v428, %v452
    %v457 = vadd.f32 %v429, %v453
    %vm458 = vcmask 1046528
    %v459 = vrot.slane %v376, 1
    %v460 = vrot.slane %v377, 1
    %v461 = vsel %vm458, %v459, %v460
    %v462 = vrot.slane %v378, 1
    %v463 = vsel %vm458, %v460, %v462
    %v464 = vrot.slane %v379, 1
    %v465 = vsel %vm458, %v462, %v464
    %v470 = vsel %vm458, %v464, 0.0
    %v471 = vmul.f32 %v461, %v171
    %v472 = vmul.f32 %v463, %v172
    %v473 = vmul.f32 %v465, %v173
    %v474 = vmul.f32 %v470, %v174
    %476 = vset.pattern.permute.xlu0 0
    %477 = vperm.xlu0 %476, %v471
    %v478 = vpop.permute.xlu0 %477
    %481 = vset.pattern.permute.xlu0 0
    %482 = vperm.xlu0 %481, %v472
    %v483 = vpop.permute.xlu0 %482
    %486 = vset.pattern.permute.xlu0 0
    %487 = vperm.xlu0 %486, %v473
    %v488 = vpop.permute.xlu0 %487
    %491 = vset.pattern.permute.xlu0 0
    %492 = vperm.xlu0 %491, %v474
    %v493 = vpop.permute.xlu0 %492
    %v495 = vlaneseq
    %v496 = vshrl.u32 %v495, 7
    %v497 = vsub.s32 2, %v496
    %v498 = vrot.slane %v380, %v497
    %v499 = vmul.f32 %v478, %v498
    %v500 = vmul.f32 %v483, %v498
    %v501 = vmul.f32 %v488, %v498
    %v502 = vmul.f32 %v493, %v498
    %v503 = vadd.f32 %v454, %v499
    %v504 = vadd.f32 %v455, %v500
    %v505 = vadd.f32 %v456, %v501
    %v506 = vadd.f32 %v457, %v502
    %v507 = vld [vmem:[%s15] sm:$0x1]
    %v509 = vlaneseq
    %v510 = vshrl.u32 %v509, 7
    %v511 = vsub.s32 0, %v510
    %v512 = vrot.slane %v507, %v511
    %v514 = vadd.f32 %v503, %v512
    %v515 = vadd.f32 %v504, %v512
    %v516 = vadd.f32 %v505, %v512
    %v517 = vadd.f32 %v506, %v512
    %v518 = vld [vmem:[%s21] sm:$0x1]
    %v520 = vlaneseq
    %v521 = vshrl.u32 %v520, 7
    %v522 = vsub.s32 0, %v521
    %v523 = vrot.slane %v518, %v522
    %v525 = vmul.f32 %v432, %v523
    %v526 = vmul.f32 %v436, %v523
    %v527 = vmul.f32 %v440, %v523
    %v528 = vmul.f32 %v444, %v523
    %v529 = vld [vmem:[%s23] sm:$0x1]
    %v531 = vlaneseq
    %v532 = vshrl.u32 %v531, 7
    %v533 = vsub.s32 0, %v532
    %v534 = vrot.slane %v529, %v533
    %v536 = vadd.f32 %v525, %v534
    %v537 = vadd.f32 %v526, %v534
    %v538 = vadd.f32 %v527, %v534
    %v539 = vadd.f32 %v528, %v534
    %v540 = vmax.f32 %v514, 0.0
    %v541 = vmax.f32 %v515, 0.0
    %v542 = vmax.f32 %v516, 0.0
    %v543 = vmax.f32 %v517, 0.0
    %v544 = vld [vmem:[%s17] sm:$0xff]
    %v545 = vld [vmem:[%s17 + $0x8] sm:$0xff]
    %v546 = vld [vmem:[%s17 + $0x10] sm:$0xff]
    %v547 = vld [vmem:[%s17 + $0x18] sm:$0xff]
    %v548 = vld [vmem:[%s17 + $0x20] sm:$0xff]
    %v549 = vld [vmem:[%s17 + $0x28] sm:$0xff]
    %v550 = vld [vmem:[%s17 + $0x30] sm:$0xff]
    %v551 = vld [vmem:[%s17 + $0x38] sm:$0xff]
    %v552 = vld [vmem:[%s17 + $0x40] sm:$0xff]
    %v553 = vld [vmem:[%s17 + $0x48] sm:$0xff]
    %v554 = vld [vmem:[%s17 + $0x50] sm:$0xff]
    %v555 = vld [vmem:[%s17 + $0x58] sm:$0xff]
    %v556 = vld [vmem:[%s17 + $0x60] sm:$0xff]
    %v557 = vld [vmem:[%s17 + $0x68] sm:$0xff]
    %v558 = vld [vmem:[%s17 + $0x70] sm:$0xff]
    %v559 = vld [vmem:[%s17 + $0x78] sm:$0xff]
    %v560 = vld [vmem:[%s17 + $0x80] sm:$0xff]
    %v561 = vld [vmem:[%s17 + $0x88] sm:$0xff]
    %v562 = vld [vmem:[%s17 + $0x90] sm:$0xff]
    %v563 = vld [vmem:[%s17 + $0x98] sm:$0xff]
    %v564 = vld [vmem:[%s17 + $0xa0] sm:$0xff]
    %v565 = vld [vmem:[%s17 + $0xa8] sm:$0xff]
    %v566 = vld [vmem:[%s17 + $0xb0] sm:$0xff]
    %v567 = vld [vmem:[%s17 + $0xb8] sm:$0xff]
    %v568 = vld [vmem:[%s19] sm:$0x1]
    %v573 = vrot.slane %v540, 7
    %v574 = vrot.slane %v541, 7
    %v575 = vsel %vm385, %v573, %v574
    %v576 = vrot.slane %v542, 7
    %v577 = vsel %vm385, %v574, %v576
    %v578 = vrot.slane %v543, 7
    %v579 = vsel %vm385, %v576, %v578
    %v584 = vsel %vm385, 0.0, %v573
    %586 = vset.pattern.permute.xlu0 0
    %587 = vperm.xlu0 %586, %v167
    %v588 = vpop.permute.xlu0 %587
    %591 = vset.pattern.permute.xlu0 0
    %592 = vperm.xlu0 %591, %v168
    %v593 = vpop.permute.xlu0 %592
    %596 = vset.pattern.permute.xlu0 0
    %597 = vperm.xlu0 %596, %v169
    %v598 = vpop.permute.xlu0 %597
    %601 = vset.pattern.permute.xlu0 0
    %602 = vperm.xlu0 %601, %v170
    %v603 = vpop.permute.xlu0 %602
    %v605 = vmul.f32 %v584, %v588
    %v606 = vmul.f32 %v575, %v593
    %v607 = vmul.f32 %v577, %v598
    %v608 = vmul.f32 %v579, %v603
    %v609 = vrot.slane %v540, 1
    %v610 = vrot.slane %v541, 1
    %v611 = vsel %vm458, %v609, %v610
    %v612 = vrot.slane %v542, 1
    %v613 = vsel %vm458, %v610, %v612
    %v614 = vrot.slane %v543, 1
    %v615 = vsel %vm458, %v612, %v614
    %v620 = vsel %vm458, %v614, 0.0
    %622 = vset.pattern.permute.xlu0 0
    %623 = vperm.xlu0 %622, %v171
    %v624 = vpop.permute.xlu0 %623
    %627 = vset.pattern.permute.xlu0 0
    %628 = vperm.xlu0 %627, %v172
    %v629 = vpop.permute.xlu0 %628
    %632 = vset.pattern.permute.xlu0 0
    %633 = vperm.xlu0 %632, %v173
    %v634 = vpop.permute.xlu0 %633
    %637 = vset.pattern.permute.xlu0 0
    %638 = vperm.xlu0 %637, %v174
    %v639 = vpop.permute.xlu0 %638
    %v641 = vmul.f32 %v611, %v624
    %v642 = vmul.f32 %v613, %v629
    %v643 = vmul.f32 %v615, %v634
    %v644 = vmul.f32 %v620, %v639
    %645 = vrot.lane.b32.xlu0 %v540, 64
    %v646 = vpop.permute.xlu0 %645
    %647 = vrot.lane.b32.xlu0 %v541, 64
    %v648 = vpop.permute.xlu0 %647
    %649 = vrot.lane.b32.xlu0 %v542, 64
    %v650 = vpop.permute.xlu0 %649
    %651 = vrot.lane.b32.xlu0 %v543, 64
    %v652 = vpop.permute.xlu0 %651
    %vm657 = vcmask 523264
    %v658 = vsel %vm657, %v605, %v646
    %v659 = vsel %vm657, %v606, %v648
    %v660 = vsel %vm657, %v607, %v650
    %v661 = vsel %vm657, %v608, %v652
    %v663 = vlaneseq
    %v664 = vshrl.u32 %v663, 7
    %v665 = vsub.s32 0, %v664
    %v666 = vrot.slane %v568, %v665
    %v669 = vsel %vm657, %v641, 0
    %v672 = vsel %vm657, %v642, 0
    %v675 = vsel %vm657, %v643, 0
    %v678 = vsel %vm657, %v644, 0
    %680 = vmatprep.subr.mxu0 0.0
    %681 = vmatpush1.msra.mxu0 %v544
    %682 = vmatprep.subr.mxu0 0.0
    %683 = vmatpush1.msra.mxu0 %v545
    %684 = vmatprep.subr.mxu0 0.0
    %685 = vmatpush1.msra.mxu0 %v546
    %686 = vmatprep.subr.mxu0 0.0
    %687 = vmatpush1.msra.mxu0 %v547
    %688 = vmatprep.subr.mxu0 0.0
    %689 = vmatpush1.msra.mxu0 %v548
    %690 = vmatprep.subr.mxu0 0.0
    %691 = vmatpush1.msra.mxu0 %v549
    %692 = vmatprep.subr.mxu0 0.0
    %693 = vmatpush1.msra.mxu0 %v550
    %694 = vmatprep.subr.mxu0 0.0
    %695 = vmatpush1.msra.mxu0 %v551
    %696 = vmatprep.subr.mxu0 0.0
    %697 = vmatpush1.msra.mxu0 %v552
    %698 = vmatprep.subr.mxu0 0.0
    %699 = vmatpush1.msra.mxu0 %v553
    %700 = vmatprep.subr.mxu0 0.0
    %701 = vmatpush1.msra.mxu0 %v554
    %702 = vmatprep.subr.mxu0 0.0
    %703 = vmatpush1.msra.mxu0 %v555
    %704 = vmatprep.subr.mxu0 0.0
    %705 = vmatpush1.msra.mxu0 %v556
    %706 = vmatprep.subr.mxu0 0.0
    %707 = vmatpush1.msra.mxu0 %v557
    %708 = vmatprep.subr.mxu0 0.0
    %709 = vmatpush1.msra.mxu0 %v558
    %710 = vmatprep.subr.mxu0 0.0
    %711 = vmatpush1.msra.mxu0 %v559
    %712 = vmatprep.subr.mxu0 0.0
    %713 = vmatpush1.msra.mxu0 %v560
    %714 = vmatprep.subr.mxu0 0.0
    %715 = vmatpush1.msra.mxu0 %v561
    %716 = vmatprep.subr.mxu0 0.0
    %717 = vmatpush1.msra.mxu0 %v562
    %718 = vmatprep.subr.mxu0 0.0
    %719 = vmatpush1.msra.mxu0 %v563
    %720 = vmatprep.subr.mxu0 0.0
    %721 = vmatpush1.msra.mxu0 %v564
    %722 = vmatprep.subr.mxu0 0.0
    %723 = vmatpush1.msra.mxu0 %v565
    %724 = vmatprep.subr.mxu0 0.0
    %725 = vmatpush1.msra.mxu0 %v566
    %726 = vmatprep.subr.mxu0 0.0
    %727 = vmatpush1.msra.mxu0 %v567
    %728 = vmatprep.subr.mxu0 0.0
    %729 = vmatpush1.msra.mxu0 0.0
    %730 = vmatprep.subr.mxu0 0.0
    %731 = vmatpush1.msra.mxu0 0.0
    %732 = vmatprep.subr.mxu0 0.0
    %733 = vmatpush1.msra.mxu0 0.0
    %734 = vmatprep.subr.mxu0 0.0
    %735 = vmatpush1.msra.mxu0 0.0
    %736 = vmatprep.subr.mxu0 0.0
    %737 = vmatpush1.msra.mxu0 0.0
    %738 = vmatprep.subr.mxu0 0.0
    %739 = vmatpush1.msra.mxu0 0.0
    %740 = vmatprep.subr.mxu0 0.0
    %741 = vmatpush1.msra.mxu0 0.0
    %742 = vmatprep.subr.mxu0 0.0
    %743 = vmatpush1.msra.mxu0 0.0
    %744 = vmatprep.mubr.f32.mxu0 %v669
    %745 = vmatmul.mubr.f32.gmra.mrb[0].mxu0 %v658
    %v746 = vpop.f32.mrb[0].mxu0
    %v747 = vadd.f32 %v666, %v746
    %v748 = vpop.f32.mrb[0].mxu0
    %749 = vmatprep.mubr.f32.mxu0 %v672
    %750 = vmatmul.mubr.f32.gmra.mrb[0].mxu0 %v659
    %v751 = vpop.f32.mrb[0].mxu0
    %v752 = vadd.f32 %v666, %v751
    %v753 = vpop.f32.mrb[0].mxu0
    %754 = vmatprep.mubr.f32.mxu0 %v675
    %755 = vmatmul.mubr.f32.gmra.mrb[0].mxu0 %v660
    %v756 = vpop.f32.mrb[0].mxu0
    %v757 = vadd.f32 %v666, %v756
    %v758 = vpop.f32.mrb[0].mxu0
    %759 = vmatprep.mubr.f32.mxu0 %v678
    %760 = vmatmul.mubr.f32.gmra.mrb[0].mxu0 %v661
    %v761 = vpop.f32.mrb[0].mxu0
    %v762 = vadd.f32 %v666, %v761
    %v763 = vpop.f32.mrb[0].mxu0
    %764 = vdwg.mxu0
    %v765 = vadd.f32 %v747, %v536
    %v766 = vadd.f32 %v752, %v537
    %v767 = vadd.f32 %v757, %v538
    %v768 = vadd.f32 %v762, %v539
    %v769 = vld [vmem:[%s25] sm:$0x1]
    %v771 = vlaneseq
    %v772 = vshrl.u32 %v771, 7
    %v773 = vsub.s32 0, %v772
    %v774 = vrot.slane %v769, %v773
    %v776 = vmul.f32 %v765, %v774
    %v777 = vmul.f32 %v766, %v774
    %v778 = vmul.f32 %v767, %v774
    %v779 = vmul.f32 %v768, %v774
    %v780 = vld [vmem:[%s27] sm:$0x1]
    %v782 = vlaneseq
    %v783 = vshrl.u32 %v782, 7
    %v784 = vsub.s32 0, %v783
    %v785 = vrot.slane %v780, %v784
    %v787 = vadd.f32 %v776, %v785
    %v788 = vadd.f32 %v777, %v785
    %v789 = vadd.f32 %v778, %v785
    %v790 = vadd.f32 %v779, %v785
    %v791 = vmax.f32 %v787, 0.0
    %v792 = vmax.f32 %v788, 0.0
    %v793 = vmax.f32 %v789, 0.0
    %v794 = vmax.f32 %v790, 0.0
    %v795 = vld [vmem:[%s29] sm:$0xff]
    %v796 = vld [vmem:[%s29 + $0x8] sm:$0xff]
    %v797 = vld [vmem:[%s29 + $0x10] sm:$0xff]
    %v798 = vld [vmem:[%s29 + $0x18] sm:$0xff]
    %v799 = vld [vmem:[%s29 + $0x20] sm:$0xff]
    %v800 = vld [vmem:[%s29 + $0x28] sm:$0xff]
    %v801 = vld [vmem:[%s29 + $0x30] sm:$0xff]
    %v802 = vld [vmem:[%s29 + $0x38] sm:$0xff]
    %v803 = vld [vmem:[%s29 + $0x40] sm:$0xff]
    %v804 = vld [vmem:[%s29 + $0x48] sm:$0xff]
    %v805 = vld [vmem:[%s29 + $0x50] sm:$0xff]
    %v806 = vld [vmem:[%s29 + $0x58] sm:$0xff]
    %v807 = vld [vmem:[%s29 + $0x60] sm:$0xff]
    %v808 = vld [vmem:[%s29 + $0x68] sm:$0xff]
    %v809 = vld [vmem:[%s29 + $0x70] sm:$0xff]
    %v810 = vld [vmem:[%s29 + $0x78] sm:$0xff]
    %v811 = vld [vmem:[%s29 + $0x80] sm:$0xff]
    %v812 = vld [vmem:[%s29 + $0x88] sm:$0xff]
    %v813 = vld [vmem:[%s29 + $0x90] sm:$0xff]
    %v814 = vld [vmem:[%s29 + $0x98] sm:$0xff]
    %v815 = vld [vmem:[%s29 + $0xa0] sm:$0xff]
    %v816 = vld [vmem:[%s29 + $0xa8] sm:$0xff]
    %v817 = vld [vmem:[%s29 + $0xb0] sm:$0xff]
    %v818 = vld [vmem:[%s29 + $0xb8] sm:$0xff]
    %v819 = vld [vmem:[%s31] sm:$0x1]
    %v824 = vrot.slane %v791, 7
    %v825 = vrot.slane %v792, 7
    %v826 = vsel %vm385, %v824, %v825
    %v827 = vrot.slane %v793, 7
    %v828 = vsel %vm385, %v825, %v827
    %v829 = vrot.slane %v794, 7
    %v830 = vsel %vm385, %v827, %v829
    %v835 = vsel %vm385, 0.0, %v824
    %v836 = vmul.f32 %v835, %v588
    %v837 = vmul.f32 %v826, %v593
    %v838 = vmul.f32 %v828, %v598
    %v839 = vmul.f32 %v830, %v603
    %v840 = vrot.slane %v791, 1
    %v841 = vrot.slane %v792, 1
    %v842 = vsel %vm458, %v840, %v841
    %v843 = vrot.slane %v793, 1
    %v844 = vsel %vm458, %v841, %v843
    %v845 = vrot.slane %v794, 1
    %v846 = vsel %vm458, %v843, %v845
    %v851 = vsel %vm458, %v845, 0.0
    %v852 = vmul.f32 %v842, %v624
    %v853 = vmul.f32 %v844, %v629
    %v854 = vmul.f32 %v846, %v634
    %v855 = vmul.f32 %v851, %v639
    %856 = vrot.lane.b32.xlu0 %v791, 64
    %v857 = vpop.permute.xlu0 %856
    %858 = vrot.lane.b32.xlu0 %v792, 64
    %v859 = vpop.permute.xlu0 %858
    %860 = vrot.lane.b32.xlu0 %v793, 64
    %v861 = vpop.permute.xlu0 %860
    %862 = vrot.lane.b32.xlu0 %v794, 64
    %v863 = vpop.permute.xlu0 %862
    %v868 = vsel %vm657, %v836, %v857
    %v869 = vsel %vm657, %v837, %v859
    %v870 = vsel %vm657, %v838, %v861
    %v871 = vsel %vm657, %v839, %v863
    %v873 = vlaneseq
    %v874 = vshrl.u32 %v873, 7
    %v875 = vsub.s32 0, %v874
    %v876 = vrot.slane %v819, %v875
    %v879 = vsel %vm657, %v852, 0
    %v882 = vsel %vm657, %v853, 0
    %v885 = vsel %vm657, %v854, 0
    %v888 = vsel %vm657, %v855, 0
    %890 = vmatprep.subr.mxu0 0.0
    %891 = vmatpush1.msra.mxu0 %v795
    %892 = vmatprep.subr.mxu0 0.0
    %893 = vmatpush1.msra.mxu0 %v796
    %894 = vmatprep.subr.mxu0 0.0
    %895 = vmatpush1.msra.mxu0 %v797
    %896 = vmatprep.subr.mxu0 0.0
    %897 = vmatpush1.msra.mxu0 %v798
    %898 = vmatprep.subr.mxu0 0.0
    %899 = vmatpush1.msra.mxu0 %v799
    %900 = vmatprep.subr.mxu0 0.0
    %901 = vmatpush1.msra.mxu0 %v800
    %902 = vmatprep.subr.mxu0 0.0
    %903 = vmatpush1.msra.mxu0 %v801
    %904 = vmatprep.subr.mxu0 0.0
    %905 = vmatpush1.msra.mxu0 %v802
    %906 = vmatprep.subr.mxu0 0.0
    %907 = vmatpush1.msra.mxu0 %v803
    %908 = vmatprep.subr.mxu0 0.0
    %909 = vmatpush1.msra.mxu0 %v804
    %910 = vmatprep.subr.mxu0 0.0
    %911 = vmatpush1.msra.mxu0 %v805
    %912 = vmatprep.subr.mxu0 0.0
    %913 = vmatpush1.msra.mxu0 %v806
    %914 = vmatprep.subr.mxu0 0.0
    %915 = vmatpush1.msra.mxu0 %v807
    %916 = vmatprep.subr.mxu0 0.0
    %917 = vmatpush1.msra.mxu0 %v808
    %918 = vmatprep.subr.mxu0 0.0
    %919 = vmatpush1.msra.mxu0 %v809
    %920 = vmatprep.subr.mxu0 0.0
    %921 = vmatpush1.msra.mxu0 %v810
    %922 = vmatprep.subr.mxu0 0.0
    %923 = vmatpush1.msra.mxu0 %v811
    %924 = vmatprep.subr.mxu0 0.0
    %925 = vmatpush1.msra.mxu0 %v812
    %926 = vmatprep.subr.mxu0 0.0
    %927 = vmatpush1.msra.mxu0 %v813
    %928 = vmatprep.subr.mxu0 0.0
    %929 = vmatpush1.msra.mxu0 %v814
    %930 = vmatprep.subr.mxu0 0.0
    %931 = vmatpush1.msra.mxu0 %v815
    %932 = vmatprep.subr.mxu0 0.0
    %933 = vmatpush1.msra.mxu0 %v816
    %934 = vmatprep.subr.mxu0 0.0
    %935 = vmatpush1.msra.mxu0 %v817
    %936 = vmatprep.subr.mxu0 0.0
    %937 = vmatpush1.msra.mxu0 %v818
    %938 = vmatprep.subr.mxu0 0.0
    %939 = vmatpush1.msra.mxu0 0.0
    %940 = vmatprep.subr.mxu0 0.0
    %941 = vmatpush1.msra.mxu0 0.0
    %942 = vmatprep.subr.mxu0 0.0
    %943 = vmatpush1.msra.mxu0 0.0
    %944 = vmatprep.subr.mxu0 0.0
    %945 = vmatpush1.msra.mxu0 0.0
    %946 = vmatprep.subr.mxu0 0.0
    %947 = vmatpush1.msra.mxu0 0.0
    %948 = vmatprep.subr.mxu0 0.0
    %949 = vmatpush1.msra.mxu0 0.0
    %950 = vmatprep.subr.mxu0 0.0
    %951 = vmatpush1.msra.mxu0 0.0
    %952 = vmatprep.subr.mxu0 0.0
    %953 = vmatpush1.msra.mxu0 0.0
    %954 = vmatprep.mubr.f32.mxu0 %v879
    %955 = vmatmul.mubr.f32.gmra.mrb[0].mxu0 %v868
    %v956 = vpop.f32.mrb[0].mxu0
    %v957 = vadd.f32 %v876, %v956
    %v958 = vpop.f32.mrb[0].mxu0
    %959 = vmatprep.mubr.f32.mxu0 %v882
    %960 = vmatmul.mubr.f32.gmra.mrb[0].mxu0 %v869
    %v961 = vpop.f32.mrb[0].mxu0
    %v962 = vadd.f32 %v876, %v961
    %v963 = vpop.f32.mrb[0].mxu0
    %964 = vmatprep.mubr.f32.mxu0 %v885
    %965 = vmatmul.mubr.f32.gmra.mrb[0].mxu0 %v870
    %v966 = vpop.f32.mrb[0].mxu0
    %v967 = vadd.f32 %v876, %v966
    %v968 = vpop.f32.mrb[0].mxu0
    %969 = vmatprep.mubr.f32.mxu0 %v888
    %970 = vmatmul.mubr.f32.gmra.mrb[0].mxu0 %v871
    %v971 = vpop.f32.mrb[0].mxu0
    %v972 = vadd.f32 %v876, %v971
    %v973 = vpop.f32.mrb[0].mxu0
    %974 = vdwg.mxu0
    %v975 = vld [vmem:[%s37] sm:$0xff]
    %v976 = vld [vmem:[%s37 + $0x8] sm:$0xff]
    %v977 = vld [vmem:[%s37 + $0x10] sm:$0xff]
    %v978 = vld [vmem:[%s37 + $0x18] sm:$0xff]
    %v979 = vld [vmem:[%s37 + $0x20] sm:$0xff]
    %v980 = vld [vmem:[%s37 + $0x28] sm:$0xff]
    %v981 = vld [vmem:[%s37 + $0x30] sm:$0xff]
    %v982 = vld [vmem:[%s37 + $0x38] sm:$0xff]
    %v983 = vld [vmem:[%s39] sm:$0x1]
    %v985 = vlaneseq
    %v986 = vshrl.u32 %v985, 7
    %v987 = vsub.s32 0, %v986
    %v988 = vrot.slane %v983, %v987
    %v990 = vsel %vm657, %v791, 0
    %v992 = vsel %vm657, %v792, 0
    %v994 = vsel %vm657, %v793, 0
    %v996 = vsel %vm657, %v794, 0
    %998 = vmatprep.subr.mxu0 0.0
    %999 = vmatpush1.msra.mxu0 %v975
    %1000 = vmatprep.subr.mxu0 0.0
    %1001 = vmatpush1.msra.mxu0 %v976
    %1002 = vmatprep.subr.mxu0 0.0
    %1003 = vmatpush1.msra.mxu0 %v977
    %1004 = vmatprep.subr.mxu0 0.0
    %1005 = vmatpush1.msra.mxu0 %v978
    %1006 = vmatprep.subr.mxu0 0.0
    %1007 = vmatpush1.msra.mxu0 %v979
    %1008 = vmatprep.subr.mxu0 0.0
    %1009 = vmatpush1.msra.mxu0 %v980
    %1010 = vmatprep.subr.mxu0 0.0
    %1011 = vmatpush1.msra.mxu0 %v981
    %1012 = vmatprep.subr.mxu0 0.0
    %1013 = vmatpush1.msra.mxu0 %v982
    %1014 = vmatprep.subr.mxu0 0.0
    %1015 = vmatpush1.msra.mxu0 0.0
    %1016 = vmatprep.subr.mxu0 0.0
    %1017 = vmatpush1.msra.mxu0 0.0
    %1018 = vmatprep.subr.mxu0 0.0
    %1019 = vmatpush1.msra.mxu0 0.0
    %1020 = vmatprep.subr.mxu0 0.0
    %1021 = vmatpush1.msra.mxu0 0.0
    %1022 = vmatprep.subr.mxu0 0.0
    %1023 = vmatpush1.msra.mxu0 0.0
    %1024 = vmatprep.subr.mxu0 0.0
    %1025 = vmatpush1.msra.mxu0 0.0
    %1026 = vmatprep.subr.mxu0 0.0
    %1027 = vmatpush1.msra.mxu0 0.0
    %1028 = vmatprep.subr.mxu0 0.0
    %1029 = vmatpush1.msra.mxu0 0.0
    %1030 = vmatprep.subr.mxu0 0.0
    %1031 = vmatpush1.msra.mxu0 0.0
    %1032 = vmatprep.subr.mxu0 0.0
    %1033 = vmatpush1.msra.mxu0 0.0
    %1034 = vmatprep.subr.mxu0 0.0
    %1035 = vmatpush1.msra.mxu0 0.0
    %1036 = vmatprep.subr.mxu0 0.0
    %1037 = vmatpush1.msra.mxu0 0.0
    %1038 = vmatprep.subr.mxu0 0.0
    %1039 = vmatpush1.msra.mxu0 0.0
    %1040 = vmatprep.subr.mxu0 0.0
    %1041 = vmatpush1.msra.mxu0 0.0
    %1042 = vmatprep.subr.mxu0 0.0
    %1043 = vmatpush1.msra.mxu0 0.0
    %1044 = vmatprep.subr.mxu0 0.0
    %1045 = vmatpush1.msra.mxu0 0.0
    %1046 = vmatprep.subr.mxu0 0.0
    %1047 = vmatpush1.msra.mxu0 0.0
    %1048 = vmatprep.subr.mxu0 0.0
    %1049 = vmatpush1.msra.mxu0 0.0
    %1050 = vmatprep.subr.mxu0 0.0
    %1051 = vmatpush1.msra.mxu0 0.0
    %1052 = vmatprep.subr.mxu0 0.0
    %1053 = vmatpush1.msra.mxu0 0.0
    %1054 = vmatprep.subr.mxu0 0.0
    %1055 = vmatpush1.msra.mxu0 0.0
    %1056 = vmatprep.subr.mxu0 0.0
    %1057 = vmatpush1.msra.mxu0 0.0
    %1058 = vmatprep.subr.mxu0 0.0
    %1059 = vmatpush1.msra.mxu0 0.0
    %1060 = vmatprep.subr.mxu0 0.0
    %1061 = vmatpush1.msra.mxu0 0.0
    %1062 = vmatprep.mubr.f32.mxu0 0.0
    %1063 = vmatmul.mubr.f32.gmra.mrb[0].mxu0 %v990
    %v1064 = vpop.f32.mrb[0].mxu0
    %v1065 = vadd.f32 %v988, %v1064
    %v1066 = vpop.f32.mrb[0].mxu0
    %1067 = vmatprep.mubr.f32.mxu0 0.0
    %1068 = vmatmul.mubr.f32.gmra.mrb[0].mxu0 %v992
    %v1069 = vpop.f32.mrb[0].mxu0
    %v1070 = vadd.f32 %v988, %v1069
    %v1071 = vpop.f32.mrb[0].mxu0
    %1072 = vmatprep.mubr.f32.mxu0 0.0
    %1073 = vmatmul.mubr.f32.gmra.mrb[0].mxu0 %v994
    %v1074 = vpop.f32.mrb[0].mxu0
    %v1075 = vadd.f32 %v988, %v1074
    %v1076 = vpop.f32.mrb[0].mxu0
    %1077 = vmatprep.mubr.f32.mxu0 0.0
    %1078 = vmatmul.mubr.f32.gmra.mrb[0].mxu0 %v996
    %v1079 = vpop.f32.mrb[0].mxu0
    %v1080 = vadd.f32 %v988, %v1079
    %v1081 = vpop.f32.mrb[0].mxu0
    %1082 = vdwg.mxu0
    %v1083 = vmax.f32 %v957, 0.0
    %v1084 = vmax.f32 %v962, 0.0
    %v1085 = vmax.f32 %v967, 0.0
    %v1086 = vmax.f32 %v972, 0.0
    %v1087 = vld [vmem:[%s33] sm:$0xff]
    %v1088 = vld [vmem:[%s33 + $0x8] sm:$0xff]
    %v1089 = vld [vmem:[%s33 + $0x10] sm:$0xff]
    %v1090 = vld [vmem:[%s33 + $0x18] sm:$0xff]
    %v1091 = vld [vmem:[%s33 + $0x20] sm:$0xff]
    %v1092 = vld [vmem:[%s33 + $0x28] sm:$0xff]
    %v1093 = vld [vmem:[%s33 + $0x30] sm:$0xff]
    %v1094 = vld [vmem:[%s33 + $0x38] sm:$0xff]
    %v1095 = vld [vmem:[%s33 + $0x40] sm:$0xff]
    %v1096 = vld [vmem:[%s33 + $0x48] sm:$0xff]
    %v1097 = vld [vmem:[%s33 + $0x50] sm:$0xff]
    %v1098 = vld [vmem:[%s33 + $0x58] sm:$0xff]
    %v1099 = vld [vmem:[%s33 + $0x60] sm:$0xff]
    %v1100 = vld [vmem:[%s33 + $0x68] sm:$0xff]
    %v1101 = vld [vmem:[%s33 + $0x70] sm:$0xff]
    %v1102 = vld [vmem:[%s33 + $0x78] sm:$0xff]
    %v1103 = vld [vmem:[%s33 + $0x80] sm:$0xff]
    %v1104 = vld [vmem:[%s33 + $0x88] sm:$0xff]
    %v1105 = vld [vmem:[%s33 + $0x90] sm:$0xff]
    %v1106 = vld [vmem:[%s33 + $0x98] sm:$0xff]
    %v1107 = vld [vmem:[%s33 + $0xa0] sm:$0xff]
    %v1108 = vld [vmem:[%s33 + $0xa8] sm:$0xff]
    %v1109 = vld [vmem:[%s33 + $0xb0] sm:$0xff]
    %v1110 = vld [vmem:[%s33 + $0xb8] sm:$0xff]
    %v1111 = vld [vmem:[%s33 + $0xc0] sm:$0xff]
    %v1112 = vld [vmem:[%s33 + $0xc8] sm:$0xff]
    %v1113 = vld [vmem:[%s33 + $0xd0] sm:$0xff]
    %v1114 = vld [vmem:[%s33 + $0xd8] sm:$0xff]
    %v1115 = vld [vmem:[%s33 + $0xe0] sm:$0xff]
    %v1116 = vld [vmem:[%s33 + $0xe8] sm:$0xff]
    %v1117 = vld [vmem:[%s33 + $0xf0] sm:$0xff]
    %v1118 = vld [vmem:[%s33 + $0xf8] sm:$0xff]
    %v1119 = vld [vmem:[%s33 + $0x100] sm:$0xff]
    %v1120 = vld [vmem:[%s33 + $0x108] sm:$0xff]
    %v1121 = vld [vmem:[%s33 + $0x110] sm:$0xff]
    %v1122 = vld [vmem:[%s33 + $0x118] sm:$0xff]
    %v1123 = vld [vmem:[%s33 + $0x120] sm:$0xff]
    %v1124 = vld [vmem:[%s33 + $0x128] sm:$0xff]
    %v1125 = vld [vmem:[%s33 + $0x130] sm:$0xff]
    %v1126 = vld [vmem:[%s33 + $0x138] sm:$0xff]
    %v1127 = vld [vmem:[%s33 + $0x140] sm:$0xff]
    %v1128 = vld [vmem:[%s33 + $0x148] sm:$0xff]
    %v1129 = vld [vmem:[%s33 + $0x150] sm:$0xff]
    %v1130 = vld [vmem:[%s33 + $0x158] sm:$0xff]
    %v1131 = vld [vmem:[%s33 + $0x160] sm:$0xff]
    %v1132 = vld [vmem:[%s33 + $0x168] sm:$0xff]
    %v1133 = vld [vmem:[%s33 + $0x170] sm:$0xff]
    %v1134 = vld [vmem:[%s33 + $0x178] sm:$0xff]
    %v1135 = vld [vmem:[%s35] sm:$0x1]
    %v1140 = vrot.slane %v1083, 7
    %v1141 = vrot.slane %v1084, 7
    %v1142 = vsel %vm385, %v1140, %v1141
    %v1143 = vrot.slane %v1085, 7
    %v1144 = vsel %vm385, %v1141, %v1143
    %v1145 = vrot.slane %v1086, 7
    %v1146 = vsel %vm385, %v1143, %v1145
    %v1151 = vsel %vm385, 0.0, %v1140
    %v1152 = vmul.f32 %v1151, %v588
    %v1153 = vmul.f32 %v1142, %v593
    %v1154 = vmul.f32 %v1144, %v598
    %v1155 = vmul.f32 %v1146, %v603
    %v1156 = vrot.slane %v1083, 1
    %v1157 = vrot.slane %v1084, 1
    %v1158 = vsel %vm458, %v1156, %v1157
    %v1159 = vrot.slane %v1085, 1
    %v1160 = vsel %vm458, %v1157, %v1159
    %v1161 = vrot.slane %v1086, 1
    %v1162 = vsel %vm458, %v1159, %v1161
    %v1167 = vsel %vm458, %v1161, 0.0
    %v1168 = vmul.f32 %v1158, %v624
    %v1169 = vmul.f32 %v1160, %v629
    %v1170 = vmul.f32 %v1162, %v634
    %v1171 = vmul.f32 %v1167, %v639
    %v1173 = vlaneseq
    %v1174 = vshrl.u32 %v1173, 7
    %v1175 = vsub.s32 0, %v1174
    %v1176 = vrot.slane %v1135, %v1175
    %1178 = vmatprep.subr.mxu0 0.0
    %1179 = vmatpush1.msra.mxu0 %v1087
    %1180 = vmatprep.subr.mxu0 0.0
    %1181 = vmatpush1.msra.mxu0 %v1088
    %1182 = vmatprep.subr.mxu0 0.0
    %1183 = vmatpush1.msra.mxu0 %v1089
    %1184 = vmatprep.subr.mxu0 0.0
    %1185 = vmatpush1.msra.mxu0 %v1090
    %1186 = vmatprep.subr.mxu0 0.0
    %1187 = vmatpush1.msra.mxu0 %v1091
    %1188 = vmatprep.subr.mxu0 0.0
    %1189 = vmatpush1.msra.mxu0 %v1092
    %1190 = vmatprep.subr.mxu0 0.0
    %1191 = vmatpush1.msra.mxu0 %v1093
    %1192 = vmatprep.subr.mxu0 0.0
    %1193 = vmatpush1.msra.mxu0 %v1094
    %1194 = vmatprep.subr.mxu0 0.0
    %1195 = vmatpush1.msra.mxu0 %v1095
    %1196 = vmatprep.subr.mxu0 0.0
    %1197 = vmatpush1.msra.mxu0 %v1096
    %1198 = vmatprep.subr.mxu0 0.0
    %1199 = vmatpush1.msra.mxu0 %v1097
    %1200 = vmatprep.subr.mxu0 0.0
    %1201 = vmatpush1.msra.mxu0 %v1098
    %1202 = vmatprep.subr.mxu0 0.0
    %1203 = vmatpush1.msra.mxu0 %v1099
    %1204 = vmatprep.subr.mxu0 0.0
    %1205 = vmatpush1.msra.mxu0 %v1100
    %1206 = vmatprep.subr.mxu0 0.0
    %1207 = vmatpush1.msra.mxu0 %v1101
    %1208 = vmatprep.subr.mxu0 0.0
    %1209 = vmatpush1.msra.mxu0 %v1102
    %1210 = vmatprep.subr.mxu0 0.0
    %1211 = vmatpush1.msra.mxu0 %v1103
    %1212 = vmatprep.subr.mxu0 0.0
    %1213 = vmatpush1.msra.mxu0 %v1104
    %1214 = vmatprep.subr.mxu0 0.0
    %1215 = vmatpush1.msra.mxu0 %v1105
    %1216 = vmatprep.subr.mxu0 0.0
    %1217 = vmatpush1.msra.mxu0 %v1106
    %1218 = vmatprep.subr.mxu0 0.0
    %1219 = vmatpush1.msra.mxu0 %v1107
    %1220 = vmatprep.subr.mxu0 0.0
    %1221 = vmatpush1.msra.mxu0 %v1108
    %1222 = vmatprep.subr.mxu0 0.0
    %1223 = vmatpush1.msra.mxu0 %v1109
    %1224 = vmatprep.subr.mxu0 0.0
    %1225 = vmatpush1.msra.mxu0 %v1110
    %1226 = vmatprep.subr.mxu0 0.0
    %1227 = vmatpush1.msra.mxu0 %v1111
    %1228 = vmatprep.subr.mxu0 0.0
    %1229 = vmatpush1.msra.mxu0 %v1112
    %1230 = vmatprep.subr.mxu0 0.0
    %1231 = vmatpush1.msra.mxu0 %v1113
    %1232 = vmatprep.subr.mxu0 0.0
    %1233 = vmatpush1.msra.mxu0 %v1114
    %1234 = vmatprep.subr.mxu0 0.0
    %1235 = vmatpush1.msra.mxu0 %v1115
    %1236 = vmatprep.subr.mxu0 0.0
    %1237 = vmatpush1.msra.mxu0 %v1116
    %1238 = vmatprep.subr.mxu0 0.0
    %1239 = vmatpush1.msra.mxu0 %v1117
    %1240 = vmatprep.subr.mxu0 0.0
    %1241 = vmatpush1.msra.mxu0 %v1118
    %1242 = vmatprep.mubr.f32.mxu0 %v1083
    %1243 = vmatmul.mubr.f32.gmra.mrb[0].mxu0 %v1152
    %v1244 = vpop.f32.mrb[0].mxu0
    %v1245 = vadd.f32 %v1176, %v1244
    %v1246 = vpop.f32.mrb[0].mxu0
    %1247 = vmatprep.mubr.f32.mxu0 %v1084
    %1248 = vmatmul.mubr.f32.gmra.mrb[0].mxu0 %v1153
    %v1249 = vpop.f32.mrb[0].mxu0
    %v1250 = vadd.f32 %v1176, %v1249
    %v1251 = vpop.f32.mrb[0].mxu0
    %1252 = vmatprep.mubr.f32.mxu0 %v1085
    %1253 = vmatmul.mubr.f32.gmra.mrb[0].mxu0 %v1154
    %v1254 = vpop.f32.mrb[0].mxu0
    %v1255 = vadd.f32 %v1176, %v1254
    %v1256 = vpop.f32.mrb[0].mxu0
    %1257 = vmatprep.mubr.f32.mxu0 %v1086
    %1258 = vmatmul.mubr.f32.gmra.mrb[0].mxu0 %v1155
    %v1259 = vpop.f32.mrb[0].mxu0
    %v1260 = vadd.f32 %v1176, %v1259
    %v1261 = vpop.f32.mrb[0].mxu0
    %1262 = vdwg.mxu0
    %1263 = vmatprep.subr.mxu0 0.0
    %1264 = vmatpush1.msra.mxu0 %v1119
    %1265 = vmatprep.subr.mxu0 0.0
    %1266 = vmatpush1.msra.mxu0 %v1120
    %1267 = vmatprep.subr.mxu0 0.0
    %1268 = vmatpush1.msra.mxu0 %v1121
    %1269 = vmatprep.subr.mxu0 0.0
    %1270 = vmatpush1.msra.mxu0 %v1122
    %1271 = vmatprep.subr.mxu0 0.0
    %1272 = vmatpush1.msra.mxu0 %v1123
    %1273 = vmatprep.subr.mxu0 0.0
    %1274 = vmatpush1.msra.mxu0 %v1124
    %1275 = vmatprep.subr.mxu0 0.0
    %1276 = vmatpush1.msra.mxu0 %v1125
    %1277 = vmatprep.subr.mxu0 0.0
    %1278 = vmatpush1.msra.mxu0 %v1126
    %1279 = vmatprep.subr.mxu0 0.0
    %1280 = vmatpush1.msra.mxu0 %v1127
    %1281 = vmatprep.subr.mxu0 0.0
    %1282 = vmatpush1.msra.mxu0 %v1128
    %1283 = vmatprep.subr.mxu0 0.0
    %1284 = vmatpush1.msra.mxu0 %v1129
    %1285 = vmatprep.subr.mxu0 0.0
    %1286 = vmatpush1.msra.mxu0 %v1130
    %1287 = vmatprep.subr.mxu0 0.0
    %1288 = vmatpush1.msra.mxu0 %v1131
    %1289 = vmatprep.subr.mxu0 0.0
    %1290 = vmatpush1.msra.mxu0 %v1132
    %1291 = vmatprep.subr.mxu0 0.0
    %1292 = vmatpush1.msra.mxu0 %v1133
    %1293 = vmatprep.subr.mxu0 0.0
    %1294 = vmatpush1.msra.mxu0 %v1134
    %1295 = vmatprep.subr.mxu0 0.0
    %1296 = vmatpush1.msra.mxu0 0.0
    %1297 = vmatprep.subr.mxu0 0.0
    %1298 = vmatpush1.msra.mxu0 0.0
    %1299 = vmatprep.subr.mxu0 0.0
    %1300 = vmatpush1.msra.mxu0 0.0
    %1301 = vmatprep.subr.mxu0 0.0
    %1302 = vmatpush1.msra.mxu0 0.0
    %1303 = vmatprep.subr.mxu0 0.0
    %1304 = vmatpush1.msra.mxu0 0.0
    %1305 = vmatprep.subr.mxu0 0.0
    %1306 = vmatpush1.msra.mxu0 0.0
    %1307 = vmatprep.subr.mxu0 0.0
    %1308 = vmatpush1.msra.mxu0 0.0
    %1309 = vmatprep.subr.mxu0 0.0
    %1310 = vmatpush1.msra.mxu0 0.0
    %1311 = vmatprep.subr.mxu0 0.0
    %1312 = vmatpush1.msra.mxu0 0.0
    %1313 = vmatprep.subr.mxu0 0.0
    %1314 = vmatpush1.msra.mxu0 0.0
    %1315 = vmatprep.subr.mxu0 0.0
    %1316 = vmatpush1.msra.mxu0 0.0
    %1317 = vmatprep.subr.mxu0 0.0
    %1318 = vmatpush1.msra.mxu0 0.0
    %1319 = vmatprep.subr.mxu0 0.0
    %1320 = vmatpush1.msra.mxu0 0.0
    %1321 = vmatprep.subr.mxu0 0.0
    %1322 = vmatpush1.msra.mxu0 0.0
    %1323 = vmatprep.subr.mxu0 0.0
    %1324 = vmatpush1.msra.mxu0 0.0
    %1325 = vmatprep.subr.mxu0 0.0
    %1326 = vmatpush1.msra.mxu0 0.0
    %1327 = vmatprep.mubr.f32.mxu0 0.0
    %1328 = vmatmul.mubr.f32.gmra.mrb[0].mxu0 %v1168
    %v1329 = vpop.f32.mrb[0].mxu0
    %v1330 = vadd.f32 %v1245, %v1329
    %v1331 = vpop.f32.mrb[0].mxu0
    %1332 = vmatprep.mubr.f32.mxu0 0.0
    %1333 = vmatmul.mubr.f32.gmra.mrb[0].mxu0 %v1169
    %v1334 = vpop.f32.mrb[0].mxu0
    %v1335 = vadd.f32 %v1250, %v1334
    %v1336 = vpop.f32.mrb[0].mxu0
    %1337 = vmatprep.mubr.f32.mxu0 0.0
    %1338 = vmatmul.mubr.f32.gmra.mrb[0].mxu0 %v1170
    %v1339 = vpop.f32.mrb[0].mxu0
    %v1340 = vadd.f32 %v1255, %v1339
    %v1341 = vpop.f32.mrb[0].mxu0
    %1342 = vmatprep.mubr.f32.mxu0 0.0
    %1343 = vmatmul.mubr.f32.gmra.mrb[0].mxu0 %v1171
    %v1344 = vpop.f32.mrb[0].mxu0
    %v1345 = vadd.f32 %v1260, %v1344
    %v1346 = vpop.f32.mrb[0].mxu0
    %1347 = vdwg.mxu0
    %v1348 = vadd.f32 %v1330, %v1065
    %v1349 = vadd.f32 %v1335, %v1070
    %v1350 = vadd.f32 %v1340, %v1075
    %v1351 = vadd.f32 %v1345, %v1080
    %v1352 = vld [vmem:[%s41] sm:$0x1]
    %v1354 = vlaneseq
    %v1355 = vshrl.u32 %v1354, 7
    %v1356 = vsub.s32 0, %v1355
    %v1357 = vrot.slane %v1352, %v1356
    %v1359 = vmul.f32 %v1348, %v1357
    %v1360 = vmul.f32 %v1349, %v1357
    %v1361 = vmul.f32 %v1350, %v1357
    %v1362 = vmul.f32 %v1351, %v1357
    %v1363 = vld [vmem:[%s43] sm:$0x1]
    %v1365 = vlaneseq
    %v1366 = vshrl.u32 %v1365, 7
    %v1367 = vsub.s32 0, %v1366
    %v1368 = vrot.slane %v1363, %v1367
    %v1370 = vadd.f32 %v1359, %v1368
    %v1371 = vadd.f32 %v1360, %v1368
    %v1372 = vadd.f32 %v1361, %v1368
    %v1373 = vadd.f32 %v1362, %v1368
    %v1374 = vmax.f32 %v1370, 0.0
    %v1375 = vmax.f32 %v1371, 0.0
    %v1376 = vmax.f32 %v1372, 0.0
    %v1377 = vmax.f32 %v1373, 0.0
    %v1378 = vld [vmem:[%s45] sm:$0xff]
    %v1379 = vld [vmem:[%s45 + $0x8] sm:$0xff]
    %v1380 = vld [vmem:[%s45 + $0x10] sm:$0xff]
    %v1381 = vld [vmem:[%s45 + $0x18] sm:$0xff]
    %v1382 = vld [vmem:[%s45 + $0x20] sm:$0xff]
    %v1383 = vld [vmem:[%s45 + $0x28] sm:$0xff]
    %v1384 = vld [vmem:[%s45 + $0x30] sm:$0xff]
    %v1385 = vld [vmem:[%s45 + $0x38] sm:$0xff]
    %v1386 = vld [vmem:[%s45 + $0x40] sm:$0xff]
    %v1387 = vld [vmem:[%s45 + $0x48] sm:$0xff]
    %v1388 = vld [vmem:[%s45 + $0x50] sm:$0xff]
    %v1389 = vld [vmem:[%s45 + $0x58] sm:$0xff]
    %v1390 = vld [vmem:[%s45 + $0x60] sm:$0xff]
    %v1391 = vld [vmem:[%s45 + $0x68] sm:$0xff]
    %v1392 = vld [vmem:[%s45 + $0x70] sm:$0xff]
    %v1393 = vld [vmem:[%s45 + $0x78] sm:$0xff]
    %v1394 = vld [vmem:[%s45 + $0x80] sm:$0xff]
    %v1395 = vld [vmem:[%s45 + $0x88] sm:$0xff]
    %v1396 = vld [vmem:[%s45 + $0x90] sm:$0xff]
    %v1397 = vld [vmem:[%s45 + $0x98] sm:$0xff]
    %v1398 = vld [vmem:[%s45 + $0xa0] sm:$0xff]
    %v1399 = vld [vmem:[%s45 + $0xa8] sm:$0xff]
    %v1400 = vld [vmem:[%s45 + $0xb0] sm:$0xff]
    %v1401 = vld [vmem:[%s45 + $0xb8] sm:$0xff]
    %v1402 = vld [vmem:[%s45 + $0xc0] sm:$0xff]
    %v1403 = vld [vmem:[%s45 + $0xc8] sm:$0xff]
    %v1404 = vld [vmem:[%s45 + $0xd0] sm:$0xff]
    %v1405 = vld [vmem:[%s45 + $0xd8] sm:$0xff]
    %v1406 = vld [vmem:[%s45 + $0xe0] sm:$0xff]
    %v1407 = vld [vmem:[%s45 + $0xe8] sm:$0xff]
    %v1408 = vld [vmem:[%s45 + $0xf0] sm:$0xff]
    %v1409 = vld [vmem:[%s45 + $0xf8] sm:$0xff]
    %v1410 = vld [vmem:[%s45 + $0x100] sm:$0xff]
    %v1411 = vld [vmem:[%s45 + $0x108] sm:$0xff]
    %v1412 = vld [vmem:[%s45 + $0x110] sm:$0xff]
    %v1413 = vld [vmem:[%s45 + $0x118] sm:$0xff]
    %v1414 = vld [vmem:[%s45 + $0x120] sm:$0xff]
    %v1415 = vld [vmem:[%s45 + $0x128] sm:$0xff]
    %v1416 = vld [vmem:[%s45 + $0x130] sm:$0xff]
    %v1417 = vld [vmem:[%s45 + $0x138] sm:$0xff]
    %v1418 = vld [vmem:[%s45 + $0x140] sm:$0xff]
    %v1419 = vld [vmem:[%s45 + $0x148] sm:$0xff]
    %v1420 = vld [vmem:[%s45 + $0x150] sm:$0xff]
    %v1421 = vld [vmem:[%s45 + $0x158] sm:$0xff]
    %v1422 = vld [vmem:[%s45 + $0x160] sm:$0xff]
    %v1423 = vld [vmem:[%s45 + $0x168] sm:$0xff]
    %v1424 = vld [vmem:[%s45 + $0x170] sm:$0xff]
    %v1425 = vld [vmem:[%s45 + $0x178] sm:$0xff]
    %v1426 = vld [vmem:[%s45 + $0x180] sm:$0xff]
    %v1427 = vld [vmem:[%s45 + $0x188] sm:$0xff]
    %v1428 = vld [vmem:[%s45 + $0x190] sm:$0xff]
    %v1429 = vld [vmem:[%s45 + $0x198] sm:$0xff]
    %v1430 = vld [vmem:[%s45 + $0x1a0] sm:$0xff]
    %v1431 = vld [vmem:[%s45 + $0x1a8] sm:$0xff]
    %v1432 = vld [vmem:[%s45 + $0x1b0] sm:$0xff]
    %v1433 = vld [vmem:[%s45 + $0x1b8] sm:$0xff]
    %v1434 = vld [vmem:[%s45 + $0x1c0] sm:$0xff]
    %v1435 = vld [vmem:[%s45 + $0x1c8] sm:$0xff]
    %v1436 = vld [vmem:[%s45 + $0x1d0] sm:$0xff]
    %v1437 = vld [vmem:[%s45 + $0x1d8] sm:$0xff]
    %v1438 = vld [vmem:[%s45 + $0x1e0] sm:$0xff]
    %v1439 = vld [vmem:[%s45 + $0x1e8] sm:$0xff]
    %v1440 = vld [vmem:[%s45 + $0x1f0] sm:$0xff]
    %v1441 = vld [vmem:[%s45 + $0x1f8] sm:$0xff]
    %v1442 = vld [vmem:[%s45 + $0x200] sm:$0xff]
    %v1443 = vld [vmem:[%s45 + $0x208] sm:$0xff]
    %v1444 = vld [vmem:[%s45 + $0x210] sm:$0xff]
    %v1445 = vld [vmem:[%s45 + $0x218] sm:$0xff]
    %v1446 = vld [vmem:[%s45 + $0x220] sm:$0xff]
    %v1447 = vld [vmem:[%s45 + $0x228] sm:$0xff]
    %v1448 = vld [vmem:[%s45 + $0x230] sm:$0xff]
    %v1449 = vld [vmem:[%s45 + $0x238] sm:$0xff]
    %v1450 = vld [vmem:[%s45 + $0x240] sm:$0xff]
    %v1451 = vld [vmem:[%s45 + $0x248] sm:$0xff]
    %v1452 = vld [vmem:[%s45 + $0x250] sm:$0xff]
    %v1453 = vld [vmem:[%s45 + $0x258] sm:$0xff]
    %v1454 = vld [vmem:[%s45 + $0x260] sm:$0xff]
    %v1455 = vld [vmem:[%s45 + $0x268] sm:$0xff]
    %v1456 = vld [vmem:[%s45 + $0x270] sm:$0xff]
    %v1457 = vld [vmem:[%s45 + $0x278] sm:$0xff]
    %v1458 = vld [vmem:[%s45 + $0x280] sm:$0xff]
    %v1459 = vld [vmem:[%s45 + $0x288] sm:$0xff]
    %v1460 = vld [vmem:[%s45 + $0x290] sm:$0xff]
    %v1461 = vld [vmem:[%s45 + $0x298] sm:$0xff]
    %v1462 = vld [vmem:[%s45 + $0x2a0] sm:$0xff]
    %v1463 = vld [vmem:[%s45 + $0x2a8] sm:$0xff]
    %v1464 = vld [vmem:[%s45 + $0x2b0] sm:$0xff]
    %v1465 = vld [vmem:[%s45 + $0x2b8] sm:$0xff]
    %v1466 = vld [vmem:[%s45 + $0x2c0] sm:$0xff]
    %v1467 = vld [vmem:[%s45 + $0x2c8] sm:$0xff]
    %v1468 = vld [vmem:[%s45 + $0x2d0] sm:$0xff]
    %v1469 = vld [vmem:[%s45 + $0x2d8] sm:$0xff]
    %v1470 = vld [vmem:[%s45 + $0x2e0] sm:$0xff]
    %v1471 = vld [vmem:[%s45 + $0x2e8] sm:$0xff]
    %v1472 = vld [vmem:[%s45 + $0x2f0] sm:$0xff]
    %v1473 = vld [vmem:[%s45 + $0x2f8] sm:$0xff]
    %v1474 = vld [vmem:[%s47] sm:$0x3]
    %v1479 = vrot.slane %v1374, 7
    %v1480 = vrot.slane %v1375, 7
    %v1481 = vsel %vm385, %v1479, %v1480
    %v1482 = vrot.slane %v1376, 7
    %v1483 = vsel %vm385, %v1480, %v1482
    %v1484 = vrot.slane %v1377, 7
    %v1485 = vsel %vm385, %v1482, %v1484
    %v1490 = vsel %vm385, 0.0, %v1479
    %v1491 = vmul.f32 %v1490, %v588
    %v1492 = vmul.f32 %v1481, %v593
    %v1493 = vmul.f32 %v1483, %v598
    %v1494 = vmul.f32 %v1485, %v603
    %v1495 = vrot.slane %v1374, 1
    %v1496 = vrot.slane %v1375, 1
    %v1497 = vsel %vm458, %v1495, %v1496
    %v1498 = vrot.slane %v1376, 1
    %v1499 = vsel %vm458, %v1496, %v1498
    %v1500 = vrot.slane %v1377, 1
    %v1501 = vsel %vm458, %v1498, %v1500
    %v1506 = vsel %vm458, %v1500, 0.0
    %v1507 = vmul.f32 %v1497, %v624
    %v1508 = vmul.f32 %v1499, %v629
    %v1509 = vmul.f32 %v1501, %v634
    %v1510 = vmul.f32 %v1506, %v639
    %v1512 = vlaneseq
    %v1513 = vshrl.u32 %v1512, 7
    %v1514 = vsub.s32 0, %v1513
    %v1515 = vrot.slane %v1474, %v1514
    %v1516 = vlaneseq
    %v1517 = vshrl.u32 %v1516, 7
    %v1518 = vsub.s32 1, %v1517
    %v1519 = vrot.slane %v1474, %v1518
    %1522 = vmatprep.subr.mxu0 %v1379
    %1523 = vmatpush1.msra.mxu0 %v1378
    %1524 = vmatprep.subr.mxu0 %v1381
    %1525 = vmatpush1.msra.mxu0 %v1380
    %1526 = vmatprep.subr.mxu0 %v1383
    %1527 = vmatpush1.msra.mxu0 %v1382
    %1528 = vmatprep.subr.mxu0 %v1385
    %1529 = vmatpush1.msra.mxu0 %v1384
    %1530 = vmatprep.subr.mxu0 %v1387
    %1531 = vmatpush1.msra.mxu0 %v1386
    %1532 = vmatprep.subr.mxu0 %v1389
    %1533 = vmatpush1.msra.mxu0 %v1388
    %1534 = vmatprep.subr.mxu0 %v1391
    %1535 = vmatpush1.msra.mxu0 %v1390
    %1536 = vmatprep.subr.mxu0 %v1393
    %1537 = vmatpush1.msra.mxu0 %v1392
    %1538 = vmatprep.subr.mxu0 %v1395
    %1539 = vmatpush1.msra.mxu0 %v1394
    %1540 = vmatprep.subr.mxu0 %v1397
    %1541 = vmatpush1.msra.mxu0 %v1396
    %1542 = vmatprep.subr.mxu0 %v1399
    %1543 = vmatpush1.msra.mxu0 %v1398
    %1544 = vmatprep.subr.mxu0 %v1401
    %1545 = vmatpush1.msra.mxu0 %v1400
    %1546 = vmatprep.subr.mxu0 %v1403
    %1547 = vmatpush1.msra.mxu0 %v1402
    %1548 = vmatprep.subr.mxu0 %v1405
    %1549 = vmatpush1.msra.mxu0 %v1404
    %1550 = vmatprep.subr.mxu0 %v1407
    %1551 = vmatpush1.msra.mxu0 %v1406
    %1552 = vmatprep.subr.mxu0 %v1409
    %1553 = vmatpush1.msra.mxu0 %v1408
    %1554 = vmatprep.subr.mxu0 %v1411
    %1555 = vmatpush1.msra.mxu0 %v1410
    %1556 = vmatprep.subr.mxu0 %v1413
    %1557 = vmatpush1.msra.mxu0 %v1412
    %1558 = vmatprep.subr.mxu0 %v1415
    %1559 = vmatpush1.msra.mxu0 %v1414
    %1560 = vmatprep.subr.mxu0 %v1417
    %1561 = vmatpush1.msra.mxu0 %v1416
    %1562 = vmatprep.subr.mxu0 %v1419
    %1563 = vmatpush1.msra.mxu0 %v1418
    %1564 = vmatprep.subr.mxu0 %v1421
    %1565 = vmatpush1.msra.mxu0 %v1420
    %1566 = vmatprep.subr.mxu0 %v1423
    %1567 = vmatpush1.msra.mxu0 %v1422
    %1568 = vmatprep.subr.mxu0 %v1425
    %1569 = vmatpush1.msra.mxu0 %v1424
    %1570 = vmatprep.subr.mxu0 %v1427
    %1571 = vmatpush1.msra.mxu0 %v1426
    %1572 = vmatprep.subr.mxu0 %v1429
    %1573 = vmatpush1.msra.mxu0 %v1428
    %1574 = vmatprep.subr.mxu0 %v1431
    %1575 = vmatpush1.msra.mxu0 %v1430
    %1576 = vmatprep.subr.mxu0 %v1433
    %1577 = vmatpush1.msra.mxu0 %v1432
    %1578 = vmatprep.subr.mxu0 %v1435
    %1579 = vmatpush1.msra.mxu0 %v1434
    %1580 = vmatprep.subr.mxu0 %v1437
    %1581 = vmatpush1.msra.mxu0 %v1436
    %1582 = vmatprep.subr.mxu0 %v1439
    %1583 = vmatpush1.msra.mxu0 %v1438
    %1584 = vmatprep.subr.mxu0 %v1441
    %1585 = vmatpush1.msra.mxu0 %v1440
    %1586 = vmatprep.mubr.f32.mxu0 %v1374
    %1587 = vmatmul.mubr.f32.gmra.mrb[0].mxu0 %v1491
    %v1588 = vpop.f32.mrb[0].mxu0
    %v1589 = vadd.f32 %v1515, %v1588
    %v1590 = vpop.f32.mrb[0].mxu0
    %v1591 = vadd.f32 %v1519, %v1590
    %1592 = vmatprep.mubr.f32.mxu0 %v1375
    %1593 = vmatmul.mubr.f32.gmra.mrb[0].mxu0 %v1492
    %v1594 = vpop.f32.mrb[0].mxu0
    %v1595 = vadd.f32 %v1515, %v1594
    %v1596 = vpop.f32.mrb[0].mxu0
    %v1597 = vadd.f32 %v1519, %v1596
    %1598 = vmatprep.mubr.f32.mxu0 %v1376
    %1599 = vmatmul.mubr.f32.gmra.mrb[0].mxu0 %v1493
    %v1600 = vpop.f32.mrb[0].mxu0
    %v1601 = vadd.f32 %v1515, %v1600
    %v1602 = vpop.f32.mrb[0].mxu0
    %v1603 = vadd.f32 %v1519, %v1602
    %1604 = vmatprep.mubr.f32.mxu0 %v1377
    %1605 = vmatmul.mubr.f32.gmra.mrb[0].mxu0 %v1494
    %v1606 = vpop.f32.mrb[0].mxu0
    %v1607 = vadd.f32 %v1515, %v1606
    %v1608 = vpop.f32.mrb[0].mxu0
    %v1609 = vadd.f32 %v1519, %v1608
    %1610 = vdwg.mxu0
    %1611 = vmatprep.subr.mxu0 %v1443
    %1612 = vmatpush1.msra.mxu0 %v1442
    %1613 = vmatprep.subr.mxu0 %v1445
    %1614 = vmatpush1.msra.mxu0 %v1444
    %1615 = vmatprep.subr.mxu0 %v1447
    %1616 = vmatpush1.msra.mxu0 %v1446
    %1617 = vmatprep.subr.mxu0 %v1449
    %1618 = vmatpush1.msra.mxu0 %v1448
    %1619 = vmatprep.subr.mxu0 %v1451
    %1620 = vmatpush1.msra.mxu0 %v1450
    %1621 = vmatprep.subr.mxu0 %v1453
    %1622 = vmatpush1.msra.mxu0 %v1452
    %1623 = vmatprep.subr.mxu0 %v1455
    %1624 = vmatpush1.msra.mxu0 %v1454
    %1625 = vmatprep.subr.mxu0 %v1457
    %1626 = vmatpush1.msra.mxu0 %v1456
    %1627 = vmatprep.subr.mxu0 %v1459
    %1628 = vmatpush1.msra.mxu0 %v1458
    %1629 = vmatprep.subr.mxu0 %v1461
    %1630 = vmatpush1.msra.mxu0 %v1460
    %1631 = vmatprep.subr.mxu0 %v1463
    %1632 = vmatpush1.msra.mxu0 %v1462
    %1633 = vmatprep.subr.mxu0 %v1465
    %1634 = vmatpush1.msra.mxu0 %v1464
    %1635 = vmatprep.subr.mxu0 %v1467
    %1636 = vmatpush1.msra.mxu0 %v1466
    %1637 = vmatprep.subr.mxu0 %v1469
    %1638 = vmatpush1.msra.mxu0 %v1468
    %1639 = vmatprep.subr.mxu0 %v1471
    %1640 = vmatpush1.msra.mxu0 %v1470
    %1641 = vmatprep.subr.mxu0 %v1473
    %1642 = vmatpush1.msra.mxu0 %v1472
    %1643 = vmatprep.subr.mxu0 0.0
    %1644 = vmatpush1.msra.mxu0 0.0
    %1645 = vmatprep.subr.mxu0 0.0
    %1646 = vmatpush1.msra.mxu0 0.0
    %1647 = vmatprep.subr.mxu0 0.0
    %1648 = vmatpush1.msra.mxu0 0.0
    %1649 = vmatprep.subr.mxu0 0.0
    %1650 = vmatpush1.msra.mxu0 0.0
    %1651 = vmatprep.subr.mxu0 0.0
    %1652 = vmatpush1.msra.mxu0 0.0
    %1653 = vmatprep.subr.mxu0 0.0
    %1654 = vmatpush1.msra.mxu0 0.0
    %1655 = vmatprep.subr.mxu0 0.0
    %1656 = vmatpush1.msra.mxu0 0.0
    %1657 = vmatprep.subr.mxu0 0.0
    %1658 = vmatpush1.msra.mxu0 0.0
    %1659 = vmatprep.subr.mxu0 0.0
    %1660 = vmatpush1.msra.mxu0 0.0
    %1661 = vmatprep.subr.mxu0 0.0
    %1662 = vmatpush1.msra.mxu0 0.0
    %1663 = vmatprep.subr.mxu0 0.0
    %1664 = vmatpush1.msra.mxu0 0.0
    %1665 = vmatprep.subr.mxu0 0.0
    %1666 = vmatpush1.msra.mxu0 0.0
    %1667 = vmatprep.subr.mxu0 0.0
    %1668 = vmatpush1.msra.mxu0 0.0
    %1669 = vmatprep.subr.mxu0 0.0
    %1670 = vmatpush1.msra.mxu0 0.0
    %1671 = vmatprep.subr.mxu0 0.0
    %1672 = vmatpush1.msra.mxu0 0.0
    %1673 = vmatprep.subr.mxu0 0.0
    %1674 = vmatpush1.msra.mxu0 0.0
    %1675 = vmatprep.mubr.f32.mxu0 0.0
    %1676 = vmatmul.mubr.f32.gmra.mrb[0].mxu0 %v1507
    %v1677 = vpop.f32.mrb[0].mxu0
    %v1678 = vadd.f32 %v1589, %v1677
    %v1679 = vpop.f32.mrb[0].mxu0
    %v1680 = vadd.f32 %v1591, %v1679
    %1681 = vmatprep.mubr.f32.mxu0 0.0
    %1682 = vmatmul.mubr.f32.gmra.mrb[0].mxu0 %v1508
    %v1683 = vpop.f32.mrb[0].mxu0
    %v1684 = vadd.f32 %v1595, %v1683
    %v1685 = vpop.f32.mrb[0].mxu0
    %v1686 = vadd.f32 %v1597, %v1685
    %1687 = vmatprep.mubr.f32.mxu0 0.0
    %1688 = vmatmul.mubr.f32.gmra.mrb[0].mxu0 %v1509
    %v1689 = vpop.f32.mrb[0].mxu0
    %v1690 = vadd.f32 %v1601, %v1689
    %v1691 = vpop.f32.mrb[0].mxu0
    %v1692 = vadd.f32 %v1603, %v1691
    %1693 = vmatprep.mubr.f32.mxu0 0.0
    %1694 = vmatmul.mubr.f32.gmra.mrb[0].mxu0 %v1510
    %v1695 = vpop.f32.mrb[0].mxu0
    %v1696 = vadd.f32 %v1607, %v1695
    %v1697 = vpop.f32.mrb[0].mxu0
    %v1698 = vadd.f32 %v1609, %v1697
    %1699 = vdwg.mxu0
    %v1700 = vld [vmem:[%s53] sm:$0xff]
    %v1701 = vld [vmem:[%s53 + $0x8] sm:$0xff]
    %v1702 = vld [vmem:[%s53 + $0x10] sm:$0xff]
    %v1703 = vld [vmem:[%s53 + $0x18] sm:$0xff]
    %v1704 = vld [vmem:[%s53 + $0x20] sm:$0xff]
    %v1705 = vld [vmem:[%s53 + $0x28] sm:$0xff]
    %v1706 = vld [vmem:[%s53 + $0x30] sm:$0xff]
    %v1707 = vld [vmem:[%s53 + $0x38] sm:$0xff]
    %v1708 = vld [vmem:[%s53 + $0x40] sm:$0xff]
    %v1709 = vld [vmem:[%s53 + $0x48] sm:$0xff]
    %v1710 = vld [vmem:[%s53 + $0x50] sm:$0xff]
    %v1711 = vld [vmem:[%s53 + $0x58] sm:$0xff]
    %v1712 = vld [vmem:[%s53 + $0x60] sm:$0xff]
    %v1713 = vld [vmem:[%s53 + $0x68] sm:$0xff]
    %v1714 = vld [vmem:[%s53 + $0x70] sm:$0xff]
    %v1715 = vld [vmem:[%s53 + $0x78] sm:$0xff]
    %v1716 = vld [vmem:[%s53 + $0x80] sm:$0xff]
    %v1717 = vld [vmem:[%s53 + $0x88] sm:$0xff]
    %v1718 = vld [vmem:[%s53 + $0x90] sm:$0xff]
    %v1719 = vld [vmem:[%s53 + $0x98] sm:$0xff]
    %v1720 = vld [vmem:[%s53 + $0xa0] sm:$0xff]
    %v1721 = vld [vmem:[%s53 + $0xa8] sm:$0xff]
    %v1722 = vld [vmem:[%s53 + $0xb0] sm:$0xff]
    %v1723 = vld [vmem:[%s53 + $0xb8] sm:$0xff]
    %v1724 = vld [vmem:[%s53 + $0xc0] sm:$0xff]
    %v1725 = vld [vmem:[%s53 + $0xc8] sm:$0xff]
    %v1726 = vld [vmem:[%s53 + $0xd0] sm:$0xff]
    %v1727 = vld [vmem:[%s53 + $0xd8] sm:$0xff]
    %v1728 = vld [vmem:[%s53 + $0xe0] sm:$0xff]
    %v1729 = vld [vmem:[%s53 + $0xe8] sm:$0xff]
    %v1730 = vld [vmem:[%s53 + $0xf0] sm:$0xff]
    %v1731 = vld [vmem:[%s53 + $0xf8] sm:$0xff]
    %v1732 = vld [vmem:[%s55] sm:$0x3]
    %v1734 = vlaneseq
    %v1735 = vshrl.u32 %v1734, 7
    %v1736 = vsub.s32 0, %v1735
    %v1737 = vrot.slane %v1732, %v1736
    %v1738 = vlaneseq
    %v1739 = vshrl.u32 %v1738, 7
    %v1740 = vsub.s32 1, %v1739
    %v1741 = vrot.slane %v1732, %v1740
    %1744 = vmatprep.subr.mxu0 %v1701
    %1745 = vmatpush1.msra.mxu0 %v1700
    %1746 = vmatprep.subr.mxu0 %v1703
    %1747 = vmatpush1.msra.mxu0 %v1702
    %1748 = vmatprep.subr.mxu0 %v1705
    %1749 = vmatpush1.msra.mxu0 %v1704
    %1750 = vmatprep.subr.mxu0 %v1707
    %1751 = vmatpush1.msra.mxu0 %v1706
    %1752 = vmatprep.subr.mxu0 %v1709
    %1753 = vmatpush1.msra.mxu0 %v1708
    %1754 = vmatprep.subr.mxu0 %v1711
    %1755 = vmatpush1.msra.mxu0 %v1710
    %1756 = vmatprep.subr.mxu0 %v1713
    %1757 = vmatpush1.msra.mxu0 %v1712
    %1758 = vmatprep.subr.mxu0 %v1715
    %1759 = vmatpush1.msra.mxu0 %v1714
    %1760 = vmatprep.subr.mxu0 %v1717
    %1761 = vmatpush1.msra.mxu0 %v1716
    %1762 = vmatprep.subr.mxu0 %v1719
    %1763 = vmatpush1.msra.mxu0 %v1718
    %1764 = vmatprep.subr.mxu0 %v1721
    %1765 = vmatpush1.msra.mxu0 %v1720
    %1766 = vmatprep.subr.mxu0 %v1723
    %1767 = vmatpush1.msra.mxu0 %v1722
    %1768 = vmatprep.subr.mxu0 %v1725
    %1769 = vmatpush1.msra.mxu0 %v1724
    %1770 = vmatprep.subr.mxu0 %v1727
    %1771 = vmatpush1.msra.mxu0 %v1726
    %1772 = vmatprep.subr.mxu0 %v1729
    %1773 = vmatpush1.msra.mxu0 %v1728
    %1774 = vmatprep.subr.mxu0 %v1731
    %1775 = vmatpush1.msra.mxu0 %v1730
    %1776 = vmatprep.subr.mxu0 0.0
    %1777 = vmatpush1.msra.mxu0 0.0
    %1778 = vmatprep.subr.mxu0 0.0
    %1779 = vmatpush1.msra.mxu0 0.0
    %1780 = vmatprep.subr.mxu0 0.0
    %1781 = vmatpush1.msra.mxu0 0.0
    %1782 = vmatprep.subr.mxu0 0.0
    %1783 = vmatpush1.msra.mxu0 0.0
    %1784 = vmatprep.subr.mxu0 0.0
    %1785 = vmatpush1.msra.mxu0 0.0
    %1786 = vmatprep.subr.mxu0 0.0
    %1787 = vmatpush1.msra.mxu0 0.0
    %1788 = vmatprep.subr.mxu0 0.0
    %1789 = vmatpush1.msra.mxu0 0.0
    %1790 = vmatprep.subr.mxu0 0.0
    %1791 = vmatpush1.msra.mxu0 0.0
    %1792 = vmatprep.subr.mxu0 0.0
    %1793 = vmatpush1.msra.mxu0 0.0
    %1794 = vmatprep.subr.mxu0 0.0
    %1795 = vmatpush1.msra.mxu0 0.0
    %1796 = vmatprep.subr.mxu0 0.0
    %1797 = vmatpush1.msra.mxu0 0.0
    %1798 = vmatprep.subr.mxu0 0.0
    %1799 = vmatpush1.msra.mxu0 0.0
    %1800 = vmatprep.subr.mxu0 0.0
    %1801 = vmatpush1.msra.mxu0 0.0
    %1802 = vmatprep.subr.mxu0 0.0
    %1803 = vmatpush1.msra.mxu0 0.0
    %1804 = vmatprep.subr.mxu0 0.0
    %1805 = vmatpush1.msra.mxu0 0.0
    %1806 = vmatprep.subr.mxu0 0.0
    %1807 = vmatpush1.msra.mxu0 0.0
    %1808 = vmatprep.mubr.f32.mxu0 0.0
    %1809 = vmatmul.mubr.f32.gmra.mrb[0].mxu0 %v1374
    %v1810 = vpop.f32.mrb[0].mxu0
    %v1811 = vadd.f32 %v1737, %v1810
    %v1812 = vpop.f32.mrb[0].mxu0
    %v1813 = vadd.f32 %v1741, %v1812
    %1814 = vmatprep.mubr.f32.mxu0 0.0
    %1815 = vmatmul.mubr.f32.gmra.mrb[0].mxu0 %v1375
    %v1816 = vpop.f32.mrb[0].mxu0
    %v1817 = vadd.f32 %v1737, %v1816
    %v1818 = vpop.f32.mrb[0].mxu0
    %v1819 = vadd.f32 %v1741, %v1818
    %1820 = vmatprep.mubr.f32.mxu0 0.0
    %1821 = vmatmul.mubr.f32.gmra.mrb[0].mxu0 %v1376
    %v1822 = vpop.f32.mrb[0].mxu0
    %v1823 = vadd.f32 %v1737, %v1822
    %v1824 = vpop.f32.mrb[0].mxu0
    %v1825 = vadd.f32 %v1741, %v1824
    %1826 = vmatprep.mubr.f32.mxu0 0.0
    %1827 = vmatmul.mubr.f32.gmra.mrb[0].mxu0 %v1377
    %v1828 = vpop.f32.mrb[0].mxu0
    %v1829 = vadd.f32 %v1737, %v1828
    %v1830 = vpop.f32.mrb[0].mxu0
    %v1831 = vadd.f32 %v1741, %v1830
    %1832 = vdwg.mxu0
    %v1833 = vmax.f32 %v1678, 0.0
    %v1834 = vmax.f32 %v1680, 0.0
    %v1835 = vmax.f32 %v1684, 0.0
    %v1836 = vmax.f32 %v1686, 0.0
    %v1837 = vmax.f32 %v1690, 0.0
    %v1838 = vmax.f32 %v1692, 0.0
    %v1839 = vmax.f32 %v1696, 0.0
    %v1840 = vmax.f32 %v1698, 0.0
    %v1841 = vld [vmem:[%s49] sm:$0xff]
    %v1842 = vld [vmem:[%s49 + $0x8] sm:$0xff]
    %v1843 = vld [vmem:[%s49 + $0x10] sm:$0xff]
    %v1844 = vld [vmem:[%s49 + $0x18] sm:$0xff]
    %v1845 = vld [vmem:[%s49 + $0x20] sm:$0xff]
    %v1846 = vld [vmem:[%s49 + $0x28] sm:$0xff]
    %v1847 = vld [vmem:[%s49 + $0x30] sm:$0xff]
    %v1848 = vld [vmem:[%s49 + $0x38] sm:$0xff]
    %v1849 = vld [vmem:[%s49 + $0x40] sm:$0xff]
    %v1850 = vld [vmem:[%s49 + $0x48] sm:$0xff]
    %v1851 = vld [vmem:[%s49 + $0x50] sm:$0xff]
    %v1852 = vld [vmem:[%s49 + $0x58] sm:$0xff]
    %v1853 = vld [vmem:[%s49 + $0x60] sm:$0xff]
    %v1854 = vld [vmem:[%s49 + $0x68] sm:$0xff]
    %v1855 = vld [vmem:[%s49 + $0x70] sm:$0xff]
    %v1856 = vld [vmem:[%s49 + $0x78] sm:$0xff]
    %v1857 = vld [vmem:[%s49 + $0x80] sm:$0xff]
    %v1858 = vld [vmem:[%s49 + $0x88] sm:$0xff]
    %v1859 = vld [vmem:[%s49 + $0x90] sm:$0xff]
    %v1860 = vld [vmem:[%s49 + $0x98] sm:$0xff]
    %v1861 = vld [vmem:[%s49 + $0xa0] sm:$0xff]
    %v1862 = vld [vmem:[%s49 + $0xa8] sm:$0xff]
    %v1863 = vld [vmem:[%s49 + $0xb0] sm:$0xff]
    %v1864 = vld [vmem:[%s49 + $0xb8] sm:$0xff]
    %v1865 = vld [vmem:[%s49 + $0xc0] sm:$0xff]
    %v1866 = vld [vmem:[%s49 + $0xc8] sm:$0xff]
    %v1867 = vld [vmem:[%s49 + $0xd0] sm:$0xff]
    %v1868 = vld [vmem:[%s49 + $0xd8] sm:$0xff]
    %v1869 = vld [vmem:[%s49 + $0xe0] sm:$0xff]
    %v1870 = vld [vmem:[%s49 + $0xe8] sm:$0xff]
    %v1871 = vld [vmem:[%s49 + $0xf0] sm:$0xff]
    %v1872 = vld [vmem:[%s49 + $0xf8] sm:$0xff]
    %v1873 = vld [vmem:[%s49 + $0x100] sm:$0xff]
    %v1874 = vld [vmem:[%s49 + $0x108] sm:$0xff]
    %v1875 = vld [vmem:[%s49 + $0x110] sm:$0xff]
    %v1876 = vld [vmem:[%s49 + $0x118] sm:$0xff]
    %v1877 = vld [vmem:[%s49 + $0x120] sm:$0xff]
    %v1878 = vld [vmem:[%s49 + $0x128] sm:$0xff]
    %v1879 = vld [vmem:[%s49 + $0x130] sm:$0xff]
    %v1880 = vld [vmem:[%s49 + $0x138] sm:$0xff]
    %v1881 = vld [vmem:[%s49 + $0x140] sm:$0xff]
    %v1882 = vld [vmem:[%s49 + $0x148] sm:$0xff]
    %v1883 = vld [vmem:[%s49 + $0x150] sm:$0xff]
    %v1884 = vld [vmem:[%s49 + $0x158] sm:$0xff]
    %v1885 = vld [vmem:[%s49 + $0x160] sm:$0xff]
    %v1886 = vld [vmem:[%s49 + $0x168] sm:$0xff]
    %v1887 = vld [vmem:[%s49 + $0x170] sm:$0xff]
    %v1888 = vld [vmem:[%s49 + $0x178] sm:$0xff]
    %v1889 = vld [vmem:[%s49 + $0x180] sm:$0xff]
    %v1890 = vld [vmem:[%s49 + $0x188] sm:$0xff]
    %v1891 = vld [vmem:[%s49 + $0x190] sm:$0xff]
    %v1892 = vld [vmem:[%s49 + $0x198] sm:$0xff]
    %v1893 = vld [vmem:[%s49 + $0x1a0] sm:$0xff]
    %v1894 = vld [vmem:[%s49 + $0x1a8] sm:$0xff]
    %v1895 = vld [vmem:[%s49 + $0x1b0] sm:$0xff]
    %v1896 = vld [vmem:[%s49 + $0x1b8] sm:$0xff]
    %v1897 = vld [vmem:[%s49 + $0x1c0] sm:$0xff]
    %v1898 = vld [vmem:[%s49 + $0x1c8] sm:$0xff]
    %v1899 = vld [vmem:[%s49 + $0x1d0] sm:$0xff]
    %v1900 = vld [vmem:[%s49 + $0x1d8] sm:$0xff]
    %v1901 = vld [vmem:[%s49 + $0x1e0] sm:$0xff]
    %v1902 = vld [vmem:[%s49 + $0x1e8] sm:$0xff]
    %v1903 = vld [vmem:[%s49 + $0x1f0] sm:$0xff]
    %v1904 = vld [vmem:[%s49 + $0x1f8] sm:$0xff]
    %v1905 = vld [vmem:[%s49 + $0x200] sm:$0xff]
    %v1906 = vld [vmem:[%s49 + $0x208] sm:$0xff]
    %v1907 = vld [vmem:[%s49 + $0x210] sm:$0xff]
    %v1908 = vld [vmem:[%s49 + $0x218] sm:$0xff]
    %v1909 = vld [vmem:[%s49 + $0x220] sm:$0xff]
    %v1910 = vld [vmem:[%s49 + $0x228] sm:$0xff]
    %v1911 = vld [vmem:[%s49 + $0x230] sm:$0xff]
    %v1912 = vld [vmem:[%s49 + $0x238] sm:$0xff]
    %v1913 = vld [vmem:[%s49 + $0x240] sm:$0xff]
    %v1914 = vld [vmem:[%s49 + $0x248] sm:$0xff]
    %v1915 = vld [vmem:[%s49 + $0x250] sm:$0xff]
    %v1916 = vld [vmem:[%s49 + $0x258] sm:$0xff]
    %v1917 = vld [vmem:[%s49 + $0x260] sm:$0xff]
    %v1918 = vld [vmem:[%s49 + $0x268] sm:$0xff]
    %v1919 = vld [vmem:[%s49 + $0x270] sm:$0xff]
    %v1920 = vld [vmem:[%s49 + $0x278] sm:$0xff]
    %v1921 = vld [vmem:[%s49 + $0x280] sm:$0xff]
    %v1922 = vld [vmem:[%s49 + $0x288] sm:$0xff]
    %v1923 = vld [vmem:[%s49 + $0x290] sm:$0xff]
    %v1924 = vld [vmem:[%s49 + $0x298] sm:$0xff]
    %v1925 = vld [vmem:[%s49 + $0x2a0] sm:$0xff]
    %v1926 = vld [vmem:[%s49 + $0x2a8] sm:$0xff]
    %v1927 = vld [vmem:[%s49 + $0x2b0] sm:$0xff]
    %v1928 = vld [vmem:[%s49 + $0x2b8] sm:$0xff]
    %v1929 = vld [vmem:[%s49 + $0x2c0] sm:$0xff]
    %v1930 = vld [vmem:[%s49 + $0x2c8] sm:$0xff]
    %v1931 = vld [vmem:[%s49 + $0x2d0] sm:$0xff]
    %v1932 = vld [vmem:[%s49 + $0x2d8] sm:$0xff]
    %v1933 = vld [vmem:[%s49 + $0x2e0] sm:$0xff]
    %v1934 = vld [vmem:[%s49 + $0x2e8] sm:$0xff]
    %v1935 = vld [vmem:[%s49 + $0x2f0] sm:$0xff]
    %v1936 = vld [vmem:[%s49 + $0x2f8] sm:$0xff]
    %v1937 = vld [vmem:[%s49 + $0x300] sm:$0xff]
    %v1938 = vld [vmem:[%s49 + $0x308] sm:$0xff]
    %v1939 = vld [vmem:[%s49 + $0x310] sm:$0xff]
    %v1940 = vld [vmem:[%s49 + $0x318] sm:$0xff]
    %v1941 = vld [vmem:[%s49 + $0x320] sm:$0xff]
    %v1942 = vld [vmem:[%s49 + $0x328] sm:$0xff]
    %v1943 = vld [vmem:[%s49 + $0x330] sm:$0xff]
    %v1944 = vld [vmem:[%s49 + $0x338] sm:$0xff]
    %v1945 = vld [vmem:[%s49 + $0x340] sm:$0xff]
    %v1946 = vld [vmem:[%s49 + $0x348] sm:$0xff]
    %v1947 = vld [vmem:[%s49 + $0x350] sm:$0xff]
    %v1948 = vld [vmem:[%s49 + $0x358] sm:$0xff]
    %v1949 = vld [vmem:[%s49 + $0x360] sm:$0xff]
    %v1950 = vld [vmem:[%s49 + $0x368] sm:$0xff]
    %v1951 = vld [vmem:[%s49 + $0x370] sm:$0xff]
    %v1952 = vld [vmem:[%s49 + $0x378] sm:$0xff]
    %v1953 = vld [vmem:[%s49 + $0x380] sm:$0xff]
    %v1954 = vld [vmem:[%s49 + $0x388] sm:$0xff]
    %v1955 = vld [vmem:[%s49 + $0x390] sm:$0xff]
    %v1956 = vld [vmem:[%s49 + $0x398] sm:$0xff]
    %v1957 = vld [vmem:[%s49 + $0x3a0] sm:$0xff]
    %v1958 = vld [vmem:[%s49 + $0x3a8] sm:$0xff]
    %v1959 = vld [vmem:[%s49 + $0x3b0] sm:$0xff]
    %v1960 = vld [vmem:[%s49 + $0x3b8] sm:$0xff]
    %v1961 = vld [vmem:[%s49 + $0x3c0] sm:$0xff]
    %v1962 = vld [vmem:[%s49 + $0x3c8] sm:$0xff]
    %v1963 = vld [vmem:[%s49 + $0x3d0] sm:$0xff]
    %v1964 = vld [vmem:[%s49 + $0x3d8] sm:$0xff]
    %v1965 = vld [vmem:[%s49 + $0x3e0] sm:$0xff]
    %v1966 = vld [vmem:[%s49 + $0x3e8] sm:$0xff]
    %v1967 = vld [vmem:[%s49 + $0x3f0] sm:$0xff]
    %v1968 = vld [vmem:[%s49 + $0x3f8] sm:$0xff]
    %v1969 = vld [vmem:[%s49 + $0x400] sm:$0xff]
    %v1970 = vld [vmem:[%s49 + $0x408] sm:$0xff]
    %v1971 = vld [vmem:[%s49 + $0x410] sm:$0xff]
    %v1972 = vld [vmem:[%s49 + $0x418] sm:$0xff]
    %v1973 = vld [vmem:[%s49 + $0x420] sm:$0xff]
    %v1974 = vld [vmem:[%s49 + $0x428] sm:$0xff]
    %v1975 = vld [vmem:[%s49 + $0x430] sm:$0xff]
    %v1976 = vld [vmem:[%s49 + $0x438] sm:$0xff]
    %v1977 = vld [vmem:[%s49 + $0x440] sm:$0xff]
    %v1978 = vld [vmem:[%s49 + $0x448] sm:$0xff]
    %v1979 = vld [vmem:[%s49 + $0x450] sm:$0xff]
    %v1980 = vld [vmem:[%s49 + $0x458] sm:$0xff]
    %v1981 = vld [vmem:[%s49 + $0x460] sm:$0xff]
    %v1982 = vld [vmem:[%s49 + $0x468] sm:$0xff]
    %v1983 = vld [vmem:[%s49 + $0x470] sm:$0xff]
    %v1984 = vld [vmem:[%s49 + $0x478] sm:$0xff]
    %v1985 = vld [vmem:[%s49 + $0x480] sm:$0xff]
    %v1986 = vld [vmem:[%s49 + $0x488] sm:$0xff]
    %v1987 = vld [vmem:[%s49 + $0x490] sm:$0xff]
    %v1988 = vld [vmem:[%s49 + $0x498] sm:$0xff]
    %v1989 = vld [vmem:[%s49 + $0x4a0] sm:$0xff]
    %v1990 = vld [vmem:[%s49 + $0x4a8] sm:$0xff]
    %v1991 = vld [vmem:[%s49 + $0x4b0] sm:$0xff]
    %v1992 = vld [vmem:[%s49 + $0x4b8] sm:$0xff]
    %v1993 = vld [vmem:[%s49 + $0x4c0] sm:$0xff]
    %v1994 = vld [vmem:[%s49 + $0x4c8] sm:$0xff]
    %v1995 = vld [vmem:[%s49 + $0x4d0] sm:$0xff]
    %v1996 = vld [vmem:[%s49 + $0x4d8] sm:$0xff]
    %v1997 = vld [vmem:[%s49 + $0x4e0] sm:$0xff]
    %v1998 = vld [vmem:[%s49 + $0x4e8] sm:$0xff]
    %v1999 = vld [vmem:[%s49 + $0x4f0] sm:$0xff]
    %v2000 = vld [vmem:[%s49 + $0x4f8] sm:$0xff]
    %v2001 = vld [vmem:[%s49 + $0x500] sm:$0xff]
    %v2002 = vld [vmem:[%s49 + $0x508] sm:$0xff]
    %v2003 = vld [vmem:[%s49 + $0x510] sm:$0xff]
    %v2004 = vld [vmem:[%s49 + $0x518] sm:$0xff]
    %v2005 = vld [vmem:[%s49 + $0x520] sm:$0xff]
    %v2006 = vld [vmem:[%s49 + $0x528] sm:$0xff]
    %v2007 = vld [vmem:[%s49 + $0x530] sm:$0xff]
    %v2008 = vld [vmem:[%s49 + $0x538] sm:$0xff]
    %v2009 = vld [vmem:[%s49 + $0x540] sm:$0xff]
    %v2010 = vld [vmem:[%s49 + $0x548] sm:$0xff]
    %v2011 = vld [vmem:[%s49 + $0x550] sm:$0xff]
    %v2012 = vld [vmem:[%s49 + $0x558] sm:$0xff]
    %v2013 = vld [vmem:[%s49 + $0x560] sm:$0xff]
    %v2014 = vld [vmem:[%s49 + $0x568] sm:$0xff]
    %v2015 = vld [vmem:[%s49 + $0x570] sm:$0xff]
    %v2016 = vld [vmem:[%s49 + $0x578] sm:$0xff]
    %v2017 = vld [vmem:[%s49 + $0x580] sm:$0xff]
    %v2018 = vld [vmem:[%s49 + $0x588] sm:$0xff]
    %v2019 = vld [vmem:[%s49 + $0x590] sm:$0xff]
    %v2020 = vld [vmem:[%s49 + $0x598] sm:$0xff]
    %v2021 = vld [vmem:[%s49 + $0x5a0] sm:$0xff]
    %v2022 = vld [vmem:[%s49 + $0x5a8] sm:$0xff]
    %v2023 = vld [vmem:[%s49 + $0x5b0] sm:$0xff]
    %v2024 = vld [vmem:[%s49 + $0x5b8] sm:$0xff]
    %v2025 = vld [vmem:[%s49 + $0x5c0] sm:$0xff]
    %v2026 = vld [vmem:[%s49 + $0x5c8] sm:$0xff]
    %v2027 = vld [vmem:[%s49 + $0x5d0] sm:$0xff]
    %v2028 = vld [vmem:[%s49 + $0x5d8] sm:$0xff]
    %v2029 = vld [vmem:[%s49 + $0x5e0] sm:$0xff]
    %v2030 = vld [vmem:[%s49 + $0x5e8] sm:$0xff]
    %v2031 = vld [vmem:[%s49 + $0x5f0] sm:$0xff]
    %v2032 = vld [vmem:[%s49 + $0x5f8] sm:$0xff]
    %v2033 = vld [vmem:[%s51] sm:$0x3]
    %v2042 = vrot.slane %v1833, 7
    %v2043 = vrot.slane %v1834, 7
    %v2044 = vrot.slane %v1835, 7
    %v2045 = vsel %vm385, %v2042, %v2044
    %v2046 = vrot.slane %v1836, 7
    %v2047 = vsel %vm385, %v2043, %v2046
    %v2048 = vrot.slane %v1837, 7
    %v2049 = vsel %vm385, %v2044, %v2048
    %v2050 = vrot.slane %v1838, 7
    %v2051 = vsel %vm385, %v2046, %v2050
    %v2052 = vrot.slane %v1839, 7
    %v2053 = vsel %vm385, %v2048, %v2052
    %v2054 = vrot.slane %v1840, 7
    %v2055 = vsel %vm385, %v2050, %v2054
    %v2064 = vsel %vm385, 0.0, %v2042
    %v2065 = vsel %vm385, 0.0, %v2043
    %v2066 = vmul.f32 %v2064, %v588
    %v2067 = vmul.f32 %v2065, %v588
    %v2068 = vmul.f32 %v2045, %v593
    %v2069 = vmul.f32 %v2047, %v593
    %v2070 = vmul.f32 %v2049, %v598
    %v2071 = vmul.f32 %v2051, %v598
    %v2072 = vmul.f32 %v2053, %v603
    %v2073 = vmul.f32 %v2055, %v603
    %v2074 = vrot.slane %v1833, 1
    %v2075 = vrot.slane %v1835, 1
    %v2076 = vsel %vm458, %v2074, %v2075
    %v2077 = vrot.slane %v1834, 1
    %v2078 = vrot.slane %v1836, 1
    %v2079 = vsel %vm458, %v2077, %v2078
    %v2080 = vrot.slane %v1837, 1
    %v2081 = vsel %vm458, %v2075, %v2080
    %v2082 = vrot.slane %v1838, 1
    %v2083 = vsel %vm458, %v2078, %v2082
    %v2084 = vrot.slane %v1839, 1
    %v2085 = vsel %vm458, %v2080, %v2084
    %v2086 = vrot.slane %v1840, 1
    %v2087 = vsel %vm458, %v2082, %v2086
    %v2096 = vsel %vm458, %v2084, 0.0
    %v2097 = vsel %vm458, %v2086, 0.0
    %v2098 = vmul.f32 %v2076, %v624
    %v2099 = vmul.f32 %v2079, %v624
    %v2100 = vmul.f32 %v2081, %v629
    %v2101 = vmul.f32 %v2083, %v629
    %v2102 = vmul.f32 %v2085, %v634
    %v2103 = vmul.f32 %v2087, %v634
    %v2104 = vmul.f32 %v2096, %v639
    %v2105 = vmul.f32 %v2097, %v639
    %v2107 = vlaneseq
    %v2108 = vshrl.u32 %v2107, 7
    %v2109 = vsub.s32 0, %v2108
    %v2110 = vrot.slane %v2033, %v2109
    %v2111 = vlaneseq
    %v2112 = vshrl.u32 %v2111, 7
    %v2113 = vsub.s32 1, %v2112
    %v2114 = vrot.slane %v2033, %v2113
    %2117 = vmatprep.subr.mxu0 %v1842
    %2118 = vmatpush1.msra.mxu0 %v1841
    %2119 = vmatprep.subr.mxu0 %v1844
    %2120 = vmatpush1.msra.mxu0 %v1843
    %2121 = vmatprep.subr.mxu0 %v1846
    %2122 = vmatpush1.msra.mxu0 %v1845
    %2123 = vmatprep.subr.mxu0 %v1848
    %2124 = vmatpush1.msra.mxu0 %v1847
    %2125 = vmatprep.subr.mxu0 %v1850
    %2126 = vmatpush1.msra.mxu0 %v1849
    %2127 = vmatprep.subr.mxu0 %v1852
    %2128 = vmatpush1.msra.mxu0 %v1851
    %2129 = vmatprep.subr.mxu0 %v1854
    %2130 = vmatpush1.msra.mxu0 %v1853
    %2131 = vmatprep.subr.mxu0 %v1856
    %2132 = vmatpush1.msra.mxu0 %v1855
    %2133 = vmatprep.subr.mxu0 %v1858
    %2134 = vmatpush1.msra.mxu0 %v1857
    %2135 = vmatprep.subr.mxu0 %v1860
    %2136 = vmatpush1.msra.mxu0 %v1859
    %2137 = vmatprep.subr.mxu0 %v1862
    %2138 = vmatpush1.msra.mxu0 %v1861
    %2139 = vmatprep.subr.mxu0 %v1864
    %2140 = vmatpush1.msra.mxu0 %v1863
    %2141 = vmatprep.subr.mxu0 %v1866
    %2142 = vmatpush1.msra.mxu0 %v1865
    %2143 = vmatprep.subr.mxu0 %v1868
    %2144 = vmatpush1.msra.mxu0 %v1867
    %2145 = vmatprep.subr.mxu0 %v1870
    %2146 = vmatpush1.msra.mxu0 %v1869
    %2147 = vmatprep.subr.mxu0 %v1872
    %2148 = vmatpush1.msra.mxu0 %v1871
    %2149 = vmatprep.subr.mxu0 %v1874
    %2150 = vmatpush1.msra.mxu0 %v1873
    %2151 = vmatprep.subr.mxu0 %v1876
    %2152 = vmatpush1.msra.mxu0 %v1875
    %2153 = vmatprep.subr.mxu0 %v1878
    %2154 = vmatpush1.msra.mxu0 %v1877
    %2155 = vmatprep.subr.mxu0 %v1880
    %2156 = vmatpush1.msra.mxu0 %v1879
    %2157 = vmatprep.subr.mxu0 %v1882
    %2158 = vmatpush1.msra.mxu0 %v1881
    %2159 = vmatprep.subr.mxu0 %v1884
    %2160 = vmatpush1.msra.mxu0 %v1883
    %2161 = vmatprep.subr.mxu0 %v1886
    %2162 = vmatpush1.msra.mxu0 %v1885
    %2163 = vmatprep.subr.mxu0 %v1888
    %2164 = vmatpush1.msra.mxu0 %v1887
    %2165 = vmatprep.subr.mxu0 %v1890
    %2166 = vmatpush1.msra.mxu0 %v1889
    %2167 = vmatprep.subr.mxu0 %v1892
    %2168 = vmatpush1.msra.mxu0 %v1891
    %2169 = vmatprep.subr.mxu0 %v1894
    %2170 = vmatpush1.msra.mxu0 %v1893
    %2171 = vmatprep.subr.mxu0 %v1896
    %2172 = vmatpush1.msra.mxu0 %v1895
    %2173 = vmatprep.subr.mxu0 %v1898
    %2174 = vmatpush1.msra.mxu0 %v1897
    %2175 = vmatprep.subr.mxu0 %v1900
    %2176 = vmatpush1.msra.mxu0 %v1899
    %2177 = vmatprep.subr.mxu0 %v1902
    %2178 = vmatpush1.msra.mxu0 %v1901
    %2179 = vmatprep.subr.mxu0 %v1904
    %2180 = vmatpush1.msra.mxu0 %v1903
    %2181 = vmatprep.mubr.f32.mxu0 %v2067
    %2182 = vmatmul.mubr.f32.gmra.mrb[0].mxu0 %v2066
    %v2183 = vpop.f32.mrb[0].mxu0
    %v2184 = vadd.f32 %v2110, %v2183
    %v2185 = vpop.f32.mrb[0].mxu0
    %v2186 = vadd.f32 %v2114, %v2185
    %2187 = vmatprep.mubr.f32.mxu0 %v2069
    %2188 = vmatmul.mubr.f32.gmra.mrb[0].mxu0 %v2068
    %v2189 = vpop.f32.mrb[0].mxu0
    %v2190 = vadd.f32 %v2110, %v2189
    %v2191 = vpop.f32.mrb[0].mxu0
    %v2192 = vadd.f32 %v2114, %v2191
    %2193 = vmatprep.mubr.f32.mxu0 %v2071
    %2194 = vmatmul.mubr.f32.gmra.mrb[0].mxu0 %v2070
    %v2195 = vpop.f32.mrb[0].mxu0
    %v2196 = vadd.f32 %v2110, %v2195
    %v2197 = vpop.f32.mrb[0].mxu0
    %v2198 = vadd.f32 %v2114, %v2197
    %2199 = vmatprep.mubr.f32.mxu0 %v2073
    %2200 = vmatmul.mubr.f32.gmra.mrb[0].mxu0 %v2072
    %v2201 = vpop.f32.mrb[0].mxu0
    %v2202 = vadd.f32 %v2110, %v2201
    %v2203 = vpop.f32.mrb[0].mxu0
    %v2204 = vadd.f32 %v2114, %v2203
    %2205 = vdwg.mxu0
    %2206 = vmatprep.subr.mxu0 %v1906
    %2207 = vmatpush1.msra.mxu0 %v1905
    %2208 = vmatprep.subr.mxu0 %v1908
    %2209 = vmatpush1.msra.mxu0 %v1907
    %2210 = vmatprep.subr.mxu0 %v1910
    %2211 = vmatpush1.msra.mxu0 %v1909
    %2212 = vmatprep.subr.mxu0 %v1912
    %2213 = vmatpush1.msra.mxu0 %v1911
    %2214 = vmatprep.subr.mxu0 %v1914
    %2215 = vmatpush1.msra.mxu0 %v1913
    %2216 = vmatprep.subr.mxu0 %v1916
    %2217 = vmatpush1.msra.mxu0 %v1915
    %2218 = vmatprep.subr.mxu0 %v1918
    %2219 = vmatpush1.msra.mxu0 %v1917
    %2220 = vmatprep.subr.mxu0 %v1920
    %2221 = vmatpush1.msra.mxu0 %v1919
    %2222 = vmatprep.subr.mxu0 %v1922
    %2223 = vmatpush1.msra.mxu0 %v1921
    %2224 = vmatprep.subr.mxu0 %v1924
    %2225 = vmatpush1.msra.mxu0 %v1923
    %2226 = vmatprep.subr.mxu0 %v1926
    %2227 = vmatpush1.msra.mxu0 %v1925
    %2228 = vmatprep.subr.mxu0 %v1928
    %2229 = vmatpush1.msra.mxu0 %v1927
    %2230 = vmatprep.subr.mxu0 %v1930
    %2231 = vmatpush1.msra.mxu0 %v1929
    %2232 = vmatprep.subr.mxu0 %v1932
    %2233 = vmatpush1.msra.mxu0 %v1931
    %2234 = vmatprep.subr.mxu0 %v1934
    %2235 = vmatpush1.msra.mxu0 %v1933
    %2236 = vmatprep.subr.mxu0 %v1936
    %2237 = vmatpush1.msra.mxu0 %v1935
    %2238 = vmatprep.subr.mxu0 %v1938
    %2239 = vmatpush1.msra.mxu0 %v1937
    %2240 = vmatprep.subr.mxu0 %v1940
    %2241 = vmatpush1.msra.mxu0 %v1939
    %2242 = vmatprep.subr.mxu0 %v1942
    %2243 = vmatpush1.msra.mxu0 %v1941
    %2244 = vmatprep.subr.mxu0 %v1944
    %2245 = vmatpush1.msra.mxu0 %v1943
    %2246 = vmatprep.subr.mxu0 %v1946
    %2247 = vmatpush1.msra.mxu0 %v1945
    %2248 = vmatprep.subr.mxu0 %v1948
    %2249 = vmatpush1.msra.mxu0 %v1947
    %2250 = vmatprep.subr.mxu0 %v1950
    %2251 = vmatpush1.msra.mxu0 %v1949
    %2252 = vmatprep.subr.mxu0 %v1952
    %2253 = vmatpush1.msra.mxu0 %v1951
    %2254 = vmatprep.subr.mxu0 %v1954
    %2255 = vmatpush1.msra.mxu0 %v1953
    %2256 = vmatprep.subr.mxu0 %v1956
    %2257 = vmatpush1.msra.mxu0 %v1955
    %2258 = vmatprep.subr.mxu0 %v1958
    %2259 = vmatpush1.msra.mxu0 %v1957
    %2260 = vmatprep.subr.mxu0 %v1960
    %2261 = vmatpush1.msra.mxu0 %v1959
    %2262 = vmatprep.subr.mxu0 %v1962
    %2263 = vmatpush1.msra.mxu0 %v1961
    %2264 = vmatprep.subr.mxu0 %v1964
    %2265 = vmatpush1.msra.mxu0 %v1963
    %2266 = vmatprep.subr.mxu0 %v1966
    %2267 = vmatpush1.msra.mxu0 %v1965
    %2268 = vmatprep.subr.mxu0 %v1968
    %2269 = vmatpush1.msra.mxu0 %v1967
    %2270 = vmatprep.mubr.f32.mxu0 %v1834
    %2271 = vmatmul.mubr.f32.gmra.mrb[0].mxu0 %v1833
    %v2272 = vpop.f32.mrb[0].mxu0
    %v2273 = vadd.f32 %v2184, %v2272
    %v2274 = vpop.f32.mrb[0].mxu0
    %v2275 = vadd.f32 %v2186, %v2274
    %2276 = vmatprep.mubr.f32.mxu0 %v1836
    %2277 = vmatmul.mubr.f32.gmra.mrb[0].mxu0 %v1835
    %v2278 = vpop.f32.mrb[0].mxu0
    %v2279 = vadd.f32 %v2190, %v2278
    %v2280 = vpop.f32.mrb[0].mxu0
    %v2281 = vadd.f32 %v2192, %v2280
    %2282 = vmatprep.mubr.f32.mxu0 %v1838
    %2283 = vmatmul.mubr.f32.gmra.mrb[0].mxu0 %v1837
    %v2284 = vpop.f32.mrb[0].mxu0
    %v2285 = vadd.f32 %v2196, %v2284
    %v2286 = vpop.f32.mrb[0].mxu0
    %v2287 = vadd.f32 %v2198, %v2286
    %2288 = vmatprep.mubr.f32.mxu0 %v1840
    %2289 = vmatmul.mubr.f32.gmra.mrb[0].mxu0 %v1839
    %v2290 = vpop.f32.mrb[0].mxu0
    %v2291 = vadd.f32 %v2202, %v2290
    %v2292 = vpop.f32.mrb[0].mxu0
    %v2293 = vadd.f32 %v2204, %v2292
    %2294 = vdwg.mxu0
    %2295 = vmatprep.subr.mxu0 %v1970
    %2296 = vmatpush1.msra.mxu0 %v1969
    %2297 = vmatprep.subr.mxu0 %v1972
    %2298 = vmatpush1.msra.mxu0 %v1971
    %2299 = vmatprep.subr.mxu0 %v1974
    %2300 = vmatpush1.msra.mxu0 %v1973
    %2301 = vmatprep.subr.mxu0 %v1976
    %2302 = vmatpush1.msra.mxu0 %v1975
    %2303 = vmatprep.subr.mxu0 %v1978
    %2304 = vmatpush1.msra.mxu0 %v1977
    %2305 = vmatprep.subr.mxu0 %v1980
    %2306 = vmatpush1.msra.mxu0 %v1979
    %2307 = vmatprep.subr.mxu0 %v1982
    %2308 = vmatpush1.msra.mxu0 %v1981
    %2309 = vmatprep.subr.mxu0 %v1984
    %2310 = vmatpush1.msra.mxu0 %v1983
    %2311 = vmatprep.subr.mxu0 %v1986
    %2312 = vmatpush1.msra.mxu0 %v1985
    %2313 = vmatprep.subr.mxu0 %v1988
    %2314 = vmatpush1.msra.mxu0 %v1987
    %2315 = vmatprep.subr.mxu0 %v1990
    %2316 = vmatpush1.msra.mxu0 %v1989
    %2317 = vmatprep.subr.mxu0 %v1992
    %2318 = vmatpush1.msra.mxu0 %v1991
    %2319 = vmatprep.subr.mxu0 %v1994
    %2320 = vmatpush1.msra.mxu0 %v1993
    %2321 = vmatprep.subr.mxu0 %v1996
    %2322 = vmatpush1.msra.mxu0 %v1995
    %2323 = vmatprep.subr.mxu0 %v1998
    %2324 = vmatpush1.msra.mxu0 %v1997
    %2325 = vmatprep.subr.mxu0 %v2000
    %2326 = vmatpush1.msra.mxu0 %v1999
    %2327 = vmatprep.subr.mxu0 %v2002
    %2328 = vmatpush1.msra.mxu0 %v2001
    %2329 = vmatprep.subr.mxu0 %v2004
    %2330 = vmatpush1.msra.mxu0 %v2003
    %2331 = vmatprep.subr.mxu0 %v2006
    %2332 = vmatpush1.msra.mxu0 %v2005
    %2333 = vmatprep.subr.mxu0 %v2008
    %2334 = vmatpush1.msra.mxu0 %v2007
    %2335 = vmatprep.subr.mxu0 %v2010
    %2336 = vmatpush1.msra.mxu0 %v2009
    %2337 = vmatprep.subr.mxu0 %v2012
    %2338 = vmatpush1.msra.mxu0 %v2011
    %2339 = vmatprep.subr.mxu0 %v2014
    %2340 = vmatpush1.msra.mxu0 %v2013
    %2341 = vmatprep.subr.mxu0 %v2016
    %2342 = vmatpush1.msra.mxu0 %v2015
    %2343 = vmatprep.subr.mxu0 %v2018
    %2344 = vmatpush1.msra.mxu0 %v2017
    %2345 = vmatprep.subr.mxu0 %v2020
    %2346 = vmatpush1.msra.mxu0 %v2019
    %2347 = vmatprep.subr.mxu0 %v2022
    %2348 = vmatpush1.msra.mxu0 %v2021
    %2349 = vmatprep.subr.mxu0 %v2024
    %2350 = vmatpush1.msra.mxu0 %v2023
    %2351 = vmatprep.subr.mxu0 %v2026
    %2352 = vmatpush1.msra.mxu0 %v2025
    %2353 = vmatprep.subr.mxu0 %v2028
    %2354 = vmatpush1.msra.mxu0 %v2027
    %2355 = vmatprep.subr.mxu0 %v2030
    %2356 = vmatpush1.msra.mxu0 %v2029
    %2357 = vmatprep.subr.mxu0 %v2032
    %2358 = vmatpush1.msra.mxu0 %v2031
    %2359 = vmatprep.mubr.f32.mxu0 %v2099
    %2360 = vmatmul.mubr.f32.gmra.mrb[0].mxu0 %v2098
    %v2361 = vpop.f32.mrb[0].mxu0
    %v2362 = vadd.f32 %v2273, %v2361
    %v2363 = vpop.f32.mrb[0].mxu0
    %v2364 = vadd.f32 %v2275, %v2363
    %2365 = vmatprep.mubr.f32.mxu0 %v2101
    %2366 = vmatmul.mubr.f32.gmra.mrb[0].mxu0 %v2100
    %v2367 = vpop.f32.mrb[0].mxu0
    %v2368 = vadd.f32 %v2279, %v2367
    %v2369 = vpop.f32.mrb[0].mxu0
    %v2370 = vadd.f32 %v2281, %v2369
    %2371 = vmatprep.mubr.f32.mxu0 %v2103
    %2372 = vmatmul.mubr.f32.gmra.mrb[0].mxu0 %v2102
    %v2373 = vpop.f32.mrb[0].mxu0
    %v2374 = vadd.f32 %v2285, %v2373
    %v2375 = vpop.f32.mrb[0].mxu0
    %v2376 = vadd.f32 %v2287, %v2375
    %2377 = vmatprep.mubr.f32.mxu0 %v2105
    %2378 = vmatmul.mubr.f32.gmra.mrb[0].mxu0 %v2104
    %v2379 = vpop.f32.mrb[0].mxu0
    %v2380 = vadd.f32 %v2291, %v2379
    %v2381 = vpop.f32.mrb[0].mxu0
    %v2382 = vadd.f32 %v2293, %v2381
    %2383 = vdwg.mxu0
    %v2384 = vadd.f32 %v2362, %v1811
    %v2385 = vadd.f32 %v2364, %v1813
    %v2386 = vadd.f32 %v2368, %v1817
    %v2387 = vadd.f32 %v2370, %v1819
    %v2388 = vadd.f32 %v2374, %v1823
    %v2389 = vadd.f32 %v2376, %v1825
    %v2390 = vadd.f32 %v2380, %v1829
    %v2391 = vadd.f32 %v2382, %v1831
    %v2392 = vld [vmem:[%s57] sm:$0x3]
    %v2394 = vlaneseq
    %v2395 = vshrl.u32 %v2394, 7
    %v2396 = vsub.s32 0, %v2395
    %v2397 = vrot.slane %v2392, %v2396
    %v2398 = vlaneseq
    %v2399 = vshrl.u32 %v2398, 7
    %v2400 = vsub.s32 1, %v2399
    %v2401 = vrot.slane %v2392, %v2400
    %v2404 = vmul.f32 %v2384, %v2397
    %v2405 = vmul.f32 %v2385, %v2401
    %v2406 = vmul.f32 %v2386, %v2397
    %v2407 = vmul.f32 %v2387, %v2401
    %v2408 = vmul.f32 %v2388, %v2397
    %v2409 = vmul.f32 %v2389, %v2401
    %v2410 = vmul.f32 %v2390, %v2397
    %v2411 = vmul.f32 %v2391, %v2401
    %v2412 = vld [vmem:[%s59] sm:$0x3]
    %v2414 = vlaneseq
    %v2415 = vshrl.u32 %v2414, 7
    %v2416 = vsub.s32 0, %v2415
    %v2417 = vrot.slane %v2412, %v2416
    %v2418 = vlaneseq
    %v2419 = vshrl.u32 %v2418, 7
    %v2420 = vsub.s32 1, %v2419
    %v2421 = vrot.slane %v2412, %v2420
    %v2424 = vadd.f32 %v2404, %v2417
    %v2425 = vadd.f32 %v2405, %v2421
    %v2426 = vadd.f32 %v2406, %v2417
    %v2427 = vadd.f32 %v2407, %v2421
    %v2428 = vadd.f32 %v2408, %v2417
    %v2429 = vadd.f32 %v2409, %v2421
    %v2430 = vadd.f32 %v2410, %v2417
    %v2431 = vadd.f32 %v2411, %v2421
    %v2432 = vmax.f32 %v2424, 0.0
    %v2433 = vmax.f32 %v2425, 0.0
    %v2434 = vmax.f32 %v2426, 0.0
    %v2435 = vmax.f32 %v2427, 0.0
    %v2436 = vmax.f32 %v2428, 0.0
    %v2437 = vmax.f32 %v2429, 0.0
    %v2438 = vmax.f32 %v2430, 0.0
    %v2439 = vmax.f32 %v2431, 0.0
    %v2440 = vld [vmem:[%s61] sm:$0xff]
    %v2441 = vld [vmem:[%s61 + $0x8] sm:$0xff]
    %v2442 = vld [vmem:[%s61 + $0x10] sm:$0xff]
    %v2443 = vld [vmem:[%s61 + $0x18] sm:$0xff]
    %v2444 = vld [vmem:[%s61 + $0x20] sm:$0xff]
    %v2445 = vld [vmem:[%s61 + $0x28] sm:$0xff]
    %v2446 = vld [vmem:[%s61 + $0x30] sm:$0xff]
    %v2447 = vld [vmem:[%s61 + $0x38] sm:$0xff]
    %v2448 = vld [vmem:[%s61 + $0x40] sm:$0xff]
    %v2449 = vld [vmem:[%s61 + $0x48] sm:$0xff]
    %v2450 = vld [vmem:[%s61 + $0x50] sm:$0xff]
    %v2451 = vld [vmem:[%s61 + $0x58] sm:$0xff]
    %v2452 = vld [vmem:[%s61 + $0x60] sm:$0xff]
    %v2453 = vld [vmem:[%s61 + $0x68] sm:$0xff]
    %v2454 = vld [vmem:[%s61 + $0x70] sm:$0xff]
    %v2455 = vld [vmem:[%s61 + $0x78] sm:$0xff]
    %v2456 = vld [vmem:[%s61 + $0x80] sm:$0xff]
    %v2457 = vld [vmem:[%s61 + $0x88] sm:$0xff]
    %v2458 = vld [vmem:[%s61 + $0x90] sm:$0xff]
    %v2459 = vld [vmem:[%s61 + $0x98] sm:$0xff]
    %v2460 = vld [vmem:[%s61 + $0xa0] sm:$0xff]
    %v2461 = vld [vmem:[%s61 + $0xa8] sm:$0xff]
    %v2462 = vld [vmem:[%s61 + $0xb0] sm:$0xff]
    %v2463 = vld [vmem:[%s61 + $0xb8] sm:$0xff]
    %v2464 = vld [vmem:[%s61 + $0xc0] sm:$0xff]
    %v2465 = vld [vmem:[%s61 + $0xc8] sm:$0xff]
    %v2466 = vld [vmem:[%s61 + $0xd0] sm:$0xff]
    %v2467 = vld [vmem:[%s61 + $0xd8] sm:$0xff]
    %v2468 = vld [vmem:[%s61 + $0xe0] sm:$0xff]
    %v2469 = vld [vmem:[%s61 + $0xe8] sm:$0xff]
    %v2470 = vld [vmem:[%s61 + $0xf0] sm:$0xff]
    %v2471 = vld [vmem:[%s61 + $0xf8] sm:$0xff]
    %v2472 = vld [vmem:[%s61 + $0x100] sm:$0xff]
    %v2473 = vld [vmem:[%s61 + $0x108] sm:$0xff]
    %v2474 = vld [vmem:[%s61 + $0x110] sm:$0xff]
    %v2475 = vld [vmem:[%s61 + $0x118] sm:$0xff]
    %v2476 = vld [vmem:[%s61 + $0x120] sm:$0xff]
    %v2477 = vld [vmem:[%s61 + $0x128] sm:$0xff]
    %v2478 = vld [vmem:[%s61 + $0x130] sm:$0xff]
    %v2479 = vld [vmem:[%s61 + $0x138] sm:$0xff]
    %v2480 = vld [vmem:[%s61 + $0x140] sm:$0xff]
    %v2481 = vld [vmem:[%s61 + $0x148] sm:$0xff]
    %v2482 = vld [vmem:[%s61 + $0x150] sm:$0xff]
    %v2483 = vld [vmem:[%s61 + $0x158] sm:$0xff]
    %v2484 = vld [vmem:[%s61 + $0x160] sm:$0xff]
    %v2485 = vld [vmem:[%s61 + $0x168] sm:$0xff]
    %v2486 = vld [vmem:[%s61 + $0x170] sm:$0xff]
    %v2487 = vld [vmem:[%s61 + $0x178] sm:$0xff]
    %v2488 = vld [vmem:[%s61 + $0x180] sm:$0xff]
    %v2489 = vld [vmem:[%s61 + $0x188] sm:$0xff]
    %v2490 = vld [vmem:[%s61 + $0x190] sm:$0xff]
    %v2491 = vld [vmem:[%s61 + $0x198] sm:$0xff]
    %v2492 = vld [vmem:[%s61 + $0x1a0] sm:$0xff]
    %v2493 = vld [vmem:[%s61 + $0x1a8] sm:$0xff]
    %v2494 = vld [vmem:[%s61 + $0x1b0] sm:$0xff]
    %v2495 = vld [vmem:[%s61 + $0x1b8] sm:$0xff]
    %v2496 = vld [vmem:[%s61 + $0x1c0] sm:$0xff]
    %v2497 = vld [vmem:[%s61 + $0x1c8] sm:$0xff]
    %v2498 = vld [vmem:[%s61 + $0x1d0] sm:$0xff]
    %v2499 = vld [vmem:[%s61 + $0x1d8] sm:$0xff]
    %v2500 = vld [vmem:[%s61 + $0x1e0] sm:$0xff]
    %v2501 = vld [vmem:[%s61 + $0x1e8] sm:$0xff]
    %v2502 = vld [vmem:[%s61 + $0x1f0] sm:$0xff]
    %v2503 = vld [vmem:[%s61 + $0x1f8] sm:$0xff]
    %v2504 = vld [vmem:[%s61 + $0x200] sm:$0xff]
    %v2505 = vld [vmem:[%s61 + $0x208] sm:$0xff]
    %v2506 = vld [vmem:[%s61 + $0x210] sm:$0xff]
    %v2507 = vld [vmem:[%s61 + $0x218] sm:$0xff]
    %v2508 = vld [vmem:[%s61 + $0x220] sm:$0xff]
    %v2509 = vld [vmem:[%s61 + $0x228] sm:$0xff]
    %v2510 = vld [vmem:[%s61 + $0x230] sm:$0xff]
    %v2511 = vld [vmem:[%s61 + $0x238] sm:$0xff]
    %v2512 = vld [vmem:[%s61 + $0x240] sm:$0xff]
    %v2513 = vld [vmem:[%s61 + $0x248] sm:$0xff]
    %v2514 = vld [vmem:[%s61 + $0x250] sm:$0xff]
    %v2515 = vld [vmem:[%s61 + $0x258] sm:$0xff]
    %v2516 = vld [vmem:[%s61 + $0x260] sm:$0xff]
    %v2517 = vld [vmem:[%s61 + $0x268] sm:$0xff]
    %v2518 = vld [vmem:[%s61 + $0x270] sm:$0xff]
    %v2519 = vld [vmem:[%s61 + $0x278] sm:$0xff]
    %v2520 = vld [vmem:[%s61 + $0x280] sm:$0xff]
    %v2521 = vld [vmem:[%s61 + $0x288] sm:$0xff]
    %v2522 = vld [vmem:[%s61 + $0x290] sm:$0xff]
    %v2523 = vld [vmem:[%s61 + $0x298] sm:$0xff]
    %v2524 = vld [vmem:[%s61 + $0x2a0] sm:$0xff]
    %v2525 = vld [vmem:[%s61 + $0x2a8] sm:$0xff]
    %v2526 = vld [vmem:[%s61 + $0x2b0] sm:$0xff]
    %v2527 = vld [vmem:[%s61 + $0x2b8] sm:$0xff]
    %v2528 = vld [vmem:[%s61 + $0x2c0] sm:$0xff]
    %v2529 = vld [vmem:[%s61 + $0x2c8] sm:$0xff]
    %v2530 = vld [vmem:[%s61 + $0x2d0] sm:$0xff]
    %v2531 = vld [vmem:[%s61 + $0x2d8] sm:$0xff]
    %v2532 = vld [vmem:[%s61 + $0x2e0] sm:$0xff]
    %v2533 = vld [vmem:[%s61 + $0x2e8] sm:$0xff]
    %v2534 = vld [vmem:[%s61 + $0x2f0] sm:$0xff]
    %v2535 = vld [vmem:[%s61 + $0x2f8] sm:$0xff]
    %v2536 = vld [vmem:[%s61 + $0x300] sm:$0xff]
    %v2537 = vld [vmem:[%s61 + $0x308] sm:$0xff]
    %v2538 = vld [vmem:[%s61 + $0x310] sm:$0xff]
    %v2539 = vld [vmem:[%s61 + $0x318] sm:$0xff]
    %v2540 = vld [vmem:[%s61 + $0x320] sm:$0xff]
    %v2541 = vld [vmem:[%s61 + $0x328] sm:$0xff]
    %v2542 = vld [vmem:[%s61 + $0x330] sm:$0xff]
    %v2543 = vld [vmem:[%s61 + $0x338] sm:$0xff]
    %v2544 = vld [vmem:[%s61 + $0x340] sm:$0xff]
    %v2545 = vld [vmem:[%s61 + $0x348] sm:$0xff]
    %v2546 = vld [vmem:[%s61 + $0x350] sm:$0xff]
    %v2547 = vld [vmem:[%s61 + $0x358] sm:$0xff]
    %v2548 = vld [vmem:[%s61 + $0x360] sm:$0xff]
    %v2549 = vld [vmem:[%s61 + $0x368] sm:$0xff]
    %v2550 = vld [vmem:[%s61 + $0x370] sm:$0xff]
    %v2551 = vld [vmem:[%s61 + $0x378] sm:$0xff]
    %v2552 = vld [vmem:[%s61 + $0x380] sm:$0xff]
    %v2553 = vld [vmem:[%s61 + $0x388] sm:$0xff]
    %v2554 = vld [vmem:[%s61 + $0x390] sm:$0xff]
    %v2555 = vld [vmem:[%s61 + $0x398] sm:$0xff]
    %v2556 = vld [vmem:[%s61 + $0x3a0] sm:$0xff]
    %v2557 = vld [vmem:[%s61 + $0x3a8] sm:$0xff]
    %v2558 = vld [vmem:[%s61 + $0x3b0] sm:$0xff]
    %v2559 = vld [vmem:[%s61 + $0x3b8] sm:$0xff]
    %v2560 = vld [vmem:[%s61 + $0x3c0] sm:$0xff]
    %v2561 = vld [vmem:[%s61 + $0x3c8] sm:$0xff]
    %v2562 = vld [vmem:[%s61 + $0x3d0] sm:$0xff]
    %v2563 = vld [vmem:[%s61 + $0x3d8] sm:$0xff]
    %v2564 = vld [vmem:[%s61 + $0x3e0] sm:$0xff]
    %v2565 = vld [vmem:[%s61 + $0x3e8] sm:$0xff]
    %v2566 = vld [vmem:[%s61 + $0x3f0] sm:$0xff]
    %v2567 = vld [vmem:[%s61 + $0x3f8] sm:$0xff]
    %v2568 = vld [vmem:[%s61 + $0x400] sm:$0xff]
    %v2569 = vld [vmem:[%s61 + $0x408] sm:$0xff]
    %v2570 = vld [vmem:[%s61 + $0x410] sm:$0xff]
    %v2571 = vld [vmem:[%s61 + $0x418] sm:$0xff]
    %v2572 = vld [vmem:[%s61 + $0x420] sm:$0xff]
    %v2573 = vld [vmem:[%s61 + $0x428] sm:$0xff]
    %v2574 = vld [vmem:[%s61 + $0x430] sm:$0xff]
    %v2575 = vld [vmem:[%s61 + $0x438] sm:$0xff]
    %v2576 = vld [vmem:[%s61 + $0x440] sm:$0xff]
    %v2577 = vld [vmem:[%s61 + $0x448] sm:$0xff]
    %v2578 = vld [vmem:[%s61 + $0x450] sm:$0xff]
    %v2579 = vld [vmem:[%s61 + $0x458] sm:$0xff]
    %v2580 = vld [vmem:[%s61 + $0x460] sm:$0xff]
    %v2581 = vld [vmem:[%s61 + $0x468] sm:$0xff]
    %v2582 = vld [vmem:[%s61 + $0x470] sm:$0xff]
    %v2583 = vld [vmem:[%s61 + $0x478] sm:$0xff]
    %v2584 = vld [vmem:[%s61 + $0x480] sm:$0xff]
    %v2585 = vld [vmem:[%s61 + $0x488] sm:$0xff]
    %v2586 = vld [vmem:[%s61 + $0x490] sm:$0xff]
    %v2587 = vld [vmem:[%s61 + $0x498] sm:$0xff]
    %v2588 = vld [vmem:[%s61 + $0x4a0] sm:$0xff]
    %v2589 = vld [vmem:[%s61 + $0x4a8] sm:$0xff]
    %v2590 = vld [vmem:[%s61 + $0x4b0] sm:$0xff]
    %v2591 = vld [vmem:[%s61 + $0x4b8] sm:$0xff]
    %v2592 = vld [vmem:[%s61 + $0x4c0] sm:$0xff]
    %v2593 = vld [vmem:[%s61 + $0x4c8] sm:$0xff]
    %v2594 = vld [vmem:[%s61 + $0x4d0] sm:$0xff]
    %v2595 = vld [vmem:[%s61 + $0x4d8] sm:$0xff]
    %v2596 = vld [vmem:[%s61 + $0x4e0] sm:$0xff]
    %v2597 = vld [vmem:[%s61 + $0x4e8] sm:$0xff]
    %v2598 = vld [vmem:[%s61 + $0x4f0] sm:$0xff]
    %v2599 = vld [vmem:[%s61 + $0x4f8] sm:$0xff]
    %v2600 = vld [vmem:[%s61 + $0x500] sm:$0xff]
    %v2601 = vld [vmem:[%s61 + $0x508] sm:$0xff]
    %v2602 = vld [vmem:[%s61 + $0x510] sm:$0xff]
    %v2603 = vld [vmem:[%s61 + $0x518] sm:$0xff]
    %v2604 = vld [vmem:[%s61 + $0x520] sm:$0xff]
    %v2605 = vld [vmem:[%s61 + $0x528] sm:$0xff]
    %v2606 = vld [vmem:[%s61 + $0x530] sm:$0xff]
    %v2607 = vld [vmem:[%s61 + $0x538] sm:$0xff]
    %v2608 = vld [vmem:[%s61 + $0x540] sm:$0xff]
    %v2609 = vld [vmem:[%s61 + $0x548] sm:$0xff]
    %v2610 = vld [vmem:[%s61 + $0x550] sm:$0xff]
    %v2611 = vld [vmem:[%s61 + $0x558] sm:$0xff]
    %v2612 = vld [vmem:[%s61 + $0x560] sm:$0xff]
    %v2613 = vld [vmem:[%s61 + $0x568] sm:$0xff]
    %v2614 = vld [vmem:[%s61 + $0x570] sm:$0xff]
    %v2615 = vld [vmem:[%s61 + $0x578] sm:$0xff]
    %v2616 = vld [vmem:[%s61 + $0x580] sm:$0xff]
    %v2617 = vld [vmem:[%s61 + $0x588] sm:$0xff]
    %v2618 = vld [vmem:[%s61 + $0x590] sm:$0xff]
    %v2619 = vld [vmem:[%s61 + $0x598] sm:$0xff]
    %v2620 = vld [vmem:[%s61 + $0x5a0] sm:$0xff]
    %v2621 = vld [vmem:[%s61 + $0x5a8] sm:$0xff]
    %v2622 = vld [vmem:[%s61 + $0x5b0] sm:$0xff]
    %v2623 = vld [vmem:[%s61 + $0x5b8] sm:$0xff]
    %v2624 = vld [vmem:[%s61 + $0x5c0] sm:$0xff]
    %v2625 = vld [vmem:[%s61 + $0x5c8] sm:$0xff]
    %v2626 = vld [vmem:[%s61 + $0x5d0] sm:$0xff]
    %v2627 = vld [vmem:[%s61 + $0x5d8] sm:$0xff]
    %v2628 = vld [vmem:[%s61 + $0x5e0] sm:$0xff]
    %v2629 = vld [vmem:[%s61 + $0x5e8] sm:$0xff]
    %v2630 = vld [vmem:[%s61 + $0x5f0] sm:$0xff]
    %v2631 = vld [vmem:[%s61 + $0x5f8] sm:$0xff]
    %v2632 = vld [vmem:[%s63] sm:$0x3f]
    %v2634 = vlaneseq
    %v2635 = vshrl.u32 %v2634, 7
    %v2636 = vsub.s32 0, %v2635
    %v2637 = vrot.slane %v2632, %v2636
    %v2638 = vlaneseq
    %v2639 = vshrl.u32 %v2638, 7
    %v2640 = vsub.s32 1, %v2639
    %v2641 = vrot.slane %v2632, %v2640
    %v2642 = vlaneseq
    %v2643 = vshrl.u32 %v2642, 7
    %v2644 = vsub.s32 2, %v2643
    %v2645 = vrot.slane %v2632, %v2644
    %v2646 = vlaneseq
    %v2647 = vshrl.u32 %v2646, 7
    %v2648 = vsub.s32 3, %v2647
    %v2649 = vrot.slane %v2632, %v2648
    %v2650 = vlaneseq
    %v2651 = vshrl.u32 %v2650, 7
    %v2652 = vsub.s32 4, %v2651
    %v2653 = vrot.slane %v2632, %v2652
    %v2654 = vlaneseq
    %v2655 = vshrl.u32 %v2654, 7
    %v2656 = vsub.s32 5, %v2655
    %v2657 = vrot.slane %v2632, %v2656
    %2664 = vmatprep.subr.mxu0 %v2441
    %2665 = vmatpush1.msra.mxu0 %v2440
    %2666 = vmatprep.subr.mxu0 %v2447
    %2667 = vmatpush1.msra.mxu0 %v2446
    %2668 = vmatprep.subr.mxu0 %v2453
    %2669 = vmatpush1.msra.mxu0 %v2452
    %2670 = vmatprep.subr.mxu0 %v2459
    %2671 = vmatpush1.msra.mxu0 %v2458
    %2672 = vmatprep.subr.mxu0 %v2465
    %2673 = vmatpush1.msra.mxu0 %v2464
    %2674 = vmatprep.subr.mxu0 %v2471
    %2675 = vmatpush1.msra.mxu0 %v2470
    %2676 = vmatprep.subr.mxu0 %v2477
    %2677 = vmatpush1.msra.mxu0 %v2476
    %2678 = vmatprep.subr.mxu0 %v2483
    %2679 = vmatpush1.msra.mxu0 %v2482
    %2680 = vmatprep.subr.mxu0 %v2489
    %2681 = vmatpush1.msra.mxu0 %v2488
    %2682 = vmatprep.subr.mxu0 %v2495
    %2683 = vmatpush1.msra.mxu0 %v2494
    %2684 = vmatprep.subr.mxu0 %v2501
    %2685 = vmatpush1.msra.mxu0 %v2500
    %2686 = vmatprep.subr.mxu0 %v2507
    %2687 = vmatpush1.msra.mxu0 %v2506
    %2688 = vmatprep.subr.mxu0 %v2513
    %2689 = vmatpush1.msra.mxu0 %v2512
    %2690 = vmatprep.subr.mxu0 %v2519
    %2691 = vmatpush1.msra.mxu0 %v2518
    %2692 = vmatprep.subr.mxu0 %v2525
    %2693 = vmatpush1.msra.mxu0 %v2524
    %2694 = vmatprep.subr.mxu0 %v2531
    %2695 = vmatpush1.msra.mxu0 %v2530
    %2696 = vmatprep.subr.mxu0 %v2537
    %2697 = vmatpush1.msra.mxu0 %v2536
    %2698 = vmatprep.subr.mxu0 %v2543
    %2699 = vmatpush1.msra.mxu0 %v2542
    %2700 = vmatprep.subr.mxu0 %v2549
    %2701 = vmatpush1.msra.mxu0 %v2548
    %2702 = vmatprep.subr.mxu0 %v2555
    %2703 = vmatpush1.msra.mxu0 %v2554
    %2704 = vmatprep.subr.mxu0 %v2561
    %2705 = vmatpush1.msra.mxu0 %v2560
    %2706 = vmatprep.subr.mxu0 %v2567
    %2707 = vmatpush1.msra.mxu0 %v2566
    %2708 = vmatprep.subr.mxu0 %v2573
    %2709 = vmatpush1.msra.mxu0 %v2572
    %2710 = vmatprep.subr.mxu0 %v2579
    %2711 = vmatpush1.msra.mxu0 %v2578
    %2712 = vmatprep.subr.mxu0 %v2585
    %2713 = vmatpush1.msra.mxu0 %v2584
    %2714 = vmatprep.subr.mxu0 %v2591
    %2715 = vmatpush1.msra.mxu0 %v2590
    %2716 = vmatprep.subr.mxu0 %v2597
    %2717 = vmatpush1.msra.mxu0 %v2596
    %2718 = vmatprep.subr.mxu0 %v2603
    %2719 = vmatpush1.msra.mxu0 %v2602
    %2720 = vmatprep.subr.mxu0 %v2609
    %2721 = vmatpush1.msra.mxu0 %v2608
    %2722 = vmatprep.subr.mxu0 %v2615
    %2723 = vmatpush1.msra.mxu0 %v2614
    %2724 = vmatprep.subr.mxu0 %v2621
    %2725 = vmatpush1.msra.mxu0 %v2620
    %2726 = vmatprep.subr.mxu0 %v2627
    %2727 = vmatpush1.msra.mxu0 %v2626
    %2728 = vmatprep.mubr.f32.mxu0 %v2433
    %2729 = vmatmul.mubr.f32.gmra.mrb[0].mxu0 %v2432
    %v2730 = vpop.f32.mrb[0].mxu0
    %v2731 = vadd.f32 %v2637, %v2730
    %v2732 = vpop.f32.mrb[0].mxu0
    %v2733 = vadd.f32 %v2641, %v2732
    %2734 = vmatprep.mubr.f32.mxu0 %v2435
    %2735 = vmatmul.mubr.f32.gmra.mrb[0].mxu0 %v2434
    %v2736 = vpop.f32.mrb[0].mxu0
    %v2737 = vadd.f32 %v2637, %v2736
    %v2738 = vpop.f32.mrb[0].mxu0
    %v2739 = vadd.f32 %v2641, %v2738
    %2740 = vmatprep.mubr.f32.mxu0 %v2437
    %2741 = vmatmul.mubr.f32.gmra.mrb[0].mxu0 %v2436
    %v2742 = vpop.f32.mrb[0].mxu0
    %v2743 = vadd.f32 %v2637, %v2742
    %v2744 = vpop.f32.mrb[0].mxu0
    %v2745 = vadd.f32 %v2641, %v2744
    %2746 = vmatprep.mubr.f32.mxu0 %v2439
    %2747 = vmatmul.mubr.f32.gmra.mrb[0].mxu0 %v2438
    %v2748 = vpop.f32.mrb[0].mxu0
    %v2749 = vadd.f32 %v2637, %v2748
    %v2750 = vpop.f32.mrb[0].mxu0
    %v2751 = vadd.f32 %v2641, %v2750
    %2752 = vdwg.mxu0
    %2753 = vmatprep.subr.mxu0 %v2443
    %2754 = vmatpush1.msra.mxu0 %v2442
    %2755 = vmatprep.subr.mxu0 %v2449
    %2756 = vmatpush1.msra.mxu0 %v2448
    %2757 = vmatprep.subr.mxu0 %v2455
    %2758 = vmatpush1.msra.mxu0 %v2454
    %2759 = vmatprep.subr.mxu0 %v2461
    %2760 = vmatpush1.msra.mxu0 %v2460
    %2761 = vmatprep.subr.mxu0 %v2467
    %2762 = vmatpush1.msra.mxu0 %v2466
    %2763 = vmatprep.subr.mxu0 %v2473
    %2764 = vmatpush1.msra.mxu0 %v2472
    %2765 = vmatprep.subr.mxu0 %v2479
    %2766 = vmatpush1.msra.mxu0 %v2478
    %2767 = vmatprep.subr.mxu0 %v2485
    %2768 = vmatpush1.msra.mxu0 %v2484
    %2769 = vmatprep.subr.mxu0 %v2491
    %2770 = vmatpush1.msra.mxu0 %v2490
    %2771 = vmatprep.subr.mxu0 %v2497
    %2772 = vmatpush1.msra.mxu0 %v2496
    %2773 = vmatprep.subr.mxu0 %v2503
    %2774 = vmatpush1.msra.mxu0 %v2502
    %2775 = vmatprep.subr.mxu0 %v2509
    %2776 = vmatpush1.msra.mxu0 %v2508
    %2777 = vmatprep.subr.mxu0 %v2515
    %2778 = vmatpush1.msra.mxu0 %v2514
    %2779 = vmatprep.subr.mxu0 %v2521
    %2780 = vmatpush1.msra.mxu0 %v2520
    %2781 = vmatprep.subr.mxu0 %v2527
    %2782 = vmatpush1.msra.mxu0 %v2526
    %2783 = vmatprep.subr.mxu0 %v2533
    %2784 = vmatpush1.msra.mxu0 %v2532
    %2785 = vmatprep.subr.mxu0 %v2539
    %2786 = vmatpush1.msra.mxu0 %v2538
    %2787 = vmatprep.subr.mxu0 %v2545
    %2788 = vmatpush1.msra.mxu0 %v2544
    %2789 = vmatprep.subr.mxu0 %v2551
    %2790 = vmatpush1.msra.mxu0 %v2550
    %2791 = vmatprep.subr.mxu0 %v2557
    %2792 = vmatpush1.msra.mxu0 %v2556
    %2793 = vmatprep.subr.mxu0 %v2563
    %2794 = vmatpush1.msra.mxu0 %v2562
    %2795 = vmatprep.subr.mxu0 %v2569
    %2796 = vmatpush1.msra.mxu0 %v2568
    %2797 = vmatprep.subr.mxu0 %v2575
    %2798 = vmatpush1.msra.mxu0 %v2574
    %2799 = vmatprep.subr.mxu0 %v2581
    %2800 = vmatpush1.msra.mxu0 %v2580
    %2801 = vmatprep.subr.mxu0 %v2587
    %2802 = vmatpush1.msra.mxu0 %v2586
    %2803 = vmatprep.subr.mxu0 %v2593
    %2804 = vmatpush1.msra.mxu0 %v2592
    %2805 = vmatprep.subr.mxu0 %v2599
    %2806 = vmatpush1.msra.mxu0 %v2598
    %2807 = vmatprep.subr.mxu0 %v2605
    %2808 = vmatpush1.msra.mxu0 %v2604
    %2809 = vmatprep.subr.mxu0 %v2611
    %2810 = vmatpush1.msra.mxu0 %v2610
    %2811 = vmatprep.subr.mxu0 %v2617
    %2812 = vmatpush1.msra.mxu0 %v2616
    %2813 = vmatprep.subr.mxu0 %v2623
    %2814 = vmatpush1.msra.mxu0 %v2622
    %2815 = vmatprep.subr.mxu0 %v2629
    %2816 = vmatpush1.msra.mxu0 %v2628
    %2817 = vmatprep.mubr.f32.mxu0 %v2433
    %2818 = vmatmul.mubr.f32.gmra.mrb[0].mxu0 %v2432
    %v2819 = vpop.f32.mrb[0].mxu0
    %v2820 = vadd.f32 %v2645, %v2819
    %v2821 = vpop.f32.mrb[0].mxu0
    %v2822 = vadd.f32 %v2649, %v2821
    %2823 = vmatprep.mubr.f32.mxu0 %v2435
    %2824 = vmatmul.mubr.f32.gmra.mrb[0].mxu0 %v2434
    %v2825 = vpop.f32.mrb[0].mxu0
    %v2826 = vadd.f32 %v2645, %v2825
    %v2827 = vpop.f32.mrb[0].mxu0
    %v2828 = vadd.f32 %v2649, %v2827
    %2829 = vmatprep.mubr.f32.mxu0 %v2437
    %2830 = vmatmul.mubr.f32.gmra.mrb[0].mxu0 %v2436
    %v2831 = vpop.f32.mrb[0].mxu0
    %v2832 = vadd.f32 %v2645, %v2831
    %v2833 = vpop.f32.mrb[0].mxu0
    %v2834 = vadd.f32 %v2649, %v2833
    %2835 = vmatprep.mubr.f32.mxu0 %v2439
    %2836 = vmatmul.mubr.f32.gmra.mrb[0].mxu0 %v2438
    %v2837 = vpop.f32.mrb[0].mxu0
    %v2838 = vadd.f32 %v2645, %v2837
    %v2839 = vpop.f32.mrb[0].mxu0
    %v2840 = vadd.f32 %v2649, %v2839
    %2841 = vdwg.mxu0
    %2842 = vmatprep.subr.mxu0 %v2445
    %2843 = vmatpush1.msra.mxu0 %v2444
    %2844 = vmatprep.subr.mxu0 %v2451
    %2845 = vmatpush1.msra.mxu0 %v2450
    %2846 = vmatprep.subr.mxu0 %v2457
    %2847 = vmatpush1.msra.mxu0 %v2456
    %2848 = vmatprep.subr.mxu0 %v2463
    %2849 = vmatpush1.msra.mxu0 %v2462
    %2850 = vmatprep.subr.mxu0 %v2469
    %2851 = vmatpush1.msra.mxu0 %v2468
    %2852 = vmatprep.subr.mxu0 %v2475
    %2853 = vmatpush1.msra.mxu0 %v2474
    %2854 = vmatprep.subr.mxu0 %v2481
    %2855 = vmatpush1.msra.mxu0 %v2480
    %2856 = vmatprep.subr.mxu0 %v2487
    %2857 = vmatpush1.msra.mxu0 %v2486
    %2858 = vmatprep.subr.mxu0 %v2493
    %2859 = vmatpush1.msra.mxu0 %v2492
    %2860 = vmatprep.subr.mxu0 %v2499
    %2861 = vmatpush1.msra.mxu0 %v2498
    %2862 = vmatprep.subr.mxu0 %v2505
    %2863 = vmatpush1.msra.mxu0 %v2504
    %2864 = vmatprep.subr.mxu0 %v2511
    %2865 = vmatpush1.msra.mxu0 %v2510
    %2866 = vmatprep.subr.mxu0 %v2517
    %2867 = vmatpush1.msra.mxu0 %v2516
    %2868 = vmatprep.subr.mxu0 %v2523
    %2869 = vmatpush1.msra.mxu0 %v2522
    %2870 = vmatprep.subr.mxu0 %v2529
    %2871 = vmatpush1.msra.mxu0 %v2528
    %2872 = vmatprep.subr.mxu0 %v2535
    %2873 = vmatpush1.msra.mxu0 %v2534
    %2874 = vmatprep.subr.mxu0 %v2541
    %2875 = vmatpush1.msra.mxu0 %v2540
    %2876 = vmatprep.subr.mxu0 %v2547
    %2877 = vmatpush1.msra.mxu0 %v2546
    %2878 = vmatprep.subr.mxu0 %v2553
    %2879 = vmatpush1.msra.mxu0 %v2552
    %2880 = vmatprep.subr.mxu0 %v2559
    %2881 = vmatpush1.msra.mxu0 %v2558
    %2882 = vmatprep.subr.mxu0 %v2565
    %2883 = vmatpush1.msra.mxu0 %v2564
    %2884 = vmatprep.subr.mxu0 %v2571
    %2885 = vmatpush1.msra.mxu0 %v2570
    %2886 = vmatprep.subr.mxu0 %v2577
    %2887 = vmatpush1.msra.mxu0 %v2576
    %2888 = vmatprep.subr.mxu0 %v2583
    %2889 = vmatpush1.msra.mxu0 %v2582
    %2890 = vmatprep.subr.mxu0 %v2589
    %2891 = vmatpush1.msra.mxu0 %v2588
    %2892 = vmatprep.subr.mxu0 %v2595
    %2893 = vmatpush1.msra.mxu0 %v2594
    %2894 = vmatprep.subr.mxu0 %v2601
    %2895 = vmatpush1.msra.mxu0 %v2600
    %2896 = vmatprep.subr.mxu0 %v2607
    %2897 = vmatpush1.msra.mxu0 %v2606
    %2898 = vmatprep.subr.mxu0 %v2613
    %2899 = vmatpush1.msra.mxu0 %v2612
    %2900 = vmatprep.subr.mxu0 %v2619
    %2901 = vmatpush1.msra.mxu0 %v2618
    %2902 = vmatprep.subr.mxu0 %v2625
    %2903 = vmatpush1.msra.mxu0 %v2624
    %2904 = vmatprep.subr.mxu0 %v2631
    %2905 = vmatpush1.msra.mxu0 %v2630
    %2906 = vmatprep.mubr.f32.mxu0 %v2433
    %2907 = vmatmul.mubr.f32.gmra.mrb[0].mxu0 %v2432
    %v2908 = vpop.f32.mrb[0].mxu0
    %v2909 = vadd.f32 %v2653, %v2908
    %v2910 = vpop.f32.mrb[0].mxu0
    %v2911 = vadd.f32 %v2657, %v2910
    %2912 = vmatprep.mubr.f32.mxu0 %v2435
    %2913 = vmatmul.mubr.f32.gmra.mrb[0].mxu0 %v2434
    %v2914 = vpop.f32.mrb[0].mxu0
    %v2915 = vadd.f32 %v2653, %v2914
    %v2916 = vpop.f32.mrb[0].mxu0
    %v2917 = vadd.f32 %v2657, %v2916
    %2918 = vmatprep.mubr.f32.mxu0 %v2437
    %2919 = vmatmul.mubr.f32.gmra.mrb[0].mxu0 %v2436
    %v2920 = vpop.f32.mrb[0].mxu0
    %v2921 = vadd.f32 %v2653, %v2920
    %v2922 = vpop.f32.mrb[0].mxu0
    %v2923 = vadd.f32 %v2657, %v2922
    %2924 = vmatprep.mubr.f32.mxu0 %v2439
    %2925 = vmatmul.mubr.f32.gmra.mrb[0].mxu0 %v2438
    %v2926 = vpop.f32.mrb[0].mxu0
    %v2927 = vadd.f32 %v2653, %v2926
    %v2928 = vpop.f32.mrb[0].mxu0
    %v2929 = vadd.f32 %v2657, %v2928
    %2930 = vdwg.mxu0
    %v2931 = vmul.f32 %v2731, 0.17677669
    %v2932 = vmul.f32 %v2733, 0.17677669
    %v2933 = vmul.f32 %v2737, 0.17677669
    %v2934 = vmul.f32 %v2739, 0.17677669
    %v2935 = vmul.f32 %v2743, 0.17677669
    %v2936 = vmul.f32 %v2745, 0.17677669
    %v2937 = vmul.f32 %v2749, 0.17677669
    %v2938 = vmul.f32 %v2751, 0.17677669
    %2943 = vrot.lane.b32.xlu0 %v2931, 96
    %v2944 = vpop.permute.xlu0 %2943
    %2945 = vrot.lane.b32.xlu0 %v2933, 96
    %v2946 = vpop.permute.xlu0 %2945
    %2947 = vrot.lane.b32.xlu0 %v2935, 96
    %v2948 = vpop.permute.xlu0 %2947
    %2949 = vrot.lane.b32.xlu0 %v2937, 96
    %v2950 = vpop.permute.xlu0 %2949
    %2951 = vrot.lane.b32.xlu0 %v2931, 64
    %v2952 = vpop.permute.xlu0 %2951
    %2953 = vrot.lane.b32.xlu0 %v2933, 64
    %v2954 = vpop.permute.xlu0 %2953
    %2955 = vrot.lane.b32.xlu0 %v2935, 64
    %v2956 = vpop.permute.xlu0 %2955
    %2957 = vrot.lane.b32.xlu0 %v2937, 64
    %v2958 = vpop.permute.xlu0 %2957
    %2959 = vrot.lane.b32.xlu0 %v2931, 32
    %v2960 = vpop.permute.xlu0 %2959
    %2961 = vrot.lane.b32.xlu0 %v2933, 32
    %v2962 = vpop.permute.xlu0 %2961
    %2963 = vrot.lane.b32.xlu0 %v2935, 32
    %v2964 = vpop.permute.xlu0 %2963
    %2965 = vrot.lane.b32.xlu0 %v2937, 32
    %v2966 = vpop.permute.xlu0 %2965
    %2971 = vrot.lane.b32.xlu0 %v2932, 96
    %v2972 = vpop.permute.xlu0 %2971
    %2973 = vrot.lane.b32.xlu0 %v2934, 96
    %v2974 = vpop.permute.xlu0 %2973
    %2975 = vrot.lane.b32.xlu0 %v2936, 96
    %v2976 = vpop.permute.xlu0 %2975
    %2977 = vrot.lane.b32.xlu0 %v2938, 96
    %v2978 = vpop.permute.xlu0 %2977
    %2979 = vrot.lane.b32.xlu0 %v2932, 64
    %v2980 = vpop.permute.xlu0 %2979
    %2981 = vrot.lane.b32.xlu0 %v2934, 64
    %v2982 = vpop.permute.xlu0 %2981
    %2983 = vrot.lane.b32.xlu0 %v2936, 64
    %v2984 = vpop.permute.xlu0 %2983
    %2985 = vrot.lane.b32.xlu0 %v2938, 64
    %v2986 = vpop.permute.xlu0 %2985
    %2987 = vrot.lane.b32.xlu0 %v2932, 32
    %v2988 = vpop.permute.xlu0 %2987
    %2989 = vrot.lane.b32.xlu0 %v2934, 32
    %v2990 = vpop.permute.xlu0 %2989
    %2991 = vrot.lane.b32.xlu0 %v2936, 32
    %v2992 = vpop.permute.xlu0 %2991
    %2993 = vrot.lane.b32.xlu0 %v2938, 32
    %v2994 = vpop.permute.xlu0 %2993
    %2999 = vrot.lane.b32.xlu0 %v2820, 96
    %v3000 = vpop.permute.xlu0 %2999
    %3001 = vrot.lane.b32.xlu0 %v2826, 96
    %v3002 = vpop.permute.xlu0 %3001
    %3003 = vrot.lane.b32.xlu0 %v2832, 96
    %v3004 = vpop.permute.xlu0 %3003
    %3005 = vrot.lane.b32.xlu0 %v2838, 96
    %v3006 = vpop.permute.xlu0 %3005
    %3007 = vrot.lane.b32.xlu0 %v2820, 64
    %v3008 = vpop.permute.xlu0 %3007
    %3009 = vrot.lane.b32.xlu0 %v2826, 64
    %v3010 = vpop.permute.xlu0 %3009
    %3011 = vrot.lane.b32.xlu0 %v2832, 64
    %v3012 = vpop.permute.xlu0 %3011
    %3013 = vrot.lane.b32.xlu0 %v2838, 64
    %v3014 = vpop.permute.xlu0 %3013
    %3015 = vrot.lane.b32.xlu0 %v2820, 32
    %v3016 = vpop.permute.xlu0 %3015
    %3017 = vrot.lane.b32.xlu0 %v2826, 32
    %v3018 = vpop.permute.xlu0 %3017
    %3019 = vrot.lane.b32.xlu0 %v2832, 32
    %v3020 = vpop.permute.xlu0 %3019
    %3021 = vrot.lane.b32.xlu0 %v2838, 32
    %v3022 = vpop.permute.xlu0 %3021
    %3027 = vrot.lane.b32.xlu0 %v2822, 96
    %v3028 = vpop.permute.xlu0 %3027
    %3029 = vrot.lane.b32.xlu0 %v2828, 96
    %v3030 = vpop.permute.xlu0 %3029
    %3031 = vrot.lane.b32.xlu0 %v2834, 96
    %v3032 = vpop.permute.xlu0 %3031
    %3033 = vrot.lane.b32.xlu0 %v2840, 96
    %v3034 = vpop.permute.xlu0 %3033
    %3035 = vrot.lane.b32.xlu0 %v2822, 64
    %v3036 = vpop.permute.xlu0 %3035
    %3037 = vrot.lane.b32.xlu0 %v2828, 64
    %v3038 = vpop.permute.xlu0 %3037
    %3039 = vrot.lane.b32.xlu0 %v2834, 64
    %v3040 = vpop.permute.xlu0 %3039
    %3041 = vrot.lane.b32.xlu0 %v2840, 64
    %v3042 = vpop.permute.xlu0 %3041
    %3043 = vrot.lane.b32.xlu0 %v2822, 32
    %v3044 = vpop.permute.xlu0 %3043
    %3045 = vrot.lane.b32.xlu0 %v2828, 32
    %v3046 = vpop.permute.xlu0 %3045
    %3047 = vrot.lane.b32.xlu0 %v2834, 32
    %v3048 = vpop.permute.xlu0 %3047
    %3049 = vrot.lane.b32.xlu0 %v2840, 32
    %v3050 = vpop.permute.xlu0 %3049
    %3055 = vrot.lane.b32.xlu0 %v2909, 96
    %v3056 = vpop.permute.xlu0 %3055
    %3057 = vrot.lane.b32.xlu0 %v2915, 96
    %v3058 = vpop.permute.xlu0 %3057
    %3059 = vrot.lane.b32.xlu0 %v2921, 96
    %v3060 = vpop.permute.xlu0 %3059
    %3061 = vrot.lane.b32.xlu0 %v2927, 96
    %v3062 = vpop.permute.xlu0 %3061
    %3067 = vrot.lane.b32.xlu0 %v2909, 64
    %v3068 = vpop.permute.xlu0 %3067
    %3069 = vrot.lane.b32.xlu0 %v2915, 64
    %v3070 = vpop.permute.xlu0 %3069
    %3071 = vrot.lane.b32.xlu0 %v2921, 64
    %v3072 = vpop.permute.xlu0 %3071
    %3073 = vrot.lane.b32.xlu0 %v2927, 64
    %v3074 = vpop.permute.xlu0 %3073
    %3079 = vrot.lane.b32.xlu0 %v2909, 32
    %v3080 = vpop.permute.xlu0 %3079
    %3081 = vrot.lane.b32.xlu0 %v2915, 32
    %v3082 = vpop.permute.xlu0 %3081
    %3083 = vrot.lane.b32.xlu0 %v2921, 32
    %v3084 = vpop.permute.xlu0 %3083
    %3085 = vrot.lane.b32.xlu0 %v2927, 32
    %v3086 = vpop.permute.xlu0 %3085
    %3095 = vrot.lane.b32.xlu0 %v2911, 96
    %v3096 = vpop.permute.xlu0 %3095
    %3097 = vrot.lane.b32.xlu0 %v2917, 96
    %v3098 = vpop.permute.xlu0 %3097
    %3099 = vrot.lane.b32.xlu0 %v2923, 96
    %v3100 = vpop.permute.xlu0 %3099
    %3101 = vrot.lane.b32.xlu0 %v2929, 96
    %v3102 = vpop.permute.xlu0 %3101
    %3107 = vrot.lane.b32.xlu0 %v2911, 64
    %v3108 = vpop.permute.xlu0 %3107
    %3109 = vrot.lane.b32.xlu0 %v2917, 64
    %v3110 = vpop.permute.xlu0 %3109
    %3111 = vrot.lane.b32.xlu0 %v2923, 64
    %v3112 = vpop.permute.xlu0 %3111
    %3113 = vrot.lane.b32.xlu0 %v2929, 64
    %v3114 = vpop.permute.xlu0 %3113
    %3119 = vrot.lane.b32.xlu0 %v2911, 32
    %v3120 = vpop.permute.xlu0 %3119
    %3121 = vrot.lane.b32.xlu0 %v2917, 32
    %v3122 = vpop.permute.xlu0 %3121
    %3123 = vrot.lane.b32.xlu0 %v2923, 32
    %v3124 = vpop.permute.xlu0 %3123
    %3125 = vrot.lane.b32.xlu0 %v2929, 32
    %v3126 = vpop.permute.xlu0 %3125
    %vm3131 = vcmask 261120
    %v3132 = vsel %vm3131, %v2931, 0
    %v3134 = vsel %vm3131, %v2933, 0
    %v3136 = vsel %vm3131, %v2935, 0
    %v3138 = vsel %vm3131, %v2937, 0
    %v3140 = vsel %vm3131, %v2944, 0
    %v3142 = vsel %vm3131, %v2946, 0
    %v3144 = vsel %vm3131, %v2948, 0
    %v3146 = vsel %vm3131, %v2950, 0
    %v3148 = vsel %vm3131, %v2952, 0
    %v3150 = vsel %vm3131, %v2954, 0
    %v3152 = vsel %vm3131, %v2956, 0
    %v3154 = vsel %vm3131, %v2958, 0
    %v3156 = vsel %vm3131, %v2960, 0
    %v3158 = vsel %vm3131, %v2962, 0
    %v3160 = vsel %vm3131, %v2964, 0
    %v3162 = vsel %vm3131, %v2966, 0
    %v3164 = vsel %vm3131, %v2932, 0
    %v3166 = vsel %vm3131, %v2934, 0
    %v3168 = vsel %vm3131, %v2936, 0
    %v3170 = vsel %vm3131, %v2938, 0
    %v3172 = vsel %vm3131, %v2972, 0
    %v3174 = vsel %vm3131, %v2974, 0
    %v3176 = vsel %vm3131, %v2976, 0
    %v3178 = vsel %vm3131, %v2978, 0
    %v3180 = vsel %vm3131, %v2980, 0
    %v3182 = vsel %vm3131, %v2982, 0
    %v3184 = vsel %vm3131, %v2984, 0
    %v3186 = vsel %vm3131, %v2986, 0
    %v3188 = vsel %vm3131, %v2988, 0
    %v3190 = vsel %vm3131, %v2990, 0
    %v3192 = vsel %vm3131, %v2992, 0
    %v3194 = vsel %vm3131, %v2994, 0
    %v3196 = vsel %vm3131, %v2820, 0
    %v3198 = vsel %vm3131, %v2826, 0
    %v3200 = vsel %vm3131, %v2832, 0
    %v3202 = vsel %vm3131, %v2838, 0
    %v3204 = vsel %vm3131, %v3000, 0
    %v3206 = vsel %vm3131, %v3002, 0
    %v3208 = vsel %vm3131, %v3004, 0
    %v3210 = vsel %vm3131, %v3006, 0
    %v3212 = vsel %vm3131, %v3008, 0
    %v3214 = vsel %vm3131, %v3010, 0
    %v3216 = vsel %vm3131, %v3012, 0
    %v3218 = vsel %vm3131, %v3014, 0
    %v3220 = vsel %vm3131, %v3016, 0
    %v3222 = vsel %vm3131, %v3018, 0
    %v3224 = vsel %vm3131, %v3020, 0
    %v3226 = vsel %vm3131, %v3022, 0
    %v3228 = vsel %vm3131, %v2822, 0
    %v3230 = vsel %vm3131, %v2828, 0
    %v3232 = vsel %vm3131, %v2834, 0
    %v3234 = vsel %vm3131, %v2840, 0
    %v3236 = vsel %vm3131, %v3028, 0
    %v3238 = vsel %vm3131, %v3030, 0
    %v3240 = vsel %vm3131, %v3032, 0
    %v3242 = vsel %vm3131, %v3034, 0
    %v3244 = vsel %vm3131, %v3036, 0
    %v3246 = vsel %vm3131, %v3038, 0
    %v3248 = vsel %vm3131, %v3040, 0
    %v3250 = vsel %vm3131, %v3042, 0
    %v3252 = vsel %vm3131, %v3044, 0
    %v3254 = vsel %vm3131, %v3046, 0
    %v3256 = vsel %vm3131, %v3048, 0
    %v3258 = vsel %vm3131, %v3050, 0
    %3260 = vmatprep.subr.mxu0 0.0
    %3261 = vmatpush1.xpose.msra.mxu0 %v3196
    %3262 = vmatprep.subr.mxu0 0.0
    %3263 = vmatpush1.xpose.msra.mxu0 %v3198
    %3264 = vmatprep.subr.mxu0 0.0
    %3265 = vmatpush1.xpose.msra.mxu0 %v3200
    %3266 = vmatprep.subr.mxu0 0.0
    %3267 = vmatpush1.xpose.msra.mxu0 %v3202
    %3268 = vmatprep.subr.mxu0 0.0
    %3269 = vmatpush1.xpose.msra.mxu0 %v3204
    %3270 = vmatprep.subr.mxu0 0.0
    %3271 = vmatpush1.xpose.msra.mxu0 %v3206
    %3272 = vmatprep.subr.mxu0 0.0
    %3273 = vmatpush1.xpose.msra.mxu0 %v3208
    %3274 = vmatprep.subr.mxu0 0.0
    %3275 = vmatpush1.xpose.msra.mxu0 %v3210
    %3276 = vmatprep.subr.mxu0 0.0
    %3277 = vmatpush1.xpose.msra.mxu0 %v3212
    %3278 = vmatprep.subr.mxu0 0.0
    %3279 = vmatpush1.xpose.msra.mxu0 %v3214
    %3280 = vmatprep.subr.mxu0 0.0
    %3281 = vmatpush1.xpose.msra.mxu0 %v3216
    %3282 = vmatprep.subr.mxu0 0.0
    %3283 = vmatpush1.xpose.msra.mxu0 %v3218
    %3284 = vmatprep.subr.mxu0 0.0
    %3285 = vmatpush1.xpose.msra.mxu0 %v3220
    %3286 = vmatprep.subr.mxu0 0.0
    %3287 = vmatpush1.xpose.msra.mxu0 %v3222
    %3288 = vmatprep.subr.mxu0 0.0
    %3289 = vmatpush1.xpose.msra.mxu0 %v3224
    %3290 = vmatprep.subr.mxu0 0.0
    %3291 = vmatpush1.xpose.msra.mxu0 %v3226
    %3292 = vmatprep.subr.mxu0 0.0
    %3293 = vmatpush1.xpose.msra.mxu0 %v3228
    %3294 = vmatprep.subr.mxu0 0.0
    %3295 = vmatpush1.xpose.msra.mxu0 %v3230
    %3296 = vmatprep.subr.mxu0 0.0
    %3297 = vmatpush1.xpose.msra.mxu0 %v3232
    %3298 = vmatprep.subr.mxu0 0.0
    %3299 = vmatpush1.xpose.msra.mxu0 %v3234
    %3300 = vmatprep.subr.mxu0 0.0
    %3301 = vmatpush1.xpose.msra.mxu0 %v3236
    %3302 = vmatprep.subr.mxu0 0.0
    %3303 = vmatpush1.xpose.msra.mxu0 %v3238
    %3304 = vmatprep.subr.mxu0 0.0
    %3305 = vmatpush1.xpose.msra.mxu0 %v3240
    %3306 = vmatprep.subr.mxu0 0.0
    %3307 = vmatpush1.xpose.msra.mxu0 %v3242
    %3308 = vmatprep.subr.mxu0 0.0
    %3309 = vmatpush1.xpose.msra.mxu0 %v3244
    %3310 = vmatprep.subr.mxu0 0.0
    %3311 = vmatpush1.xpose.msra.mxu0 %v3246
    %3312 = vmatprep.subr.mxu0 0.0
    %3313 = vmatpush1.xpose.msra.mxu0 %v3248
    %3314 = vmatprep.subr.mxu0 0.0
    %3315 = vmatpush1.xpose.msra.mxu0 %v3250
    %3316 = vmatprep.subr.mxu0 0.0
    %3317 = vmatpush1.xpose.msra.mxu0 %v3252
    %3318 = vmatprep.subr.mxu0 0.0
    %3319 = vmatpush1.xpose.msra.mxu0 %v3254
    %3320 = vmatprep.subr.mxu0 0.0
    %3321 = vmatpush1.xpose.msra.mxu0 %v3256
    %3322 = vmatprep.subr.mxu0 0.0
    %3323 = vmatpush1.xpose.msra.mxu0 %v3258
    %3324 = vmatprep.mubr.f32.mxu0 0.0
    %3325 = vmatmul.mubr.f32.gmra.mrb[0].mxu0 %v3132
    %v3326 = vpop.f32.mrb[0].mxu0
    %v3327 = vadd.f32 0.0, %v3326
    %v3328 = vpop.f32.mrb[0].mxu0
    %v3329 = vadd.f32 0.0, %v3328
    %3330 = vmatprep.mubr.f32.mxu0 0.0
    %3331 = vmatmul.mubr.f32.gmra.mrb[0].mxu0 %v3134
    %v3332 = vpop.f32.mrb[0].mxu0
    %v3333 = vadd.f32 0.0, %v3332
    %v3334 = vpop.f32.mrb[0].mxu0
    %v3335 = vadd.f32 0.0, %v3334
    %3336 = vmatprep.mubr.f32.mxu0 0.0
    %3337 = vmatmul.mubr.f32.gmra.mrb[0].mxu0 %v3136
    %v3338 = vpop.f32.mrb[0].mxu0
    %v3339 = vadd.f32 0.0, %v3338
    %v3340 = vpop.f32.mrb[0].mxu0
    %v3341 = vadd.f32 0.0, %v3340
    %3342 = vmatprep.mubr.f32.mxu0 0.0
    %3343 = vmatmul.mubr.f32.gmra.mrb[0].mxu0 %v3138
    %v3344 = vpop.f32.mrb[0].mxu0
    %v3345 = vadd.f32 0.0, %v3344
    %v3346 = vpop.f32.mrb[0].mxu0
    %v3347 = vadd.f32 0.0, %v3346
    %3348 = vmatprep.mubr.f32.mxu0 0.0
    %3349 = vmatmul.mubr.f32.gmra.mrb[0].mxu0 %v3140
    %v3350 = vpop.f32.mrb[0].mxu0
    %v3351 = vadd.f32 0.0, %v3350
    %v3352 = vpop.f32.mrb[0].mxu0
    %v3353 = vadd.f32 0.0, %v3352
    %3354 = vmatprep.mubr.f32.mxu0 0.0
    %3355 = vmatmul.mubr.f32.gmra.mrb[0].mxu0 %v3142
    %v3356 = vpop.f32.mrb[0].mxu0
    %v3357 = vadd.f32 0.0, %v3356
    %v3358 = vpop.f32.mrb[0].mxu0
    %v3359 = vadd.f32 0.0, %v3358
    %3360 = vmatprep.mubr.f32.mxu0 0.0
    %3361 = vmatmul.mubr.f32.gmra.mrb[0].mxu0 %v3144
    %v3362 = vpop.f32.mrb[0].mxu0
    %v3363 = vadd.f32 0.0, %v3362
    %v3364 = vpop.f32.mrb[0].mxu0
    %v3365 = vadd.f32 0.0, %v3364
    %3366 = vmatprep.mubr.f32.mxu0 0.0
    %3367 = vmatmul.mubr.f32.gmra.mrb[0].mxu0 %v3146
    %v3368 = vpop.f32.mrb[0].mxu0
    %v3369 = vadd.f32 0.0, %v3368
    %v3370 = vpop.f32.mrb[0].mxu0
    %v3371 = vadd.f32 0.0, %v3370
    %3372 = vmatprep.mubr.f32.mxu0 0.0
    %3373 = vmatmul.mubr.f32.gmra.mrb[0].mxu0 %v3148
    %v3374 = vpop.f32.mrb[0].mxu0
    %v3375 = vadd.f32 0.0, %v3374
    %v3376 = vpop.f32.mrb[0].mxu0
    %v3377 = vadd.f32 0.0, %v3376
    %3378 = vmatprep.mubr.f32.mxu0 0.0
    %3379 = vmatmul.mubr.f32.gmra.mrb[0].mxu0 %v3150
    %v3380 = vpop.f32.mrb[0].mxu0
    %v3381 = vadd.f32 0.0, %v3380
    %v3382 = vpop.f32.mrb[0].mxu0
    %v3383 = vadd.f32 0.0, %v3382
    %3384 = vmatprep.mubr.f32.mxu0 0.0
    %3385 = vmatmul.mubr.f32.gmra.mrb[0].mxu0 %v3152
    %v3386 = vpop.f32.mrb[0].mxu0
    %v3387 = vadd.f32 0.0, %v3386
    %v3388 = vpop.f32.mrb[0].mxu0
    %v3389 = vadd.f32 0.0, %v3388
    %3390 = vmatprep.mubr.f32.mxu0 0.0
    %3391 = vmatmul.mubr.f32.gmra.mrb[0].mxu0 %v3154
    %v3392 = vpop.f32.mrb[0].mxu0
    %v3393 = vadd.f32 0.0, %v3392
    %v3394 = vpop.f32.mrb[0].mxu0
    %v3395 = vadd.f32 0.0, %v3394
    %3396 = vmatprep.mubr.f32.mxu0 0.0
    %3397 = vmatmul.mubr.f32.gmra.mrb[0].mxu0 %v3156
    %v3398 = vpop.f32.mrb[0].mxu0
    %v3399 = vadd.f32 0.0, %v3398
    %v3400 = vpop.f32.mrb[0].mxu0
    %v3401 = vadd.f32 0.0, %v3400
    %3402 = vmatprep.mubr.f32.mxu0 0.0
    %3403 = vmatmul.mubr.f32.gmra.mrb[0].mxu0 %v3158
    %v3404 = vpop.f32.mrb[0].mxu0
    %v3405 = vadd.f32 0.0, %v3404
    %v3406 = vpop.f32.mrb[0].mxu0
    %v3407 = vadd.f32 0.0, %v3406
    %3408 = vmatprep.mubr.f32.mxu0 0.0
    %3409 = vmatmul.mubr.f32.gmra.mrb[0].mxu0 %v3160
    %v3410 = vpop.f32.mrb[0].mxu0
    %v3411 = vadd.f32 0.0, %v3410
    %v3412 = vpop.f32.mrb[0].mxu0
    %v3413 = vadd.f32 0.0, %v3412
    %3414 = vmatprep.mubr.f32.mxu0 0.0
    %3415 = vmatmul.mubr.f32.gmra.mrb[0].mxu0 %v3162
    %v3416 = vpop.f32.mrb[0].mxu0
    %v3417 = vadd.f32 0.0, %v3416
    %v3418 = vpop.f32.mrb[0].mxu0
    %v3419 = vadd.f32 0.0, %v3418
    %3420 = vmatprep.mubr.f32.mxu0 0.0
    %3421 = vmatmul.mubr.f32.gmra.mrb[0].mxu0 %v3164
    %v3422 = vpop.f32.mrb[0].mxu0
    %v3423 = vadd.f32 0.0, %v3422
    %v3424 = vpop.f32.mrb[0].mxu0
    %v3425 = vadd.f32 0.0, %v3424
    %3426 = vmatprep.mubr.f32.mxu0 0.0
    %3427 = vmatmul.mubr.f32.gmra.mrb[0].mxu0 %v3166
    %v3428 = vpop.f32.mrb[0].mxu0
    %v3429 = vadd.f32 0.0, %v3428
    %v3430 = vpop.f32.mrb[0].mxu0
    %v3431 = vadd.f32 0.0, %v3430
    %3432 = vmatprep.mubr.f32.mxu0 0.0
    %3433 = vmatmul.mubr.f32.gmra.mrb[0].mxu0 %v3168
    %v3434 = vpop.f32.mrb[0].mxu0
    %v3435 = vadd.f32 0.0, %v3434
    %v3436 = vpop.f32.mrb[0].mxu0
    %v3437 = vadd.f32 0.0, %v3436
    %3438 = vmatprep.mubr.f32.mxu0 0.0
    %3439 = vmatmul.mubr.f32.gmra.mrb[0].mxu0 %v3170
    %v3440 = vpop.f32.mrb[0].mxu0
    %v3441 = vadd.f32 0.0, %v3440
    %v3442 = vpop.f32.mrb[0].mxu0
    %v3443 = vadd.f32 0.0, %v3442
    %3444 = vmatprep.mubr.f32.mxu0 0.0
    %3445 = vmatmul.mubr.f32.gmra.mrb[0].mxu0 %v3172
    %v3446 = vpop.f32.mrb[0].mxu0
    %v3447 = vadd.f32 0.0, %v3446
    %v3448 = vpop.f32.mrb[0].mxu0
    %v3449 = vadd.f32 0.0, %v3448
    %3450 = vmatprep.mubr.f32.mxu0 0.0
    %3451 = vmatmul.mubr.f32.gmra.mrb[0].mxu0 %v3174
    %v3452 = vpop.f32.mrb[0].mxu0
    %v3453 = vadd.f32 0.0, %v3452
    %v3454 = vpop.f32.mrb[0].mxu0
    %v3455 = vadd.f32 0.0, %v3454
    %3456 = vmatprep.mubr.f32.mxu0 0.0
    %3457 = vmatmul.mubr.f32.gmra.mrb[0].mxu0 %v3176
    %v3458 = vpop.f32.mrb[0].mxu0
    %v3459 = vadd.f32 0.0, %v3458
    %v3460 = vpop.f32.mrb[0].mxu0
    %v3461 = vadd.f32 0.0, %v3460
    %3462 = vmatprep.mubr.f32.mxu0 0.0
    %3463 = vmatmul.mubr.f32.gmra.mrb[0].mxu0 %v3178
    %v3464 = vpop.f32.mrb[0].mxu0
    %v3465 = vadd.f32 0.0, %v3464
    %v3466 = vpop.f32.mrb[0].mxu0
    %v3467 = vadd.f32 0.0, %v3466
    %3468 = vmatprep.mubr.f32.mxu0 0.0
    %3469 = vmatmul.mubr.f32.gmra.mrb[0].mxu0 %v3180
    %v3470 = vpop.f32.mrb[0].mxu0
    %v3471 = vadd.f32 0.0, %v3470
    %v3472 = vpop.f32.mrb[0].mxu0
    %v3473 = vadd.f32 0.0, %v3472
    %3474 = vmatprep.mubr.f32.mxu0 0.0
    %3475 = vmatmul.mubr.f32.gmra.mrb[0].mxu0 %v3182
    %v3476 = vpop.f32.mrb[0].mxu0
    %v3477 = vadd.f32 0.0, %v3476
    %v3478 = vpop.f32.mrb[0].mxu0
    %v3479 = vadd.f32 0.0, %v3478
    %3480 = vmatprep.mubr.f32.mxu0 0.0
    %3481 = vmatmul.mubr.f32.gmra.mrb[0].mxu0 %v3184
    %v3482 = vpop.f32.mrb[0].mxu0
    %v3483 = vadd.f32 0.0, %v3482
    %v3484 = vpop.f32.mrb[0].mxu0
    %v3485 = vadd.f32 0.0, %v3484
    %3486 = vmatprep.mubr.f32.mxu0 0.0
    %3487 = vmatmul.mubr.f32.gmra.mrb[0].mxu0 %v3186
    %v3488 = vpop.f32.mrb[0].mxu0
    %v3489 = vadd.f32 0.0, %v3488
    %v3490 = vpop.f32.mrb[0].mxu0
    %v3491 = vadd.f32 0.0, %v3490
    %3492 = vmatprep.mubr.f32.mxu0 0.0
    %3493 = vmatmul.mubr.f32.gmra.mrb[0].mxu0 %v3188
    %v3494 = vpop.f32.mrb[0].mxu0
    %v3495 = vadd.f32 0.0, %v3494
    %v3496 = vpop.f32.mrb[0].mxu0
    %v3497 = vadd.f32 0.0, %v3496
    %3498 = vmatprep.mubr.f32.mxu0 0.0
    %3499 = vmatmul.mubr.f32.gmra.mrb[0].mxu0 %v3190
    %v3500 = vpop.f32.mrb[0].mxu0
    %v3501 = vadd.f32 0.0, %v3500
    %v3502 = vpop.f32.mrb[0].mxu0
    %v3503 = vadd.f32 0.0, %v3502
    %3504 = vmatprep.mubr.f32.mxu0 0.0
    %3505 = vmatmul.mubr.f32.gmra.mrb[0].mxu0 %v3192
    %v3506 = vpop.f32.mrb[0].mxu0
    %v3507 = vadd.f32 0.0, %v3506
    %v3508 = vpop.f32.mrb[0].mxu0
    %v3509 = vadd.f32 0.0, %v3508
    %3510 = vmatprep.mubr.f32.mxu0 0.0
    %3511 = vmatmul.mubr.f32.gmra.mrb[0].mxu0 %v3194
    %v3512 = vpop.f32.mrb[0].mxu0
    %v3513 = vadd.f32 0.0, %v3512
    %v3514 = vpop.f32.mrb[0].mxu0
    %v3515 = vadd.f32 0.0, %v3514
    %3516 = vdwg.mxu0
    %v3517 = vsel %vm312, %v3327, -1e+30
    %v3518 = vsel %vm313, %v3329, -1e+30
    %v3519 = vsel %vm314, %v3333, -1e+30
    %v3520 = vsel %vm315, %v3335, -1e+30
    %v3521 = vsel %vm316, %v3339, -1e+30
    %v3522 = vsel %vm317, %v3341, -1e+30
    %v3523 = vsel %vm318, %v3345, -1e+30
    %v3524 = vsel %vm319, %v3347, -1e+30
    %v3525 = vsel %vm320, %v3351, -1e+30
    %v3526 = vsel %vm321, %v3353, -1e+30
    %v3527 = vsel %vm322, %v3357, -1e+30
    %v3528 = vsel %vm323, %v3359, -1e+30
    %v3529 = vsel %vm324, %v3363, -1e+30
    %v3530 = vsel %vm325, %v3365, -1e+30
    %v3531 = vsel %vm326, %v3369, -1e+30
    %v3532 = vsel %vm327, %v3371, -1e+30
    %v3533 = vsel %vm328, %v3375, -1e+30
    %v3534 = vsel %vm329, %v3377, -1e+30
    %v3535 = vsel %vm330, %v3381, -1e+30
    %v3536 = vsel %vm331, %v3383, -1e+30
    %v3537 = vsel %vm332, %v3387, -1e+30
    %v3538 = vsel %vm333, %v3389, -1e+30
    %v3539 = vsel %vm334, %v3393, -1e+30
    %v3540 = vsel %vm335, %v3395, -1e+30
    %v3541 = vsel %vm336, %v3399, -1e+30
    %v3542 = vsel %vm337, %v3401, -1e+30
    %v3543 = vsel %vm338, %v3405, -1e+30
    %v3544 = vsel %vm339, %v3407, -1e+30
    %v3545 = vsel %vm340, %v3411, -1e+30
    %v3546 = vsel %vm341, %v3413, -1e+30
    %v3547 = vsel %vm342, %v3417, -1e+30
    %v3548 = vsel %vm343, %v3419, -1e+30
    %v3549 = vsel %vm344, %v3423, -1e+30
    %v3550 = vsel %vm345, %v3425, -1e+30
    %v3551 = vsel %vm346, %v3429, -1e+30
    %v3552 = vsel %vm347, %v3431, -1e+30
    %v3553 = vsel %vm348, %v3435, -1e+30
    %v3554 = vsel %vm349, %v3437, -1e+30
    %v3555 = vsel %vm350, %v3441, -1e+30
    %v3556 = vsel %vm351, %v3443, -1e+30
    %v3557 = vsel %vm352, %v3447, -1e+30
    %v3558 = vsel %vm353, %v3449, -1e+30
    %v3559 = vsel %vm354, %v3453, -1e+30
    %v3560 = vsel %vm355, %v3455, -1e+30
    %v3561 = vsel %vm356, %v3459, -1e+30
    %v3562 = vsel %vm357, %v3461, -1e+30
    %v3563 = vsel %vm358, %v3465, -1e+30
    %v3564 = vsel %vm359, %v3467, -1e+30
    %v3565 = vsel %vm360, %v3471, -1e+30
    %v3566 = vsel %vm361, %v3473, -1e+30
    %v3567 = vsel %vm362, %v3477, -1e+30
    %v3568 = vsel %vm363, %v3479, -1e+30
    %v3569 = vsel %vm364, %v3483, -1e+30
    %v3570 = vsel %vm365, %v3485, -1e+30
    %v3571 = vsel %vm366, %v3489, -1e+30
    %v3572 = vsel %vm367, %v3491, -1e+30
    %v3573 = vsel %vm368, %v3495, -1e+30
    %v3574 = vsel %vm369, %v3497, -1e+30
    %v3575 = vsel %vm370, %v3501, -1e+30
    %v3576 = vsel %vm371, %v3503, -1e+30
    %v3577 = vsel %vm372, %v3507, -1e+30
    %v3578 = vsel %vm373, %v3509, -1e+30
    %v3579 = vsel %vm374, %v3513, -1e+30
    %v3580 = vsel %vm375, %v3515, -1e+30
    %v3581 = vmax.f32 %v3517, %v3518
    %3582 = vmax.xlane.f32.xlu0 %v3581
    %v3583 = vpop.xlane.xlu0 %3582
    %v3584 = vmax.f32 %v3519, %v3520
    %3585 = vmax.xlane.f32.xlu0 %v3584
    %v3586 = vpop.xlane.xlu0 %3585
    %v3587 = vmax.f32 %v3521, %v3522
    %3588 = vmax.xlane.f32.xlu0 %v3587
    %v3589 = vpop.xlane.xlu0 %3588
    %v3590 = vmax.f32 %v3523, %v3524
    %3591 = vmax.xlane.f32.xlu0 %v3590
    %v3592 = vpop.xlane.xlu0 %3591
    %v3593 = vmax.f32 %v3525, %v3526
    %3594 = vmax.xlane.f32.xlu0 %v3593
    %v3595 = vpop.xlane.xlu0 %3594
    %v3596 = vmax.f32 %v3527, %v3528
    %3597 = vmax.xlane.f32.xlu0 %v3596
    %v3598 = vpop.xlane.xlu0 %3597
    %v3599 = vmax.f32 %v3529, %v3530
    %3600 = vmax.xlane.f32.xlu0 %v3599
    %v3601 = vpop.xlane.xlu0 %3600
    %v3602 = vmax.f32 %v3531, %v3532
    %3603 = vmax.xlane.f32.xlu0 %v3602
    %v3604 = vpop.xlane.xlu0 %3603
    %v3605 = vmax.f32 %v3533, %v3534
    %3606 = vmax.xlane.f32.xlu0 %v3605
    %v3607 = vpop.xlane.xlu0 %3606
    %v3608 = vmax.f32 %v3535, %v3536
    %3609 = vmax.xlane.f32.xlu0 %v3608
    %v3610 = vpop.xlane.xlu0 %3609
    %v3611 = vmax.f32 %v3537, %v3538
    %3612 = vmax.xlane.f32.xlu0 %v3611
    %v3613 = vpop.xlane.xlu0 %3612
    %v3614 = vmax.f32 %v3539, %v3540
    %3615 = vmax.xlane.f32.xlu0 %v3614
    %v3616 = vpop.xlane.xlu0 %3615
    %v3617 = vmax.f32 %v3541, %v3542
    %3618 = vmax.xlane.f32.xlu0 %v3617
    %v3619 = vpop.xlane.xlu0 %3618
    %v3620 = vmax.f32 %v3543, %v3544
    %3621 = vmax.xlane.f32.xlu0 %v3620
    %v3622 = vpop.xlane.xlu0 %3621
    %v3623 = vmax.f32 %v3545, %v3546
    %3624 = vmax.xlane.f32.xlu0 %v3623
    %v3625 = vpop.xlane.xlu0 %3624
    %v3626 = vmax.f32 %v3547, %v3548
    %3627 = vmax.xlane.f32.xlu0 %v3626
    %v3628 = vpop.xlane.xlu0 %3627
    %v3629 = vmax.f32 %v3549, %v3550
    %3630 = vmax.xlane.f32.xlu0 %v3629
    %v3631 = vpop.xlane.xlu0 %3630
    %v3632 = vmax.f32 %v3551, %v3552
    %3633 = vmax.xlane.f32.xlu0 %v3632
    %v3634 = vpop.xlane.xlu0 %3633
    %v3635 = vmax.f32 %v3553, %v3554
    %3636 = vmax.xlane.f32.xlu0 %v3635
    %v3637 = vpop.xlane.xlu0 %3636
    %v3638 = vmax.f32 %v3555, %v3556
    %3639 = vmax.xlane.f32.xlu0 %v3638
    %v3640 = vpop.xlane.xlu0 %3639
    %v3641 = vmax.f32 %v3557, %v3558
    %3642 = vmax.xlane.f32.xlu0 %v3641
    %v3643 = vpop.xlane.xlu0 %3642
    %v3644 = vmax.f32 %v3559, %v3560
    %3645 = vmax.xlane.f32.xlu0 %v3644
    %v3646 = vpop.xlane.xlu0 %3645
    %v3647 = vmax.f32 %v3561, %v3562
    %3648 = vmax.xlane.f32.xlu0 %v3647
    %v3649 = vpop.xlane.xlu0 %3648
    %v3650 = vmax.f32 %v3563, %v3564
    %3651 = vmax.xlane.f32.xlu0 %v3650
    %v3652 = vpop.xlane.xlu0 %3651
    %v3653 = vmax.f32 %v3565, %v3566
    %3654 = vmax.xlane.f32.xlu0 %v3653
    %v3655 = vpop.xlane.xlu0 %3654
    %v3656 = vmax.f32 %v3567, %v3568
    %3657 = vmax.xlane.f32.xlu0 %v3656
    %v3658 = vpop.xlane.xlu0 %3657
    %v3659 = vmax.f32 %v3569, %v3570
    %3660 = vmax.xlane.f32.xlu0 %v3659
    %v3661 = vpop.xlane.xlu0 %3660
    %v3662 = vmax.f32 %v3571, %v3572
    %3663 = vmax.xlane.f32.xlu0 %v3662
    %v3664 = vpop.xlane.xlu0 %3663
    %v3665 = vmax.f32 %v3573, %v3574
    %3666 = vmax.xlane.f32.xlu0 %v3665
    %v3667 = vpop.xlane.xlu0 %3666
    %v3668 = vmax.f32 %v3575, %v3576
    %3669 = vmax.xlane.f32.xlu0 %v3668
    %v3670 = vpop.xlane.xlu0 %3669
    %v3671 = vmax.f32 %v3577, %v3578
    %3672 = vmax.xlane.f32.xlu0 %v3671
    %v3673 = vpop.xlane.xlu0 %3672
    %v3674 = vmax.f32 %v3579, %v3580
    %3675 = vmax.xlane.f32.xlu0 %v3674
    %v3676 = vpop.xlane.xlu0 %3675
    %v3677 = vsub.f32 %v3517, %v3583
    %v3678 = vsub.f32 %v3518, %v3583
    %v3679 = vsub.f32 %v3519, %v3586
    %v3680 = vsub.f32 %v3520, %v3586
    %v3681 = vsub.f32 %v3521, %v3589
    %v3682 = vsub.f32 %v3522, %v3589
    %v3683 = vsub.f32 %v3523, %v3592
    %v3684 = vsub.f32 %v3524, %v3592
    %v3685 = vsub.f32 %v3525, %v3595
    %v3686 = vsub.f32 %v3526, %v3595
    %v3687 = vsub.f32 %v3527, %v3598
    %v3688 = vsub.f32 %v3528, %v3598
    %v3689 = vsub.f32 %v3529, %v3601
    %v3690 = vsub.f32 %v3530, %v3601
    %v3691 = vsub.f32 %v3531, %v3604
    %v3692 = vsub.f32 %v3532, %v3604
    %v3693 = vsub.f32 %v3533, %v3607
    %v3694 = vsub.f32 %v3534, %v3607
    %v3695 = vsub.f32 %v3535, %v3610
    %v3696 = vsub.f32 %v3536, %v3610
    %v3697 = vsub.f32 %v3537, %v3613
    %v3698 = vsub.f32 %v3538, %v3613
    %v3699 = vsub.f32 %v3539, %v3616
    %v3700 = vsub.f32 %v3540, %v3616
    %v3701 = vsub.f32 %v3541, %v3619
    %v3702 = vsub.f32 %v3542, %v3619
    %v3703 = vsub.f32 %v3543, %v3622
    %v3704 = vsub.f32 %v3544, %v3622
    %v3705 = vsub.f32 %v3545, %v3625
    %v3706 = vsub.f32 %v3546, %v3625
    %v3707 = vsub.f32 %v3547, %v3628
    %v3708 = vsub.f32 %v3548, %v3628
    %v3709 = vsub.f32 %v3549, %v3631
    %v3710 = vsub.f32 %v3550, %v3631
    %v3711 = vsub.f32 %v3551, %v3634
    %v3712 = vsub.f32 %v3552, %v3634
    %v3713 = vsub.f32 %v3553, %v3637
    %v3714 = vsub.f32 %v3554, %v3637
    %v3715 = vsub.f32 %v3555, %v3640
    %v3716 = vsub.f32 %v3556, %v3640
    %v3717 = vsub.f32 %v3557, %v3643
    %v3718 = vsub.f32 %v3558, %v3643
    %v3719 = vsub.f32 %v3559, %v3646
    %v3720 = vsub.f32 %v3560, %v3646
    %v3721 = vsub.f32 %v3561, %v3649
    %v3722 = vsub.f32 %v3562, %v3649
    %v3723 = vsub.f32 %v3563, %v3652
    %v3724 = vsub.f32 %v3564, %v3652
    %v3725 = vsub.f32 %v3565, %v3655
    %v3726 = vsub.f32 %v3566, %v3655
    %v3727 = vsub.f32 %v3567, %v3658
    %v3728 = vsub.f32 %v3568, %v3658
    %v3729 = vsub.f32 %v3569, %v3661
    %v3730 = vsub.f32 %v3570, %v3661
    %v3731 = vsub.f32 %v3571, %v3664
    %v3732 = vsub.f32 %v3572, %v3664
    %v3733 = vsub.f32 %v3573, %v3667
    %v3734 = vsub.f32 %v3574, %v3667
    %v3735 = vsub.f32 %v3575, %v3670
    %v3736 = vsub.f32 %v3576, %v3670
    %v3737 = vsub.f32 %v3577, %v3673
    %v3738 = vsub.f32 %v3578, %v3673
    %v3739 = vsub.f32 %v3579, %v3676
    %v3740 = vsub.f32 %v3580, %v3676
    %v3741 = vmul.f32 %v3677, 1.442695
    %v3742 = vpow.pop %v3741
    %v3743 = vmul.f32 %v3678, 1.442695
    %v3744 = vpow.pop %v3743
    %v3745 = vmul.f32 %v3679, 1.442695
    %v3746 = vpow.pop %v3745
    %v3747 = vmul.f32 %v3680, 1.442695
    %v3748 = vpow.pop %v3747
    %v3749 = vmul.f32 %v3681, 1.442695
    %v3750 = vpow.pop %v3749
    %v3751 = vmul.f32 %v3682, 1.442695
    %v3752 = vpow.pop %v3751
    %v3753 = vmul.f32 %v3683, 1.442695
    %v3754 = vpow.pop %v3753
    %v3755 = vmul.f32 %v3684, 1.442695
    %v3756 = vpow.pop %v3755
    %v3757 = vmul.f32 %v3685, 1.442695
    %v3758 = vpow.pop %v3757
    %v3759 = vmul.f32 %v3686, 1.442695
    %v3760 = vpow.pop %v3759
    %v3761 = vmul.f32 %v3687, 1.442695
    %v3762 = vpow.pop %v3761
    %v3763 = vmul.f32 %v3688, 1.442695
    %v3764 = vpow.pop %v3763
    %v3765 = vmul.f32 %v3689, 1.442695
    %v3766 = vpow.pop %v3765
    %v3767 = vmul.f32 %v3690, 1.442695
    %v3768 = vpow.pop %v3767
    %v3769 = vmul.f32 %v3691, 1.442695
    %v3770 = vpow.pop %v3769
    %v3771 = vmul.f32 %v3692, 1.442695
    %v3772 = vpow.pop %v3771
    %v3773 = vmul.f32 %v3693, 1.442695
    %v3774 = vpow.pop %v3773
    %v3775 = vmul.f32 %v3694, 1.442695
    %v3776 = vpow.pop %v3775
    %v3777 = vmul.f32 %v3695, 1.442695
    %v3778 = vpow.pop %v3777
    %v3779 = vmul.f32 %v3696, 1.442695
    %v3780 = vpow.pop %v3779
    %v3781 = vmul.f32 %v3697, 1.442695
    %v3782 = vpow.pop %v3781
    %v3783 = vmul.f32 %v3698, 1.442695
    %v3784 = vpow.pop %v3783
    %v3785 = vmul.f32 %v3699, 1.442695
    %v3786 = vpow.pop %v3785
    %v3787 = vmul.f32 %v3700, 1.442695
    %v3788 = vpow.pop %v3787
    %v3789 = vmul.f32 %v3701, 1.442695
    %v3790 = vpow.pop %v3789
    %v3791 = vmul.f32 %v3702, 1.442695
    %v3792 = vpow.pop %v3791
    %v3793 = vmul.f32 %v3703, 1.442695
    %v3794 = vpow.pop %v3793
    %v3795 = vmul.f32 %v3704, 1.442695
    %v3796 = vpow.pop %v3795
    %v3797 = vmul.f32 %v3705, 1.442695
    %v3798 = vpow.pop %v3797
    %v3799 = vmul.f32 %v3706, 1.442695
    %v3800 = vpow.pop %v3799
    %v3801 = vmul.f32 %v3707, 1.442695
    %v3802 = vpow.pop %v3801
    %v3803 = vmul.f32 %v3708, 1.442695
    %v3804 = vpow.pop %v3803
    %v3805 = vmul.f32 %v3709, 1.442695
    %v3806 = vpow.pop %v3805
    %v3807 = vmul.f32 %v3710, 1.442695
    %v3808 = vpow.pop %v3807
    %v3809 = vmul.f32 %v3711, 1.442695
    %v3810 = vpow.pop %v3809
    %v3811 = vmul.f32 %v3712, 1.442695
    %v3812 = vpow.pop %v3811
    %v3813 = vmul.f32 %v3713, 1.442695
    %v3814 = vpow.pop %v3813
    %v3815 = vmul.f32 %v3714, 1.442695
    %v3816 = vpow.pop %v3815
    %v3817 = vmul.f32 %v3715, 1.442695
    %v3818 = vpow.pop %v3817
    %v3819 = vmul.f32 %v3716, 1.442695
    %v3820 = vpow.pop %v3819
    %v3821 = vmul.f32 %v3717, 1.442695
    %v3822 = vpow.pop %v3821
    %v3823 = vmul.f32 %v3718, 1.442695
    %v3824 = vpow.pop %v3823
    %v3825 = vmul.f32 %v3719, 1.442695
    %v3826 = vpow.pop %v3825
    %v3827 = vmul.f32 %v3720, 1.442695
    %v3828 = vpow.pop %v3827
    %v3829 = vmul.f32 %v3721, 1.442695
    %v3830 = vpow.pop %v3829
    %v3831 = vmul.f32 %v3722, 1.442695
    %v3832 = vpow.pop %v3831
    %v3833 = vmul.f32 %v3723, 1.442695
    %v3834 = vpow.pop %v3833
    %v3835 = vmul.f32 %v3724, 1.442695
    %v3836 = vpow.pop %v3835
    %v3837 = vmul.f32 %v3725, 1.442695
    %v3838 = vpow.pop %v3837
    %v3839 = vmul.f32 %v3726, 1.442695
    %v3840 = vpow.pop %v3839
    %v3841 = vmul.f32 %v3727, 1.442695
    %v3842 = vpow.pop %v3841
    %v3843 = vmul.f32 %v3728, 1.442695
    %v3844 = vpow.pop %v3843
    %v3845 = vmul.f32 %v3729, 1.442695
    %v3846 = vpow.pop %v3845
    %v3847 = vmul.f32 %v3730, 1.442695
    %v3848 = vpow.pop %v3847
    %v3849 = vmul.f32 %v3731, 1.442695
    %v3850 = vpow.pop %v3849
    %v3851 = vmul.f32 %v3732, 1.442695
    %v3852 = vpow.pop %v3851
    %v3853 = vmul.f32 %v3733, 1.442695
    %v3854 = vpow.pop %v3853
    %v3855 = vmul.f32 %v3734, 1.442695
    %v3856 = vpow.pop %v3855
    %v3857 = vmul.f32 %v3735, 1.442695
    %v3858 = vpow.pop %v3857
    %v3859 = vmul.f32 %v3736, 1.442695
    %v3860 = vpow.pop %v3859
    %v3861 = vmul.f32 %v3737, 1.442695
    %v3862 = vpow.pop %v3861
    %v3863 = vmul.f32 %v3738, 1.442695
    %v3864 = vpow.pop %v3863
    %v3865 = vmul.f32 %v3739, 1.442695
    %v3866 = vpow.pop %v3865
    %v3867 = vmul.f32 %v3740, 1.442695
    %v3868 = vpow.pop %v3867
    %v3869 = vadd.f32 %v3742, %v3744
    %3870 = vadd.xlane.f32.xlu0 %v3869
    %v3871 = vpop.xlane.xlu0 %3870
    %v3872 = vadd.f32 %v3746, %v3748
    %3873 = vadd.xlane.f32.xlu0 %v3872
    %v3874 = vpop.xlane.xlu0 %3873
    %v3875 = vadd.f32 %v3750, %v3752
    %3876 = vadd.xlane.f32.xlu0 %v3875
    %v3877 = vpop.xlane.xlu0 %3876
    %v3878 = vadd.f32 %v3754, %v3756
    %3879 = vadd.xlane.f32.xlu0 %v3878
    %v3880 = vpop.xlane.xlu0 %3879
    %v3881 = vadd.f32 %v3758, %v3760
    %3882 = vadd.xlane.f32.xlu0 %v3881
    %v3883 = vpop.xlane.xlu0 %3882
    %v3884 = vadd.f32 %v3762, %v3764
    %3885 = vadd.xlane.f32.xlu0 %v3884
    %v3886 = vpop.xlane.xlu0 %3885
    %v3887 = vadd.f32 %v3766, %v3768
    %3888 = vadd.xlane.f32.xlu0 %v3887
    %v3889 = vpop.xlane.xlu0 %3888
    %v3890 = vadd.f32 %v3770, %v3772
    %3891 = vadd.xlane.f32.xlu0 %v3890
    %v3892 = vpop.xlane.xlu0 %3891
    %v3893 = vadd.f32 %v3774, %v3776
    %3894 = vadd.xlane.f32.xlu0 %v3893
    %v3895 = vpop.xlane.xlu0 %3894
    %v3896 = vadd.f32 %v3778, %v3780
    %3897 = vadd.xlane.f32.xlu0 %v3896
    %v3898 = vpop.xlane.xlu0 %3897
    %v3899 = vadd.f32 %v3782, %v3784
    %3900 = vadd.xlane.f32.xlu0 %v3899
    %v3901 = vpop.xlane.xlu0 %3900
    %v3902 = vadd.f32 %v3786, %v3788
    %3903 = vadd.xlane.f32.xlu0 %v3902
    %v3904 = vpop.xlane.xlu0 %3903
    %v3905 = vadd.f32 %v3790, %v3792
    %3906 = vadd.xlane.f32.xlu0 %v3905
    %v3907 = vpop.xlane.xlu0 %3906
    %v3908 = vadd.f32 %v3794, %v3796
    %3909 = vadd.xlane.f32.xlu0 %v3908
    %v3910 = vpop.xlane.xlu0 %3909
    %v3911 = vadd.f32 %v3798, %v3800
    %3912 = vadd.xlane.f32.xlu0 %v3911
    %v3913 = vpop.xlane.xlu0 %3912
    %v3914 = vadd.f32 %v3802, %v3804
    %3915 = vadd.xlane.f32.xlu0 %v3914
    %v3916 = vpop.xlane.xlu0 %3915
    %v3917 = vadd.f32 %v3806, %v3808
    %3918 = vadd.xlane.f32.xlu0 %v3917
    %v3919 = vpop.xlane.xlu0 %3918
    %v3920 = vadd.f32 %v3810, %v3812
    %3921 = vadd.xlane.f32.xlu0 %v3920
    %v3922 = vpop.xlane.xlu0 %3921
    %v3923 = vadd.f32 %v3814, %v3816
    %3924 = vadd.xlane.f32.xlu0 %v3923
    %v3925 = vpop.xlane.xlu0 %3924
    %v3926 = vadd.f32 %v3818, %v3820
    %3927 = vadd.xlane.f32.xlu0 %v3926
    %v3928 = vpop.xlane.xlu0 %3927
    %v3929 = vadd.f32 %v3822, %v3824
    %3930 = vadd.xlane.f32.xlu0 %v3929
    %v3931 = vpop.xlane.xlu0 %3930
    %v3932 = vadd.f32 %v3826, %v3828
    %3933 = vadd.xlane.f32.xlu0 %v3932
    %v3934 = vpop.xlane.xlu0 %3933
    %v3935 = vadd.f32 %v3830, %v3832
    %3936 = vadd.xlane.f32.xlu0 %v3935
    %v3937 = vpop.xlane.xlu0 %3936
    %v3938 = vadd.f32 %v3834, %v3836
    %3939 = vadd.xlane.f32.xlu0 %v3938
    %v3940 = vpop.xlane.xlu0 %3939
    %v3941 = vadd.f32 %v3838, %v3840
    %3942 = vadd.xlane.f32.xlu0 %v3941
    %v3943 = vpop.xlane.xlu0 %3942
    %v3944 = vadd.f32 %v3842, %v3844
    %3945 = vadd.xlane.f32.xlu0 %v3944
    %v3946 = vpop.xlane.xlu0 %3945
    %v3947 = vadd.f32 %v3846, %v3848
    %3948 = vadd.xlane.f32.xlu0 %v3947
    %v3949 = vpop.xlane.xlu0 %3948
    %v3950 = vadd.f32 %v3850, %v3852
    %3951 = vadd.xlane.f32.xlu0 %v3950
    %v3952 = vpop.xlane.xlu0 %3951
    %v3953 = vadd.f32 %v3854, %v3856
    %3954 = vadd.xlane.f32.xlu0 %v3953
    %v3955 = vpop.xlane.xlu0 %3954
    %v3956 = vadd.f32 %v3858, %v3860
    %3957 = vadd.xlane.f32.xlu0 %v3956
    %v3958 = vpop.xlane.xlu0 %3957
    %v3959 = vadd.f32 %v3862, %v3864
    %3960 = vadd.xlane.f32.xlu0 %v3959
    %v3961 = vpop.xlane.xlu0 %3960
    %v3962 = vadd.f32 %v3866, %v3868
    %3963 = vadd.xlane.f32.xlu0 %v3962
    %v3964 = vpop.xlane.xlu0 %3963
    %v3965 = vrcp.pop %v3871
    %v3966 = vrcp.pop %v3874
    %v3967 = vrcp.pop %v3877
    %v3968 = vrcp.pop %v3880
    %v3969 = vrcp.pop %v3883
    %v3970 = vrcp.pop %v3886
    %v3971 = vrcp.pop %v3889
    %v3972 = vrcp.pop %v3892
    %v3973 = vrcp.pop %v3895
    %v3974 = vrcp.pop %v3898
    %v3975 = vrcp.pop %v3901
    %v3976 = vrcp.pop %v3904
    %v3977 = vrcp.pop %v3907
    %v3978 = vrcp.pop %v3910
    %v3979 = vrcp.pop %v3913
    %v3980 = vrcp.pop %v3916
    %v3981 = vrcp.pop %v3919
    %v3982 = vrcp.pop %v3922
    %v3983 = vrcp.pop %v3925
    %v3984 = vrcp.pop %v3928
    %v3985 = vrcp.pop %v3931
    %v3986 = vrcp.pop %v3934
    %v3987 = vrcp.pop %v3937
    %v3988 = vrcp.pop %v3940
    %v3989 = vrcp.pop %v3943
    %v3990 = vrcp.pop %v3946
    %v3991 = vrcp.pop %v3949
    %v3992 = vrcp.pop %v3952
    %v3993 = vrcp.pop %v3955
    %v3994 = vrcp.pop %v3958
    %v3995 = vrcp.pop %v3961
    %v3996 = vrcp.pop %v3964
    %v3997 = vmul.f32 %v3742, %v3965
    %v3998 = vmul.f32 %v3744, %v3965
    %v3999 = vmul.f32 %v3746, %v3966
    %v4000 = vmul.f32 %v3748, %v3966
    %v4001 = vmul.f32 %v3750, %v3967
    %v4002 = vmul.f32 %v3752, %v3967
    %v4003 = vmul.f32 %v3754, %v3968
    %v4004 = vmul.f32 %v3756, %v3968
    %v4005 = vmul.f32 %v3758, %v3969
    %v4006 = vmul.f32 %v3760, %v3969
    %v4007 = vmul.f32 %v3762, %v3970
    %v4008 = vmul.f32 %v3764, %v3970
    %v4009 = vmul.f32 %v3766, %v3971
    %v4010 = vmul.f32 %v3768, %v3971
    %v4011 = vmul.f32 %v3770, %v3972
    %v4012 = vmul.f32 %v3772, %v3972
    %v4013 = vmul.f32 %v3774, %v3973
    %v4014 = vmul.f32 %v3776, %v3973
    %v4015 = vmul.f32 %v3778, %v3974
    %v4016 = vmul.f32 %v3780, %v3974
    %v4017 = vmul.f32 %v3782, %v3975
    %v4018 = vmul.f32 %v3784, %v3975
    %v4019 = vmul.f32 %v3786, %v3976
    %v4020 = vmul.f32 %v3788, %v3976
    %v4021 = vmul.f32 %v3790, %v3977
    %v4022 = vmul.f32 %v3792, %v3977
    %v4023 = vmul.f32 %v3794, %v3978
    %v4024 = vmul.f32 %v3796, %v3978
    %v4025 = vmul.f32 %v3798, %v3979
    %v4026 = vmul.f32 %v3800, %v3979
    %v4027 = vmul.f32 %v3802, %v3980
    %v4028 = vmul.f32 %v3804, %v3980
    %v4029 = vmul.f32 %v3806, %v3981
    %v4030 = vmul.f32 %v3808, %v3981
    %v4031 = vmul.f32 %v3810, %v3982
    %v4032 = vmul.f32 %v3812, %v3982
    %v4033 = vmul.f32 %v3814, %v3983
    %v4034 = vmul.f32 %v3816, %v3983
    %v4035 = vmul.f32 %v3818, %v3984
    %v4036 = vmul.f32 %v3820, %v3984
    %v4037 = vmul.f32 %v3822, %v3985
    %v4038 = vmul.f32 %v3824, %v3985
    %v4039 = vmul.f32 %v3826, %v3986
    %v4040 = vmul.f32 %v3828, %v3986
    %v4041 = vmul.f32 %v3830, %v3987
    %v4042 = vmul.f32 %v3832, %v3987
    %v4043 = vmul.f32 %v3834, %v3988
    %v4044 = vmul.f32 %v3836, %v3988
    %v4045 = vmul.f32 %v3838, %v3989
    %v4046 = vmul.f32 %v3840, %v3989
    %v4047 = vmul.f32 %v3842, %v3990
    %v4048 = vmul.f32 %v3844, %v3990
    %v4049 = vmul.f32 %v3846, %v3991
    %v4050 = vmul.f32 %v3848, %v3991
    %v4051 = vmul.f32 %v3850, %v3992
    %v4052 = vmul.f32 %v3852, %v3992
    %v4053 = vmul.f32 %v3854, %v3993
    %v4054 = vmul.f32 %v3856, %v3993
    %v4055 = vmul.f32 %v3858, %v3994
    %v4056 = vmul.f32 %v3860, %v3994
    %v4057 = vmul.f32 %v3862, %v3995
    %v4058 = vmul.f32 %v3864, %v3995
    %v4059 = vmul.f32 %v3866, %v3996
    %v4060 = vmul.f32 %v3868, %v3996
    %4061 = vmatprep.subr.mxu0 0.0
    %4062 = vmatpush1.msra.mxu0 %v2909
    %4063 = vmatprep.subr.mxu0 0.0
    %4064 = vmatpush1.msra.mxu0 %v2915
    %4065 = vmatprep.subr.mxu0 0.0
    %4066 = vmatpush1.msra.mxu0 %v2921
    %4067 = vmatprep.subr.mxu0 0.0
    %4068 = vmatpush1.msra.mxu0 %v2927
    %4069 = vmatprep.subr.mxu0 0.0
    %4070 = vmatpush1.msra.mxu0 %v3056
    %4071 = vmatprep.subr.mxu0 0.0
    %4072 = vmatpush1.msra.mxu0 %v3058
    %4073 = vmatprep.subr.mxu0 0.0
    %4074 = vmatpush1.msra.mxu0 %v3060
    %4075 = vmatprep.subr.mxu0 0.0
    %4076 = vmatpush1.msra.mxu0 %v3062
    %4077 = vmatprep.subr.mxu0 0.0
    %4078 = vmatpush1.msra.mxu0 %v3068
    %4079 = vmatprep.subr.mxu0 0.0
    %4080 = vmatpush1.msra.mxu0 %v3070
    %4081 = vmatprep.subr.mxu0 0.0
    %4082 = vmatpush1.msra.mxu0 %v3072
    %4083 = vmatprep.subr.mxu0 0.0
    %4084 = vmatpush1.msra.mxu0 %v3074
    %4085 = vmatprep.subr.mxu0 0.0
    %4086 = vmatpush1.msra.mxu0 %v3080
    %4087 = vmatprep.subr.mxu0 0.0
    %4088 = vmatpush1.msra.mxu0 %v3082
    %4089 = vmatprep.subr.mxu0 0.0
    %4090 = vmatpush1.msra.mxu0 %v3084
    %4091 = vmatprep.subr.mxu0 0.0
    %4092 = vmatpush1.msra.mxu0 %v3086
    %4093 = vmatprep.subr.mxu0 0.0
    %4094 = vmatpush1.msra.mxu0 %v2911
    %4095 = vmatprep.subr.mxu0 0.0
    %4096 = vmatpush1.msra.mxu0 %v2917
    %4097 = vmatprep.subr.mxu0 0.0
    %4098 = vmatpush1.msra.mxu0 %v2923
    %4099 = vmatprep.subr.mxu0 0.0
    %4100 = vmatpush1.msra.mxu0 %v2929
    %4101 = vmatprep.subr.mxu0 0.0
    %4102 = vmatpush1.msra.mxu0 %v3096
    %4103 = vmatprep.subr.mxu0 0.0
    %4104 = vmatpush1.msra.mxu0 %v3098
    %4105 = vmatprep.subr.mxu0 0.0
    %4106 = vmatpush1.msra.mxu0 %v3100
    %4107 = vmatprep.subr.mxu0 0.0
    %4108 = vmatpush1.msra.mxu0 %v3102
    %4109 = vmatprep.subr.mxu0 0.0
    %4110 = vmatpush1.msra.mxu0 %v3108
    %4111 = vmatprep.subr.mxu0 0.0
    %4112 = vmatpush1.msra.mxu0 %v3110
    %4113 = vmatprep.subr.mxu0 0.0
    %4114 = vmatpush1.msra.mxu0 %v3112
    %4115 = vmatprep.subr.mxu0 0.0
    %4116 = vmatpush1.msra.mxu0 %v3114
    %4117 = vmatprep.subr.mxu0 0.0
    %4118 = vmatpush1.msra.mxu0 %v3120
    %4119 = vmatprep.subr.mxu0 0.0
    %4120 = vmatpush1.msra.mxu0 %v3122
    %4121 = vmatprep.subr.mxu0 0.0
    %4122 = vmatpush1.msra.mxu0 %v3124
    %4123 = vmatprep.subr.mxu0 0.0
    %4124 = vmatpush1.msra.mxu0 %v3126
    %4125 = vmatprep.mubr.f32.mxu0 %v3998
    %4126 = vmatmul.mubr.f32.gmra.mrb[0].mxu0 %v3997
    %v4127 = vpop.f32.mrb[0].mxu0
    %v4128 = vadd.f32 0.0, %v4127
    %v4129 = vpop.f32.mrb[0].mxu0
    %4130 = vmatprep.mubr.f32.mxu0 %v4000
    %4131 = vmatmul.mubr.f32.gmra.mrb[0].mxu0 %v3999
    %v4132 = vpop.f32.mrb[0].mxu0
    %v4133 = vadd.f32 0.0, %v4132
    %v4134 = vpop.f32.mrb[0].mxu0
    %4135 = vmatprep.mubr.f32.mxu0 %v4002
    %4136 = vmatmul.mubr.f32.gmra.mrb[0].mxu0 %v4001
    %v4137 = vpop.f32.mrb[0].mxu0
    %v4138 = vadd.f32 0.0, %v4137
    %v4139 = vpop.f32.mrb[0].mxu0
    %4140 = vmatprep.mubr.f32.mxu0 %v4004
    %4141 = vmatmul.mubr.f32.gmra.mrb[0].mxu0 %v4003
    %v4142 = vpop.f32.mrb[0].mxu0
    %v4143 = vadd.f32 0.0, %v4142
    %v4144 = vpop.f32.mrb[0].mxu0
    %4145 = vmatprep.mubr.f32.mxu0 %v4006
    %4146 = vmatmul.mubr.f32.gmra.mrb[0].mxu0 %v4005
    %v4147 = vpop.f32.mrb[0].mxu0
    %v4148 = vadd.f32 0.0, %v4147
    %v4149 = vpop.f32.mrb[0].mxu0
    %4150 = vmatprep.mubr.f32.mxu0 %v4008
    %4151 = vmatmul.mubr.f32.gmra.mrb[0].mxu0 %v4007
    %v4152 = vpop.f32.mrb[0].mxu0
    %v4153 = vadd.f32 0.0, %v4152
    %v4154 = vpop.f32.mrb[0].mxu0
    %4155 = vmatprep.mubr.f32.mxu0 %v4010
    %4156 = vmatmul.mubr.f32.gmra.mrb[0].mxu0 %v4009
    %v4157 = vpop.f32.mrb[0].mxu0
    %v4158 = vadd.f32 0.0, %v4157
    %v4159 = vpop.f32.mrb[0].mxu0
    %4160 = vmatprep.mubr.f32.mxu0 %v4012
    %4161 = vmatmul.mubr.f32.gmra.mrb[0].mxu0 %v4011
    %v4162 = vpop.f32.mrb[0].mxu0
    %v4163 = vadd.f32 0.0, %v4162
    %v4164 = vpop.f32.mrb[0].mxu0
    %4165 = vmatprep.mubr.f32.mxu0 %v4014
    %4166 = vmatmul.mubr.f32.gmra.mrb[0].mxu0 %v4013
    %v4167 = vpop.f32.mrb[0].mxu0
    %v4168 = vadd.f32 0.0, %v4167
    %v4169 = vpop.f32.mrb[0].mxu0
    %4170 = vmatprep.mubr.f32.mxu0 %v4016
    %4171 = vmatmul.mubr.f32.gmra.mrb[0].mxu0 %v4015
    %v4172 = vpop.f32.mrb[0].mxu0
    %v4173 = vadd.f32 0.0, %v4172
    %v4174 = vpop.f32.mrb[0].mxu0
    %4175 = vmatprep.mubr.f32.mxu0 %v4018
    %4176 = vmatmul.mubr.f32.gmra.mrb[0].mxu0 %v4017
    %v4177 = vpop.f32.mrb[0].mxu0
    %v4178 = vadd.f32 0.0, %v4177
    %v4179 = vpop.f32.mrb[0].mxu0
    %4180 = vmatprep.mubr.f32.mxu0 %v4020
    %4181 = vmatmul.mubr.f32.gmra.mrb[0].mxu0 %v4019
    %v4182 = vpop.f32.mrb[0].mxu0
    %v4183 = vadd.f32 0.0, %v4182
    %v4184 = vpop.f32.mrb[0].mxu0
    %4185 = vmatprep.mubr.f32.mxu0 %v4022
    %4186 = vmatmul.mubr.f32.gmra.mrb[0].mxu0 %v4021
    %v4187 = vpop.f32.mrb[0].mxu0
    %v4188 = vadd.f32 0.0, %v4187
    %v4189 = vpop.f32.mrb[0].mxu0
    %4190 = vmatprep.mubr.f32.mxu0 %v4024
    %4191 = vmatmul.mubr.f32.gmra.mrb[0].mxu0 %v4023
    %v4192 = vpop.f32.mrb[0].mxu0
    %v4193 = vadd.f32 0.0, %v4192
    %v4194 = vpop.f32.mrb[0].mxu0
    %4195 = vmatprep.mubr.f32.mxu0 %v4026
    %4196 = vmatmul.mubr.f32.gmra.mrb[0].mxu0 %v4025
    %v4197 = vpop.f32.mrb[0].mxu0
    %v4198 = vadd.f32 0.0, %v4197
    %v4199 = vpop.f32.mrb[0].mxu0
    %4200 = vmatprep.mubr.f32.mxu0 %v4028
    %4201 = vmatmul.mubr.f32.gmra.mrb[0].mxu0 %v4027
    %v4202 = vpop.f32.mrb[0].mxu0
    %v4203 = vadd.f32 0.0, %v4202
    %v4204 = vpop.f32.mrb[0].mxu0
    %4205 = vmatprep.mubr.f32.mxu0 %v4030
    %4206 = vmatmul.mubr.f32.gmra.mrb[0].mxu0 %v4029
    %v4207 = vpop.f32.mrb[0].mxu0
    %v4208 = vadd.f32 0.0, %v4207
    %v4209 = vpop.f32.mrb[0].mxu0
    %4210 = vmatprep.mubr.f32.mxu0 %v4032
    %4211 = vmatmul.mubr.f32.gmra.mrb[0].mxu0 %v4031
    %v4212 = vpop.f32.mrb[0].mxu0
    %v4213 = vadd.f32 0.0, %v4212
    %v4214 = vpop.f32.mrb[0].mxu0
    %4215 = vmatprep.mubr.f32.mxu0 %v4034
    %4216 = vmatmul.mubr.f32.gmra.mrb[0].mxu0 %v4033
    %v4217 = vpop.f32.mrb[0].mxu0
    %v4218 = vadd.f32 0.0, %v4217
    %v4219 = vpop.f32.mrb[0].mxu0
    %4220 = vmatprep.mubr.f32.mxu0 %v4036
    %4221 = vmatmul.mubr.f32.gmra.mrb[0].mxu0 %v4035
    %v4222 = vpop.f32.mrb[0].mxu0
    %v4223 = vadd.f32 0.0, %v4222
    %v4224 = vpop.f32.mrb[0].mxu0
    %4225 = vmatprep.mubr.f32.mxu0 %v4038
    %4226 = vmatmul.mubr.f32.gmra.mrb[0].mxu0 %v4037
    %v4227 = vpop.f32.mrb[0].mxu0
    %v4228 = vadd.f32 0.0, %v4227
    %v4229 = vpop.f32.mrb[0].mxu0
    %4230 = vmatprep.mubr.f32.mxu0 %v4040
    %4231 = vmatmul.mubr.f32.gmra.mrb[0].mxu0 %v4039
    %v4232 = vpop.f32.mrb[0].mxu0
    %v4233 = vadd.f32 0.0, %v4232
    %v4234 = vpop.f32.mrb[0].mxu0
    %4235 = vmatprep.mubr.f32.mxu0 %v4042
    %4236 = vmatmul.mubr.f32.gmra.mrb[0].mxu0 %v4041
    %v4237 = vpop.f32.mrb[0].mxu0
    %v4238 = vadd.f32 0.0, %v4237
    %v4239 = vpop.f32.mrb[0].mxu0
    %4240 = vmatprep.mubr.f32.mxu0 %v4044
    %4241 = vmatmul.mubr.f32.gmra.mrb[0].mxu0 %v4043
    %v4242 = vpop.f32.mrb[0].mxu0
    %v4243 = vadd.f32 0.0, %v4242
    %v4244 = vpop.f32.mrb[0].mxu0
    %4245 = vmatprep.mubr.f32.mxu0 %v4046
    %4246 = vmatmul.mubr.f32.gmra.mrb[0].mxu0 %v4045
    %v4247 = vpop.f32.mrb[0].mxu0
    %v4248 = vadd.f32 0.0, %v4247
    %v4249 = vpop.f32.mrb[0].mxu0
    %4250 = vmatprep.mubr.f32.mxu0 %v4048
    %4251 = vmatmul.mubr.f32.gmra.mrb[0].mxu0 %v4047
    %v4252 = vpop.f32.mrb[0].mxu0
    %v4253 = vadd.f32 0.0, %v4252
    %v4254 = vpop.f32.mrb[0].mxu0
    %4255 = vmatprep.mubr.f32.mxu0 %v4050
    %4256 = vmatmul.mubr.f32.gmra.mrb[0].mxu0 %v4049
    %v4257 = vpop.f32.mrb[0].mxu0
    %v4258 = vadd.f32 0.0, %v4257
    %v4259 = vpop.f32.mrb[0].mxu0
    %4260 = vmatprep.mubr.f32.mxu0 %v4052
    %4261 = vmatmul.mubr.f32.gmra.mrb[0].mxu0 %v4051
    %v4262 = vpop.f32.mrb[0].mxu0
    %v4263 = vadd.f32 0.0, %v4262
    %v4264 = vpop.f32.mrb[0].mxu0
    %4265 = vmatprep.mubr.f32.mxu0 %v4054
    %4266 = vmatmul.mubr.f32.gmra.mrb[0].mxu0 %v4053
    %v4267 = vpop.f32.mrb[0].mxu0
    %v4268 = vadd.f32 0.0, %v4267
    %v4269 = vpop.f32.mrb[0].mxu0
    %4270 = vmatprep.mubr.f32.mxu0 %v4056
    %4271 = vmatmul.mubr.f32.gmra.mrb[0].mxu0 %v4055
    %v4272 = vpop.f32.mrb[0].mxu0
    %v4273 = vadd.f32 0.0, %v4272
    %v4274 = vpop.f32.mrb[0].mxu0
    %4275 = vmatprep.mubr.f32.mxu0 %v4058
    %4276 = vmatmul.mubr.f32.gmra.mrb[0].mxu0 %v4057
    %v4277 = vpop.f32.mrb[0].mxu0
    %v4278 = vadd.f32 0.0, %v4277
    %v4279 = vpop.f32.mrb[0].mxu0
    %4280 = vmatprep.mubr.f32.mxu0 %v4060
    %4281 = vmatmul.mubr.f32.gmra.mrb[0].mxu0 %v4059
    %v4282 = vpop.f32.mrb[0].mxu0
    %v4283 = vadd.f32 0.0, %v4282
    %v4284 = vpop.f32.mrb[0].mxu0
    %4285 = vdwg.mxu0
    %4290 = vrot.lane.b32.xlu0 %v4148, 32
    %v4291 = vpop.permute.xlu0 %4290
    %4292 = vrot.lane.b32.xlu0 %v4153, 32
    %v4293 = vpop.permute.xlu0 %4292
    %4294 = vrot.lane.b32.xlu0 %v4158, 32
    %v4295 = vpop.permute.xlu0 %4294
    %4296 = vrot.lane.b32.xlu0 %v4163, 32
    %v4297 = vpop.permute.xlu0 %4296
    %4306 = vrot.lane.b32.xlu0 %v4168, 64
    %v4307 = vpop.permute.xlu0 %4306
    %4308 = vrot.lane.b32.xlu0 %v4173, 64
    %v4309 = vpop.permute.xlu0 %4308
    %4310 = vrot.lane.b32.xlu0 %v4178, 64
    %v4311 = vpop.permute.xlu0 %4310
    %4312 = vrot.lane.b32.xlu0 %v4183, 64
    %v4313 = vpop.permute.xlu0 %4312
    %4322 = vrot.lane.b32.xlu0 %v4188, 96
    %v4323 = vpop.permute.xlu0 %4322
    %4324 = vrot.lane.b32.xlu0 %v4193, 96
    %v4325 = vpop.permute.xlu0 %4324
    %4326 = vrot.lane.b32.xlu0 %v4198, 96
    %v4327 = vpop.permute.xlu0 %4326
    %4328 = vrot.lane.b32.xlu0 %v4203, 96
    %v4329 = vpop.permute.xlu0 %4328
    %4338 = vrot.lane.b32.xlu0 %v4228, 32
    %v4339 = vpop.permute.xlu0 %4338
    %4340 = vrot.lane.b32.xlu0 %v4233, 32
    %v4341 = vpop.permute.xlu0 %4340
    %4342 = vrot.lane.b32.xlu0 %v4238, 32
    %v4343 = vpop.permute.xlu0 %4342
    %4344 = vrot.lane.b32.xlu0 %v4243, 32
    %v4345 = vpop.permute.xlu0 %4344
    %4354 = vrot.lane.b32.xlu0 %v4248, 64
    %v4355 = vpop.permute.xlu0 %4354
    %4356 = vrot.lane.b32.xlu0 %v4253, 64
    %v4357 = vpop.permute.xlu0 %4356
    %4358 = vrot.lane.b32.xlu0 %v4258, 64
    %v4359 = vpop.permute.xlu0 %4358
    %4360 = vrot.lane.b32.xlu0 %v4263, 64
    %v4361 = vpop.permute.xlu0 %4360
    %4370 = vrot.lane.b32.xlu0 %v4268, 96
    %v4371 = vpop.permute.xlu0 %4370
    %4372 = vrot.lane.b32.xlu0 %v4273, 96
    %v4373 = vpop.permute.xlu0 %4372
    %4374 = vrot.lane.b32.xlu0 %v4278, 96
    %v4375 = vpop.permute.xlu0 %4374
    %4376 = vrot.lane.b32.xlu0 %v4283, 96
    %v4377 = vpop.permute.xlu0 %4376
    %v4382 = vsel %vm3131, %v4128, %v4291
    %v4383 = vsel %vm3131, %v4133, %v4293
    %v4384 = vsel %vm3131, %v4138, %v4295
    %v4385 = vsel %vm3131, %v4143, %v4297
    %v4386 = vsel %vm657, %v4382, %v4307
    %v4387 = vsel %vm657, %v4383, %v4309
    %v4388 = vsel %vm657, %v4384, %v4311
    %v4389 = vsel %vm657, %v4385, %v4313
    %vm4390 = vcmask 785408
    %v4391 = vsel %vm4390, %v4386, %v4323
    %v4392 = vsel %vm4390, %v4387, %v4325
    %v4393 = vsel %vm4390, %v4388, %v4327
    %v4394 = vsel %vm4390, %v4389, %v4329
    %v4395 = vsel %vm3131, %v4208, %v4339
    %v4396 = vsel %vm3131, %v4213, %v4341
    %v4397 = vsel %vm3131, %v4218, %v4343
    %v4398 = vsel %vm3131, %v4223, %v4345
    %v4399 = vsel %vm657, %v4395, %v4355
    %v4400 = vsel %vm657, %v4396, %v4357
    %v4401 = vsel %vm657, %v4397, %v4359
    %v4402 = vsel %vm657, %v4398, %v4361
    %v4403 = vsel %vm4390, %v4399, %v4371
    %v4404 = vsel %vm4390, %v4400, %v4373
    %v4405 = vsel %vm4390, %v4401, %v4375
    %v4406 = vsel %vm4390, %v4402, %v4377
    %v4407 = vld [vmem:[%s65] sm:$0xff]
    %v4408 = vld [vmem:[%s65 + $0x8] sm:$0xff]
    %v4409 = vld [vmem:[%s65 + $0x10] sm:$0xff]
    %v4410 = vld [vmem:[%s65 + $0x18] sm:$0xff]
    %v4411 = vld [vmem:[%s65 + $0x20] sm:$0xff]
    %v4412 = vld [vmem:[%s65 + $0x28] sm:$0xff]
    %v4413 = vld [vmem:[%s65 + $0x30] sm:$0xff]
    %v4414 = vld [vmem:[%s65 + $0x38] sm:$0xff]
    %v4415 = vld [vmem:[%s65 + $0x40] sm:$0xff]
    %v4416 = vld [vmem:[%s65 + $0x48] sm:$0xff]
    %v4417 = vld [vmem:[%s65 + $0x50] sm:$0xff]
    %v4418 = vld [vmem:[%s65 + $0x58] sm:$0xff]
    %v4419 = vld [vmem:[%s65 + $0x60] sm:$0xff]
    %v4420 = vld [vmem:[%s65 + $0x68] sm:$0xff]
    %v4421 = vld [vmem:[%s65 + $0x70] sm:$0xff]
    %v4422 = vld [vmem:[%s65 + $0x78] sm:$0xff]
    %v4423 = vld [vmem:[%s65 + $0x80] sm:$0xff]
    %v4424 = vld [vmem:[%s65 + $0x88] sm:$0xff]
    %v4425 = vld [vmem:[%s65 + $0x90] sm:$0xff]
    %v4426 = vld [vmem:[%s65 + $0x98] sm:$0xff]
    %v4427 = vld [vmem:[%s65 + $0xa0] sm:$0xff]
    %v4428 = vld [vmem:[%s65 + $0xa8] sm:$0xff]
    %v4429 = vld [vmem:[%s65 + $0xb0] sm:$0xff]
    %v4430 = vld [vmem:[%s65 + $0xb8] sm:$0xff]
    %v4431 = vld [vmem:[%s65 + $0xc0] sm:$0xff]
    %v4432 = vld [vmem:[%s65 + $0xc8] sm:$0xff]
    %v4433 = vld [vmem:[%s65 + $0xd0] sm:$0xff]
    %v4434 = vld [vmem:[%s65 + $0xd8] sm:$0xff]
    %v4435 = vld [vmem:[%s65 + $0xe0] sm:$0xff]
    %v4436 = vld [vmem:[%s65 + $0xe8] sm:$0xff]
    %v4437 = vld [vmem:[%s65 + $0xf0] sm:$0xff]
    %v4438 = vld [vmem:[%s65 + $0xf8] sm:$0xff]
    %v4439 = vld [vmem:[%s65 + $0x100] sm:$0xff]
    %v4440 = vld [vmem:[%s65 + $0x108] sm:$0xff]
    %v4441 = vld [vmem:[%s65 + $0x110] sm:$0xff]
    %v4442 = vld [vmem:[%s65 + $0x118] sm:$0xff]
    %v4443 = vld [vmem:[%s65 + $0x120] sm:$0xff]
    %v4444 = vld [vmem:[%s65 + $0x128] sm:$0xff]
    %v4445 = vld [vmem:[%s65 + $0x130] sm:$0xff]
    %v4446 = vld [vmem:[%s65 + $0x138] sm:$0xff]
    %v4447 = vld [vmem:[%s65 + $0x140] sm:$0xff]
    %v4448 = vld [vmem:[%s65 + $0x148] sm:$0xff]
    %v4449 = vld [vmem:[%s65 + $0x150] sm:$0xff]
    %v4450 = vld [vmem:[%s65 + $0x158] sm:$0xff]
    %v4451 = vld [vmem:[%s65 + $0x160] sm:$0xff]
    %v4452 = vld [vmem:[%s65 + $0x168] sm:$0xff]
    %v4453 = vld [vmem:[%s65 + $0x170] sm:$0xff]
    %v4454 = vld [vmem:[%s65 + $0x178] sm:$0xff]
    %v4455 = vld [vmem:[%s65 + $0x180] sm:$0xff]
    %v4456 = vld [vmem:[%s65 + $0x188] sm:$0xff]
    %v4457 = vld [vmem:[%s65 + $0x190] sm:$0xff]
    %v4458 = vld [vmem:[%s65 + $0x198] sm:$0xff]
    %v4459 = vld [vmem:[%s65 + $0x1a0] sm:$0xff]
    %v4460 = vld [vmem:[%s65 + $0x1a8] sm:$0xff]
    %v4461 = vld [vmem:[%s65 + $0x1b0] sm:$0xff]
    %v4462 = vld [vmem:[%s65 + $0x1b8] sm:$0xff]
    %v4463 = vld [vmem:[%s65 + $0x1c0] sm:$0xff]
    %v4464 = vld [vmem:[%s65 + $0x1c8] sm:$0xff]
    %v4465 = vld [vmem:[%s65 + $0x1d0] sm:$0xff]
    %v4466 = vld [vmem:[%s65 + $0x1d8] sm:$0xff]
    %v4467 = vld [vmem:[%s65 + $0x1e0] sm:$0xff]
    %v4468 = vld [vmem:[%s65 + $0x1e8] sm:$0xff]
    %v4469 = vld [vmem:[%s65 + $0x1f0] sm:$0xff]
    %v4470 = vld [vmem:[%s65 + $0x1f8] sm:$0xff]
    %v4471 = vld [vmem:[%s67] sm:$0x3]
    %v4473 = vlaneseq
    %v4474 = vshrl.u32 %v4473, 7
    %v4475 = vsub.s32 0, %v4474
    %v4476 = vrot.slane %v4471, %v4475
    %v4477 = vlaneseq
    %v4478 = vshrl.u32 %v4477, 7
    %v4479 = vsub.s32 1, %v4478
    %v4480 = vrot.slane %v4471, %v4479
    %4483 = vmatprep.subr.mxu0 %v4408
    %4484 = vmatpush1.msra.mxu0 %v4407
    %4485 = vmatprep.subr.mxu0 %v4410
    %4486 = vmatpush1.msra.mxu0 %v4409
    %4487 = vmatprep.subr.mxu0 %v4412
    %4488 = vmatpush1.msra.mxu0 %v4411
    %4489 = vmatprep.subr.mxu0 %v4414
    %4490 = vmatpush1.msra.mxu0 %v4413
    %4491 = vmatprep.subr.mxu0 %v4416
    %4492 = vmatpush1.msra.mxu0 %v4415
    %4493 = vmatprep.subr.mxu0 %v4418
    %4494 = vmatpush1.msra.mxu0 %v4417
    %4495 = vmatprep.subr.mxu0 %v4420
    %4496 = vmatpush1.msra.mxu0 %v4419
    %4497 = vmatprep.subr.mxu0 %v4422
    %4498 = vmatpush1.msra.mxu0 %v4421
    %4499 = vmatprep.subr.mxu0 %v4424
    %4500 = vmatpush1.msra.mxu0 %v4423
    %4501 = vmatprep.subr.mxu0 %v4426
    %4502 = vmatpush1.msra.mxu0 %v4425
    %4503 = vmatprep.subr.mxu0 %v4428
    %4504 = vmatpush1.msra.mxu0 %v4427
    %4505 = vmatprep.subr.mxu0 %v4430
    %4506 = vmatpush1.msra.mxu0 %v4429
    %4507 = vmatprep.subr.mxu0 %v4432
    %4508 = vmatpush1.msra.mxu0 %v4431
    %4509 = vmatprep.subr.mxu0 %v4434
    %4510 = vmatpush1.msra.mxu0 %v4433
    %4511 = vmatprep.subr.mxu0 %v4436
    %4512 = vmatpush1.msra.mxu0 %v4435
    %4513 = vmatprep.subr.mxu0 %v4438
    %4514 = vmatpush1.msra.mxu0 %v4437
    %4515 = vmatprep.subr.mxu0 %v4440
    %4516 = vmatpush1.msra.mxu0 %v4439
    %4517 = vmatprep.subr.mxu0 %v4442
    %4518 = vmatpush1.msra.mxu0 %v4441
    %4519 = vmatprep.subr.mxu0 %v4444
    %4520 = vmatpush1.msra.mxu0 %v4443
    %4521 = vmatprep.subr.mxu0 %v4446
    %4522 = vmatpush1.msra.mxu0 %v4445
    %4523 = vmatprep.subr.mxu0 %v4448
    %4524 = vmatpush1.msra.mxu0 %v4447
    %4525 = vmatprep.subr.mxu0 %v4450
    %4526 = vmatpush1.msra.mxu0 %v4449
    %4527 = vmatprep.subr.mxu0 %v4452
    %4528 = vmatpush1.msra.mxu0 %v4451
    %4529 = vmatprep.subr.mxu0 %v4454
    %4530 = vmatpush1.msra.mxu0 %v4453
    %4531 = vmatprep.subr.mxu0 %v4456
    %4532 = vmatpush1.msra.mxu0 %v4455
    %4533 = vmatprep.subr.mxu0 %v4458
    %4534 = vmatpush1.msra.mxu0 %v4457
    %4535 = vmatprep.subr.mxu0 %v4460
    %4536 = vmatpush1.msra.mxu0 %v4459
    %4537 = vmatprep.subr.mxu0 %v4462
    %4538 = vmatpush1.msra.mxu0 %v4461
    %4539 = vmatprep.subr.mxu0 %v4464
    %4540 = vmatpush1.msra.mxu0 %v4463
    %4541 = vmatprep.subr.mxu0 %v4466
    %4542 = vmatpush1.msra.mxu0 %v4465
    %4543 = vmatprep.subr.mxu0 %v4468
    %4544 = vmatpush1.msra.mxu0 %v4467
    %4545 = vmatprep.subr.mxu0 %v4470
    %4546 = vmatpush1.msra.mxu0 %v4469
    %4547 = vmatprep.mubr.f32.mxu0 %v4403
    %4548 = vmatmul.mubr.f32.gmra.mrb[0].mxu0 %v4391
    %v4549 = vpop.f32.mrb[0].mxu0
    %v4550 = vadd.f32 %v4476, %v4549
    %v4551 = vpop.f32.mrb[0].mxu0
    %v4552 = vadd.f32 %v4480, %v4551
    %4553 = vmatprep.mubr.f32.mxu0 %v4404
    %4554 = vmatmul.mubr.f32.gmra.mrb[0].mxu0 %v4392
    %v4555 = vpop.f32.mrb[0].mxu0
    %v4556 = vadd.f32 %v4476, %v4555
    %v4557 = vpop.f32.mrb[0].mxu0
    %v4558 = vadd.f32 %v4480, %v4557
    %4559 = vmatprep.mubr.f32.mxu0 %v4405
    %4560 = vmatmul.mubr.f32.gmra.mrb[0].mxu0 %v4393
    %v4561 = vpop.f32.mrb[0].mxu0
    %v4562 = vadd.f32 %v4476, %v4561
    %v4563 = vpop.f32.mrb[0].mxu0
    %v4564 = vadd.f32 %v4480, %v4563
    %4565 = vmatprep.mubr.f32.mxu0 %v4406
    %4566 = vmatmul.mubr.f32.gmra.mrb[0].mxu0 %v4394
    %v4567 = vpop.f32.mrb[0].mxu0
    %v4568 = vadd.f32 %v4476, %v4567
    %v4569 = vpop.f32.mrb[0].mxu0
    %v4570 = vadd.f32 %v4480, %v4569
    %4571 = vdwg.mxu0
    %v4572 = vadd.f32 %v4550, %v2432
    %v4573 = vadd.f32 %v4552, %v2433
    %v4574 = vadd.f32 %v4556, %v2434
    %v4575 = vadd.f32 %v4558, %v2435
    %v4576 = vadd.f32 %v4562, %v2436
    %v4577 = vadd.f32 %v4564, %v2437
    %v4578 = vadd.f32 %v4568, %v2438
    %v4579 = vadd.f32 %v4570, %v2439
    %v4580 = vmax.f32 %v4572, 0.0
    %v4581 = vmax.f32 %v4573, 0.0
    %v4582 = vmax.f32 %v4574, 0.0
    %v4583 = vmax.f32 %v4575, 0.0
    %v4584 = vmax.f32 %v4576, 0.0
    %v4585 = vmax.f32 %v4577, 0.0
    %v4586 = vmax.f32 %v4578, 0.0
    %v4587 = vmax.f32 %v4579, 0.0
    %v4588 = vld [vmem:[%s69] sm:$0xff]
    %v4589 = vld [vmem:[%s69 + $0x8] sm:$0xff]
    %v4590 = vld [vmem:[%s69 + $0x10] sm:$0xff]
    %v4591 = vld [vmem:[%s69 + $0x18] sm:$0xff]
    %v4592 = vld [vmem:[%s69 + $0x20] sm:$0xff]
    %v4593 = vld [vmem:[%s69 + $0x28] sm:$0xff]
    %v4594 = vld [vmem:[%s69 + $0x30] sm:$0xff]
    %v4595 = vld [vmem:[%s69 + $0x38] sm:$0xff]
    %v4596 = vld [vmem:[%s69 + $0x40] sm:$0xff]
    %v4597 = vld [vmem:[%s69 + $0x48] sm:$0xff]
    %v4598 = vld [vmem:[%s69 + $0x50] sm:$0xff]
    %v4599 = vld [vmem:[%s69 + $0x58] sm:$0xff]
    %v4600 = vld [vmem:[%s69 + $0x60] sm:$0xff]
    %v4601 = vld [vmem:[%s69 + $0x68] sm:$0xff]
    %v4602 = vld [vmem:[%s69 + $0x70] sm:$0xff]
    %v4603 = vld [vmem:[%s69 + $0x78] sm:$0xff]
    %v4604 = vld [vmem:[%s69 + $0x80] sm:$0xff]
    %v4605 = vld [vmem:[%s69 + $0x88] sm:$0xff]
    %v4606 = vld [vmem:[%s69 + $0x90] sm:$0xff]
    %v4607 = vld [vmem:[%s69 + $0x98] sm:$0xff]
    %v4608 = vld [vmem:[%s69 + $0xa0] sm:$0xff]
    %v4609 = vld [vmem:[%s69 + $0xa8] sm:$0xff]
    %v4610 = vld [vmem:[%s69 + $0xb0] sm:$0xff]
    %v4611 = vld [vmem:[%s69 + $0xb8] sm:$0xff]
    %v4612 = vld [vmem:[%s69 + $0xc0] sm:$0xff]
    %v4613 = vld [vmem:[%s69 + $0xc8] sm:$0xff]
    %v4614 = vld [vmem:[%s69 + $0xd0] sm:$0xff]
    %v4615 = vld [vmem:[%s69 + $0xd8] sm:$0xff]
    %v4616 = vld [vmem:[%s69 + $0xe0] sm:$0xff]
    %v4617 = vld [vmem:[%s69 + $0xe8] sm:$0xff]
    %v4618 = vld [vmem:[%s69 + $0xf0] sm:$0xff]
    %v4619 = vld [vmem:[%s69 + $0xf8] sm:$0xff]
    %v4620 = vld [vmem:[%s69 + $0x100] sm:$0xff]
    %v4621 = vld [vmem:[%s69 + $0x108] sm:$0xff]
    %v4622 = vld [vmem:[%s69 + $0x110] sm:$0xff]
    %v4623 = vld [vmem:[%s69 + $0x118] sm:$0xff]
    %v4624 = vld [vmem:[%s69 + $0x120] sm:$0xff]
    %v4625 = vld [vmem:[%s69 + $0x128] sm:$0xff]
    %v4626 = vld [vmem:[%s69 + $0x130] sm:$0xff]
    %v4627 = vld [vmem:[%s69 + $0x138] sm:$0xff]
    %v4628 = vld [vmem:[%s69 + $0x140] sm:$0xff]
    %v4629 = vld [vmem:[%s69 + $0x148] sm:$0xff]
    %v4630 = vld [vmem:[%s69 + $0x150] sm:$0xff]
    %v4631 = vld [vmem:[%s69 + $0x158] sm:$0xff]
    %v4632 = vld [vmem:[%s69 + $0x160] sm:$0xff]
    %v4633 = vld [vmem:[%s69 + $0x168] sm:$0xff]
    %v4634 = vld [vmem:[%s69 + $0x170] sm:$0xff]
    %v4635 = vld [vmem:[%s69 + $0x178] sm:$0xff]
    %v4636 = vld [vmem:[%s69 + $0x180] sm:$0xff]
    %v4637 = vld [vmem:[%s69 + $0x188] sm:$0xff]
    %v4638 = vld [vmem:[%s69 + $0x190] sm:$0xff]
    %v4639 = vld [vmem:[%s69 + $0x198] sm:$0xff]
    %v4640 = vld [vmem:[%s69 + $0x1a0] sm:$0xff]
    %v4641 = vld [vmem:[%s69 + $0x1a8] sm:$0xff]
    %v4642 = vld [vmem:[%s69 + $0x1b0] sm:$0xff]
    %v4643 = vld [vmem:[%s69 + $0x1b8] sm:$0xff]
    %v4644 = vld [vmem:[%s69 + $0x1c0] sm:$0xff]
    %v4645 = vld [vmem:[%s69 + $0x1c8] sm:$0xff]
    %v4646 = vld [vmem:[%s69 + $0x1d0] sm:$0xff]
    %v4647 = vld [vmem:[%s69 + $0x1d8] sm:$0xff]
    %v4648 = vld [vmem:[%s69 + $0x1e0] sm:$0xff]
    %v4649 = vld [vmem:[%s69 + $0x1e8] sm:$0xff]
    %v4650 = vld [vmem:[%s69 + $0x1f0] sm:$0xff]
    %v4651 = vld [vmem:[%s69 + $0x1f8] sm:$0xff]
    %v4652 = vld [vmem:[%s69 + $0x200] sm:$0xff]
    %v4653 = vld [vmem:[%s69 + $0x208] sm:$0xff]
    %v4654 = vld [vmem:[%s69 + $0x210] sm:$0xff]
    %v4655 = vld [vmem:[%s69 + $0x218] sm:$0xff]
    %v4656 = vld [vmem:[%s69 + $0x220] sm:$0xff]
    %v4657 = vld [vmem:[%s69 + $0x228] sm:$0xff]
    %v4658 = vld [vmem:[%s69 + $0x230] sm:$0xff]
    %v4659 = vld [vmem:[%s69 + $0x238] sm:$0xff]
    %v4660 = vld [vmem:[%s69 + $0x240] sm:$0xff]
    %v4661 = vld [vmem:[%s69 + $0x248] sm:$0xff]
    %v4662 = vld [vmem:[%s69 + $0x250] sm:$0xff]
    %v4663 = vld [vmem:[%s69 + $0x258] sm:$0xff]
    %v4664 = vld [vmem:[%s69 + $0x260] sm:$0xff]
    %v4665 = vld [vmem:[%s69 + $0x268] sm:$0xff]
    %v4666 = vld [vmem:[%s69 + $0x270] sm:$0xff]
    %v4667 = vld [vmem:[%s69 + $0x278] sm:$0xff]
    %v4668 = vld [vmem:[%s69 + $0x280] sm:$0xff]
    %v4669 = vld [vmem:[%s69 + $0x288] sm:$0xff]
    %v4670 = vld [vmem:[%s69 + $0x290] sm:$0xff]
    %v4671 = vld [vmem:[%s69 + $0x298] sm:$0xff]
    %v4672 = vld [vmem:[%s69 + $0x2a0] sm:$0xff]
    %v4673 = vld [vmem:[%s69 + $0x2a8] sm:$0xff]
    %v4674 = vld [vmem:[%s69 + $0x2b0] sm:$0xff]
    %v4675 = vld [vmem:[%s69 + $0x2b8] sm:$0xff]
    %v4676 = vld [vmem:[%s69 + $0x2c0] sm:$0xff]
    %v4677 = vld [vmem:[%s69 + $0x2c8] sm:$0xff]
    %v4678 = vld [vmem:[%s69 + $0x2d0] sm:$0xff]
    %v4679 = vld [vmem:[%s69 + $0x2d8] sm:$0xff]
    %v4680 = vld [vmem:[%s69 + $0x2e0] sm:$0xff]
    %v4681 = vld [vmem:[%s69 + $0x2e8] sm:$0xff]
    %v4682 = vld [vmem:[%s69 + $0x2f0] sm:$0xff]
    %v4683 = vld [vmem:[%s69 + $0x2f8] sm:$0xff]
    %v4684 = vld [vmem:[%s69 + $0x300] sm:$0xff]
    %v4685 = vld [vmem:[%s69 + $0x308] sm:$0xff]
    %v4686 = vld [vmem:[%s69 + $0x310] sm:$0xff]
    %v4687 = vld [vmem:[%s69 + $0x318] sm:$0xff]
    %v4688 = vld [vmem:[%s69 + $0x320] sm:$0xff]
    %v4689 = vld [vmem:[%s69 + $0x328] sm:$0xff]
    %v4690 = vld [vmem:[%s69 + $0x330] sm:$0xff]
    %v4691 = vld [vmem:[%s69 + $0x338] sm:$0xff]
    %v4692 = vld [vmem:[%s69 + $0x340] sm:$0xff]
    %v4693 = vld [vmem:[%s69 + $0x348] sm:$0xff]
    %v4694 = vld [vmem:[%s69 + $0x350] sm:$0xff]
    %v4695 = vld [vmem:[%s69 + $0x358] sm:$0xff]
    %v4696 = vld [vmem:[%s69 + $0x360] sm:$0xff]
    %v4697 = vld [vmem:[%s69 + $0x368] sm:$0xff]
    %v4698 = vld [vmem:[%s69 + $0x370] sm:$0xff]
    %v4699 = vld [vmem:[%s69 + $0x378] sm:$0xff]
    %v4700 = vld [vmem:[%s69 + $0x380] sm:$0xff]
    %v4701 = vld [vmem:[%s69 + $0x388] sm:$0xff]
    %v4702 = vld [vmem:[%s69 + $0x390] sm:$0xff]
    %v4703 = vld [vmem:[%s69 + $0x398] sm:$0xff]
    %v4704 = vld [vmem:[%s69 + $0x3a0] sm:$0xff]
    %v4705 = vld [vmem:[%s69 + $0x3a8] sm:$0xff]
    %v4706 = vld [vmem:[%s69 + $0x3b0] sm:$0xff]
    %v4707 = vld [vmem:[%s69 + $0x3b8] sm:$0xff]
    %v4708 = vld [vmem:[%s69 + $0x3c0] sm:$0xff]
    %v4709 = vld [vmem:[%s69 + $0x3c8] sm:$0xff]
    %v4710 = vld [vmem:[%s69 + $0x3d0] sm:$0xff]
    %v4711 = vld [vmem:[%s69 + $0x3d8] sm:$0xff]
    %v4712 = vld [vmem:[%s69 + $0x3e0] sm:$0xff]
    %v4713 = vld [vmem:[%s69 + $0x3e8] sm:$0xff]
    %v4714 = vld [vmem:[%s69 + $0x3f0] sm:$0xff]
    %v4715 = vld [vmem:[%s69 + $0x3f8] sm:$0xff]
    %v4716 = vld [vmem:[%s69 + $0x400] sm:$0xff]
    %v4717 = vld [vmem:[%s69 + $0x408] sm:$0xff]
    %v4718 = vld [vmem:[%s69 + $0x410] sm:$0xff]
    %v4719 = vld [vmem:[%s69 + $0x418] sm:$0xff]
    %v4720 = vld [vmem:[%s69 + $0x420] sm:$0xff]
    %v4721 = vld [vmem:[%s69 + $0x428] sm:$0xff]
    %v4722 = vld [vmem:[%s69 + $0x430] sm:$0xff]
    %v4723 = vld [vmem:[%s69 + $0x438] sm:$0xff]
    %v4724 = vld [vmem:[%s69 + $0x440] sm:$0xff]
    %v4725 = vld [vmem:[%s69 + $0x448] sm:$0xff]
    %v4726 = vld [vmem:[%s69 + $0x450] sm:$0xff]
    %v4727 = vld [vmem:[%s69 + $0x458] sm:$0xff]
    %v4728 = vld [vmem:[%s69 + $0x460] sm:$0xff]
    %v4729 = vld [vmem:[%s69 + $0x468] sm:$0xff]
    %v4730 = vld [vmem:[%s69 + $0x470] sm:$0xff]
    %v4731 = vld [vmem:[%s69 + $0x478] sm:$0xff]
    %v4732 = vld [vmem:[%s69 + $0x480] sm:$0xff]
    %v4733 = vld [vmem:[%s69 + $0x488] sm:$0xff]
    %v4734 = vld [vmem:[%s69 + $0x490] sm:$0xff]
    %v4735 = vld [vmem:[%s69 + $0x498] sm:$0xff]
    %v4736 = vld [vmem:[%s69 + $0x4a0] sm:$0xff]
    %v4737 = vld [vmem:[%s69 + $0x4a8] sm:$0xff]
    %v4738 = vld [vmem:[%s69 + $0x4b0] sm:$0xff]
    %v4739 = vld [vmem:[%s69 + $0x4b8] sm:$0xff]
    %v4740 = vld [vmem:[%s69 + $0x4c0] sm:$0xff]
    %v4741 = vld [vmem:[%s69 + $0x4c8] sm:$0xff]
    %v4742 = vld [vmem:[%s69 + $0x4d0] sm:$0xff]
    %v4743 = vld [vmem:[%s69 + $0x4d8] sm:$0xff]
    %v4744 = vld [vmem:[%s69 + $0x4e0] sm:$0xff]
    %v4745 = vld [vmem:[%s69 + $0x4e8] sm:$0xff]
    %v4746 = vld [vmem:[%s69 + $0x4f0] sm:$0xff]
    %v4747 = vld [vmem:[%s69 + $0x4f8] sm:$0xff]
    %v4748 = vld [vmem:[%s69 + $0x500] sm:$0xff]
    %v4749 = vld [vmem:[%s69 + $0x508] sm:$0xff]
    %v4750 = vld [vmem:[%s69 + $0x510] sm:$0xff]
    %v4751 = vld [vmem:[%s69 + $0x518] sm:$0xff]
    %v4752 = vld [vmem:[%s69 + $0x520] sm:$0xff]
    %v4753 = vld [vmem:[%s69 + $0x528] sm:$0xff]
    %v4754 = vld [vmem:[%s69 + $0x530] sm:$0xff]
    %v4755 = vld [vmem:[%s69 + $0x538] sm:$0xff]
    %v4756 = vld [vmem:[%s69 + $0x540] sm:$0xff]
    %v4757 = vld [vmem:[%s69 + $0x548] sm:$0xff]
    %v4758 = vld [vmem:[%s69 + $0x550] sm:$0xff]
    %v4759 = vld [vmem:[%s69 + $0x558] sm:$0xff]
    %v4760 = vld [vmem:[%s69 + $0x560] sm:$0xff]
    %v4761 = vld [vmem:[%s69 + $0x568] sm:$0xff]
    %v4762 = vld [vmem:[%s69 + $0x570] sm:$0xff]
    %v4763 = vld [vmem:[%s69 + $0x578] sm:$0xff]
    %v4764 = vld [vmem:[%s69 + $0x580] sm:$0xff]
    %v4765 = vld [vmem:[%s69 + $0x588] sm:$0xff]
    %v4766 = vld [vmem:[%s69 + $0x590] sm:$0xff]
    %v4767 = vld [vmem:[%s69 + $0x598] sm:$0xff]
    %v4768 = vld [vmem:[%s69 + $0x5a0] sm:$0xff]
    %v4769 = vld [vmem:[%s69 + $0x5a8] sm:$0xff]
    %v4770 = vld [vmem:[%s69 + $0x5b0] sm:$0xff]
    %v4771 = vld [vmem:[%s69 + $0x5b8] sm:$0xff]
    %v4772 = vld [vmem:[%s69 + $0x5c0] sm:$0xff]
    %v4773 = vld [vmem:[%s69 + $0x5c8] sm:$0xff]
    %v4774 = vld [vmem:[%s69 + $0x5d0] sm:$0xff]
    %v4775 = vld [vmem:[%s69 + $0x5d8] sm:$0xff]
    %v4776 = vld [vmem:[%s69 + $0x5e0] sm:$0xff]
    %v4777 = vld [vmem:[%s69 + $0x5e8] sm:$0xff]
    %v4778 = vld [vmem:[%s69 + $0x5f0] sm:$0xff]
    %v4779 = vld [vmem:[%s69 + $0x5f8] sm:$0xff]
    %v4780 = vld [vmem:[%s71] sm:$0x3f]
    %v4782 = vlaneseq
    %v4783 = vshrl.u32 %v4782, 7
    %v4784 = vsub.s32 0, %v4783
    %v4785 = vrot.slane %v4780, %v4784
    %v4786 = vlaneseq
    %v4787 = vshrl.u32 %v4786, 7
    %v4788 = vsub.s32 1, %v4787
    %v4789 = vrot.slane %v4780, %v4788
    %v4790 = vlaneseq
    %v4791 = vshrl.u32 %v4790, 7
    %v4792 = vsub.s32 2, %v4791
    %v4793 = vrot.slane %v4780, %v4792
    %v4794 = vlaneseq
    %v4795 = vshrl.u32 %v4794, 7
    %v4796 = vsub.s32 3, %v4795
    %v4797 = vrot.slane %v4780, %v4796
    %v4798 = vlaneseq
    %v4799 = vshrl.u32 %v4798, 7
    %v4800 = vsub.s32 4, %v4799
    %v4801 = vrot.slane %v4780, %v4800
    %v4802 = vlaneseq
    %v4803 = vshrl.u32 %v4802, 7
    %v4804 = vsub.s32 5, %v4803
    %v4805 = vrot.slane %v4780, %v4804
    %4812 = vmatprep.subr.mxu0 %v4589
    %4813 = vmatpush1.msra.mxu0 %v4588
    %4814 = vmatprep.subr.mxu0 %v4595
    %4815 = vmatpush1.msra.mxu0 %v4594
    %4816 = vmatprep.subr.mxu0 %v4601
    %4817 = vmatpush1.msra.mxu0 %v4600
    %4818 = vmatprep.subr.mxu0 %v4607
    %4819 = vmatpush1.msra.mxu0 %v4606
    %4820 = vmatprep.subr.mxu0 %v4613
    %4821 = vmatpush1.msra.mxu0 %v4612
    %4822 = vmatprep.subr.mxu0 %v4619
    %4823 = vmatpush1.msra.mxu0 %v4618
    %4824 = vmatprep.subr.mxu0 %v4625
    %4825 = vmatpush1.msra.mxu0 %v4624
    %4826 = vmatprep.subr.mxu0 %v4631
    %4827 = vmatpush1.msra.mxu0 %v4630
    %4828 = vmatprep.subr.mxu0 %v4637
    %4829 = vmatpush1.msra.mxu0 %v4636
    %4830 = vmatprep.subr.mxu0 %v4643
    %4831 = vmatpush1.msra.mxu0 %v4642
    %4832 = vmatprep.subr.mxu0 %v4649
    %4833 = vmatpush1.msra.mxu0 %v4648
    %4834 = vmatprep.subr.mxu0 %v4655
    %4835 = vmatpush1.msra.mxu0 %v4654
    %4836 = vmatprep.subr.mxu0 %v4661
    %4837 = vmatpush1.msra.mxu0 %v4660
    %4838 = vmatprep.subr.mxu0 %v4667
    %4839 = vmatpush1.msra.mxu0 %v4666
    %4840 = vmatprep.subr.mxu0 %v4673
    %4841 = vmatpush1.msra.mxu0 %v4672
    %4842 = vmatprep.subr.mxu0 %v4679
    %4843 = vmatpush1.msra.mxu0 %v4678
    %4844 = vmatprep.subr.mxu0 %v4685
    %4845 = vmatpush1.msra.mxu0 %v4684
    %4846 = vmatprep.subr.mxu0 %v4691
    %4847 = vmatpush1.msra.mxu0 %v4690
    %4848 = vmatprep.subr.mxu0 %v4697
    %4849 = vmatpush1.msra.mxu0 %v4696
    %4850 = vmatprep.subr.mxu0 %v4703
    %4851 = vmatpush1.msra.mxu0 %v4702
    %4852 = vmatprep.subr.mxu0 %v4709
    %4853 = vmatpush1.msra.mxu0 %v4708
    %4854 = vmatprep.subr.mxu0 %v4715
    %4855 = vmatpush1.msra.mxu0 %v4714
    %4856 = vmatprep.subr.mxu0 %v4721
    %4857 = vmatpush1.msra.mxu0 %v4720
    %4858 = vmatprep.subr.mxu0 %v4727
    %4859 = vmatpush1.msra.mxu0 %v4726
    %4860 = vmatprep.subr.mxu0 %v4733
    %4861 = vmatpush1.msra.mxu0 %v4732
    %4862 = vmatprep.subr.mxu0 %v4739
    %4863 = vmatpush1.msra.mxu0 %v4738
    %4864 = vmatprep.subr.mxu0 %v4745
    %4865 = vmatpush1.msra.mxu0 %v4744
    %4866 = vmatprep.subr.mxu0 %v4751
    %4867 = vmatpush1.msra.mxu0 %v4750
    %4868 = vmatprep.subr.mxu0 %v4757
    %4869 = vmatpush1.msra.mxu0 %v4756
    %4870 = vmatprep.subr.mxu0 %v4763
    %4871 = vmatpush1.msra.mxu0 %v4762
    %4872 = vmatprep.subr.mxu0 %v4769
    %4873 = vmatpush1.msra.mxu0 %v4768
    %4874 = vmatprep.subr.mxu0 %v4775
    %4875 = vmatpush1.msra.mxu0 %v4774
    %4876 = vmatprep.mubr.f32.mxu0 %v4581
    %4877 = vmatmul.mubr.f32.gmra.mrb[0].mxu0 %v4580
    %v4878 = vpop.f32.mrb[0].mxu0
    %v4879 = vadd.f32 %v4785, %v4878
    %v4880 = vpop.f32.mrb[0].mxu0
    %v4881 = vadd.f32 %v4789, %v4880
    %4882 = vmatprep.mubr.f32.mxu0 %v4583
    %4883 = vmatmul.mubr.f32.gmra.mrb[0].mxu0 %v4582
    %v4884 = vpop.f32.mrb[0].mxu0
    %v4885 = vadd.f32 %v4785, %v4884
    %v4886 = vpop.f32.mrb[0].mxu0
    %v4887 = vadd.f32 %v4789, %v4886
    %4888 = vmatprep.mubr.f32.mxu0 %v4585
    %4889 = vmatmul.mubr.f32.gmra.mrb[0].mxu0 %v4584
    %v4890 = vpop.f32.mrb[0].mxu0
    %v4891 = vadd.f32 %v4785, %v4890
    %v4892 = vpop.f32.mrb[0].mxu0
    %v4893 = vadd.f32 %v4789, %v4892
    %4894 = vmatprep.mubr.f32.mxu0 %v4587
    %4895 = vmatmul.mubr.f32.gmra.mrb[0].mxu0 %v4586
    %v4896 = vpop.f32.mrb[0].mxu0
    %v4897 = vadd.f32 %v4785, %v4896
    %v4898 = vpop.f32.mrb[0].mxu0
    %v4899 = vadd.f32 %v4789, %v4898
    %4900 = vdwg.mxu0
    %4901 = vmatprep.subr.mxu0 %v4591
    %4902 = vmatpush1.msra.mxu0 %v4590
    %4903 = vmatprep.subr.mxu0 %v4597
    %4904 = vmatpush1.msra.mxu0 %v4596
    %4905 = vmatprep.subr.mxu0 %v4603
    %4906 = vmatpush1.msra.mxu0 %v4602
    %4907 = vmatprep.subr.mxu0 %v4609
    %4908 = vmatpush1.msra.mxu0 %v4608
    %4909 = vmatprep.subr.mxu0 %v4615
    %4910 = vmatpush1.msra.mxu0 %v4614
    %4911 = vmatprep.subr.mxu0 %v4621
    %4912 = vmatpush1.msra.mxu0 %v4620
    %4913 = vmatprep.subr.mxu0 %v4627
    %4914 = vmatpush1.msra.mxu0 %v4626
    %4915 = vmatprep.subr.mxu0 %v4633
    %4916 = vmatpush1.msra.mxu0 %v4632
    %4917 = vmatprep.subr.mxu0 %v4639
    %4918 = vmatpush1.msra.mxu0 %v4638
    %4919 = vmatprep.subr.mxu0 %v4645
    %4920 = vmatpush1.msra.mxu0 %v4644
    %4921 = vmatprep.subr.mxu0 %v4651
    %4922 = vmatpush1.msra.mxu0 %v4650
    %4923 = vmatprep.subr.mxu0 %v4657
    %4924 = vmatpush1.msra.mxu0 %v4656
    %4925 = vmatprep.subr.mxu0 %v4663
    %4926 = vmatpush1.msra.mxu0 %v4662
    %4927 = vmatprep.subr.mxu0 %v4669
    %4928 = vmatpush1.msra.mxu0 %v4668
    %4929 = vmatprep.subr.mxu0 %v4675
    %4930 = vmatpush1.msra.mxu0 %v4674
    %4931 = vmatprep.subr.mxu0 %v4681
    %4932 = vmatpush1.msra.mxu0 %v4680
    %4933 = vmatprep.subr.mxu0 %v4687
    %4934 = vmatpush1.msra.mxu0 %v4686
    %4935 = vmatprep.subr.mxu0 %v4693
    %4936 = vmatpush1.msra.mxu0 %v4692
    %4937 = vmatprep.subr.mxu0 %v4699
    %4938 = vmatpush1.msra.mxu0 %v4698
    %4939 = vmatprep.subr.mxu0 %v4705
    %4940 = vmatpush1.msra.mxu0 %v4704
    %4941 = vmatprep.subr.mxu0 %v4711
    %4942 = vmatpush1.msra.mxu0 %v4710
    %4943 = vmatprep.subr.mxu0 %v4717
    %4944 = vmatpush1.msra.mxu0 %v4716
    %4945 = vmatprep.subr.mxu0 %v4723
    %4946 = vmatpush1.msra.mxu0 %v4722
    %4947 = vmatprep.subr.mxu0 %v4729
    %4948 = vmatpush1.msra.mxu0 %v4728
    %4949 = vmatprep.subr.mxu0 %v4735
    %4950 = vmatpush1.msra.mxu0 %v4734
    %4951 = vmatprep.subr.mxu0 %v4741
    %4952 = vmatpush1.msra.mxu0 %v4740
    %4953 = vmatprep.subr.mxu0 %v4747
    %4954 = vmatpush1.msra.mxu0 %v4746
    %4955 = vmatprep.subr.mxu0 %v4753
    %4956 = vmatpush1.msra.mxu0 %v4752
    %4957 = vmatprep.subr.mxu0 %v4759
    %4958 = vmatpush1.msra.mxu0 %v4758
    %4959 = vmatprep.subr.mxu0 %v4765
    %4960 = vmatpush1.msra.mxu0 %v4764
    %4961 = vmatprep.subr.mxu0 %v4771
    %4962 = vmatpush1.msra.mxu0 %v4770
    %4963 = vmatprep.subr.mxu0 %v4777
    %4964 = vmatpush1.msra.mxu0 %v4776
    %4965 = vmatprep.mubr.f32.mxu0 %v4581
    %4966 = vmatmul.mubr.f32.gmra.mrb[0].mxu0 %v4580
    %v4967 = vpop.f32.mrb[0].mxu0
    %v4968 = vadd.f32 %v4793, %v4967
    %v4969 = vpop.f32.mrb[0].mxu0
    %v4970 = vadd.f32 %v4797, %v4969
    %4971 = vmatprep.mubr.f32.mxu0 %v4583
    %4972 = vmatmul.mubr.f32.gmra.mrb[0].mxu0 %v4582
    %v4973 = vpop.f32.mrb[0].mxu0
    %v4974 = vadd.f32 %v4793, %v4973
    %v4975 = vpop.f32.mrb[0].mxu0
    %v4976 = vadd.f32 %v4797, %v4975
    %4977 = vmatprep.mubr.f32.mxu0 %v4585
    %4978 = vmatmul.mubr.f32.gmra.mrb[0].mxu0 %v4584
    %v4979 = vpop.f32.mrb[0].mxu0
    %v4980 = vadd.f32 %v4793, %v4979
    %v4981 = vpop.f32.mrb[0].mxu0
    %v4982 = vadd.f32 %v4797, %v4981
    %4983 = vmatprep.mubr.f32.mxu0 %v4587
    %4984 = vmatmul.mubr.f32.gmra.mrb[0].mxu0 %v4586
    %v4985 = vpop.f32.mrb[0].mxu0
    %v4986 = vadd.f32 %v4793, %v4985
    %v4987 = vpop.f32.mrb[0].mxu0
    %v4988 = vadd.f32 %v4797, %v4987
    %4989 = vdwg.mxu0
    %4990 = vmatprep.subr.mxu0 %v4593
    %4991 = vmatpush1.msra.mxu0 %v4592
    %4992 = vmatprep.subr.mxu0 %v4599
    %4993 = vmatpush1.msra.mxu0 %v4598
    %4994 = vmatprep.subr.mxu0 %v4605
    %4995 = vmatpush1.msra.mxu0 %v4604
    %4996 = vmatprep.subr.mxu0 %v4611
    %4997 = vmatpush1.msra.mxu0 %v4610
    %4998 = vmatprep.subr.mxu0 %v4617
    %4999 = vmatpush1.msra.mxu0 %v4616
    %5000 = vmatprep.subr.mxu0 %v4623
    %5001 = vmatpush1.msra.mxu0 %v4622
    %5002 = vmatprep.subr.mxu0 %v4629
    %5003 = vmatpush1.msra.mxu0 %v4628
    %5004 = vmatprep.subr.mxu0 %v4635
    %5005 = vmatpush1.msra.mxu0 %v4634
    %5006 = vmatprep.subr.mxu0 %v4641
    %5007 = vmatpush1.msra.mxu0 %v4640
    %5008 = vmatprep.subr.mxu0 %v4647
    %5009 = vmatpush1.msra.mxu0 %v4646
    %5010 = vmatprep.subr.mxu0 %v4653
    %5011 = vmatpush1.msra.mxu0 %v4652
    %5012 = vmatprep.subr.mxu0 %v4659
    %5013 = vmatpush1.msra.mxu0 %v4658
    %5014 = vmatprep.subr.mxu0 %v4665
    %5015 = vmatpush1.msra.mxu0 %v4664
    %5016 = vmatprep.subr.mxu0 %v4671
    %5017 = vmatpush1.msra.mxu0 %v4670
    %5018 = vmatprep.subr.mxu0 %v4677
    %5019 = vmatpush1.msra.mxu0 %v4676
    %5020 = vmatprep.subr.mxu0 %v4683
    %5021 = vmatpush1.msra.mxu0 %v4682
    %5022 = vmatprep.subr.mxu0 %v4689
    %5023 = vmatpush1.msra.mxu0 %v4688
    %5024 = vmatprep.subr.mxu0 %v4695
    %5025 = vmatpush1.msra.mxu0 %v4694
    %5026 = vmatprep.subr.mxu0 %v4701
    %5027 = vmatpush1.msra.mxu0 %v4700
    %5028 = vmatprep.subr.mxu0 %v4707
    %5029 = vmatpush1.msra.mxu0 %v4706
    %5030 = vmatprep.subr.mxu0 %v4713
    %5031 = vmatpush1.msra.mxu0 %v4712
    %5032 = vmatprep.subr.mxu0 %v4719
    %5033 = vmatpush1.msra.mxu0 %v4718
    %5034 = vmatprep.subr.mxu0 %v4725
    %5035 = vmatpush1.msra.mxu0 %v4724
    %5036 = vmatprep.subr.mxu0 %v4731
    %5037 = vmatpush1.msra.mxu0 %v4730
    %5038 = vmatprep.subr.mxu0 %v4737
    %5039 = vmatpush1.msra.mxu0 %v4736
    %5040 = vmatprep.subr.mxu0 %v4743
    %5041 = vmatpush1.msra.mxu0 %v4742
    %5042 = vmatprep.subr.mxu0 %v4749
    %5043 = vmatpush1.msra.mxu0 %v4748
    %5044 = vmatprep.subr.mxu0 %v4755
    %5045 = vmatpush1.msra.mxu0 %v4754
    %5046 = vmatprep.subr.mxu0 %v4761
    %5047 = vmatpush1.msra.mxu0 %v4760
    %5048 = vmatprep.subr.mxu0 %v4767
    %5049 = vmatpush1.msra.mxu0 %v4766
    %5050 = vmatprep.subr.mxu0 %v4773
    %5051 = vmatpush1.msra.mxu0 %v4772
    %5052 = vmatprep.subr.mxu0 %v4779
    %5053 = vmatpush1.msra.mxu0 %v4778
    %5054 = vmatprep.mubr.f32.mxu0 %v4581
    %5055 = vmatmul.mubr.f32.gmra.mrb[0].mxu0 %v4580
    %v5056 = vpop.f32.mrb[0].mxu0
    %v5057 = vadd.f32 %v4801, %v5056
    %v5058 = vpop.f32.mrb[0].mxu0
    %v5059 = vadd.f32 %v4805, %v5058
    %5060 = vmatprep.mubr.f32.mxu0 %v4583
    %5061 = vmatmul.mubr.f32.gmra.mrb[0].mxu0 %v4582
    %v5062 = vpop.f32.mrb[0].mxu0
    %v5063 = vadd.f32 %v4801, %v5062
    %v5064 = vpop.f32.mrb[0].mxu0
    %v5065 = vadd.f32 %v4805, %v5064
    %5066 = vmatprep.mubr.f32.mxu0 %v4585
    %5067 = vmatmul.mubr.f32.gmra.mrb[0].mxu0 %v4584
    %v5068 = vpop.f32.mrb[0].mxu0
    %v5069 = vadd.f32 %v4801, %v5068
    %v5070 = vpop.f32.mrb[0].mxu0
    %v5071 = vadd.f32 %v4805, %v5070
    %5072 = vmatprep.mubr.f32.mxu0 %v4587
    %5073 = vmatmul.mubr.f32.gmra.mrb[0].mxu0 %v4586
    %v5074 = vpop.f32.mrb[0].mxu0
    %v5075 = vadd.f32 %v4801, %v5074
    %v5076 = vpop.f32.mrb[0].mxu0
    %v5077 = vadd.f32 %v4805, %v5076
    %5078 = vdwg.mxu0
    %v5079 = vmul.f32 %v4879, 0.17677669
    %v5080 = vmul.f32 %v4881, 0.17677669
    %v5081 = vmul.f32 %v4885, 0.17677669
    %v5082 = vmul.f32 %v4887, 0.17677669
    %v5083 = vmul.f32 %v4891, 0.17677669
    %v5084 = vmul.f32 %v4893, 0.17677669
    %v5085 = vmul.f32 %v4897, 0.17677669
    %v5086 = vmul.f32 %v4899, 0.17677669
    %5091 = vrot.lane.b32.xlu0 %v5079, 96
    %v5092 = vpop.permute.xlu0 %5091
    %5093 = vrot.lane.b32.xlu0 %v5081, 96
    %v5094 = vpop.permute.xlu0 %5093
    %5095 = vrot.lane.b32.xlu0 %v5083, 96
    %v5096 = vpop.permute.xlu0 %5095
    %5097 = vrot.lane.b32.xlu0 %v5085, 96
    %v5098 = vpop.permute.xlu0 %5097
    %5099 = vrot.lane.b32.xlu0 %v5079, 64
    %v5100 = vpop.permute.xlu0 %5099
    %5101 = vrot.lane.b32.xlu0 %v5081, 64
    %v5102 = vpop.permute.xlu0 %5101
    %5103 = vrot.lane.b32.xlu0 %v5083, 64
    %v5104 = vpop.permute.xlu0 %5103
    %5105 = vrot.lane.b32.xlu0 %v5085, 64
    %v5106 = vpop.permute.xlu0 %5105
    %5107 = vrot.lane.b32.xlu0 %v5079, 32
    %v5108 = vpop.permute.xlu0 %5107
    %5109 = vrot.lane.b32.xlu0 %v5081, 32
    %v5110 = vpop.permute.xlu0 %5109
    %5111 = vrot.lane.b32.xlu0 %v5083, 32
    %v5112 = vpop.permute.xlu0 %5111
    %5113 = vrot.lane.b32.xlu0 %v5085, 32
    %v5114 = vpop.permute.xlu0 %5113
    %5119 = vrot.lane.b32.xlu0 %v5080, 96
    %v5120 = vpop.permute.xlu0 %5119
    %5121 = vrot.lane.b32.xlu0 %v5082, 96
    %v5122 = vpop.permute.xlu0 %5121
    %5123 = vrot.lane.b32.xlu0 %v5084, 96
    %v5124 = vpop.permute.xlu0 %5123
    %5125 = vrot.lane.b32.xlu0 %v5086, 96
    %v5126 = vpop.permute.xlu0 %5125
    %5127 = vrot.lane.b32.xlu0 %v5080, 64
    %v5128 = vpop.permute.xlu0 %5127
    %5129 = vrot.lane.b32.xlu0 %v5082, 64
    %v5130 = vpop.permute.xlu0 %5129
    %5131 = vrot.lane.b32.xlu0 %v5084, 64
    %v5132 = vpop.permute.xlu0 %5131
    %5133 = vrot.lane.b32.xlu0 %v5086, 64
    %v5134 = vpop.permute.xlu0 %5133
    %5135 = vrot.lane.b32.xlu0 %v5080, 32
    %v5136 = vpop.permute.xlu0 %5135
    %5137 = vrot.lane.b32.xlu0 %v5082, 32
    %v5138 = vpop.permute.xlu0 %5137
    %5139 = vrot.lane.b32.xlu0 %v5084, 32
    %v5140 = vpop.permute.xlu0 %5139
    %5141 = vrot.lane.b32.xlu0 %v5086, 32
    %v5142 = vpop.permute.xlu0 %5141
    %5147 = vrot.lane.b32.xlu0 %v4968, 96
    %v5148 = vpop.permute.xlu0 %5147
    %5149 = vrot.lane.b32.xlu0 %v4974, 96
    %v5150 = vpop.permute.xlu0 %5149
    %5151 = vrot.lane.b32.xlu0 %v4980, 96
    %v5152 = vpop.permute.xlu0 %5151
    %5153 = vrot.lane.b32.xlu0 %v4986, 96
    %v5154 = vpop.permute.xlu0 %5153
    %5155 = vrot.lane.b32.xlu0 %v4968, 64
    %v5156 = vpop.permute.xlu0 %5155
    %5157 = vrot.lane.b32.xlu0 %v4974, 64
    %v5158 = vpop.permute.xlu0 %5157
    %5159 = vrot.lane.b32.xlu0 %v4980, 64
    %v5160 = vpop.permute.xlu0 %5159
    %5161 = vrot.lane.b32.xlu0 %v4986, 64
    %v5162 = vpop.permute.xlu0 %5161
    %5163 = vrot.lane.b32.xlu0 %v4968, 32
    %v5164 = vpop.permute.xlu0 %5163
    %5165 = vrot.lane.b32.xlu0 %v4974, 32
    %v5166 = vpop.permute.xlu0 %5165
    %5167 = vrot.lane.b32.xlu0 %v4980, 32
    %v5168 = vpop.permute.xlu0 %5167
    %5169 = vrot.lane.b32.xlu0 %v4986, 32
    %v5170 = vpop.permute.xlu0 %5169
    %5175 = vrot.lane.b32.xlu0 %v4970, 96
    %v5176 = vpop.permute.xlu0 %5175
    %5177 = vrot.lane.b32.xlu0 %v4976, 96
    %v5178 = vpop.permute.xlu0 %5177
    %5179 = vrot.lane.b32.xlu0 %v4982, 96
    %v5180 = vpop.permute.xlu0 %5179
    %5181 = vrot.lane.b32.xlu0 %v4988, 96
    %v5182 = vpop.permute.xlu0 %5181
    %5183 = vrot.lane.b32.xlu0 %v4970, 64
    %v5184 = vpop.permute.xlu0 %5183
    %5185 = vrot.lane.b32.xlu0 %v4976, 64
    %v5186 = vpop.permute.xlu0 %5185
    %5187 = vrot.lane.b32.xlu0 %v4982, 64
    %v5188 = vpop.permute.xlu0 %5187
    %5189 = vrot.lane.b32.xlu0 %v4988, 64
    %v5190 = vpop.permute.xlu0 %5189
    %5191 = vrot.lane.b32.xlu0 %v4970, 32
    %v5192 = vpop.permute.xlu0 %5191
    %5193 = vrot.lane.b32.xlu0 %v4976, 32
    %v5194 = vpop.permute.xlu0 %5193
    %5195 = vrot.lane.b32.xlu0 %v4982, 32
    %v5196 = vpop.permute.xlu0 %5195
    %5197 = vrot.lane.b32.xlu0 %v4988, 32
    %v5198 = vpop.permute.xlu0 %5197
    %5203 = vrot.lane.b32.xlu0 %v5057, 96
    %v5204 = vpop.permute.xlu0 %5203
    %5205 = vrot.lane.b32.xlu0 %v5063, 96
    %v5206 = vpop.permute.xlu0 %5205
    %5207 = vrot.lane.b32.xlu0 %v5069, 96
    %v5208 = vpop.permute.xlu0 %5207
    %5209 = vrot.lane.b32.xlu0 %v5075, 96
    %v5210 = vpop.permute.xlu0 %5209
    %5215 = vrot.lane.b32.xlu0 %v5057, 64
    %v5216 = vpop.permute.xlu0 %5215
    %5217 = vrot.lane.b32.xlu0 %v5063, 64
    %v5218 = vpop.permute.xlu0 %5217
    %5219 = vrot.lane.b32.xlu0 %v5069, 64
    %v5220 = vpop.permute.xlu0 %5219
    %5221 = vrot.lane.b32.xlu0 %v5075, 64
    %v5222 = vpop.permute.xlu0 %5221
    %5227 = vrot.lane.b32.xlu0 %v5057, 32
    %v5228 = vpop.permute.xlu0 %5227
    %5229 = vrot.lane.b32.xlu0 %v5063, 32
    %v5230 = vpop.permute.xlu0 %5229
    %5231 = vrot.lane.b32.xlu0 %v5069, 32
    %v5232 = vpop.permute.xlu0 %5231
    %5233 = vrot.lane.b32.xlu0 %v5075, 32
    %v5234 = vpop.permute.xlu0 %5233
    %5243 = vrot.lane.b32.xlu0 %v5059, 96
    %v5244 = vpop.permute.xlu0 %5243
    %5245 = vrot.lane.b32.xlu0 %v5065, 96
    %v5246 = vpop.permute.xlu0 %5245
    %5247 = vrot.lane.b32.xlu0 %v5071, 96
    %v5248 = vpop.permute.xlu0 %5247
    %5249 = vrot.lane.b32.xlu0 %v5077, 96
    %v5250 = vpop.permute.xlu0 %5249
    %5255 = vrot.lane.b32.xlu0 %v5059, 64
    %v5256 = vpop.permute.xlu0 %5255
    %5257 = vrot.lane.b32.xlu0 %v5065, 64
    %v5258 = vpop.permute.xlu0 %5257
    %5259 = vrot.lane.b32.xlu0 %v5071, 64
    %v5260 = vpop.permute.xlu0 %5259
    %5261 = vrot.lane.b32.xlu0 %v5077, 64
    %v5262 = vpop.permute.xlu0 %5261
    %5267 = vrot.lane.b32.xlu0 %v5059, 32
    %v5268 = vpop.permute.xlu0 %5267
    %5269 = vrot.lane.b32.xlu0 %v5065, 32
    %v5270 = vpop.permute.xlu0 %5269
    %5271 = vrot.lane.b32.xlu0 %v5071, 32
    %v5272 = vpop.permute.xlu0 %5271
    %5273 = vrot.lane.b32.xlu0 %v5077, 32
    %v5274 = vpop.permute.xlu0 %5273
    %v5279 = vsel %vm3131, %v5079, 0
    %v5281 = vsel %vm3131, %v5081, 0
    %v5283 = vsel %vm3131, %v5083, 0
    %v5285 = vsel %vm3131, %v5085, 0
    %v5287 = vsel %vm3131, %v5092, 0
    %v5289 = vsel %vm3131, %v5094, 0
    %v5291 = vsel %vm3131, %v5096, 0
    %v5293 = vsel %vm3131, %v5098, 0
    %v5295 = vsel %vm3131, %v5100, 0
    %v5297 = vsel %vm3131, %v5102, 0
    %v5299 = vsel %vm3131, %v5104, 0
    %v5301 = vsel %vm3131, %v5106, 0
    %v5303 = vsel %vm3131, %v5108, 0
    %v5305 = vsel %vm3131, %v5110, 0
    %v5307 = vsel %vm3131, %v5112, 0
    %v5309 = vsel %vm3131, %v5114, 0
    %v5311 = vsel %vm3131, %v5080, 0
    %v5313 = vsel %vm3131, %v5082, 0
    %v5315 = vsel %vm3131, %v5084, 0
    %v5317 = vsel %vm3131, %v5086, 0
    %v5319 = vsel %vm3131, %v5120, 0
    %v5321 = vsel %vm3131, %v5122, 0
    %v5323 = vsel %vm3131, %v5124, 0
    %v5325 = vsel %vm3131, %v5126, 0
    %v5327 = vsel %vm3131, %v5128, 0
    %v5329 = vsel %vm3131, %v5130, 0
    %v5331 = vsel %vm3131, %v5132, 0
    %v5333 = vsel %vm3131, %v5134, 0
    %v5335 = vsel %vm3131, %v5136, 0
    %v5337 = vsel %vm3131, %v5138, 0
    %v5339 = vsel %vm3131, %v5140, 0
    %v5341 = vsel %vm3131, %v5142, 0
    %v5343 = vsel %vm3131, %v4968, 0
    %v5345 = vsel %vm3131, %v4974, 0
    %v5347 = vsel %vm3131, %v4980, 0
    %v5349 = vsel %vm3131, %v4986, 0
    %v5351 = vsel %vm3131, %v5148, 0
    %v5353 = vsel %vm3131, %v5150, 0
    %v5355 = vsel %vm3131, %v5152, 0
    %v5357 = vsel %vm3131, %v5154, 0
    %v5359 = vsel %vm3131, %v5156, 0
    %v5361 = vsel %vm3131, %v5158, 0
    %v5363 = vsel %vm3131, %v5160, 0
    %v5365 = vsel %vm3131, %v5162, 0
    %v5367 = vsel %vm3131, %v5164, 0
    %v5369 = vsel %vm3131, %v5166, 0
    %v5371 = vsel %vm3131, %v5168, 0
    %v5373 = vsel %vm3131, %v5170, 0
    %v5375 = vsel %vm3131, %v4970, 0
    %v5377 = vsel %vm3131, %v4976, 0
    %v5379 = vsel %vm3131, %v4982, 0
    %v5381 = vsel %vm3131, %v4988, 0
    %v5383 = vsel %vm3131, %v5176, 0
    %v5385 = vsel %vm3131, %v5178, 0
    %v5387 = vsel %vm3131, %v5180, 0
    %v5389 = vsel %vm3131, %v5182, 0
    %v5391 = vsel %vm3131, %v5184, 0
    %v5393 = vsel %vm3131, %v5186, 0
    %v5395 = vsel %vm3131, %v5188, 0
    %v5397 = vsel %vm3131, %v5190, 0
    %v5399 = vsel %vm3131, %v5192, 0
    %v5401 = vsel %vm3131, %v5194, 0
    %v5403 = vsel %vm3131, %v5196, 0
    %v5405 = vsel %vm3131, %v5198, 0
    %5407 = vmatprep.subr.mxu0 0.0
    %5408 = vmatpush1.xpose.msra.mxu0 %v5343
    %5409 = vmatprep.subr.mxu0 0.0
    %5410 = vmatpush1.xpose.msra.mxu0 %v5345
    %5411 = vmatprep.subr.mxu0 0.0
    %5412 = vmatpush1.xpose.msra.mxu0 %v5347
    %5413 = vmatprep.subr.mxu0 0.0
    %5414 = vmatpush1.xpose.msra.mxu0 %v5349
    %5415 = vmatprep.subr.mxu0 0.0
    %5416 = vmatpush1.xpose.msra.mxu0 %v5351
    %5417 = vmatprep.subr.mxu0 0.0
    %5418 = vmatpush1.xpose.msra.mxu0 %v5353
    %5419 = vmatprep.subr.mxu0 0.0
    %5420 = vmatpush1.xpose.msra.mxu0 %v5355
    %5421 = vmatprep.subr.mxu0 0.0
    %5422 = vmatpush1.xpose.msra.mxu0 %v5357
    %5423 = vmatprep.subr.mxu0 0.0
    %5424 = vmatpush1.xpose.msra.mxu0 %v5359
    %5425 = vmatprep.subr.mxu0 0.0
    %5426 = vmatpush1.xpose.msra.mxu0 %v5361
    %5427 = vmatprep.subr.mxu0 0.0
    %5428 = vmatpush1.xpose.msra.mxu0 %v5363
    %5429 = vmatprep.subr.mxu0 0.0
    %5430 = vmatpush1.xpose.msra.mxu0 %v5365
    %5431 = vmatprep.subr.mxu0 0.0
    %5432 = vmatpush1.xpose.msra.mxu0 %v5367
    %5433 = vmatprep.subr.mxu0 0.0
    %5434 = vmatpush1.xpose.msra.mxu0 %v5369
    %5435 = vmatprep.subr.mxu0 0.0
    %5436 = vmatpush1.xpose.msra.mxu0 %v5371
    %5437 = vmatprep.subr.mxu0 0.0
    %5438 = vmatpush1.xpose.msra.mxu0 %v5373
    %5439 = vmatprep.subr.mxu0 0.0
    %5440 = vmatpush1.xpose.msra.mxu0 %v5375
    %5441 = vmatprep.subr.mxu0 0.0
    %5442 = vmatpush1.xpose.msra.mxu0 %v5377
    %5443 = vmatprep.subr.mxu0 0.0
    %5444 = vmatpush1.xpose.msra.mxu0 %v5379
    %5445 = vmatprep.subr.mxu0 0.0
    %5446 = vmatpush1.xpose.msra.mxu0 %v5381
    %5447 = vmatprep.subr.mxu0 0.0
    %5448 = vmatpush1.xpose.msra.mxu0 %v5383
    %5449 = vmatprep.subr.mxu0 0.0
    %5450 = vmatpush1.xpose.msra.mxu0 %v5385
    %5451 = vmatprep.subr.mxu0 0.0
    %5452 = vmatpush1.xpose.msra.mxu0 %v5387
    %5453 = vmatprep.subr.mxu0 0.0
    %5454 = vmatpush1.xpose.msra.mxu0 %v5389
    %5455 = vmatprep.subr.mxu0 0.0
    %5456 = vmatpush1.xpose.msra.mxu0 %v5391
    %5457 = vmatprep.subr.mxu0 0.0
    %5458 = vmatpush1.xpose.msra.mxu0 %v5393
    %5459 = vmatprep.subr.mxu0 0.0
    %5460 = vmatpush1.xpose.msra.mxu0 %v5395
    %5461 = vmatprep.subr.mxu0 0.0
    %5462 = vmatpush1.xpose.msra.mxu0 %v5397
    %5463 = vmatprep.subr.mxu0 0.0
    %5464 = vmatpush1.xpose.msra.mxu0 %v5399
    %5465 = vmatprep.subr.mxu0 0.0
    %5466 = vmatpush1.xpose.msra.mxu0 %v5401
    %5467 = vmatprep.subr.mxu0 0.0
    %5468 = vmatpush1.xpose.msra.mxu0 %v5403
    %5469 = vmatprep.subr.mxu0 0.0
    %5470 = vmatpush1.xpose.msra.mxu0 %v5405
    %5471 = vmatprep.mubr.f32.mxu0 0.0
    %5472 = vmatmul.mubr.f32.gmra.mrb[0].mxu0 %v5279
    %v5473 = vpop.f32.mrb[0].mxu0
    %v5474 = vadd.f32 0.0, %v5473
    %v5475 = vpop.f32.mrb[0].mxu0
    %v5476 = vadd.f32 0.0, %v5475
    %5477 = vmatprep.mubr.f32.mxu0 0.0
    %5478 = vmatmul.mubr.f32.gmra.mrb[0].mxu0 %v5281
    %v5479 = vpop.f32.mrb[0].mxu0
    %v5480 = vadd.f32 0.0, %v5479
    %v5481 = vpop.f32.mrb[0].mxu0
    %v5482 = vadd.f32 0.0, %v5481
    %5483 = vmatprep.mubr.f32.mxu0 0.0
    %5484 = vmatmul.mubr.f32.gmra.mrb[0].mxu0 %v5283
    %v5485 = vpop.f32.mrb[0].mxu0
    %v5486 = vadd.f32 0.0, %v5485
    %v5487 = vpop.f32.mrb[0].mxu0
    %v5488 = vadd.f32 0.0, %v5487
    %5489 = vmatprep.mubr.f32.mxu0 0.0
    %5490 = vmatmul.mubr.f32.gmra.mrb[0].mxu0 %v5285
    %v5491 = vpop.f32.mrb[0].mxu0
    %v5492 = vadd.f32 0.0, %v5491
    %v5493 = vpop.f32.mrb[0].mxu0
    %v5494 = vadd.f32 0.0, %v5493
    %5495 = vmatprep.mubr.f32.mxu0 0.0
    %5496 = vmatmul.mubr.f32.gmra.mrb[0].mxu0 %v5287
    %v5497 = vpop.f32.mrb[0].mxu0
    %v5498 = vadd.f32 0.0, %v5497
    %v5499 = vpop.f32.mrb[0].mxu0
    %v5500 = vadd.f32 0.0, %v5499
    %5501 = vmatprep.mubr.f32.mxu0 0.0
    %5502 = vmatmul.mubr.f32.gmra.mrb[0].mxu0 %v5289
    %v5503 = vpop.f32.mrb[0].mxu0
    %v5504 = vadd.f32 0.0, %v5503
    %v5505 = vpop.f32.mrb[0].mxu0
    %v5506 = vadd.f32 0.0, %v5505
    %5507 = vmatprep.mubr.f32.mxu0 0.0
    %5508 = vmatmul.mubr.f32.gmra.mrb[0].mxu0 %v5291
    %v5509 = vpop.f32.mrb[0].mxu0
    %v5510 = vadd.f32 0.0, %v5509
    %v5511 = vpop.f32.mrb[0].mxu0
    %v5512 = vadd.f32 0.0, %v5511
    %5513 = vmatprep.mubr.f32.mxu0 0.0
    %5514 = vmatmul.mubr.f32.gmra.mrb[0].mxu0 %v5293
    %v5515 = vpop.f32.mrb[0].mxu0
    %v5516 = vadd.f32 0.0, %v5515
    %v5517 = vpop.f32.mrb[0].mxu0
    %v5518 = vadd.f32 0.0, %v5517
    %5519 = vmatprep.mubr.f32.mxu0 0.0
    %5520 = vmatmul.mubr.f32.gmra.mrb[0].mxu0 %v5295
    %v5521 = vpop.f32.mrb[0].mxu0
    %v5522 = vadd.f32 0.0, %v5521
    %v5523 = vpop.f32.mrb[0].mxu0
    %v5524 = vadd.f32 0.0, %v5523
    %5525 = vmatprep.mubr.f32.mxu0 0.0
    %5526 = vmatmul.mubr.f32.gmra.mrb[0].mxu0 %v5297
    %v5527 = vpop.f32.mrb[0].mxu0
    %v5528 = vadd.f32 0.0, %v5527
    %v5529 = vpop.f32.mrb[0].mxu0
    %v5530 = vadd.f32 0.0, %v5529
    %5531 = vmatprep.mubr.f32.mxu0 0.0
    %5532 = vmatmul.mubr.f32.gmra.mrb[0].mxu0 %v5299
    %v5533 = vpop.f32.mrb[0].mxu0
    %v5534 = vadd.f32 0.0, %v5533
    %v5535 = vpop.f32.mrb[0].mxu0
    %v5536 = vadd.f32 0.0, %v5535
    %5537 = vmatprep.mubr.f32.mxu0 0.0
    %5538 = vmatmul.mubr.f32.gmra.mrb[0].mxu0 %v5301
    %v5539 = vpop.f32.mrb[0].mxu0
    %v5540 = vadd.f32 0.0, %v5539
    %v5541 = vpop.f32.mrb[0].mxu0
    %v5542 = vadd.f32 0.0, %v5541
    %5543 = vmatprep.mubr.f32.mxu0 0.0
    %5544 = vmatmul.mubr.f32.gmra.mrb[0].mxu0 %v5303
    %v5545 = vpop.f32.mrb[0].mxu0
    %v5546 = vadd.f32 0.0, %v5545
    %v5547 = vpop.f32.mrb[0].mxu0
    %v5548 = vadd.f32 0.0, %v5547
    %5549 = vmatprep.mubr.f32.mxu0 0.0
    %5550 = vmatmul.mubr.f32.gmra.mrb[0].mxu0 %v5305
    %v5551 = vpop.f32.mrb[0].mxu0
    %v5552 = vadd.f32 0.0, %v5551
    %v5553 = vpop.f32.mrb[0].mxu0
    %v5554 = vadd.f32 0.0, %v5553
    %5555 = vmatprep.mubr.f32.mxu0 0.0
    %5556 = vmatmul.mubr.f32.gmra.mrb[0].mxu0 %v5307
    %v5557 = vpop.f32.mrb[0].mxu0
    %v5558 = vadd.f32 0.0, %v5557
    %v5559 = vpop.f32.mrb[0].mxu0
    %v5560 = vadd.f32 0.0, %v5559
    %5561 = vmatprep.mubr.f32.mxu0 0.0
    %5562 = vmatmul.mubr.f32.gmra.mrb[0].mxu0 %v5309
    %v5563 = vpop.f32.mrb[0].mxu0
    %v5564 = vadd.f32 0.0, %v5563
    %v5565 = vpop.f32.mrb[0].mxu0
    %v5566 = vadd.f32 0.0, %v5565
    %5567 = vmatprep.mubr.f32.mxu0 0.0
    %5568 = vmatmul.mubr.f32.gmra.mrb[0].mxu0 %v5311
    %v5569 = vpop.f32.mrb[0].mxu0
    %v5570 = vadd.f32 0.0, %v5569
    %v5571 = vpop.f32.mrb[0].mxu0
    %v5572 = vadd.f32 0.0, %v5571
    %5573 = vmatprep.mubr.f32.mxu0 0.0
    %5574 = vmatmul.mubr.f32.gmra.mrb[0].mxu0 %v5313
    %v5575 = vpop.f32.mrb[0].mxu0
    %v5576 = vadd.f32 0.0, %v5575
    %v5577 = vpop.f32.mrb[0].mxu0
    %v5578 = vadd.f32 0.0, %v5577
    %5579 = vmatprep.mubr.f32.mxu0 0.0
    %5580 = vmatmul.mubr.f32.gmra.mrb[0].mxu0 %v5315
    %v5581 = vpop.f32.mrb[0].mxu0
    %v5582 = vadd.f32 0.0, %v5581
    %v5583 = vpop.f32.mrb[0].mxu0
    %v5584 = vadd.f32 0.0, %v5583
    %5585 = vmatprep.mubr.f32.mxu0 0.0
    %5586 = vmatmul.mubr.f32.gmra.mrb[0].mxu0 %v5317
    %v5587 = vpop.f32.mrb[0].mxu0
    %v5588 = vadd.f32 0.0, %v5587
    %v5589 = vpop.f32.mrb[0].mxu0
    %v5590 = vadd.f32 0.0, %v5589
    %5591 = vmatprep.mubr.f32.mxu0 0.0
    %5592 = vmatmul.mubr.f32.gmra.mrb[0].mxu0 %v5319
    %v5593 = vpop.f32.mrb[0].mxu0
    %v5594 = vadd.f32 0.0, %v5593
    %v5595 = vpop.f32.mrb[0].mxu0
    %v5596 = vadd.f32 0.0, %v5595
    %5597 = vmatprep.mubr.f32.mxu0 0.0
    %5598 = vmatmul.mubr.f32.gmra.mrb[0].mxu0 %v5321
    %v5599 = vpop.f32.mrb[0].mxu0
    %v5600 = vadd.f32 0.0, %v5599
    %v5601 = vpop.f32.mrb[0].mxu0
    %v5602 = vadd.f32 0.0, %v5601
    %5603 = vmatprep.mubr.f32.mxu0 0.0
    %5604 = vmatmul.mubr.f32.gmra.mrb[0].mxu0 %v5323
    %v5605 = vpop.f32.mrb[0].mxu0
    %v5606 = vadd.f32 0.0, %v5605
    %v5607 = vpop.f32.mrb[0].mxu0
    %v5608 = vadd.f32 0.0, %v5607
    %5609 = vmatprep.mubr.f32.mxu0 0.0
    %5610 = vmatmul.mubr.f32.gmra.mrb[0].mxu0 %v5325
    %v5611 = vpop.f32.mrb[0].mxu0
    %v5612 = vadd.f32 0.0, %v5611
    %v5613 = vpop.f32.mrb[0].mxu0
    %v5614 = vadd.f32 0.0, %v5613
    %5615 = vmatprep.mubr.f32.mxu0 0.0
    %5616 = vmatmul.mubr.f32.gmra.mrb[0].mxu0 %v5327
    %v5617 = vpop.f32.mrb[0].mxu0
    %v5618 = vadd.f32 0.0, %v5617
    %v5619 = vpop.f32.mrb[0].mxu0
    %v5620 = vadd.f32 0.0, %v5619
    %5621 = vmatprep.mubr.f32.mxu0 0.0
    %5622 = vmatmul.mubr.f32.gmra.mrb[0].mxu0 %v5329
    %v5623 = vpop.f32.mrb[0].mxu0
    %v5624 = vadd.f32 0.0, %v5623
    %v5625 = vpop.f32.mrb[0].mxu0
    %v5626 = vadd.f32 0.0, %v5625
    %5627 = vmatprep.mubr.f32.mxu0 0.0
    %5628 = vmatmul.mubr.f32.gmra.mrb[0].mxu0 %v5331
    %v5629 = vpop.f32.mrb[0].mxu0
    %v5630 = vadd.f32 0.0, %v5629
    %v5631 = vpop.f32.mrb[0].mxu0
    %v5632 = vadd.f32 0.0, %v5631
    %5633 = vmatprep.mubr.f32.mxu0 0.0
    %5634 = vmatmul.mubr.f32.gmra.mrb[0].mxu0 %v5333
    %v5635 = vpop.f32.mrb[0].mxu0
    %v5636 = vadd.f32 0.0, %v5635
    %v5637 = vpop.f32.mrb[0].mxu0
    %v5638 = vadd.f32 0.0, %v5637
    %5639 = vmatprep.mubr.f32.mxu0 0.0
    %5640 = vmatmul.mubr.f32.gmra.mrb[0].mxu0 %v5335
    %v5641 = vpop.f32.mrb[0].mxu0
    %v5642 = vadd.f32 0.0, %v5641
    %v5643 = vpop.f32.mrb[0].mxu0
    %v5644 = vadd.f32 0.0, %v5643
    %5645 = vmatprep.mubr.f32.mxu0 0.0
    %5646 = vmatmul.mubr.f32.gmra.mrb[0].mxu0 %v5337
    %v5647 = vpop.f32.mrb[0].mxu0
    %v5648 = vadd.f32 0.0, %v5647
    %v5649 = vpop.f32.mrb[0].mxu0
    %v5650 = vadd.f32 0.0, %v5649
    %5651 = vmatprep.mubr.f32.mxu0 0.0
    %5652 = vmatmul.mubr.f32.gmra.mrb[0].mxu0 %v5339
    %v5653 = vpop.f32.mrb[0].mxu0
    %v5654 = vadd.f32 0.0, %v5653
    %v5655 = vpop.f32.mrb[0].mxu0
    %v5656 = vadd.f32 0.0, %v5655
    %5657 = vmatprep.mubr.f32.mxu0 0.0
    %5658 = vmatmul.mubr.f32.gmra.mrb[0].mxu0 %v5341
    %v5659 = vpop.f32.mrb[0].mxu0
    %v5660 = vadd.f32 0.0, %v5659
    %v5661 = vpop.f32.mrb[0].mxu0
    %v5662 = vadd.f32 0.0, %v5661
    %5663 = vdwg.mxu0
    %v5664 = vsel %vm312, %v5474, -1e+30
    %v5665 = vsel %vm313, %v5476, -1e+30
    %v5666 = vsel %vm314, %v5480, -1e+30
    %v5667 = vsel %vm315, %v5482, -1e+30
    %v5668 = vsel %vm316, %v5486, -1e+30
    %v5669 = vsel %vm317, %v5488, -1e+30
    %v5670 = vsel %vm318, %v5492, -1e+30
    %v5671 = vsel %vm319, %v5494, -1e+30
    %v5672 = vsel %vm320, %v5498, -1e+30
    %v5673 = vsel %vm321, %v5500, -1e+30
    %v5674 = vsel %vm322, %v5504, -1e+30
    %v5675 = vsel %vm323, %v5506, -1e+30
    %v5676 = vsel %vm324, %v5510, -1e+30
    %v5677 = vsel %vm325, %v5512, -1e+30
    %v5678 = vsel %vm326, %v5516, -1e+30
    %v5679 = vsel %vm327, %v5518, -1e+30
    %v5680 = vsel %vm328, %v5522, -1e+30
    %v5681 = vsel %vm329, %v5524, -1e+30
    %v5682 = vsel %vm330, %v5528, -1e+30
    %v5683 = vsel %vm331, %v5530, -1e+30
    %v5684 = vsel %vm332, %v5534, -1e+30
    %v5685 = vsel %vm333, %v5536, -1e+30
    %v5686 = vsel %vm334, %v5540, -1e+30
    %v5687 = vsel %vm335, %v5542, -1e+30
    %v5688 = vsel %vm336, %v5546, -1e+30
    %v5689 = vsel %vm337, %v5548, -1e+30
    %v5690 = vsel %vm338, %v5552, -1e+30
    %v5691 = vsel %vm339, %v5554, -1e+30
    %v5692 = vsel %vm340, %v5558, -1e+30
    %v5693 = vsel %vm341, %v5560, -1e+30
    %v5694 = vsel %vm342, %v5564, -1e+30
    %v5695 = vsel %vm343, %v5566, -1e+30
    %v5696 = vsel %vm344, %v5570, -1e+30
    %v5697 = vsel %vm345, %v5572, -1e+30
    %v5698 = vsel %vm346, %v5576, -1e+30
    %v5699 = vsel %vm347, %v5578, -1e+30
    %v5700 = vsel %vm348, %v5582, -1e+30
    %v5701 = vsel %vm349, %v5584, -1e+30
    %v5702 = vsel %vm350, %v5588, -1e+30
    %v5703 = vsel %vm351, %v5590, -1e+30
    %v5704 = vsel %vm352, %v5594, -1e+30
    %v5705 = vsel %vm353, %v5596, -1e+30
    %v5706 = vsel %vm354, %v5600, -1e+30
    %v5707 = vsel %vm355, %v5602, -1e+30
    %v5708 = vsel %vm356, %v5606, -1e+30
    %v5709 = vsel %vm357, %v5608, -1e+30
    %v5710 = vsel %vm358, %v5612, -1e+30
    %v5711 = vsel %vm359, %v5614, -1e+30
    %v5712 = vsel %vm360, %v5618, -1e+30
    %v5713 = vsel %vm361, %v5620, -1e+30
    %v5714 = vsel %vm362, %v5624, -1e+30
    %v5715 = vsel %vm363, %v5626, -1e+30
    %v5716 = vsel %vm364, %v5630, -1e+30
    %v5717 = vsel %vm365, %v5632, -1e+30
    %v5718 = vsel %vm366, %v5636, -1e+30
    %v5719 = vsel %vm367, %v5638, -1e+30
    %v5720 = vsel %vm368, %v5642, -1e+30
    %v5721 = vsel %vm369, %v5644, -1e+30
    %v5722 = vsel %vm370, %v5648, -1e+30
    %v5723 = vsel %vm371, %v5650, -1e+30
    %v5724 = vsel %vm372, %v5654, -1e+30
    %v5725 = vsel %vm373, %v5656, -1e+30
    %v5726 = vsel %vm374, %v5660, -1e+30
    %v5727 = vsel %vm375, %v5662, -1e+30
    %v5728 = vmax.f32 %v5664, %v5665
    %5729 = vmax.xlane.f32.xlu0 %v5728
    %v5730 = vpop.xlane.xlu0 %5729
    %v5731 = vmax.f32 %v5666, %v5667
    %5732 = vmax.xlane.f32.xlu0 %v5731
    %v5733 = vpop.xlane.xlu0 %5732
    %v5734 = vmax.f32 %v5668, %v5669
    %5735 = vmax.xlane.f32.xlu0 %v5734
    %v5736 = vpop.xlane.xlu0 %5735
    %v5737 = vmax.f32 %v5670, %v5671
    %5738 = vmax.xlane.f32.xlu0 %v5737
    %v5739 = vpop.xlane.xlu0 %5738
    %v5740 = vmax.f32 %v5672, %v5673
    %5741 = vmax.xlane.f32.xlu0 %v5740
    %v5742 = vpop.xlane.xlu0 %5741
    %v5743 = vmax.f32 %v5674, %v5675
    %5744 = vmax.xlane.f32.xlu0 %v5743
    %v5745 = vpop.xlane.xlu0 %5744
    %v5746 = vmax.f32 %v5676, %v5677
    %5747 = vmax.xlane.f32.xlu0 %v5746
    %v5748 = vpop.xlane.xlu0 %5747
    %v5749 = vmax.f32 %v5678, %v5679
    %5750 = vmax.xlane.f32.xlu0 %v5749
    %v5751 = vpop.xlane.xlu0 %5750
    %v5752 = vmax.f32 %v5680, %v5681
    %5753 = vmax.xlane.f32.xlu0 %v5752
    %v5754 = vpop.xlane.xlu0 %5753
    %v5755 = vmax.f32 %v5682, %v5683
    %5756 = vmax.xlane.f32.xlu0 %v5755
    %v5757 = vpop.xlane.xlu0 %5756
    %v5758 = vmax.f32 %v5684, %v5685
    %5759 = vmax.xlane.f32.xlu0 %v5758
    %v5760 = vpop.xlane.xlu0 %5759
    %v5761 = vmax.f32 %v5686, %v5687
    %5762 = vmax.xlane.f32.xlu0 %v5761
    %v5763 = vpop.xlane.xlu0 %5762
    %v5764 = vmax.f32 %v5688, %v5689
    %5765 = vmax.xlane.f32.xlu0 %v5764
    %v5766 = vpop.xlane.xlu0 %5765
    %v5767 = vmax.f32 %v5690, %v5691
    %5768 = vmax.xlane.f32.xlu0 %v5767
    %v5769 = vpop.xlane.xlu0 %5768
    %v5770 = vmax.f32 %v5692, %v5693
    %5771 = vmax.xlane.f32.xlu0 %v5770
    %v5772 = vpop.xlane.xlu0 %5771
    %v5773 = vmax.f32 %v5694, %v5695
    %5774 = vmax.xlane.f32.xlu0 %v5773
    %v5775 = vpop.xlane.xlu0 %5774
    %v5776 = vmax.f32 %v5696, %v5697
    %5777 = vmax.xlane.f32.xlu0 %v5776
    %v5778 = vpop.xlane.xlu0 %5777
    %v5779 = vmax.f32 %v5698, %v5699
    %5780 = vmax.xlane.f32.xlu0 %v5779
    %v5781 = vpop.xlane.xlu0 %5780
    %v5782 = vmax.f32 %v5700, %v5701
    %5783 = vmax.xlane.f32.xlu0 %v5782
    %v5784 = vpop.xlane.xlu0 %5783
    %v5785 = vmax.f32 %v5702, %v5703
    %5786 = vmax.xlane.f32.xlu0 %v5785
    %v5787 = vpop.xlane.xlu0 %5786
    %v5788 = vmax.f32 %v5704, %v5705
    %5789 = vmax.xlane.f32.xlu0 %v5788
    %v5790 = vpop.xlane.xlu0 %5789
    %v5791 = vmax.f32 %v5706, %v5707
    %5792 = vmax.xlane.f32.xlu0 %v5791
    %v5793 = vpop.xlane.xlu0 %5792
    %v5794 = vmax.f32 %v5708, %v5709
    %5795 = vmax.xlane.f32.xlu0 %v5794
    %v5796 = vpop.xlane.xlu0 %5795
    %v5797 = vmax.f32 %v5710, %v5711
    %5798 = vmax.xlane.f32.xlu0 %v5797
    %v5799 = vpop.xlane.xlu0 %5798
    %v5800 = vmax.f32 %v5712, %v5713
    %5801 = vmax.xlane.f32.xlu0 %v5800
    %v5802 = vpop.xlane.xlu0 %5801
    %v5803 = vmax.f32 %v5714, %v5715
    %5804 = vmax.xlane.f32.xlu0 %v5803
    %v5805 = vpop.xlane.xlu0 %5804
    %v5806 = vmax.f32 %v5716, %v5717
    %5807 = vmax.xlane.f32.xlu0 %v5806
    %v5808 = vpop.xlane.xlu0 %5807
    %v5809 = vmax.f32 %v5718, %v5719
    %5810 = vmax.xlane.f32.xlu0 %v5809
    %v5811 = vpop.xlane.xlu0 %5810
    %v5812 = vmax.f32 %v5720, %v5721
    %5813 = vmax.xlane.f32.xlu0 %v5812
    %v5814 = vpop.xlane.xlu0 %5813
    %v5815 = vmax.f32 %v5722, %v5723
    %5816 = vmax.xlane.f32.xlu0 %v5815
    %v5817 = vpop.xlane.xlu0 %5816
    %v5818 = vmax.f32 %v5724, %v5725
    %5819 = vmax.xlane.f32.xlu0 %v5818
    %v5820 = vpop.xlane.xlu0 %5819
    %v5821 = vmax.f32 %v5726, %v5727
    %5822 = vmax.xlane.f32.xlu0 %v5821
    %v5823 = vpop.xlane.xlu0 %5822
    %v5824 = vsub.f32 %v5664, %v5730
    %v5825 = vsub.f32 %v5665, %v5730
    %v5826 = vsub.f32 %v5666, %v5733
    %v5827 = vsub.f32 %v5667, %v5733
    %v5828 = vsub.f32 %v5668, %v5736
    %v5829 = vsub.f32 %v5669, %v5736
    %v5830 = vsub.f32 %v5670, %v5739
    %v5831 = vsub.f32 %v5671, %v5739
    %v5832 = vsub.f32 %v5672, %v5742
    %v5833 = vsub.f32 %v5673, %v5742
    %v5834 = vsub.f32 %v5674, %v5745
    %v5835 = vsub.f32 %v5675, %v5745
    %v5836 = vsub.f32 %v5676, %v5748
    %v5837 = vsub.f32 %v5677, %v5748
    %v5838 = vsub.f32 %v5678, %v5751
    %v5839 = vsub.f32 %v5679, %v5751
    %v5840 = vsub.f32 %v5680, %v5754
    %v5841 = vsub.f32 %v5681, %v5754
    %v5842 = vsub.f32 %v5682, %v5757
    %v5843 = vsub.f32 %v5683, %v5757
    %v5844 = vsub.f32 %v5684, %v5760
    %v5845 = vsub.f32 %v5685, %v5760
    %v5846 = vsub.f32 %v5686, %v5763
    %v5847 = vsub.f32 %v5687, %v5763
    %v5848 = vsub.f32 %v5688, %v5766
    %v5849 = vsub.f32 %v5689, %v5766
    %v5850 = vsub.f32 %v5690, %v5769
    %v5851 = vsub.f32 %v5691, %v5769
    %v5852 = vsub.f32 %v5692, %v5772
    %v5853 = vsub.f32 %v5693, %v5772
    %v5854 = vsub.f32 %v5694, %v5775
    %v5855 = vsub.f32 %v5695, %v5775
    %v5856 = vsub.f32 %v5696, %v5778
    %v5857 = vsub.f32 %v5697, %v5778
    %v5858 = vsub.f32 %v5698, %v5781
    %v5859 = vsub.f32 %v5699, %v5781
    %v5860 = vsub.f32 %v5700, %v5784
    %v5861 = vsub.f32 %v5701, %v5784
    %v5862 = vsub.f32 %v5702, %v5787
    %v5863 = vsub.f32 %v5703, %v5787
    %v5864 = vsub.f32 %v5704, %v5790
    %v5865 = vsub.f32 %v5705, %v5790
    %v5866 = vsub.f32 %v5706, %v5793
    %v5867 = vsub.f32 %v5707, %v5793
    %v5868 = vsub.f32 %v5708, %v5796
    %v5869 = vsub.f32 %v5709, %v5796
    %v5870 = vsub.f32 %v5710, %v5799
    %v5871 = vsub.f32 %v5711, %v5799
    %v5872 = vsub.f32 %v5712, %v5802
    %v5873 = vsub.f32 %v5713, %v5802
    %v5874 = vsub.f32 %v5714, %v5805
    %v5875 = vsub.f32 %v5715, %v5805
    %v5876 = vsub.f32 %v5716, %v5808
    %v5877 = vsub.f32 %v5717, %v5808
    %v5878 = vsub.f32 %v5718, %v5811
    %v5879 = vsub.f32 %v5719, %v5811
    %v5880 = vsub.f32 %v5720, %v5814
    %v5881 = vsub.f32 %v5721, %v5814
    %v5882 = vsub.f32 %v5722, %v5817
    %v5883 = vsub.f32 %v5723, %v5817
    %v5884 = vsub.f32 %v5724, %v5820
    %v5885 = vsub.f32 %v5725, %v5820
    %v5886 = vsub.f32 %v5726, %v5823
    %v5887 = vsub.f32 %v5727, %v5823
    %v5888 = vmul.f32 %v5824, 1.442695
    %v5889 = vpow.pop %v5888
    %v5890 = vmul.f32 %v5825, 1.442695
    %v5891 = vpow.pop %v5890
    %v5892 = vmul.f32 %v5826, 1.442695
    %v5893 = vpow.pop %v5892
    %v5894 = vmul.f32 %v5827, 1.442695
    %v5895 = vpow.pop %v5894
    %v5896 = vmul.f32 %v5828, 1.442695
    %v5897 = vpow.pop %v5896
    %v5898 = vmul.f32 %v5829, 1.442695
    %v5899 = vpow.pop %v5898
    %v5900 = vmul.f32 %v5830, 1.442695
    %v5901 = vpow.pop %v5900
    %v5902 = vmul.f32 %v5831, 1.442695
    %v5903 = vpow.pop %v5902
    %v5904 = vmul.f32 %v5832, 1.442695
    %v5905 = vpow.pop %v5904
    %v5906 = vmul.f32 %v5833, 1.442695
    %v5907 = vpow.pop %v5906
    %v5908 = vmul.f32 %v5834, 1.442695
    %v5909 = vpow.pop %v5908
    %v5910 = vmul.f32 %v5835, 1.442695
    %v5911 = vpow.pop %v5910
    %v5912 = vmul.f32 %v5836, 1.442695
    %v5913 = vpow.pop %v5912
    %v5914 = vmul.f32 %v5837, 1.442695
    %v5915 = vpow.pop %v5914
    %v5916 = vmul.f32 %v5838, 1.442695
    %v5917 = vpow.pop %v5916
    %v5918 = vmul.f32 %v5839, 1.442695
    %v5919 = vpow.pop %v5918
    %v5920 = vmul.f32 %v5840, 1.442695
    %v5921 = vpow.pop %v5920
    %v5922 = vmul.f32 %v5841, 1.442695
    %v5923 = vpow.pop %v5922
    %v5924 = vmul.f32 %v5842, 1.442695
    %v5925 = vpow.pop %v5924
    %v5926 = vmul.f32 %v5843, 1.442695
    %v5927 = vpow.pop %v5926
    %v5928 = vmul.f32 %v5844, 1.442695
    %v5929 = vpow.pop %v5928
    %v5930 = vmul.f32 %v5845, 1.442695
    %v5931 = vpow.pop %v5930
    %v5932 = vmul.f32 %v5846, 1.442695
    %v5933 = vpow.pop %v5932
    %v5934 = vmul.f32 %v5847, 1.442695
    %v5935 = vpow.pop %v5934
    %v5936 = vmul.f32 %v5848, 1.442695
    %v5937 = vpow.pop %v5936
    %v5938 = vmul.f32 %v5849, 1.442695
    %v5939 = vpow.pop %v5938
    %v5940 = vmul.f32 %v5850, 1.442695
    %v5941 = vpow.pop %v5940
    %v5942 = vmul.f32 %v5851, 1.442695
    %v5943 = vpow.pop %v5942
    %v5944 = vmul.f32 %v5852, 1.442695
    %v5945 = vpow.pop %v5944
    %v5946 = vmul.f32 %v5853, 1.442695
    %v5947 = vpow.pop %v5946
    %v5948 = vmul.f32 %v5854, 1.442695
    %v5949 = vpow.pop %v5948
    %v5950 = vmul.f32 %v5855, 1.442695
    %v5951 = vpow.pop %v5950
    %v5952 = vmul.f32 %v5856, 1.442695
    %v5953 = vpow.pop %v5952
    %v5954 = vmul.f32 %v5857, 1.442695
    %v5955 = vpow.pop %v5954
    %v5956 = vmul.f32 %v5858, 1.442695
    %v5957 = vpow.pop %v5956
    %v5958 = vmul.f32 %v5859, 1.442695
    %v5959 = vpow.pop %v5958
    %v5960 = vmul.f32 %v5860, 1.442695
    %v5961 = vpow.pop %v5960
    %v5962 = vmul.f32 %v5861, 1.442695
    %v5963 = vpow.pop %v5962
    %v5964 = vmul.f32 %v5862, 1.442695
    %v5965 = vpow.pop %v5964
    %v5966 = vmul.f32 %v5863, 1.442695
    %v5967 = vpow.pop %v5966
    %v5968 = vmul.f32 %v5864, 1.442695
    %v5969 = vpow.pop %v5968
    %v5970 = vmul.f32 %v5865, 1.442695
    %v5971 = vpow.pop %v5970
    %v5972 = vmul.f32 %v5866, 1.442695
    %v5973 = vpow.pop %v5972
    %v5974 = vmul.f32 %v5867, 1.442695
    %v5975 = vpow.pop %v5974
    %v5976 = vmul.f32 %v5868, 1.442695
    %v5977 = vpow.pop %v5976
    %v5978 = vmul.f32 %v5869, 1.442695
    %v5979 = vpow.pop %v5978
    %v5980 = vmul.f32 %v5870, 1.442695
    %v5981 = vpow.pop %v5980
    %v5982 = vmul.f32 %v5871, 1.442695
    %v5983 = vpow.pop %v5982
    %v5984 = vmul.f32 %v5872, 1.442695
    %v5985 = vpow.pop %v5984
    %v5986 = vmul.f32 %v5873, 1.442695
    %v5987 = vpow.pop %v5986
    %v5988 = vmul.f32 %v5874, 1.442695
    %v5989 = vpow.pop %v5988
    %v5990 = vmul.f32 %v5875, 1.442695
    %v5991 = vpow.pop %v5990
    %v5992 = vmul.f32 %v5876, 1.442695
    %v5993 = vpow.pop %v5992
    %v5994 = vmul.f32 %v5877, 1.442695
    %v5995 = vpow.pop %v5994
    %v5996 = vmul.f32 %v5878, 1.442695
    %v5997 = vpow.pop %v5996
    %v5998 = vmul.f32 %v5879, 1.442695
    %v5999 = vpow.pop %v5998
    %v6000 = vmul.f32 %v5880, 1.442695
    %v6001 = vpow.pop %v6000
    %v6002 = vmul.f32 %v5881, 1.442695
    %v6003 = vpow.pop %v6002
    %v6004 = vmul.f32 %v5882, 1.442695
    %v6005 = vpow.pop %v6004
    %v6006 = vmul.f32 %v5883, 1.442695
    %v6007 = vpow.pop %v6006
    %v6008 = vmul.f32 %v5884, 1.442695
    %v6009 = vpow.pop %v6008
    %v6010 = vmul.f32 %v5885, 1.442695
    %v6011 = vpow.pop %v6010
    %v6012 = vmul.f32 %v5886, 1.442695
    %v6013 = vpow.pop %v6012
    %v6014 = vmul.f32 %v5887, 1.442695
    %v6015 = vpow.pop %v6014
    %v6016 = vadd.f32 %v5889, %v5891
    %6017 = vadd.xlane.f32.xlu0 %v6016
    %v6018 = vpop.xlane.xlu0 %6017
    %v6019 = vadd.f32 %v5893, %v5895
    %6020 = vadd.xlane.f32.xlu0 %v6019
    %v6021 = vpop.xlane.xlu0 %6020
    %v6022 = vadd.f32 %v5897, %v5899
    %6023 = vadd.xlane.f32.xlu0 %v6022
    %v6024 = vpop.xlane.xlu0 %6023
    %v6025 = vadd.f32 %v5901, %v5903
    %6026 = vadd.xlane.f32.xlu0 %v6025
    %v6027 = vpop.xlane.xlu0 %6026
    %v6028 = vadd.f32 %v5905, %v5907
    %6029 = vadd.xlane.f32.xlu0 %v6028
    %v6030 = vpop.xlane.xlu0 %6029
    %v6031 = vadd.f32 %v5909, %v5911
    %6032 = vadd.xlane.f32.xlu0 %v6031
    %v6033 = vpop.xlane.xlu0 %6032
    %v6034 = vadd.f32 %v5913, %v5915
    %6035 = vadd.xlane.f32.xlu0 %v6034
    %v6036 = vpop.xlane.xlu0 %6035
    %v6037 = vadd.f32 %v5917, %v5919
    %6038 = vadd.xlane.f32.xlu0 %v6037
    %v6039 = vpop.xlane.xlu0 %6038
    %v6040 = vadd.f32 %v5921, %v5923
    %6041 = vadd.xlane.f32.xlu0 %v6040
    %v6042 = vpop.xlane.xlu0 %6041
    %v6043 = vadd.f32 %v5925, %v5927
    %6044 = vadd.xlane.f32.xlu0 %v6043
    %v6045 = vpop.xlane.xlu0 %6044
    %v6046 = vadd.f32 %v5929, %v5931
    %6047 = vadd.xlane.f32.xlu0 %v6046
    %v6048 = vpop.xlane.xlu0 %6047
    %v6049 = vadd.f32 %v5933, %v5935
    %6050 = vadd.xlane.f32.xlu0 %v6049
    %v6051 = vpop.xlane.xlu0 %6050
    %v6052 = vadd.f32 %v5937, %v5939
    %6053 = vadd.xlane.f32.xlu0 %v6052
    %v6054 = vpop.xlane.xlu0 %6053
    %v6055 = vadd.f32 %v5941, %v5943
    %6056 = vadd.xlane.f32.xlu0 %v6055
    %v6057 = vpop.xlane.xlu0 %6056
    %v6058 = vadd.f32 %v5945, %v5947
    %6059 = vadd.xlane.f32.xlu0 %v6058
    %v6060 = vpop.xlane.xlu0 %6059
    %v6061 = vadd.f32 %v5949, %v5951
    %6062 = vadd.xlane.f32.xlu0 %v6061
    %v6063 = vpop.xlane.xlu0 %6062
    %v6064 = vadd.f32 %v5953, %v5955
    %6065 = vadd.xlane.f32.xlu0 %v6064
    %v6066 = vpop.xlane.xlu0 %6065
    %v6067 = vadd.f32 %v5957, %v5959
    %6068 = vadd.xlane.f32.xlu0 %v6067
    %v6069 = vpop.xlane.xlu0 %6068
    %v6070 = vadd.f32 %v5961, %v5963
    %6071 = vadd.xlane.f32.xlu0 %v6070
    %v6072 = vpop.xlane.xlu0 %6071
    %v6073 = vadd.f32 %v5965, %v5967
    %6074 = vadd.xlane.f32.xlu0 %v6073
    %v6075 = vpop.xlane.xlu0 %6074
    %v6076 = vadd.f32 %v5969, %v5971
    %6077 = vadd.xlane.f32.xlu0 %v6076
    %v6078 = vpop.xlane.xlu0 %6077
    %v6079 = vadd.f32 %v5973, %v5975
    %6080 = vadd.xlane.f32.xlu0 %v6079
    %v6081 = vpop.xlane.xlu0 %6080
    %v6082 = vadd.f32 %v5977, %v5979
    %6083 = vadd.xlane.f32.xlu0 %v6082
    %v6084 = vpop.xlane.xlu0 %6083
    %v6085 = vadd.f32 %v5981, %v5983
    %6086 = vadd.xlane.f32.xlu0 %v6085
    %v6087 = vpop.xlane.xlu0 %6086
    %v6088 = vadd.f32 %v5985, %v5987
    %6089 = vadd.xlane.f32.xlu0 %v6088
    %v6090 = vpop.xlane.xlu0 %6089
    %v6091 = vadd.f32 %v5989, %v5991
    %6092 = vadd.xlane.f32.xlu0 %v6091
    %v6093 = vpop.xlane.xlu0 %6092
    %v6094 = vadd.f32 %v5993, %v5995
    %6095 = vadd.xlane.f32.xlu0 %v6094
    %v6096 = vpop.xlane.xlu0 %6095
    %v6097 = vadd.f32 %v5997, %v5999
    %6098 = vadd.xlane.f32.xlu0 %v6097
    %v6099 = vpop.xlane.xlu0 %6098
    %v6100 = vadd.f32 %v6001, %v6003
    %6101 = vadd.xlane.f32.xlu0 %v6100
    %v6102 = vpop.xlane.xlu0 %6101
    %v6103 = vadd.f32 %v6005, %v6007
    %6104 = vadd.xlane.f32.xlu0 %v6103
    %v6105 = vpop.xlane.xlu0 %6104
    %v6106 = vadd.f32 %v6009, %v6011
    %6107 = vadd.xlane.f32.xlu0 %v6106
    %v6108 = vpop.xlane.xlu0 %6107
    %v6109 = vadd.f32 %v6013, %v6015
    %6110 = vadd.xlane.f32.xlu0 %v6109
    %v6111 = vpop.xlane.xlu0 %6110
    %v6112 = vrcp.pop %v6018
    %v6113 = vrcp.pop %v6021
    %v6114 = vrcp.pop %v6024
    %v6115 = vrcp.pop %v6027
    %v6116 = vrcp.pop %v6030
    %v6117 = vrcp.pop %v6033
    %v6118 = vrcp.pop %v6036
    %v6119 = vrcp.pop %v6039
    %v6120 = vrcp.pop %v6042
    %v6121 = vrcp.pop %v6045
    %v6122 = vrcp.pop %v6048
    %v6123 = vrcp.pop %v6051
    %v6124 = vrcp.pop %v6054
    %v6125 = vrcp.pop %v6057
    %v6126 = vrcp.pop %v6060
    %v6127 = vrcp.pop %v6063
    %v6128 = vrcp.pop %v6066
    %v6129 = vrcp.pop %v6069
    %v6130 = vrcp.pop %v6072
    %v6131 = vrcp.pop %v6075
    %v6132 = vrcp.pop %v6078
    %v6133 = vrcp.pop %v6081
    %v6134 = vrcp.pop %v6084
    %v6135 = vrcp.pop %v6087
    %v6136 = vrcp.pop %v6090
    %v6137 = vrcp.pop %v6093
    %v6138 = vrcp.pop %v6096
    %v6139 = vrcp.pop %v6099
    %v6140 = vrcp.pop %v6102
    %v6141 = vrcp.pop %v6105
    %v6142 = vrcp.pop %v6108
    %v6143 = vrcp.pop %v6111
    %v6144 = vmul.f32 %v5889, %v6112
    %v6145 = vmul.f32 %v5891, %v6112
    %v6146 = vmul.f32 %v5893, %v6113
    %v6147 = vmul.f32 %v5895, %v6113
    %v6148 = vmul.f32 %v5897, %v6114
    %v6149 = vmul.f32 %v5899, %v6114
    %v6150 = vmul.f32 %v5901, %v6115
    %v6151 = vmul.f32 %v5903, %v6115
    %v6152 = vmul.f32 %v5905, %v6116
    %v6153 = vmul.f32 %v5907, %v6116
    %v6154 = vmul.f32 %v5909, %v6117
    %v6155 = vmul.f32 %v5911, %v6117
    %v6156 = vmul.f32 %v5913, %v6118
    %v6157 = vmul.f32 %v5915, %v6118
    %v6158 = vmul.f32 %v5917, %v6119
    %v6159 = vmul.f32 %v5919, %v6119
    %v6160 = vmul.f32 %v5921, %v6120
    %v6161 = vmul.f32 %v5923, %v6120
    %v6162 = vmul.f32 %v5925, %v6121
    %v6163 = vmul.f32 %v5927, %v6121
    %v6164 = vmul.f32 %v5929, %v6122
    %v6165 = vmul.f32 %v5931, %v6122
    %v6166 = vmul.f32 %v5933, %v6123
    %v6167 = vmul.f32 %v5935, %v6123
    %v6168 = vmul.f32 %v5937, %v6124
    %v6169 = vmul.f32 %v5939, %v6124
    %v6170 = vmul.f32 %v5941, %v6125
    %v6171 = vmul.f32 %v5943, %v6125
    %v6172 = vmul.f32 %v5945, %v6126
    %v6173 = vmul.f32 %v5947, %v6126
    %v6174 = vmul.f32 %v5949, %v6127
    %v6175 = vmul.f32 %v5951, %v6127
    %v6176 = vmul.f32 %v5953, %v6128
    %v6177 = vmul.f32 %v5955, %v6128
    %v6178 = vmul.f32 %v5957, %v6129
    %v6179 = vmul.f32 %v5959, %v6129
    %v6180 = vmul.f32 %v5961, %v6130
    %v6181 = vmul.f32 %v5963, %v6130
    %v6182 = vmul.f32 %v5965, %v6131
    %v6183 = vmul.f32 %v5967, %v6131
    %v6184 = vmul.f32 %v5969, %v6132
    %v6185 = vmul.f32 %v5971, %v6132
    %v6186 = vmul.f32 %v5973, %v6133
    %v6187 = vmul.f32 %v5975, %v6133
    %v6188 = vmul.f32 %v5977, %v6134
    %v6189 = vmul.f32 %v5979, %v6134
    %v6190 = vmul.f32 %v5981, %v6135
    %v6191 = vmul.f32 %v5983, %v6135
    %v6192 = vmul.f32 %v5985, %v6136
    %v6193 = vmul.f32 %v5987, %v6136
    %v6194 = vmul.f32 %v5989, %v6137
    %v6195 = vmul.f32 %v5991, %v6137
    %v6196 = vmul.f32 %v5993, %v6138
    %v6197 = vmul.f32 %v5995, %v6138
    %v6198 = vmul.f32 %v5997, %v6139
    %v6199 = vmul.f32 %v5999, %v6139
    %v6200 = vmul.f32 %v6001, %v6140
    %v6201 = vmul.f32 %v6003, %v6140
    %v6202 = vmul.f32 %v6005, %v6141
    %v6203 = vmul.f32 %v6007, %v6141
    %v6204 = vmul.f32 %v6009, %v6142
    %v6205 = vmul.f32 %v6011, %v6142
    %v6206 = vmul.f32 %v6013, %v6143
    %v6207 = vmul.f32 %v6015, %v6143
    %6208 = vmatprep.subr.mxu0 0.0
    %6209 = vmatpush1.msra.mxu0 %v5057
    %6210 = vmatprep.subr.mxu0 0.0
    %6211 = vmatpush1.msra.mxu0 %v5063
    %6212 = vmatprep.subr.mxu0 0.0
    %6213 = vmatpush1.msra.mxu0 %v5069
    %6214 = vmatprep.subr.mxu0 0.0
    %6215 = vmatpush1.msra.mxu0 %v5075
    %6216 = vmatprep.subr.mxu0 0.0
    %6217 = vmatpush1.msra.mxu0 %v5204
    %6218 = vmatprep.subr.mxu0 0.0
    %6219 = vmatpush1.msra.mxu0 %v5206
    %6220 = vmatprep.subr.mxu0 0.0
    %6221 = vmatpush1.msra.mxu0 %v5208
    %6222 = vmatprep.subr.mxu0 0.0
    %6223 = vmatpush1.msra.mxu0 %v5210
    %6224 = vmatprep.subr.mxu0 0.0
    %6225 = vmatpush1.msra.mxu0 %v5216
    %6226 = vmatprep.subr.mxu0 0.0
    %6227 = vmatpush1.msra.mxu0 %v5218
    %6228 = vmatprep.subr.mxu0 0.0
    %6229 = vmatpush1.msra.mxu0 %v5220
    %6230 = vmatprep.subr.mxu0 0.0
    %6231 = vmatpush1.msra.mxu0 %v5222
    %6232 = vmatprep.subr.mxu0 0.0
    %6233 = vmatpush1.msra.mxu0 %v5228
    %6234 = vmatprep.subr.mxu0 0.0
    %6235 = vmatpush1.msra.mxu0 %v5230
    %6236 = vmatprep.subr.mxu0 0.0
    %6237 = vmatpush1.msra.mxu0 %v5232
    %6238 = vmatprep.subr.mxu0 0.0
    %6239 = vmatpush1.msra.mxu0 %v5234
    %6240 = vmatprep.subr.mxu0 0.0
    %6241 = vmatpush1.msra.mxu0 %v5059
    %6242 = vmatprep.subr.mxu0 0.0
    %6243 = vmatpush1.msra.mxu0 %v5065
    %6244 = vmatprep.subr.mxu0 0.0
    %6245 = vmatpush1.msra.mxu0 %v5071
    %6246 = vmatprep.subr.mxu0 0.0
    %6247 = vmatpush1.msra.mxu0 %v5077
    %6248 = vmatprep.subr.mxu0 0.0
    %6249 = vmatpush1.msra.mxu0 %v5244
    %6250 = vmatprep.subr.mxu0 0.0
    %6251 = vmatpush1.msra.mxu0 %v5246
    %6252 = vmatprep.subr.mxu0 0.0
    %6253 = vmatpush1.msra.mxu0 %v5248
    %6254 = vmatprep.subr.mxu0 0.0
    %6255 = vmatpush1.msra.mxu0 %v5250
    %6256 = vmatprep.subr.mxu0 0.0
    %6257 = vmatpush1.msra.mxu0 %v5256
    %6258 = vmatprep.subr.mxu0 0.0
    %6259 = vmatpush1.msra.mxu0 %v5258
    %6260 = vmatprep.subr.mxu0 0.0
    %6261 = vmatpush1.msra.mxu0 %v5260
    %6262 = vmatprep.subr.mxu0 0.0
    %6263 = vmatpush1.msra.mxu0 %v5262
    %6264 = vmatprep.subr.mxu0 0.0
    %6265 = vmatpush1.msra.mxu0 %v5268
    %6266 = vmatprep.subr.mxu0 0.0
    %6267 = vmatpush1.msra.mxu0 %v5270
    %6268 = vmatprep.subr.mxu0 0.0
    %6269 = vmatpush1.msra.mxu0 %v5272
    %6270 = vmatprep.subr.mxu0 0.0
    %6271 = vmatpush1.msra.mxu0 %v5274
    %6272 = vmatprep.mubr.f32.mxu0 %v6145
    %6273 = vmatmul.mubr.f32.gmra.mrb[0].mxu0 %v6144
    %v6274 = vpop.f32.mrb[0].mxu0
    %v6275 = vadd.f32 0.0, %v6274
    %v6276 = vpop.f32.mrb[0].mxu0
    %6277 = vmatprep.mubr.f32.mxu0 %v6147
    %6278 = vmatmul.mubr.f32.gmra.mrb[0].mxu0 %v6146
    %v6279 = vpop.f32.mrb[0].mxu0
    %v6280 = vadd.f32 0.0, %v6279
    %v6281 = vpop.f32.mrb[0].mxu0
    %6282 = vmatprep.mubr.f32.mxu0 %v6149
    %6283 = vmatmul.mubr.f32.gmra.mrb[0].mxu0 %v6148
    %v6284 = vpop.f32.mrb[0].mxu0
    %v6285 = vadd.f32 0.0, %v6284
    %v6286 = vpop.f32.mrb[0].mxu0
    %6287 = vmatprep.mubr.f32.mxu0 %v6151
    %6288 = vmatmul.mubr.f32.gmra.mrb[0].mxu0 %v6150
    %v6289 = vpop.f32.mrb[0].mxu0
    %v6290 = vadd.f32 0.0, %v6289
    %v6291 = vpop.f32.mrb[0].mxu0
    %6292 = vmatprep.mubr.f32.mxu0 %v6153
    %6293 = vmatmul.mubr.f32.gmra.mrb[0].mxu0 %v6152
    %v6294 = vpop.f32.mrb[0].mxu0
    %v6295 = vadd.f32 0.0, %v6294
    %v6296 = vpop.f32.mrb[0].mxu0
    %6297 = vmatprep.mubr.f32.mxu0 %v6155
    %6298 = vmatmul.mubr.f32.gmra.mrb[0].mxu0 %v6154
    %v6299 = vpop.f32.mrb[0].mxu0
    %v6300 = vadd.f32 0.0, %v6299
    %v6301 = vpop.f32.mrb[0].mxu0
    %6302 = vmatprep.mubr.f32.mxu0 %v6157
    %6303 = vmatmul.mubr.f32.gmra.mrb[0].mxu0 %v6156
    %v6304 = vpop.f32.mrb[0].mxu0
    %v6305 = vadd.f32 0.0, %v6304
    %v6306 = vpop.f32.mrb[0].mxu0
    %6307 = vmatprep.mubr.f32.mxu0 %v6159
    %6308 = vmatmul.mubr.f32.gmra.mrb[0].mxu0 %v6158
    %v6309 = vpop.f32.mrb[0].mxu0
    %v6310 = vadd.f32 0.0, %v6309
    %v6311 = vpop.f32.mrb[0].mxu0
    %6312 = vmatprep.mubr.f32.mxu0 %v6161
    %6313 = vmatmul.mubr.f32.gmra.mrb[0].mxu0 %v6160
    %v6314 = vpop.f32.mrb[0].mxu0
    %v6315 = vadd.f32 0.0, %v6314
    %v6316 = vpop.f32.mrb[0].mxu0
    %6317 = vmatprep.mubr.f32.mxu0 %v6163
    %6318 = vmatmul.mubr.f32.gmra.mrb[0].mxu0 %v6162
    %v6319 = vpop.f32.mrb[0].mxu0
    %v6320 = vadd.f32 0.0, %v6319
    %v6321 = vpop.f32.mrb[0].mxu0
    %6322 = vmatprep.mubr.f32.mxu0 %v6165
    %6323 = vmatmul.mubr.f32.gmra.mrb[0].mxu0 %v6164
    %v6324 = vpop.f32.mrb[0].mxu0
    %v6325 = vadd.f32 0.0, %v6324
    %v6326 = vpop.f32.mrb[0].mxu0
    %6327 = vmatprep.mubr.f32.mxu0 %v6167
    %6328 = vmatmul.mubr.f32.gmra.mrb[0].mxu0 %v6166
    %v6329 = vpop.f32.mrb[0].mxu0
    %v6330 = vadd.f32 0.0, %v6329
    %v6331 = vpop.f32.mrb[0].mxu0
    %6332 = vmatprep.mubr.f32.mxu0 %v6169
    %6333 = vmatmul.mubr.f32.gmra.mrb[0].mxu0 %v6168
    %v6334 = vpop.f32.mrb[0].mxu0
    %v6335 = vadd.f32 0.0, %v6334
    %v6336 = vpop.f32.mrb[0].mxu0
    %6337 = vmatprep.mubr.f32.mxu0 %v6171
    %6338 = vmatmul.mubr.f32.gmra.mrb[0].mxu0 %v6170
    %v6339 = vpop.f32.mrb[0].mxu0
    %v6340 = vadd.f32 0.0, %v6339
    %v6341 = vpop.f32.mrb[0].mxu0
    %6342 = vmatprep.mubr.f32.mxu0 %v6173
    %6343 = vmatmul.mubr.f32.gmra.mrb[0].mxu0 %v6172
    %v6344 = vpop.f32.mrb[0].mxu0
    %v6345 = vadd.f32 0.0, %v6344
    %v6346 = vpop.f32.mrb[0].mxu0
    %6347 = vmatprep.mubr.f32.mxu0 %v6175
    %6348 = vmatmul.mubr.f32.gmra.mrb[0].mxu0 %v6174
    %v6349 = vpop.f32.mrb[0].mxu0
    %v6350 = vadd.f32 0.0, %v6349
    %v6351 = vpop.f32.mrb[0].mxu0
    %6352 = vmatprep.mubr.f32.mxu0 %v6177
    %6353 = vmatmul.mubr.f32.gmra.mrb[0].mxu0 %v6176
    %v6354 = vpop.f32.mrb[0].mxu0
    %v6355 = vadd.f32 0.0, %v6354
    %v6356 = vpop.f32.mrb[0].mxu0
    %6357 = vmatprep.mubr.f32.mxu0 %v6179
    %6358 = vmatmul.mubr.f32.gmra.mrb[0].mxu0 %v6178
    %v6359 = vpop.f32.mrb[0].mxu0
    %v6360 = vadd.f32 0.0, %v6359
    %v6361 = vpop.f32.mrb[0].mxu0
    %6362 = vmatprep.mubr.f32.mxu0 %v6181
    %6363 = vmatmul.mubr.f32.gmra.mrb[0].mxu0 %v6180
    %v6364 = vpop.f32.mrb[0].mxu0
    %v6365 = vadd.f32 0.0, %v6364
    %v6366 = vpop.f32.mrb[0].mxu0
    %6367 = vmatprep.mubr.f32.mxu0 %v6183
    %6368 = vmatmul.mubr.f32.gmra.mrb[0].mxu0 %v6182
    %v6369 = vpop.f32.mrb[0].mxu0
    %v6370 = vadd.f32 0.0, %v6369
    %v6371 = vpop.f32.mrb[0].mxu0
    %6372 = vmatprep.mubr.f32.mxu0 %v6185
    %6373 = vmatmul.mubr.f32.gmra.mrb[0].mxu0 %v6184
    %v6374 = vpop.f32.mrb[0].mxu0
    %v6375 = vadd.f32 0.0, %v6374
    %v6376 = vpop.f32.mrb[0].mxu0
    %6377 = vmatprep.mubr.f32.mxu0 %v6187
    %6378 = vmatmul.mubr.f32.gmra.mrb[0].mxu0 %v6186
    %v6379 = vpop.f32.mrb[0].mxu0
    %v6380 = vadd.f32 0.0, %v6379
    %v6381 = vpop.f32.mrb[0].mxu0
    %6382 = vmatprep.mubr.f32.mxu0 %v6189
    %6383 = vmatmul.mubr.f32.gmra.mrb[0].mxu0 %v6188
    %v6384 = vpop.f32.mrb[0].mxu0
    %v6385 = vadd.f32 0.0, %v6384
    %v6386 = vpop.f32.mrb[0].mxu0
    %6387 = vmatprep.mubr.f32.mxu0 %v6191
    %6388 = vmatmul.mubr.f32.gmra.mrb[0].mxu0 %v6190
    %v6389 = vpop.f32.mrb[0].mxu0
    %v6390 = vadd.f32 0.0, %v6389
    %v6391 = vpop.f32.mrb[0].mxu0
    %6392 = vmatprep.mubr.f32.mxu0 %v6193
    %6393 = vmatmul.mubr.f32.gmra.mrb[0].mxu0 %v6192
    %v6394 = vpop.f32.mrb[0].mxu0
    %v6395 = vadd.f32 0.0, %v6394
    %v6396 = vpop.f32.mrb[0].mxu0
    %6397 = vmatprep.mubr.f32.mxu0 %v6195
    %6398 = vmatmul.mubr.f32.gmra.mrb[0].mxu0 %v6194
    %v6399 = vpop.f32.mrb[0].mxu0
    %v6400 = vadd.f32 0.0, %v6399
    %v6401 = vpop.f32.mrb[0].mxu0
    %6402 = vmatprep.mubr.f32.mxu0 %v6197
    %6403 = vmatmul.mubr.f32.gmra.mrb[0].mxu0 %v6196
    %v6404 = vpop.f32.mrb[0].mxu0
    %v6405 = vadd.f32 0.0, %v6404
    %v6406 = vpop.f32.mrb[0].mxu0
    %6407 = vmatprep.mubr.f32.mxu0 %v6199
    %6408 = vmatmul.mubr.f32.gmra.mrb[0].mxu0 %v6198
    %v6409 = vpop.f32.mrb[0].mxu0
    %v6410 = vadd.f32 0.0, %v6409
    %v6411 = vpop.f32.mrb[0].mxu0
    %6412 = vmatprep.mubr.f32.mxu0 %v6201
    %6413 = vmatmul.mubr.f32.gmra.mrb[0].mxu0 %v6200
    %v6414 = vpop.f32.mrb[0].mxu0
    %v6415 = vadd.f32 0.0, %v6414
    %v6416 = vpop.f32.mrb[0].mxu0
    %6417 = vmatprep.mubr.f32.mxu0 %v6203
    %6418 = vmatmul.mubr.f32.gmra.mrb[0].mxu0 %v6202
    %v6419 = vpop.f32.mrb[0].mxu0
    %v6420 = vadd.f32 0.0, %v6419
    %v6421 = vpop.f32.mrb[0].mxu0
    %6422 = vmatprep.mubr.f32.mxu0 %v6205
    %6423 = vmatmul.mubr.f32.gmra.mrb[0].mxu0 %v6204
    %v6424 = vpop.f32.mrb[0].mxu0
    %v6425 = vadd.f32 0.0, %v6424
    %v6426 = vpop.f32.mrb[0].mxu0
    %6427 = vmatprep.mubr.f32.mxu0 %v6207
    %6428 = vmatmul.mubr.f32.gmra.mrb[0].mxu0 %v6206
    %v6429 = vpop.f32.mrb[0].mxu0
    %v6430 = vadd.f32 0.0, %v6429
    %v6431 = vpop.f32.mrb[0].mxu0
    %6432 = vdwg.mxu0
    %6437 = vrot.lane.b32.xlu0 %v6295, 32
    %v6438 = vpop.permute.xlu0 %6437
    %6439 = vrot.lane.b32.xlu0 %v6300, 32
    %v6440 = vpop.permute.xlu0 %6439
    %6441 = vrot.lane.b32.xlu0 %v6305, 32
    %v6442 = vpop.permute.xlu0 %6441
    %6443 = vrot.lane.b32.xlu0 %v6310, 32
    %v6444 = vpop.permute.xlu0 %6443
    %6453 = vrot.lane.b32.xlu0 %v6315, 64
    %v6454 = vpop.permute.xlu0 %6453
    %6455 = vrot.lane.b32.xlu0 %v6320, 64
    %v6456 = vpop.permute.xlu0 %6455
    %6457 = vrot.lane.b32.xlu0 %v6325, 64
    %v6458 = vpop.permute.xlu0 %6457
    %6459 = vrot.lane.b32.xlu0 %v6330, 64
    %v6460 = vpop.permute.xlu0 %6459
    %6469 = vrot.lane.b32.xlu0 %v6335, 96
    %v6470 = vpop.permute.xlu0 %6469
    %6471 = vrot.lane.b32.xlu0 %v6340, 96
    %v6472 = vpop.permute.xlu0 %6471
    %6473 = vrot.lane.b32.xlu0 %v6345, 96
    %v6474 = vpop.permute.xlu0 %6473
    %6475 = vrot.lane.b32.xlu0 %v6350, 96
    %v6476 = vpop.permute.xlu0 %6475
    %6485 = vrot.lane.b32.xlu0 %v6375, 32
    %v6486 = vpop.permute.xlu0 %6485
    %6487 = vrot.lane.b32.xlu0 %v6380, 32
    %v6488 = vpop.permute.xlu0 %6487
    %6489 = vrot.lane.b32.xlu0 %v6385, 32
    %v6490 = vpop.permute.xlu0 %6489
    %6491 = vrot.lane.b32.xlu0 %v6390, 32
    %v6492 = vpop.permute.xlu0 %6491
    %6501 = vrot.lane.b32.xlu0 %v6395, 64
    %v6502 = vpop.permute.xlu0 %6501
    %6503 = vrot.lane.b32.xlu0 %v6400, 64
    %v6504 = vpop.permute.xlu0 %6503
    %6505 = vrot.lane.b32.xlu0 %v6405, 64
    %v6506 = vpop.permute.xlu0 %6505
    %6507 = vrot.lane.b32.xlu0 %v6410, 64
    %v6508 = vpop.permute.xlu0 %6507
    %6517 = vrot.lane.b32.xlu0 %v6415, 96
    %v6518 = vpop.permute.xlu0 %6517
    %6519 = vrot.lane.b32.xlu0 %v6420, 96
    %v6520 = vpop.permute.xlu0 %6519
    %6521 = vrot.lane.b32.xlu0 %v6425, 96
    %v6522 = vpop.permute.xlu0 %6521
    %6523 = vrot.lane.b32.xlu0 %v6430, 96
    %v6524 = vpop.permute.xlu0 %6523
    %v6529 = vsel %vm3131, %v6275, %v6438
    %v6530 = vsel %vm3131, %v6280, %v6440
    %v6531 = vsel %vm3131, %v6285, %v6442
    %v6532 = vsel %vm3131, %v6290, %v6444
    %v6533 = vsel %vm657, %v6529, %v6454
    %v6534 = vsel %vm657, %v6530, %v6456
    %v6535 = vsel %vm657, %v6531, %v6458
    %v6536 = vsel %vm657, %v6532, %v6460
    %v6537 = vsel %vm4390, %v6533, %v6470
    %v6538 = vsel %vm4390, %v6534, %v6472
    %v6539 = vsel %vm4390, %v6535, %v6474
    %v6540 = vsel %vm4390, %v6536, %v6476
    %v6541 = vsel %vm3131, %v6355, %v6486
    %v6542 = vsel %vm3131, %v6360, %v6488
    %v6543 = vsel %vm3131, %v6365, %v6490
    %v6544 = vsel %vm3131, %v6370, %v6492
    %v6545 = vsel %vm657, %v6541, %v6502
    %v6546 = vsel %vm657, %v6542, %v6504
    %v6547 = vsel %vm657, %v6543, %v6506
    %v6548 = vsel %vm657, %v6544, %v6508
    %v6549 = vsel %vm4390, %v6545, %v6518
    %v6550 = vsel %vm4390, %v6546, %v6520
    %v6551 = vsel %vm4390, %v6547, %v6522
    %v6552 = vsel %vm4390, %v6548, %v6524
    %v6553 = vld [vmem:[%s73] sm:$0xff]
    %v6554 = vld [vmem:[%s73 + $0x8] sm:$0xff]
    %v6555 = vld [vmem:[%s73 + $0x10] sm:$0xff]
    %v6556 = vld [vmem:[%s73 + $0x18] sm:$0xff]
    %v6557 = vld [vmem:[%s73 + $0x20] sm:$0xff]
    %v6558 = vld [vmem:[%s73 + $0x28] sm:$0xff]
    %v6559 = vld [vmem:[%s73 + $0x30] sm:$0xff]
    %v6560 = vld [vmem:[%s73 + $0x38] sm:$0xff]
    %v6561 = vld [vmem:[%s73 + $0x40] sm:$0xff]
    %v6562 = vld [vmem:[%s73 + $0x48] sm:$0xff]
    %v6563 = vld [vmem:[%s73 + $0x50] sm:$0xff]
    %v6564 = vld [vmem:[%s73 + $0x58] sm:$0xff]
    %v6565 = vld [vmem:[%s73 + $0x60] sm:$0xff]
    %v6566 = vld [vmem:[%s73 + $0x68] sm:$0xff]
    %v6567 = vld [vmem:[%s73 + $0x70] sm:$0xff]
    %v6568 = vld [vmem:[%s73 + $0x78] sm:$0xff]
    %v6569 = vld [vmem:[%s73 + $0x80] sm:$0xff]
    %v6570 = vld [vmem:[%s73 + $0x88] sm:$0xff]
    %v6571 = vld [vmem:[%s73 + $0x90] sm:$0xff]
    %v6572 = vld [vmem:[%s73 + $0x98] sm:$0xff]
    %v6573 = vld [vmem:[%s73 + $0xa0] sm:$0xff]
    %v6574 = vld [vmem:[%s73 + $0xa8] sm:$0xff]
    %v6575 = vld [vmem:[%s73 + $0xb0] sm:$0xff]
    %v6576 = vld [vmem:[%s73 + $0xb8] sm:$0xff]
    %v6577 = vld [vmem:[%s73 + $0xc0] sm:$0xff]
    %v6578 = vld [vmem:[%s73 + $0xc8] sm:$0xff]
    %v6579 = vld [vmem:[%s73 + $0xd0] sm:$0xff]
    %v6580 = vld [vmem:[%s73 + $0xd8] sm:$0xff]
    %v6581 = vld [vmem:[%s73 + $0xe0] sm:$0xff]
    %v6582 = vld [vmem:[%s73 + $0xe8] sm:$0xff]
    %v6583 = vld [vmem:[%s73 + $0xf0] sm:$0xff]
    %v6584 = vld [vmem:[%s73 + $0xf8] sm:$0xff]
    %v6585 = vld [vmem:[%s73 + $0x100] sm:$0xff]
    %v6586 = vld [vmem:[%s73 + $0x108] sm:$0xff]
    %v6587 = vld [vmem:[%s73 + $0x110] sm:$0xff]
    %v6588 = vld [vmem:[%s73 + $0x118] sm:$0xff]
    %v6589 = vld [vmem:[%s73 + $0x120] sm:$0xff]
    %v6590 = vld [vmem:[%s73 + $0x128] sm:$0xff]
    %v6591 = vld [vmem:[%s73 + $0x130] sm:$0xff]
    %v6592 = vld [vmem:[%s73 + $0x138] sm:$0xff]
    %v6593 = vld [vmem:[%s73 + $0x140] sm:$0xff]
    %v6594 = vld [vmem:[%s73 + $0x148] sm:$0xff]
    %v6595 = vld [vmem:[%s73 + $0x150] sm:$0xff]
    %v6596 = vld [vmem:[%s73 + $0x158] sm:$0xff]
    %v6597 = vld [vmem:[%s73 + $0x160] sm:$0xff]
    %v6598 = vld [vmem:[%s73 + $0x168] sm:$0xff]
    %v6599 = vld [vmem:[%s73 + $0x170] sm:$0xff]
    %v6600 = vld [vmem:[%s73 + $0x178] sm:$0xff]
    %v6601 = vld [vmem:[%s73 + $0x180] sm:$0xff]
    %v6602 = vld [vmem:[%s73 + $0x188] sm:$0xff]
    %v6603 = vld [vmem:[%s73 + $0x190] sm:$0xff]
    %v6604 = vld [vmem:[%s73 + $0x198] sm:$0xff]
    %v6605 = vld [vmem:[%s73 + $0x1a0] sm:$0xff]
    %v6606 = vld [vmem:[%s73 + $0x1a8] sm:$0xff]
    %v6607 = vld [vmem:[%s73 + $0x1b0] sm:$0xff]
    %v6608 = vld [vmem:[%s73 + $0x1b8] sm:$0xff]
    %v6609 = vld [vmem:[%s73 + $0x1c0] sm:$0xff]
    %v6610 = vld [vmem:[%s73 + $0x1c8] sm:$0xff]
    %v6611 = vld [vmem:[%s73 + $0x1d0] sm:$0xff]
    %v6612 = vld [vmem:[%s73 + $0x1d8] sm:$0xff]
    %v6613 = vld [vmem:[%s73 + $0x1e0] sm:$0xff]
    %v6614 = vld [vmem:[%s73 + $0x1e8] sm:$0xff]
    %v6615 = vld [vmem:[%s73 + $0x1f0] sm:$0xff]
    %v6616 = vld [vmem:[%s73 + $0x1f8] sm:$0xff]
    %v6617 = vld [vmem:[%s75] sm:$0x3]
    %v6619 = vlaneseq
    %v6620 = vshrl.u32 %v6619, 7
    %v6621 = vsub.s32 0, %v6620
    %v6622 = vrot.slane %v6617, %v6621
    %v6623 = vlaneseq
    %v6624 = vshrl.u32 %v6623, 7
    %v6625 = vsub.s32 1, %v6624
    %v6626 = vrot.slane %v6617, %v6625
    %6629 = vmatprep.subr.mxu0 %v6554
    %6630 = vmatpush1.msra.mxu0 %v6553
    %6631 = vmatprep.subr.mxu0 %v6556
    %6632 = vmatpush1.msra.mxu0 %v6555
    %6633 = vmatprep.subr.mxu0 %v6558
    %6634 = vmatpush1.msra.mxu0 %v6557
    %6635 = vmatprep.subr.mxu0 %v6560
    %6636 = vmatpush1.msra.mxu0 %v6559
    %6637 = vmatprep.subr.mxu0 %v6562
    %6638 = vmatpush1.msra.mxu0 %v6561
    %6639 = vmatprep.subr.mxu0 %v6564
    %6640 = vmatpush1.msra.mxu0 %v6563
    %6641 = vmatprep.subr.mxu0 %v6566
    %6642 = vmatpush1.msra.mxu0 %v6565
    %6643 = vmatprep.subr.mxu0 %v6568
    %6644 = vmatpush1.msra.mxu0 %v6567
    %6645 = vmatprep.subr.mxu0 %v6570
    %6646 = vmatpush1.msra.mxu0 %v6569
    %6647 = vmatprep.subr.mxu0 %v6572
    %6648 = vmatpush1.msra.mxu0 %v6571
    %6649 = vmatprep.subr.mxu0 %v6574
    %6650 = vmatpush1.msra.mxu0 %v6573
    %6651 = vmatprep.subr.mxu0 %v6576
    %6652 = vmatpush1.msra.mxu0 %v6575
    %6653 = vmatprep.subr.mxu0 %v6578
    %6654 = vmatpush1.msra.mxu0 %v6577
    %6655 = vmatprep.subr.mxu0 %v6580
    %6656 = vmatpush1.msra.mxu0 %v6579
    %6657 = vmatprep.subr.mxu0 %v6582
    %6658 = vmatpush1.msra.mxu0 %v6581
    %6659 = vmatprep.subr.mxu0 %v6584
    %6660 = vmatpush1.msra.mxu0 %v6583
    %6661 = vmatprep.subr.mxu0 %v6586
    %6662 = vmatpush1.msra.mxu0 %v6585
    %6663 = vmatprep.subr.mxu0 %v6588
    %6664 = vmatpush1.msra.mxu0 %v6587
    %6665 = vmatprep.subr.mxu0 %v6590
    %6666 = vmatpush1.msra.mxu0 %v6589
    %6667 = vmatprep.subr.mxu0 %v6592
    %6668 = vmatpush1.msra.mxu0 %v6591
    %6669 = vmatprep.subr.mxu0 %v6594
    %6670 = vmatpush1.msra.mxu0 %v6593
    %6671 = vmatprep.subr.mxu0 %v6596
    %6672 = vmatpush1.msra.mxu0 %v6595
    %6673 = vmatprep.subr.mxu0 %v6598
    %6674 = vmatpush1.msra.mxu0 %v6597
    %6675 = vmatprep.subr.mxu0 %v6600
    %6676 = vmatpush1.msra.mxu0 %v6599
    %6677 = vmatprep.subr.mxu0 %v6602
    %6678 = vmatpush1.msra.mxu0 %v6601
    %6679 = vmatprep.subr.mxu0 %v6604
    %6680 = vmatpush1.msra.mxu0 %v6603
    %6681 = vmatprep.subr.mxu0 %v6606
    %6682 = vmatpush1.msra.mxu0 %v6605
    %6683 = vmatprep.subr.mxu0 %v6608
    %6684 = vmatpush1.msra.mxu0 %v6607
    %6685 = vmatprep.subr.mxu0 %v6610
    %6686 = vmatpush1.msra.mxu0 %v6609
    %6687 = vmatprep.subr.mxu0 %v6612
    %6688 = vmatpush1.msra.mxu0 %v6611
    %6689 = vmatprep.subr.mxu0 %v6614
    %6690 = vmatpush1.msra.mxu0 %v6613
    %6691 = vmatprep.subr.mxu0 %v6616
    %6692 = vmatpush1.msra.mxu0 %v6615
    %6693 = vmatprep.mubr.f32.mxu0 %v6549
    %6694 = vmatmul.mubr.f32.gmra.mrb[0].mxu0 %v6537
    %v6695 = vpop.f32.mrb[0].mxu0
    %v6696 = vadd.f32 %v6622, %v6695
    %v6697 = vpop.f32.mrb[0].mxu0
    %v6698 = vadd.f32 %v6626, %v6697
    %6699 = vmatprep.mubr.f32.mxu0 %v6550
    %6700 = vmatmul.mubr.f32.gmra.mrb[0].mxu0 %v6538
    %v6701 = vpop.f32.mrb[0].mxu0
    %v6702 = vadd.f32 %v6622, %v6701
    %v6703 = vpop.f32.mrb[0].mxu0
    %v6704 = vadd.f32 %v6626, %v6703
    %6705 = vmatprep.mubr.f32.mxu0 %v6551
    %6706 = vmatmul.mubr.f32.gmra.mrb[0].mxu0 %v6539
    %v6707 = vpop.f32.mrb[0].mxu0
    %v6708 = vadd.f32 %v6622, %v6707
    %v6709 = vpop.f32.mrb[0].mxu0
    %v6710 = vadd.f32 %v6626, %v6709
    %6711 = vmatprep.mubr.f32.mxu0 %v6552
    %6712 = vmatmul.mubr.f32.gmra.mrb[0].mxu0 %v6540
    %v6713 = vpop.f32.mrb[0].mxu0
    %v6714 = vadd.f32 %v6622, %v6713
    %v6715 = vpop.f32.mrb[0].mxu0
    %v6716 = vadd.f32 %v6626, %v6715
    %6717 = vdwg.mxu0
    %v6718 = vadd.f32 %v6696, %v4580
    %v6719 = vadd.f32 %v6698, %v4581
    %v6720 = vadd.f32 %v6702, %v4582
    %v6721 = vadd.f32 %v6704, %v4583
    %v6722 = vadd.f32 %v6708, %v4584
    %v6723 = vadd.f32 %v6710, %v4585
    %v6724 = vadd.f32 %v6714, %v4586
    %v6725 = vadd.f32 %v6716, %v4587
    %v6726 = vmax.f32 %v6718, 0.0
    %v6727 = vmax.f32 %v6719, 0.0
    %v6728 = vmax.f32 %v6720, 0.0
    %v6729 = vmax.f32 %v6721, 0.0
    %v6730 = vmax.f32 %v6722, 0.0
    %v6731 = vmax.f32 %v6723, 0.0
    %v6732 = vmax.f32 %v6724, 0.0
    %v6733 = vmax.f32 %v6725, 0.0
    %v6734 = vld [vmem:[%s7] sm:$0x3]
    %v6736 = vsel %vm3131, %v6734, 0
    %6738 = vmatprep.subr.mxu0 %v6727
    %6739 = vmatpush1.msra.mxu0 %v6726
    %6740 = vmatprep.subr.mxu0 %v6729
    %6741 = vmatpush1.msra.mxu0 %v6728
    %6742 = vmatprep.subr.mxu0 %v6731
    %6743 = vmatpush1.msra.mxu0 %v6730
    %6744 = vmatprep.subr.mxu0 %v6733
    %6745 = vmatpush1.msra.mxu0 %v6732
    %6746 = vmatprep.subr.mxu0 0.0
    %6747 = vmatpush1.msra.mxu0 0.0
    %6748 = vmatprep.subr.mxu0 0.0
    %6749 = vmatpush1.msra.mxu0 0.0
    %6750 = vmatprep.subr.mxu0 0.0
    %6751 = vmatpush1.msra.mxu0 0.0
    %6752 = vmatprep.subr.mxu0 0.0
    %6753 = vmatpush1.msra.mxu0 0.0
    %6754 = vmatprep.subr.mxu0 0.0
    %6755 = vmatpush1.msra.mxu0 0.0
    %6756 = vmatprep.subr.mxu0 0.0
    %6757 = vmatpush1.msra.mxu0 0.0
    %6758 = vmatprep.subr.mxu0 0.0
    %6759 = vmatpush1.msra.mxu0 0.0
    %6760 = vmatprep.subr.mxu0 0.0
    %6761 = vmatpush1.msra.mxu0 0.0
    %6762 = vmatprep.subr.mxu0 0.0
    %6763 = vmatpush1.msra.mxu0 0.0
    %6764 = vmatprep.subr.mxu0 0.0
    %6765 = vmatpush1.msra.mxu0 0.0
    %6766 = vmatprep.subr.mxu0 0.0
    %6767 = vmatpush1.msra.mxu0 0.0
    %6768 = vmatprep.subr.mxu0 0.0
    %6769 = vmatpush1.msra.mxu0 0.0
    %6770 = vmatprep.subr.mxu0 0.0
    %6771 = vmatpush1.msra.mxu0 0.0
    %6772 = vmatprep.subr.mxu0 0.0
    %6773 = vmatpush1.msra.mxu0 0.0
    %6774 = vmatprep.subr.mxu0 0.0
    %6775 = vmatpush1.msra.mxu0 0.0
    %6776 = vmatprep.subr.mxu0 0.0
    %6777 = vmatpush1.msra.mxu0 0.0
    %6778 = vmatprep.subr.mxu0 0.0
    %6779 = vmatpush1.msra.mxu0 0.0
    %6780 = vmatprep.subr.mxu0 0.0
    %6781 = vmatpush1.msra.mxu0 0.0
    %6782 = vmatprep.subr.mxu0 0.0
    %6783 = vmatpush1.msra.mxu0 0.0
    %6784 = vmatprep.subr.mxu0 0.0
    %6785 = vmatpush1.msra.mxu0 0.0
    %6786 = vmatprep.subr.mxu0 0.0
    %6787 = vmatpush1.msra.mxu0 0.0
    %6788 = vmatprep.subr.mxu0 0.0
    %6789 = vmatpush1.msra.mxu0 0.0
    %6790 = vmatprep.subr.mxu0 0.0
    %6791 = vmatpush1.msra.mxu0 0.0
    %6792 = vmatprep.subr.mxu0 0.0
    %6793 = vmatpush1.msra.mxu0 0.0
    %6794 = vmatprep.subr.mxu0 0.0
    %6795 = vmatpush1.msra.mxu0 0.0
    %6796 = vmatprep.subr.mxu0 0.0
    %6797 = vmatpush1.msra.mxu0 0.0
    %6798 = vmatprep.subr.mxu0 0.0
    %6799 = vmatpush1.msra.mxu0 0.0
    %6800 = vmatprep.subr.mxu0 0.0
    %6801 = vmatpush1.msra.mxu0 0.0
    %6802 = vmatprep.mubr.f32.mxu0 0.0
    %6803 = vmatmul.mubr.f32.gmra.mrb[0].mxu0 %v6736
    %v6804 = vpop.f32.mrb[0].mxu0
    %v6805 = vadd.f32 0.0, %v6804
    %v6806 = vpop.f32.mrb[0].mxu0
    %v6807 = vadd.f32 0.0, %v6806
    %6808 = vdwg.mxu0
    %v6809 = vld [vmem:[%s77] sm:$0xff]
    %v6810 = vld [vmem:[%s77 + $0x8] sm:$0xff]
    %v6811 = vld [vmem:[%s77 + $0x10] sm:$0xff]
    %v6812 = vld [vmem:[%s77 + $0x18] sm:$0xff]
    %v6813 = vld [vmem:[%s77 + $0x20] sm:$0xff]
    %v6814 = vld [vmem:[%s77 + $0x28] sm:$0xff]
    %v6815 = vld [vmem:[%s77 + $0x30] sm:$0xff]
    %v6816 = vld [vmem:[%s77 + $0x38] sm:$0xff]
    %v6817 = vld [vmem:[%s77 + $0x40] sm:$0xff]
    %v6818 = vld [vmem:[%s77 + $0x48] sm:$0xff]
    %v6819 = vld [vmem:[%s77 + $0x50] sm:$0xff]
    %v6820 = vld [vmem:[%s77 + $0x58] sm:$0xff]
    %v6821 = vld [vmem:[%s77 + $0x60] sm:$0xff]
    %v6822 = vld [vmem:[%s77 + $0x68] sm:$0xff]
    %v6823 = vld [vmem:[%s77 + $0x70] sm:$0xff]
    %v6824 = vld [vmem:[%s77 + $0x78] sm:$0xff]
    %v6825 = vld [vmem:[%s77 + $0x80] sm:$0xff]
    %v6826 = vld [vmem:[%s77 + $0x88] sm:$0xff]
    %v6827 = vld [vmem:[%s77 + $0x90] sm:$0xff]
    %v6828 = vld [vmem:[%s77 + $0x98] sm:$0xff]
    %v6829 = vld [vmem:[%s77 + $0xa0] sm:$0xff]
    %v6830 = vld [vmem:[%s77 + $0xa8] sm:$0xff]
    %v6831 = vld [vmem:[%s77 + $0xb0] sm:$0xff]
    %v6832 = vld [vmem:[%s77 + $0xb8] sm:$0xff]
    %v6833 = vld [vmem:[%s77 + $0xc0] sm:$0xff]
    %v6834 = vld [vmem:[%s77 + $0xc8] sm:$0xff]
    %v6835 = vld [vmem:[%s77 + $0xd0] sm:$0xff]
    %v6836 = vld [vmem:[%s77 + $0xd8] sm:$0xff]
    %v6837 = vld [vmem:[%s77 + $0xe0] sm:$0xff]
    %v6838 = vld [vmem:[%s77 + $0xe8] sm:$0xff]
    %v6839 = vld [vmem:[%s77 + $0xf0] sm:$0xff]
    %v6840 = vld [vmem:[%s77 + $0xf8] sm:$0xff]
    %v6841 = vld [vmem:[%s79] sm:$0x1]
    %v6843 = vlaneseq
    %v6844 = vshrl.u32 %v6843, 7
    %v6845 = vsub.s32 0, %v6844
    %v6846 = vrot.slane %v6841, %v6845
    %6848 = vmatprep.subr.mxu0 0.0
    %6849 = vmatpush1.msra.mxu0 %v6809
    %6850 = vmatprep.subr.mxu0 0.0
    %6851 = vmatpush1.msra.mxu0 %v6810
    %6852 = vmatprep.subr.mxu0 0.0
    %6853 = vmatpush1.msra.mxu0 %v6811
    %6854 = vmatprep.subr.mxu0 0.0
    %6855 = vmatpush1.msra.mxu0 %v6812
    %6856 = vmatprep.subr.mxu0 0.0
    %6857 = vmatpush1.msra.mxu0 %v6813
    %6858 = vmatprep.subr.mxu0 0.0
    %6859 = vmatpush1.msra.mxu0 %v6814
    %6860 = vmatprep.subr.mxu0 0.0
    %6861 = vmatpush1.msra.mxu0 %v6815
    %6862 = vmatprep.subr.mxu0 0.0
    %6863 = vmatpush1.msra.mxu0 %v6816
    %6864 = vmatprep.subr.mxu0 0.0
    %6865 = vmatpush1.msra.mxu0 %v6817
    %6866 = vmatprep.subr.mxu0 0.0
    %6867 = vmatpush1.msra.mxu0 %v6818
    %6868 = vmatprep.subr.mxu0 0.0
    %6869 = vmatpush1.msra.mxu0 %v6819
    %6870 = vmatprep.subr.mxu0 0.0
    %6871 = vmatpush1.msra.mxu0 %v6820
    %6872 = vmatprep.subr.mxu0 0.0
    %6873 = vmatpush1.msra.mxu0 %v6821
    %6874 = vmatprep.subr.mxu0 0.0
    %6875 = vmatpush1.msra.mxu0 %v6822
    %6876 = vmatprep.subr.mxu0 0.0
    %6877 = vmatpush1.msra.mxu0 %v6823
    %6878 = vmatprep.subr.mxu0 0.0
    %6879 = vmatpush1.msra.mxu0 %v6824
    %6880 = vmatprep.subr.mxu0 0.0
    %6881 = vmatpush1.msra.mxu0 %v6825
    %6882 = vmatprep.subr.mxu0 0.0
    %6883 = vmatpush1.msra.mxu0 %v6826
    %6884 = vmatprep.subr.mxu0 0.0
    %6885 = vmatpush1.msra.mxu0 %v6827
    %6886 = vmatprep.subr.mxu0 0.0
    %6887 = vmatpush1.msra.mxu0 %v6828
    %6888 = vmatprep.subr.mxu0 0.0
    %6889 = vmatpush1.msra.mxu0 %v6829
    %6890 = vmatprep.subr.mxu0 0.0
    %6891 = vmatpush1.msra.mxu0 %v6830
    %6892 = vmatprep.subr.mxu0 0.0
    %6893 = vmatpush1.msra.mxu0 %v6831
    %6894 = vmatprep.subr.mxu0 0.0
    %6895 = vmatpush1.msra.mxu0 %v6832
    %6896 = vmatprep.subr.mxu0 0.0
    %6897 = vmatpush1.msra.mxu0 %v6833
    %6898 = vmatprep.subr.mxu0 0.0
    %6899 = vmatpush1.msra.mxu0 %v6834
    %6900 = vmatprep.subr.mxu0 0.0
    %6901 = vmatpush1.msra.mxu0 %v6835
    %6902 = vmatprep.subr.mxu0 0.0
    %6903 = vmatpush1.msra.mxu0 %v6836
    %6904 = vmatprep.subr.mxu0 0.0
    %6905 = vmatpush1.msra.mxu0 %v6837
    %6906 = vmatprep.subr.mxu0 0.0
    %6907 = vmatpush1.msra.mxu0 %v6838
    %6908 = vmatprep.subr.mxu0 0.0
    %6909 = vmatpush1.msra.mxu0 %v6839
    %6910 = vmatprep.subr.mxu0 0.0
    %6911 = vmatpush1.msra.mxu0 %v6840
    %6912 = vmatprep.mubr.f32.mxu0 %v6807
    %6913 = vmatmul.mubr.f32.gmra.mrb[0].mxu0 %v6805
    %v6914 = vpop.f32.mrb[0].mxu0
    %v6915 = vadd.f32 %v6846, %v6914
    %v6916 = vpop.f32.mrb[0].mxu0
    %6917 = vdwg.mxu0
    %6918 = vst [vmem:[#allocation2] sm:$0x3] %v6915
    // Predicated region
    $region162: #{cnn_attention_forward.1} parent=1 // pred_check
      _
    $region163: #{cnn_attention_forward.1} parent=1 // pred_check_branch
      %6920 = sbr.rel (0) target = $region165
    $region164: #{cnn_attention_forward.1} parent=1 // pred_region
      %s6922 = ssub.s32 32, 32
      %6923 = vsyncadd [#allocation3], %s6922
      %s6925 = sshll.u32 [#allocation2], 4
      %s6926 = int_to_ptr.vmem [resolvable:$true] %s6925
      %6928 = dma.vmem_to_hbm [thread:$0]  %s6926, 32, %s81, [#allocation3]
    $region165: #{cnn_attention_forward.1} parent=1 // pred_fallthru
      _
    // Predicated region
    $region166: #{cnn_attention_forward.1} parent=1 // pred_check
      _
    $region167: #{cnn_attention_forward.1} parent=1 // pred_check_branch
      %6930 = sbr.rel (0) target = $region169
    $region168: #{cnn_attention_forward.1} parent=1 // pred_region
      %6931 = dma.done [#allocation3], 32
    $region169: #{cnn_attention_forward.1} parent=1 // pred_fallthru
      _
    %6932 = vsyncpa [#allocation3], 1

</llo_original>
